<compile_context>
chip_gen: v6e
topology: v6e:2x2x1
jax: 0.10.0
libtpu: 0.0.40
codegen_flags: <defaults>
</compile_context>

<pallas_src>
import math
import numpy as np
import jax
import jax.numpy as jnp
from jax import lax
from jax.experimental import pallas as pl
from jax.experimental.pallas import tpu as pltpu

# ---- hyperparameters (consistent with the module's __init__ defaults) ----
HIDDEN = 32
D_K = 64
ESSENTIAL_TAG = 3
WHOLE_TAG = 4
HEADER_NUM = WHOLE_TAG + 1          # whole_tag_size + 1
GRAPH_STACK = 1
RGAT_LAYERS = 2
BATCH = 2
SEQ = 8
LN_EPS = 1e-5
P_LEN = SEQ * (SEQ + 1) // 2
SCALE = 1.0 / math.sqrt(D_K)

INNER_GRAPH = (HIDDEN + D_K * HEADER_NUM) // 2        # 176
INNER_PRED = (2 * HIDDEN + D_K * ESSENTIAL_TAG) // 2  # 128


# ------------------------------------------------------------ in-kernel helpers

def _rope(v, cos, sin, rot):
    """RoFormer rotary embedding on a (S, D_K) tile.

    rotate_half(v) is computed as v @ R with a constant pair-swap/sign matrix
    (pure MXU work; avoids cross-lane swizzles)."""
    return v * cos + jnp.dot(v, rot, preferred_element_type=jnp.float32) * sin


def _pair_scores(qk, n_heads, k_offset, cos, sin, rot):
    """qk: (S, ...) with q heads at cols [h*D_K, (h+1)*D_K) and k heads at
    k_offset + same.  Returns list of n_heads (S, S) score matrices (already
    scaled by 1/sqrt(d_k))."""
    scores = []
    for h in range(n_heads):
        q_h = _rope(qk[:, h * D_K:(h + 1) * D_K], cos, sin, rot)
        k_h = _rope(qk[:, k_offset + h * D_K:k_offset + (h + 1) * D_K], cos, sin, rot)
        s = lax.dot_general(q_h, k_h, (((1,), (1,)), ((), ())),
                            preferred_element_type=jnp.float32) * SCALE
        scores.append(s)
    return scores


def _write_strips(out_ref, mats, do_relu):
    """torch.cat([m[:, :, i, i:].transpose(-1, -2) for i in range(S)], dim=1),
    written directly from VMEM into the (1, P_LEN, n_heads) output block."""
    for h, m in enumerate(mats):
        mt = jnp.transpose(m)                       # mt[j, i] = m[i, j]
        off = 0
        for i in range(SEQ):
            col = mt[i:, i:i + 1]                   # (S - i, 1) == m[i, i:]^T
            if do_relu:
                col = jnp.maximum(col, 0.0)
            out_ref[0, off:off + (SEQ - i), h:h + 1] = col
            off += SEQ - i


# ------------------------------------------------------------------ kernels ----

def _graph_layer_kernel(x_ref, mask_ref, cos_ref, sin_ref, rot_ref,
                        wt_ref, bt_ref, w1_ref, b1_ref, w2_ref, b2_ref,
                        rgatw_ref,
                        gout_ref, sc4g_ref, th4g_ref):
    x = x_ref[0]                                    # (S, H)
    mask = mask_ref[0]                              # (S, 1)
    cos, sin, rot = cos_ref[...], sin_ref[...], rot_ref[...]

    # --- threshold head (W_Q4GraphThreshold | W_K4GraphThreshold concatenated) ---
    t = (jnp.dot(x, wt_ref[...], preferred_element_type=jnp.float32)
         + bt_ref[...]) * mask                      # (S, 2*D_K)
    thr_scores = _pair_scores(t, 1, D_K, cos, sin, rot)
    _write_strips(th4g_ref, thr_scores, do_relu=True)

    # --- graph scoring heads (W_Q4Graph | W_K4Graph MLPs, block-diag 2nd layer) ---
    h1 = jnp.maximum(
        jnp.dot(x, w1_ref[...], preferred_element_type=jnp.float32) + b1_ref[...], 0.0)
    qk = (jnp.dot(h1, w2_ref[...], preferred_element_type=jnp.float32)
          + b2_ref[...]) * mask                     # (S, 2*HEADER_NUM*D_K)
    g_scores = _pair_scores(qk, HEADER_NUM, HEADER_NUM * D_K, cos, sin, rot)
    _write_strips(sc4g_ref, g_scores[:WHOLE_TAG], do_relu=False)

    # --- adjacency: symmetrize upper triangle, softmax, re-mask zeros ---
    row_i = lax.broadcasted_iota(jnp.int32, (SEQ, SEQ), 0)
    col_i = lax.broadcasted_iota(jnp.int32, (SEQ, SEQ), 1)
    adjs = []
    for s in g_scores:
        upper = jnp.where(col_i > row_i, s, 0.0)    # triu(diagonal=1)
        diag = jnp.where(col_i == row_i, s, 0.0)    # triu(0) - triu(1)
        att = upper + jnp.transpose(upper) + diag
        keep = (att != 0.0).astype(jnp.float32)     # att_mask_choose
        m = jnp.max(att, axis=-1, keepdims=True)
        e = jnp.exp(att - m)
        p = e / jnp.sum(e, axis=-1, keepdims=True)
        adjs.append(p * keep)

    # --- 2-layer RGAT with per-relation weights packed into one (H, R*H) matmul ---
    feat = x
    for layer in range(RGAT_LAYERS):
        h_all = jnp.dot(feat, rgatw_ref[layer], preferred_element_type=jnp.float32)
        acc = jnp.zeros((SEQ, HIDDEN), jnp.float32)
        for r in range(HEADER_NUM):
            h_r = h_all[:, r * HIDDEN:(r + 1) * HIDDEN]
            acc = acc + jnp.maximum(
                jnp.dot(adjs[r], h_r, preferred_element_type=jnp.float32), 0.0)
        z = jnp.maximum(acc, 0.0) / float(HEADER_NUM)
        mean = jnp.mean(z, axis=-1, keepdims=True)
        var = jnp.mean(jnp.square(z - mean), axis=-1, keepdims=True)
        feat = (z - mean) * lax.rsqrt(var + LN_EPS)  # LayerNorm, no affine
        # inter-layer RGAT dropout is identity at inference time
    gout_ref[0] = feat


def _pred_kernel(res_ref, gin_ref, mask_ref, cos_ref, sin_ref, rot_ref,
                 wt_a_ref, wt_b_ref, bt_ref, w1_a_ref, w1_b_ref, b1_ref,
                 w2_ref, b2_ref,
                 sc_ref, th_ref):
    # inputs = cat([residual, graph_out], -1); implemented as split-weight matmuls
    # (x @ W == res @ W[:H] + graph_out @ W[H:]) to keep everything matmul-only.
    res = res_ref[0]                                # (S, H)
    gin = gin_ref[0]                                # (S, H)
    mask = mask_ref[0]
    cos, sin, rot = cos_ref[...], sin_ref[...], rot_ref[...]

    # --- prediction threshold head ---
    t = (jnp.dot(res, wt_a_ref[...], preferred_element_type=jnp.float32)
         + jnp.dot(gin, wt_b_ref[...], preferred_element_type=jnp.float32)
         + bt_ref[...]) * mask
    thr_scores = _pair_scores(t, 1, D_K, cos, sin, rot)
    _write_strips(th_ref, thr_scores, do_relu=True)

    # --- prediction scoring heads (W_Q | W_K MLPs) ---
    h1 = jnp.maximum(
        jnp.dot(res, w1_a_ref[...], preferred_element_type=jnp.float32)
        + jnp.dot(gin, w1_b_ref[...], preferred_element_type=jnp.float32)
        + b1_ref[...], 0.0)
    qk = (jnp.dot(h1, w2_ref[...], preferred_element_type=jnp.float32)
          + b2_ref[...]) * mask
    p_scores = _pair_scores(qk, ESSENTIAL_TAG, ESSENTIAL_TAG * D_K, cos, sin, rot)
    _write_strips(sc_ref, p_scores, do_relu=False)


# -------------------------------------------------------------- pallas_call glue

def _full_spec(arr):
    nd = arr.ndim
    return pl.BlockSpec(arr.shape, lambda b, _nd=nd: (0,) * _nd)


def _batch_spec(*tail):
    n = len(tail)
    return pl.BlockSpec((1,) + tuple(tail), lambda b, _n=n: (b,) + (0,) * _n)


def graph_layer_call(x, mask, tables, lp):
    B = x.shape[0]
    inputs = (x, mask, tables['cos'], tables['sin'], tables['rot'],
              lp['wt'], lp['bt'], lp['w1'], lp['b1'], lp['w2'], lp['b2'], lp['rgat'])
    in_specs = [_batch_spec(SEQ, HIDDEN), _batch_spec(SEQ, 1)] + \
               [_full_spec(a) for a in inputs[2:]]
    out_shape = (jax.ShapeDtypeStruct((B, SEQ, HIDDEN), jnp.float32),
                 jax.ShapeDtypeStruct((B, P_LEN, WHOLE_TAG), jnp.float32),
                 jax.ShapeDtypeStruct((B, P_LEN, 1), jnp.float32))
    out_specs = (_batch_spec(SEQ, HIDDEN),
                 _batch_spec(P_LEN, WHOLE_TAG),
                 _batch_spec(P_LEN, 1))
    return pl.pallas_call(
        _graph_layer_kernel,
        out_shape=out_shape,
        grid=(B,),
        in_specs=in_specs,
        out_specs=out_specs,
        compiler_params=pltpu.CompilerParams(dimension_semantics=("parallel",)),
    )(*inputs)


def pred_call(residual, graph_out, mask, tables, pp):
    B = residual.shape[0]
    inputs = (residual, graph_out, mask,
              tables['cos'], tables['sin'], tables['rot'],
              pp['wt_a'], pp['wt_b'], pp['bt'],
              pp['w1_a'], pp['w1_b'], pp['b1'], pp['w2'], pp['b2'])
    in_specs = [_batch_spec(SEQ, HIDDEN), _batch_spec(SEQ, HIDDEN),
                _batch_spec(SEQ, 1)] + [_full_spec(a) for a in inputs[3:]]
    out_shape = (jax.ShapeDtypeStruct((B, P_LEN, ESSENTIAL_TAG), jnp.float32),
                 jax.ShapeDtypeStruct((B, P_LEN, 1), jnp.float32))
    out_specs = (_batch_spec(P_LEN, ESSENTIAL_TAG), _batch_spec(P_LEN, 1))
    return pl.pallas_call(
        _pred_kernel,
        out_shape=out_shape,
        grid=(B,),
        in_specs=in_specs,
        out_specs=out_specs,
        compiler_params=pltpu.CompilerParams(dimension_semantics=("parallel",)),
    )(*inputs)


def token_pair_modeling_forward(packed, seq_hiddens, attention_mask):
    tables = packed['tables']
    graph_inputs = seq_hiddens
    total_scoring4graph, total_threshold4graph = [], []
    for lp in packed['graph']:
        graph_inputs, sc4g, th4g = graph_layer_call(
            graph_inputs, attention_mask, tables, lp)
        total_scoring4graph.append(sc4g)
        total_threshold4graph.append(th4g)
    # TokenPairModeling dropout on cat([residual, graph_inputs]) is identity at inference
    sc4pred, th4pred = pred_call(seq_hiddens, graph_inputs, attention_mask,
                                 tables, packed['pred'])
    return sc4pred, th4pred, total_scoring4graph, total_threshold4graph


# ---------------------------------------------------------- parameter plumbing

def sinusoidal_pos_embedding(S, dim):
    """RoFormerSinusoidalPositionalEmbedding weight rows 0..S-1."""
    pos = np.arange(S, dtype=np.float64)[:, None]
    j = np.arange(dim)
    position_enc = pos / np.power(10000.0, 2 * (j // 2) / dim)
    sentinel = dim // 2
    out = np.zeros((S, dim), dtype=np.float64)
    out[:, :sentinel] = np.sin(position_enc[:, 0::2])
    out[:, sentinel:] = np.cos(position_enc[:, 1::2])
    return jnp.asarray(out, dtype=jnp.float32)


def rotate_half_matrix(width):
    """R with (v @ R) == [-v1, v0, -v3, v2, ...]."""
    r = np.zeros((width, width), np.float32)
    even = np.arange(0, width, 2)
    r[even + 1, even] = -1.0
    r[even, even + 1] = 1.0
    return jnp.asarray(r)


def block_diag2(a, b):
    za = jnp.zeros((a.shape[0], b.shape[1]), a.dtype)
    zb = jnp.zeros((b.shape[0], a.shape[1]), a.dtype)
    return jnp.concatenate([jnp.concatenate([a, za], axis=1),
                            jnp.concatenate([zb, b], axis=1)], axis=0)


class KeyGen:
    def __init__(self, key):
        self.key = key
        self.i = 0

    def __call__(self):
        self.i += 1
        return jax.random.fold_in(self.key, self.i)


def init_params(seed=0):
    kg = KeyGen(jax.random.PRNGKey(seed))

    def lin(in_f, out_f, bias=True):
        lim = math.sqrt(6.0 / (in_f + out_f))
        w = jax.random.uniform(kg(), (in_f, out_f), jnp.float32, -lim, lim)
        if not bias:
            return w
        b = jax.random.uniform(kg(), (out_f,), jnp.float32, -lim, lim)
        return w, b

    def mlp(in_f, inner, out_f):
        w1, b1 = lin(in_f, inner)
        w2, b2 = lin(inner, out_f)
        return dict(w1=w1, b1=b1, w2=w2, b2=b2)

    H2 = 2 * HIDDEN
    p = {
        'W_Q': mlp(H2, INNER_PRED, D_K * ESSENTIAL_TAG),
        'W_K': mlp(H2, INNER_PRED, D_K * ESSENTIAL_TAG),
        'W_Q4Threshold': dict(zip(('w', 'b'), lin(H2, D_K))),
        'W_K4Threshold': dict(zip(('w', 'b'), lin(H2, D_K))),
        'graph': [],
    }
    for _ in range(GRAPH_STACK):
        gl = {
            'W_Q4Graph': mlp(HIDDEN, INNER_GRAPH, D_K * HEADER_NUM),
            'W_K4Graph': mlp(HIDDEN, INNER_GRAPH, D_K * HEADER_NUM),
            'W_Q4GraphThreshold': dict(zip(('w', 'b'), lin(HIDDEN, D_K))),
            'W_K4GraphThreshold': dict(zip(('w', 'b'), lin(HIDDEN, D_K))),
            'rgat_w': jnp.stack([
                jnp.stack([lin(HIDDEN, HIDDEN, bias=False) for _ in range(HEADER_NUM)])
                for _ in range(RGAT_LAYERS)]),
        }
        p['graph'].append(gl)
    return p


def pack_params(p):
    """Pre-concatenate Q|K projections, block-diagonalise second MLP layers and
    pack RGAT relation weights so every kernel stage is one wide matmul."""
    weight = sinusoidal_pos_embedding(SEQ, D_K)
    sin_h, cos_h = weight[:, :D_K // 2], weight[:, D_K // 2:]
    tables = dict(
        cos=jnp.repeat(cos_h, 2, axis=-1),          # [c0,c0,c1,c1,...]
        sin=jnp.repeat(sin_h, 2, axis=-1),
        rot=rotate_half_matrix(D_K),
    )

    def cat1(a, b):
        return jnp.concatenate([a, b], axis=1)

    def catb(a, b):
        return jnp.concatenate([a, b], axis=0).reshape(1, -1)

    graph_layers = []
    for gl in p['graph']:
        graph_layers.append(dict(
            wt=cat1(gl['W_Q4GraphThreshold']['w'], gl['W_K4GraphThreshold']['w']),
            bt=catb(gl['W_Q4GraphThreshold']['b'], gl['W_K4GraphThreshold']['b']),
            w1=cat1(gl['W_Q4Graph']['w1'], gl['W_K4Graph']['w1']),
            b1=catb(gl['W_Q4Graph']['b1'], gl['W_K4Graph']['b1']),
            w2=block_diag2(gl['W_Q4Graph']['w2'], gl['W_K4Graph']['w2']),
            b2=catb(gl['W_Q4Graph']['b2'], gl['W_K4Graph']['b2']),
            rgat=jnp.transpose(gl['rgat_w'], (0, 2, 1, 3)).reshape(
                RGAT_LAYERS, HIDDEN, HEADER_NUM * HIDDEN),
        ))

    wt_pred = cat1(p['W_Q4Threshold']['w'], p['W_K4Threshold']['w'])   # (2H, 128)
    w1_pred = cat1(p['W_Q']['w1'], p['W_K']['w1'])                     # (2H, 256)
    pred = dict(
        wt_a=wt_pred[:HIDDEN], wt_b=wt_pred[HIDDEN:],
        bt=catb(p['W_Q4Threshold']['b'], p['W_K4Threshold']['b']),
        w1_a=w1_pred[:HIDDEN], w1_b=w1_pred[HIDDEN:],
        b1=catb(p['W_Q']['b1'], p['W_K']['b1']),
        w2=block_diag2(p['W_Q']['w2'], p['W_K']['w2']),
        b2=catb(p['W_Q']['b2'], p['W_K']['b2']),
    )
    return dict(tables=tables, graph=graph_layers, pred=pred)


# ------------------------------------------------------------------------ main

if __name__ == "__main__":
    key = jax.random.PRNGKey(0)
    k1, _ = jax.random.split(key)
    seq_hiddens = jax.random.normal(k1, (BATCH, SEQ, HIDDEN), jnp.float32)
    attention_mask = jnp.ones((BATCH, SEQ, 1), jnp.float32)

    packed = pack_params(init_params(seed=0))
    fwd = jax.jit(token_pair_modeling_forward)

    outs = fwd(packed, seq_hiddens, attention_mask)
    outs = jax.block_until_ready(outs)

    a, t, sg, tg = outs
    assert a.shape == (BATCH, P_LEN, ESSENTIAL_TAG)
    assert t.shape == (BATCH, P_LEN, 1)
    assert len(sg) == GRAPH_STACK and sg[0].shape == (BATCH, P_LEN, WHOLE_TAG)
    assert len(tg) == GRAPH_STACK and tg[0].shape == (BATCH, P_LEN, 1)
    assert all(bool(jnp.all(jnp.isfinite(x))) for x in (a, t, sg[0], tg[0]))
    print("KERNEL_OK")
</pallas_src>

<mosaic_0001>
module attributes {stable_mosaic.version = 11 : i64} {
  func.func @_graph_layer_kernel(%arg0: i32, %arg1: memref<1x8x32xf32, #tpu.memory_space<vmem>>, %arg2: memref<1x8x1xf32, #tpu.memory_space<vmem>>, %arg3: memref<8x64xf32, #tpu.memory_space<vmem>>, %arg4: memref<8x64xf32, #tpu.memory_space<vmem>>, %arg5: memref<64x64xf32, #tpu.memory_space<vmem>>, %arg6: memref<32x128xf32, #tpu.memory_space<vmem>>, %arg7: memref<1x128xf32, #tpu.memory_space<vmem>>, %arg8: memref<32x352xf32, #tpu.memory_space<vmem>>, %arg9: memref<1x352xf32, #tpu.memory_space<vmem>>, %arg10: memref<352x640xf32, #tpu.memory_space<vmem>>, %arg11: memref<1x640xf32, #tpu.memory_space<vmem>>, %arg12: memref<2x32x160xf32, #tpu.memory_space<vmem>>, %arg13: memref<1x8x32xf32, #tpu.memory_space<vmem>>, %arg14: memref<1x36x4xf32, #tpu.memory_space<vmem>>, %arg15: memref<1x36x1xf32, #tpu.memory_space<vmem>>) attributes {dimension_semantics = [#tpu.dimension_semantics<parallel>], iteration_bounds = array<i64: 2>, scalar_prefetch = 0 : i64, scratch_operands = 0 : i64, tpu.core_type = #tpu.core_type<tc>, window_params = [{transform_indices = @transform_0, window_bounds = array<i64: 1, 8, 32>}, {transform_indices = @transform_1, window_bounds = array<i64: 1, 8, 1>}, {pipeline_mode = #tpu.pipeline_mode<synchronous>, transform_indices = @transform_2, window_bounds = array<i64: 8, 64>}, {pipeline_mode = #tpu.pipeline_mode<synchronous>, transform_indices = @transform_3, window_bounds = array<i64: 8, 64>}, {pipeline_mode = #tpu.pipeline_mode<synchronous>, transform_indices = @transform_4, window_bounds = array<i64: 64, 64>}, {pipeline_mode = #tpu.pipeline_mode<synchronous>, transform_indices = @transform_5, window_bounds = array<i64: 32, 128>}, {pipeline_mode = #tpu.pipeline_mode<synchronous>, transform_indices = @transform_6, window_bounds = array<i64: 1, 128>}, {pipeline_mode = #tpu.pipeline_mode<synchronous>, transform_indices = @transform_7, window_bounds = array<i64: 32, 352>}, {pipeline_mode = #tpu.pipeline_mode<synchronous>, transform_indices = @transform_8, window_bounds = array<i64: 1, 352>}, {pipeline_mode = #tpu.pipeline_mode<synchronous>, transform_indices = @transform_9, window_bounds = array<i64: 352, 640>}, {pipeline_mode = #tpu.pipeline_mode<synchronous>, transform_indices = @transform_10, window_bounds = array<i64: 1, 640>}, {pipeline_mode = #tpu.pipeline_mode<synchronous>, transform_indices = @transform_11, window_bounds = array<i64: 2, 32, 160>}, {transform_indices = @transform_12, window_bounds = array<i64: 1, 8, 32>}, {transform_indices = @transform_13, window_bounds = array<i64: 1, 36, 4>}, {transform_indices = @transform_14, window_bounds = array<i64: 1, 36, 1>}]} {
    %c0 = arith.constant 0 : index
    %c0_0 = arith.constant 0 : index
    %c0_1 = arith.constant 0 : index
    %0 = vector.load %arg1[%c0, %c0_0, %c0_1] : memref<1x8x32xf32, #tpu.memory_space<vmem>>, vector<1x8x32xf32>
    %1 = vector.shape_cast %0 : vector<1x8x32xf32> to vector<8x32xf32>
    %c0_2 = arith.constant 0 : index
    %c0_3 = arith.constant 0 : index
    %c0_4 = arith.constant 0 : index
    %2 = vector.load %arg2[%c0_2, %c0_3, %c0_4] : memref<1x8x1xf32, #tpu.memory_space<vmem>>, vector<1x8x1xf32>
    %3 = vector.shape_cast %2 : vector<1x8x1xf32> to vector<8x1xf32>
    %c0_5 = arith.constant 0 : index
    %c0_6 = arith.constant 0 : index
    %4 = vector.load %arg3[%c0_5, %c0_6] : memref<8x64xf32, #tpu.memory_space<vmem>>, vector<8x64xf32>
    %c0_7 = arith.constant 0 : index
    %c0_8 = arith.constant 0 : index
    %5 = vector.load %arg4[%c0_7, %c0_8] : memref<8x64xf32, #tpu.memory_space<vmem>>, vector<8x64xf32>
    %c0_9 = arith.constant 0 : index
    %c0_10 = arith.constant 0 : index
    %6 = vector.load %arg5[%c0_9, %c0_10] : memref<64x64xf32, #tpu.memory_space<vmem>>, vector<64x64xf32>
    %c0_11 = arith.constant 0 : index
    %c0_12 = arith.constant 0 : index
    %7 = vector.load %arg6[%c0_11, %c0_12] : memref<32x128xf32, #tpu.memory_space<vmem>>, vector<32x128xf32>
    %cst = arith.constant dense<0.000000e+00> : vector<8x128xf32>
    %8 = tpu.matmul %1, %7, %cst {dimension_numbers = #tpu.dot_dimension_numbers<[1], [0], [0], [1], [0, 0, 1, 1], [], []>} : vector<8x32xf32>, vector<32x128xf32>, vector<8x128xf32> -> vector<8x128xf32>
    %c0_13 = arith.constant 0 : index
    %c0_14 = arith.constant 0 : index
    %9 = vector.load %arg7[%c0_13, %c0_14] : memref<1x128xf32, #tpu.memory_space<vmem>>, vector<1x128xf32>
    %10 = vector.broadcast %9 : vector<1x128xf32> to vector<8x128xf32>
    %11 = arith.addf %8, %10 : vector<8x128xf32>
    %12 = vector.broadcast %3 : vector<8x1xf32> to vector<8x128xf32>
    %13 = arith.mulf %11, %12 : vector<8x128xf32>
    %14 = vector.extract_strided_slice %13 {offsets = [0, 0], sizes = [8, 64], strides = [1, 1]} : vector<8x128xf32> to vector<8x64xf32>
    %15 = arith.mulf %14, %4 : vector<8x64xf32>
    %cst_15 = arith.constant dense<0.000000e+00> : vector<8x64xf32>
    %16 = tpu.matmul %14, %6, %cst_15 {dimension_numbers = #tpu.dot_dimension_numbers<[1], [0], [0], [1], [0, 0, 1, 1], [], []>} : vector<8x64xf32>, vector<64x64xf32>, vector<8x64xf32> -> vector<8x64xf32>
    %17 = arith.mulf %16, %5 : vector<8x64xf32>
    %18 = arith.addf %15, %17 : vector<8x64xf32>
    %19 = vector.extract_strided_slice %13 {offsets = [0, 64], sizes = [8, 64], strides = [1, 1]} : vector<8x128xf32> to vector<8x64xf32>
    %20 = arith.mulf %19, %4 : vector<8x64xf32>
    %cst_16 = arith.constant dense<0.000000e+00> : vector<8x64xf32>
    %21 = tpu.matmul %19, %6, %cst_16 {dimension_numbers = #tpu.dot_dimension_numbers<[1], [0], [0], [1], [0, 0, 1, 1], [], []>} : vector<8x64xf32>, vector<64x64xf32>, vector<8x64xf32> -> vector<8x64xf32>
    %22 = arith.mulf %21, %5 : vector<8x64xf32>
    %23 = arith.addf %20, %22 : vector<8x64xf32>
    %cst_17 = arith.constant dense<0.000000e+00> : vector<8x8xf32>
    %24 = tpu.matmul %18, %23, %cst_17 {dimension_numbers = #tpu.dot_dimension_numbers<[1], [1], [0], [0], [0, 0, 1, 0], [], []>} : vector<8x64xf32>, vector<8x64xf32>, vector<8x8xf32> -> vector<8x8xf32>
    %cst_18 = arith.constant 1.250000e-01 : f32
    %25 = vector.broadcast %cst_18 : f32 to vector<8x8xf32>
    %26 = arith.mulf %24, %25 : vector<8x8xf32>
    %27 = tpu.transpose %26, [1, 0] : vector<8x8xf32> -> vector<8x8xf32>
    %28 = vector.extract_strided_slice %27 {offsets = [0, 0], sizes = [8, 1], strides = [1, 1]} : vector<8x8xf32> to vector<8x1xf32>
    %cst_19 = arith.constant 0.000000e+00 : f32
    %29 = vector.broadcast %cst_19 : f32 to vector<8x1xf32>
    %30 = arith.maximumf %28, %29 : vector<8x1xf32>
    %c0_20 = arith.constant 0 : index
    %c0_21 = arith.constant 0 : index
    %c0_22 = arith.constant 0 : index
    %31 = vector.load %arg15[%c0_20, %c0_21, %c0_22] : memref<1x36x1xf32, #tpu.memory_space<vmem>>, vector<1x8x1xf32>
    %32 = vector.shape_cast %31 : vector<1x8x1xf32> to vector<8x1xf32>
    %33 = vector.shape_cast %30 : vector<8x1xf32> to vector<1x8x1xf32>
    tpu.vector_store %arg15[%c0_20, %c0_21, %c0_22], %33 {strides = array<i32>} : memref<1x36x1xf32, #tpu.memory_space<vmem>>, vector<1x8x1xf32>,
    %34 = vector.extract_strided_slice %27 {offsets = [1, 1], sizes = [7, 1], strides = [1, 1]} : vector<8x8xf32> to vector<7x1xf32>
    %cst_23 = arith.constant 0.000000e+00 : f32
    %35 = vector.broadcast %cst_23 : f32 to vector<7x1xf32>
    %36 = arith.maximumf %34, %35 : vector<7x1xf32>
    %c0_24 = arith.constant 0 : index
    %c8 = arith.constant 8 : index
    %c0_25 = arith.constant 0 : index
    %37 = vector.load %arg15[%c0_24, %c8, %c0_25] : memref<1x36x1xf32, #tpu.memory_space<vmem>>, vector<1x7x1xf32>
    %38 = vector.shape_cast %37 : vector<1x7x1xf32> to vector<7x1xf32>
    %39 = vector.shape_cast %36 : vector<7x1xf32> to vector<1x7x1xf32>
    tpu.vector_store %arg15[%c0_24, %c8, %c0_25], %39 {strides = array<i32>} : memref<1x36x1xf32, #tpu.memory_space<vmem>>, vector<1x7x1xf32>,
    %40 = vector.extract_strided_slice %27 {offsets = [2, 2], sizes = [6, 1], strides = [1, 1]} : vector<8x8xf32> to vector<6x1xf32>
    %cst_26 = arith.constant 0.000000e+00 : f32
    %41 = vector.broadcast %cst_26 : f32 to vector<6x1xf32>
    %42 = arith.maximumf %40, %41 : vector<6x1xf32>
    %c0_27 = arith.constant 0 : index
    %c15 = arith.constant 15 : index
    %c0_28 = arith.constant 0 : index
    %43 = vector.load %arg15[%c0_27, %c15, %c0_28] : memref<1x36x1xf32, #tpu.memory_space<vmem>>, vector<1x6x1xf32>
    %44 = vector.shape_cast %43 : vector<1x6x1xf32> to vector<6x1xf32>
    %45 = vector.shape_cast %42 : vector<6x1xf32> to vector<1x6x1xf32>
    tpu.vector_store %arg15[%c0_27, %c15, %c0_28], %45 {strides = array<i32>} : memref<1x36x1xf32, #tpu.memory_space<vmem>>, vector<1x6x1xf32>,
    %46 = vector.extract_strided_slice %27 {offsets = [3, 3], sizes = [5, 1], strides = [1, 1]} : vector<8x8xf32> to vector<5x1xf32>
    %cst_29 = arith.constant 0.000000e+00 : f32
    %47 = vector.broadcast %cst_29 : f32 to vector<5x1xf32>
    %48 = arith.maximumf %46, %47 : vector<5x1xf32>
    %c0_30 = arith.constant 0 : index
    %c21 = arith.constant 21 : index
    %c0_31 = arith.constant 0 : index
    %49 = vector.load %arg15[%c0_30, %c21, %c0_31] : memref<1x36x1xf32, #tpu.memory_space<vmem>>, vector<1x5x1xf32>
    %50 = vector.shape_cast %49 : vector<1x5x1xf32> to vector<5x1xf32>
    %51 = vector.shape_cast %48 : vector<5x1xf32> to vector<1x5x1xf32>
    tpu.vector_store %arg15[%c0_30, %c21, %c0_31], %51 {strides = array<i32>} : memref<1x36x1xf32, #tpu.memory_space<vmem>>, vector<1x5x1xf32>,
    %52 = vector.extract_strided_slice %27 {offsets = [4, 4], sizes = [4, 1], strides = [1, 1]} : vector<8x8xf32> to vector<4x1xf32>
    %cst_32 = arith.constant 0.000000e+00 : f32
    %53 = vector.broadcast %cst_32 : f32 to vector<4x1xf32>
    %54 = arith.maximumf %52, %53 : vector<4x1xf32>
    %c0_33 = arith.constant 0 : index
    %c26 = arith.constant 26 : index
    %c0_34 = arith.constant 0 : index
    %55 = vector.load %arg15[%c0_33, %c26, %c0_34] : memref<1x36x1xf32, #tpu.memory_space<vmem>>, vector<1x4x1xf32>
    %56 = vector.shape_cast %55 : vector<1x4x1xf32> to vector<4x1xf32>
    %57 = vector.shape_cast %54 : vector<4x1xf32> to vector<1x4x1xf32>
    tpu.vector_store %arg15[%c0_33, %c26, %c0_34], %57 {strides = array<i32>} : memref<1x36x1xf32, #tpu.memory_space<vmem>>, vector<1x4x1xf32>,
    %58 = vector.extract_strided_slice %27 {offsets = [5, 5], sizes = [3, 1], strides = [1, 1]} : vector<8x8xf32> to vector<3x1xf32>
    %cst_35 = arith.constant 0.000000e+00 : f32
    %59 = vector.broadcast %cst_35 : f32 to vector<3x1xf32>
    %60 = arith.maximumf %58, %59 : vector<3x1xf32>
    %c0_36 = arith.constant 0 : index
    %c30 = arith.constant 30 : index
    %c0_37 = arith.constant 0 : index
    %61 = vector.load %arg15[%c0_36, %c30, %c0_37] : memref<1x36x1xf32, #tpu.memory_space<vmem>>, vector<1x3x1xf32>
    %62 = vector.shape_cast %61 : vector<1x3x1xf32> to vector<3x1xf32>
    %63 = vector.shape_cast %60 : vector<3x1xf32> to vector<1x3x1xf32>
    tpu.vector_store %arg15[%c0_36, %c30, %c0_37], %63 {strides = array<i32>} : memref<1x36x1xf32, #tpu.memory_space<vmem>>, vector<1x3x1xf32>,
    %64 = vector.extract_strided_slice %27 {offsets = [6, 6], sizes = [2, 1], strides = [1, 1]} : vector<8x8xf32> to vector<2x1xf32>
    %cst_38 = arith.constant 0.000000e+00 : f32
    %65 = vector.broadcast %cst_38 : f32 to vector<2x1xf32>
    %66 = arith.maximumf %64, %65 : vector<2x1xf32>
    %c0_39 = arith.constant 0 : index
    %c33 = arith.constant 33 : index
    %c0_40 = arith.constant 0 : index
    %67 = vector.load %arg15[%c0_39, %c33, %c0_40] : memref<1x36x1xf32, #tpu.memory_space<vmem>>, vector<1x2x1xf32>
    %68 = vector.shape_cast %67 : vector<1x2x1xf32> to vector<2x1xf32>
    %69 = vector.shape_cast %66 : vector<2x1xf32> to vector<1x2x1xf32>
    tpu.vector_store %arg15[%c0_39, %c33, %c0_40], %69 {strides = array<i32>} : memref<1x36x1xf32, #tpu.memory_space<vmem>>, vector<1x2x1xf32>,
    %70 = vector.extract_strided_slice %27 {offsets = [7, 7], sizes = [1, 1], strides = [1, 1]} : vector<8x8xf32> to vector<1x1xf32>
    %cst_41 = arith.constant 0.000000e+00 : f32
    %71 = vector.broadcast %cst_41 : f32 to vector<1x1xf32>
    %72 = arith.maximumf %70, %71 : vector<1x1xf32>
    %c0_42 = arith.constant 0 : index
    %c35 = arith.constant 35 : index
    %c0_43 = arith.constant 0 : index
    %73 = vector.load %arg15[%c0_42, %c35, %c0_43] : memref<1x36x1xf32, #tpu.memory_space<vmem>>, vector<1x1x1xf32>
    %74 = vector.shape_cast %73 : vector<1x1x1xf32> to vector<1x1xf32>
    %75 = vector.shape_cast %72 : vector<1x1xf32> to vector<1x1x1xf32>
    tpu.vector_store %arg15[%c0_42, %c35, %c0_43], %75 {strides = array<i32>} : memref<1x36x1xf32, #tpu.memory_space<vmem>>, vector<1x1x1xf32>,
    %c0_44 = arith.constant 0 : index
    %c0_45 = arith.constant 0 : index
    %76 = vector.load %arg8[%c0_44, %c0_45] : memref<32x352xf32, #tpu.memory_space<vmem>>, vector<32x352xf32>
    %cst_46 = arith.constant dense<0.000000e+00> : vector<8x352xf32>
    %77 = tpu.matmul %1, %76, %cst_46 {dimension_numbers = #tpu.dot_dimension_numbers<[1], [0], [0], [1], [0, 0, 1, 1], [], []>} : vector<8x32xf32>, vector<32x352xf32>, vector<8x352xf32> -> vector<8x352xf32>
    %c0_47 = arith.constant 0 : index
    %c0_48 = arith.constant 0 : index
    %78 = vector.load %arg9[%c0_47, %c0_48] : memref<1x352xf32, #tpu.memory_space<vmem>>, vector<1x352xf32>
    %79 = vector.broadcast %78 : vector<1x352xf32> to vector<8x352xf32>
    %80 = arith.addf %77, %79 : vector<8x352xf32>
    %cst_49 = arith.constant 0.000000e+00 : f32
    %81 = vector.broadcast %cst_49 : f32 to vector<8x352xf32>
    %82 = arith.maximumf %80, %81 : vector<8x352xf32>
    %c0_50 = arith.constant 0 : index
    %c0_51 = arith.constant 0 : index
    %83 = vector.load %arg10[%c0_50, %c0_51] : memref<352x640xf32, #tpu.memory_space<vmem>>, vector<352x640xf32>
    %cst_52 = arith.constant dense<0.000000e+00> : vector<8x640xf32>
    %84 = tpu.matmul %82, %83, %cst_52 {dimension_numbers = #tpu.dot_dimension_numbers<[1], [0], [0], [1], [0, 0, 1, 1], [], []>} : vector<8x352xf32>, vector<352x640xf32>, vector<8x640xf32> -> vector<8x640xf32>
    %c0_53 = arith.constant 0 : index
    %c0_54 = arith.constant 0 : index
    %85 = vector.load %arg11[%c0_53, %c0_54] : memref<1x640xf32, #tpu.memory_space<vmem>>, vector<1x640xf32>
    %86 = vector.broadcast %85 : vector<1x640xf32> to vector<8x640xf32>
    %87 = arith.addf %84, %86 : vector<8x640xf32>
    %88 = vector.broadcast %3 : vector<8x1xf32> to vector<8x640xf32>
    %89 = arith.mulf %87, %88 : vector<8x640xf32>
    %90 = vector.extract_strided_slice %89 {offsets = [0, 0], sizes = [8, 64], strides = [1, 1]} : vector<8x640xf32> to vector<8x64xf32>
    %91 = arith.mulf %90, %4 : vector<8x64xf32>
    %cst_55 = arith.constant dense<0.000000e+00> : vector<8x64xf32>
    %92 = tpu.matmul %90, %6, %cst_55 {dimension_numbers = #tpu.dot_dimension_numbers<[1], [0], [0], [1], [0, 0, 1, 1], [], []>} : vector<8x64xf32>, vector<64x64xf32>, vector<8x64xf32> -> vector<8x64xf32>
    %93 = arith.mulf %92, %5 : vector<8x64xf32>
    %94 = arith.addf %91, %93 : vector<8x64xf32>
    %95 = vector.extract_strided_slice %89 {offsets = [0, 320], sizes = [8, 64], strides = [1, 1]} : vector<8x640xf32> to vector<8x64xf32>
    %96 = arith.mulf %95, %4 : vector<8x64xf32>
    %cst_56 = arith.constant dense<0.000000e+00> : vector<8x64xf32>
    %97 = tpu.matmul %95, %6, %cst_56 {dimension_numbers = #tpu.dot_dimension_numbers<[1], [0], [0], [1], [0, 0, 1, 1], [], []>} : vector<8x64xf32>, vector<64x64xf32>, vector<8x64xf32> -> vector<8x64xf32>
    %98 = arith.mulf %97, %5 : vector<8x64xf32>
    %99 = arith.addf %96, %98 : vector<8x64xf32>
    %cst_57 = arith.constant dense<0.000000e+00> : vector<8x8xf32>
    %100 = tpu.matmul %94, %99, %cst_57 {dimension_numbers = #tpu.dot_dimension_numbers<[1], [1], [0], [0], [0, 0, 1, 0], [], []>} : vector<8x64xf32>, vector<8x64xf32>, vector<8x8xf32> -> vector<8x8xf32>
    %cst_58 = arith.constant 1.250000e-01 : f32
    %101 = vector.broadcast %cst_58 : f32 to vector<8x8xf32>
    %102 = arith.mulf %100, %101 : vector<8x8xf32>
    %103 = vector.extract_strided_slice %89 {offsets = [0, 64], sizes = [8, 64], strides = [1, 1]} : vector<8x640xf32> to vector<8x64xf32>
    %104 = arith.mulf %103, %4 : vector<8x64xf32>
    %cst_59 = arith.constant dense<0.000000e+00> : vector<8x64xf32>
    %105 = tpu.matmul %103, %6, %cst_59 {dimension_numbers = #tpu.dot_dimension_numbers<[1], [0], [0], [1], [0, 0, 1, 1], [], []>} : vector<8x64xf32>, vector<64x64xf32>, vector<8x64xf32> -> vector<8x64xf32>
    %106 = arith.mulf %105, %5 : vector<8x64xf32>
    %107 = arith.addf %104, %106 : vector<8x64xf32>
    %108 = vector.extract_strided_slice %89 {offsets = [0, 384], sizes = [8, 64], strides = [1, 1]} : vector<8x640xf32> to vector<8x64xf32>
    %109 = arith.mulf %108, %4 : vector<8x64xf32>
    %cst_60 = arith.constant dense<0.000000e+00> : vector<8x64xf32>
    %110 = tpu.matmul %108, %6, %cst_60 {dimension_numbers = #tpu.dot_dimension_numbers<[1], [0], [0], [1], [0, 0, 1, 1], [], []>} : vector<8x64xf32>, vector<64x64xf32>, vector<8x64xf32> -> vector<8x64xf32>
    %111 = arith.mulf %110, %5 : vector<8x64xf32>
    %112 = arith.addf %109, %111 : vector<8x64xf32>
    %cst_61 = arith.constant dense<0.000000e+00> : vector<8x8xf32>
    %113 = tpu.matmul %107, %112, %cst_61 {dimension_numbers = #tpu.dot_dimension_numbers<[1], [1], [0], [0], [0, 0, 1, 0], [], []>} : vector<8x64xf32>, vector<8x64xf32>, vector<8x8xf32> -> vector<8x8xf32>
    %cst_62 = arith.constant 1.250000e-01 : f32
    %114 = vector.broadcast %cst_62 : f32 to vector<8x8xf32>
    %115 = arith.mulf %113, %114 : vector<8x8xf32>
    %116 = vector.extract_strided_slice %89 {offsets = [0, 128], sizes = [8, 64], strides = [1, 1]} : vector<8x640xf32> to vector<8x64xf32>
    %117 = arith.mulf %116, %4 : vector<8x64xf32>
    %cst_63 = arith.constant dense<0.000000e+00> : vector<8x64xf32>
    %118 = tpu.matmul %116, %6, %cst_63 {dimension_numbers = #tpu.dot_dimension_numbers<[1], [0], [0], [1], [0, 0, 1, 1], [], []>} : vector<8x64xf32>, vector<64x64xf32>, vector<8x64xf32> -> vector<8x64xf32>
    %119 = arith.mulf %118, %5 : vector<8x64xf32>
    %120 = arith.addf %117, %119 : vector<8x64xf32>
    %121 = vector.extract_strided_slice %89 {offsets = [0, 448], sizes = [8, 64], strides = [1, 1]} : vector<8x640xf32> to vector<8x64xf32>
    %122 = arith.mulf %121, %4 : vector<8x64xf32>
    %cst_64 = arith.constant dense<0.000000e+00> : vector<8x64xf32>
    %123 = tpu.matmul %121, %6, %cst_64 {dimension_numbers = #tpu.dot_dimension_numbers<[1], [0], [0], [1], [0, 0, 1, 1], [], []>} : vector<8x64xf32>, vector<64x64xf32>, vector<8x64xf32> -> vector<8x64xf32>
    %124 = arith.mulf %123, %5 : vector<8x64xf32>
    %125 = arith.addf %122, %124 : vector<8x64xf32>
    %cst_65 = arith.constant dense<0.000000e+00> : vector<8x8xf32>
    %126 = tpu.matmul %120, %125, %cst_65 {dimension_numbers = #tpu.dot_dimension_numbers<[1], [1], [0], [0], [0, 0, 1, 0], [], []>} : vector<8x64xf32>, vector<8x64xf32>, vector<8x8xf32> -> vector<8x8xf32>
    %cst_66 = arith.constant 1.250000e-01 : f32
    %127 = vector.broadcast %cst_66 : f32 to vector<8x8xf32>
    %128 = arith.mulf %126, %127 : vector<8x8xf32>
    %129 = vector.extract_strided_slice %89 {offsets = [0, 192], sizes = [8, 64], strides = [1, 1]} : vector<8x640xf32> to vector<8x64xf32>
    %130 = arith.mulf %129, %4 : vector<8x64xf32>
    %cst_67 = arith.constant dense<0.000000e+00> : vector<8x64xf32>
    %131 = tpu.matmul %129, %6, %cst_67 {dimension_numbers = #tpu.dot_dimension_numbers<[1], [0], [0], [1], [0, 0, 1, 1], [], []>} : vector<8x64xf32>, vector<64x64xf32>, vector<8x64xf32> -> vector<8x64xf32>
    %132 = arith.mulf %131, %5 : vector<8x64xf32>
    %133 = arith.addf %130, %132 : vector<8x64xf32>
    %134 = vector.extract_strided_slice %89 {offsets = [0, 512], sizes = [8, 64], strides = [1, 1]} : vector<8x640xf32> to vector<8x64xf32>
    %135 = arith.mulf %134, %4 : vector<8x64xf32>
    %cst_68 = arith.constant dense<0.000000e+00> : vector<8x64xf32>
    %136 = tpu.matmul %134, %6, %cst_68 {dimension_numbers = #tpu.dot_dimension_numbers<[1], [0], [0], [1], [0, 0, 1, 1], [], []>} : vector<8x64xf32>, vector<64x64xf32>, vector<8x64xf32> -> vector<8x64xf32>
    %137 = arith.mulf %136, %5 : vector<8x64xf32>
    %138 = arith.addf %135, %137 : vector<8x64xf32>
    %cst_69 = arith.constant dense<0.000000e+00> : vector<8x8xf32>
    %139 = tpu.matmul %133, %138, %cst_69 {dimension_numbers = #tpu.dot_dimension_numbers<[1], [1], [0], [0], [0, 0, 1, 0], [], []>} : vector<8x64xf32>, vector<8x64xf32>, vector<8x8xf32> -> vector<8x8xf32>
    %cst_70 = arith.constant 1.250000e-01 : f32
    %140 = vector.broadcast %cst_70 : f32 to vector<8x8xf32>
    %141 = arith.mulf %139, %140 : vector<8x8xf32>
    %142 = vector.extract_strided_slice %89 {offsets = [0, 256], sizes = [8, 64], strides = [1, 1]} : vector<8x640xf32> to vector<8x64xf32>
    %143 = arith.mulf %142, %4 : vector<8x64xf32>
    %cst_71 = arith.constant dense<0.000000e+00> : vector<8x64xf32>
    %144 = tpu.matmul %142, %6, %cst_71 {dimension_numbers = #tpu.dot_dimension_numbers<[1], [0], [0], [1], [0, 0, 1, 1], [], []>} : vector<8x64xf32>, vector<64x64xf32>, vector<8x64xf32> -> vector<8x64xf32>
    %145 = arith.mulf %144, %5 : vector<8x64xf32>
    %146 = arith.addf %143, %145 : vector<8x64xf32>
    %147 = vector.extract_strided_slice %89 {offsets = [0, 576], sizes = [8, 64], strides = [1, 1]} : vector<8x640xf32> to vector<8x64xf32>
    %148 = arith.mulf %147, %4 : vector<8x64xf32>
    %cst_72 = arith.constant dense<0.000000e+00> : vector<8x64xf32>
    %149 = tpu.matmul %147, %6, %cst_72 {dimension_numbers = #tpu.dot_dimension_numbers<[1], [0], [0], [1], [0, 0, 1, 1], [], []>} : vector<8x64xf32>, vector<64x64xf32>, vector<8x64xf32> -> vector<8x64xf32>
    %150 = arith.mulf %149, %5 : vector<8x64xf32>
    %151 = arith.addf %148, %150 : vector<8x64xf32>
    %cst_73 = arith.constant dense<0.000000e+00> : vector<8x8xf32>
    %152 = tpu.matmul %146, %151, %cst_73 {dimension_numbers = #tpu.dot_dimension_numbers<[1], [1], [0], [0], [0, 0, 1, 0], [], []>} : vector<8x64xf32>, vector<8x64xf32>, vector<8x8xf32> -> vector<8x8xf32>
    %cst_74 = arith.constant 1.250000e-01 : f32
    %153 = vector.broadcast %cst_74 : f32 to vector<8x8xf32>
    %154 = arith.mulf %152, %153 : vector<8x8xf32>
    %155 = tpu.transpose %102, [1, 0] : vector<8x8xf32> -> vector<8x8xf32>
    %156 = vector.extract_strided_slice %155 {offsets = [0, 0], sizes = [8, 1], strides = [1, 1]} : vector<8x8xf32> to vector<8x1xf32>
    %c0_75 = arith.constant 0 : index
    %c0_76 = arith.constant 0 : index
    %c0_77 = arith.constant 0 : index
    %157 = vector.load %arg14[%c0_75, %c0_76, %c0_77] : memref<1x36x4xf32, #tpu.memory_space<vmem>>, vector<1x8x1xf32>
    %158 = vector.shape_cast %157 : vector<1x8x1xf32> to vector<8x1xf32>
    %159 = vector.shape_cast %156 : vector<8x1xf32> to vector<1x8x1xf32>
    tpu.vector_store %arg14[%c0_75, %c0_76, %c0_77], %159 {strides = array<i32>} : memref<1x36x4xf32, #tpu.memory_space<vmem>>, vector<1x8x1xf32>,
    %160 = vector.extract_strided_slice %155 {offsets = [1, 1], sizes = [7, 1], strides = [1, 1]} : vector<8x8xf32> to vector<7x1xf32>
    %c0_78 = arith.constant 0 : index
    %c8_79 = arith.constant 8 : index
    %c0_80 = arith.constant 0 : index
    %161 = vector.load %arg14[%c0_78, %c8_79, %c0_80] : memref<1x36x4xf32, #tpu.memory_space<vmem>>, vector<1x7x1xf32>
    %162 = vector.shape_cast %161 : vector<1x7x1xf32> to vector<7x1xf32>
    %163 = vector.shape_cast %160 : vector<7x1xf32> to vector<1x7x1xf32>
    tpu.vector_store %arg14[%c0_78, %c8_79, %c0_80], %163 {strides = array<i32>} : memref<1x36x4xf32, #tpu.memory_space<vmem>>, vector<1x7x1xf32>,
    %164 = vector.extract_strided_slice %155 {offsets = [2, 2], sizes = [6, 1], strides = [1, 1]} : vector<8x8xf32> to vector<6x1xf32>
    %c0_81 = arith.constant 0 : index
    %c15_82 = arith.constant 15 : index
    %c0_83 = arith.constant 0 : index
    %165 = vector.load %arg14[%c0_81, %c15_82, %c0_83] : memref<1x36x4xf32, #tpu.memory_space<vmem>>, vector<1x6x1xf32>
    %166 = vector.shape_cast %165 : vector<1x6x1xf32> to vector<6x1xf32>
    %167 = vector.shape_cast %164 : vector<6x1xf32> to vector<1x6x1xf32>
    tpu.vector_store %arg14[%c0_81, %c15_82, %c0_83], %167 {strides = array<i32>} : memref<1x36x4xf32, #tpu.memory_space<vmem>>, vector<1x6x1xf32>,
    %168 = vector.extract_strided_slice %155 {offsets = [3, 3], sizes = [5, 1], strides = [1, 1]} : vector<8x8xf32> to vector<5x1xf32>
    %c0_84 = arith.constant 0 : index
    %c21_85 = arith.constant 21 : index
    %c0_86 = arith.constant 0 : index
    %169 = vector.load %arg14[%c0_84, %c21_85, %c0_86] : memref<1x36x4xf32, #tpu.memory_space<vmem>>, vector<1x5x1xf32>
    %170 = vector.shape_cast %169 : vector<1x5x1xf32> to vector<5x1xf32>
    %171 = vector.shape_cast %168 : vector<5x1xf32> to vector<1x5x1xf32>
    tpu.vector_store %arg14[%c0_84, %c21_85, %c0_86], %171 {strides = array<i32>} : memref<1x36x4xf32, #tpu.memory_space<vmem>>, vector<1x5x1xf32>,
    %172 = vector.extract_strided_slice %155 {offsets = [4, 4], sizes = [4, 1], strides = [1, 1]} : vector<8x8xf32> to vector<4x1xf32>
    %c0_87 = arith.constant 0 : index
    %c26_88 = arith.constant 26 : index
    %c0_89 = arith.constant 0 : index
    %173 = vector.load %arg14[%c0_87, %c26_88, %c0_89] : memref<1x36x4xf32, #tpu.memory_space<vmem>>, vector<1x4x1xf32>
    %174 = vector.shape_cast %173 : vector<1x4x1xf32> to vector<4x1xf32>
    %175 = vector.shape_cast %172 : vector<4x1xf32> to vector<1x4x1xf32>
    tpu.vector_store %arg14[%c0_87, %c26_88, %c0_89], %175 {strides = array<i32>} : memref<1x36x4xf32, #tpu.memory_space<vmem>>, vector<1x4x1xf32>,
    %176 = vector.extract_strided_slice %155 {offsets = [5, 5], sizes = [3, 1], strides = [1, 1]} : vector<8x8xf32> to vector<3x1xf32>
    %c0_90 = arith.constant 0 : index
    %c30_91 = arith.constant 30 : index
    %c0_92 = arith.constant 0 : index
    %177 = vector.load %arg14[%c0_90, %c30_91, %c0_92] : memref<1x36x4xf32, #tpu.memory_space<vmem>>, vector<1x3x1xf32>
    %178 = vector.shape_cast %177 : vector<1x3x1xf32> to vector<3x1xf32>
    %179 = vector.shape_cast %176 : vector<3x1xf32> to vector<1x3x1xf32>
    tpu.vector_store %arg14[%c0_90, %c30_91, %c0_92], %179 {strides = array<i32>} : memref<1x36x4xf32, #tpu.memory_space<vmem>>, vector<1x3x1xf32>,
    %180 = vector.extract_strided_slice %155 {offsets = [6, 6], sizes = [2, 1], strides = [1, 1]} : vector<8x8xf32> to vector<2x1xf32>
    %c0_93 = arith.constant 0 : index
    %c33_94 = arith.constant 33 : index
    %c0_95 = arith.constant 0 : index
    %181 = vector.load %arg14[%c0_93, %c33_94, %c0_95] : memref<1x36x4xf32, #tpu.memory_space<vmem>>, vector<1x2x1xf32>
    %182 = vector.shape_cast %181 : vector<1x2x1xf32> to vector<2x1xf32>
    %183 = vector.shape_cast %180 : vector<2x1xf32> to vector<1x2x1xf32>
    tpu.vector_store %arg14[%c0_93, %c33_94, %c0_95], %183 {strides = array<i32>} : memref<1x36x4xf32, #tpu.memory_space<vmem>>, vector<1x2x1xf32>,
    %184 = vector.extract_strided_slice %155 {offsets = [7, 7], sizes = [1, 1], strides = [1, 1]} : vector<8x8xf32> to vector<1x1xf32>
    %c0_96 = arith.constant 0 : index
    %c35_97 = arith.constant 35 : index
    %c0_98 = arith.constant 0 : index
    %185 = vector.load %arg14[%c0_96, %c35_97, %c0_98] : memref<1x36x4xf32, #tpu.memory_space<vmem>>, vector<1x1x1xf32>
    %186 = vector.shape_cast %185 : vector<1x1x1xf32> to vector<1x1xf32>
    %187 = vector.shape_cast %184 : vector<1x1xf32> to vector<1x1x1xf32>
    tpu.vector_store %arg14[%c0_96, %c35_97, %c0_98], %187 {strides = array<i32>} : memref<1x36x4xf32, #tpu.memory_space<vmem>>, vector<1x1x1xf32>,
    %188 = tpu.transpose %115, [1, 0] : vector<8x8xf32> -> vector<8x8xf32>
    %189 = vector.extract_strided_slice %188 {offsets = [0, 0], sizes = [8, 1], strides = [1, 1]} : vector<8x8xf32> to vector<8x1xf32>
    %c0_99 = arith.constant 0 : index
    %c0_100 = arith.constant 0 : index
    %c1 = arith.constant 1 : index
    %190 = vector.load %arg14[%c0_99, %c0_100, %c1] : memref<1x36x4xf32, #tpu.memory_space<vmem>>, vector<1x8x1xf32>
    %191 = vector.shape_cast %190 : vector<1x8x1xf32> to vector<8x1xf32>
    %192 = vector.shape_cast %189 : vector<8x1xf32> to vector<1x8x1xf32>
    tpu.vector_store %arg14[%c0_99, %c0_100, %c1], %192 {strides = array<i32>} : memref<1x36x4xf32, #tpu.memory_space<vmem>>, vector<1x8x1xf32>,
    %193 = vector.extract_strided_slice %188 {offsets = [1, 1], sizes = [7, 1], strides = [1, 1]} : vector<8x8xf32> to vector<7x1xf32>
    %c0_101 = arith.constant 0 : index
    %c8_102 = arith.constant 8 : index
    %c1_103 = arith.constant 1 : index
    %194 = vector.load %arg14[%c0_101, %c8_102, %c1_103] : memref<1x36x4xf32, #tpu.memory_space<vmem>>, vector<1x7x1xf32>
    %195 = vector.shape_cast %194 : vector<1x7x1xf32> to vector<7x1xf32>
    %196 = vector.shape_cast %193 : vector<7x1xf32> to vector<1x7x1xf32>
    tpu.vector_store %arg14[%c0_101, %c8_102, %c1_103], %196 {strides = array<i32>} : memref<1x36x4xf32, #tpu.memory_space<vmem>>, vector<1x7x1xf32>,
    %197 = vector.extract_strided_slice %188 {offsets = [2, 2], sizes = [6, 1], strides = [1, 1]} : vector<8x8xf32> to vector<6x1xf32>
    %c0_104 = arith.constant 0 : index
    %c15_105 = arith.constant 15 : index
    %c1_106 = arith.constant 1 : index
    %198 = vector.load %arg14[%c0_104, %c15_105, %c1_106] : memref<1x36x4xf32, #tpu.memory_space<vmem>>, vector<1x6x1xf32>
    %199 = vector.shape_cast %198 : vector<1x6x1xf32> to vector<6x1xf32>
    %200 = vector.shape_cast %197 : vector<6x1xf32> to vector<1x6x1xf32>
    tpu.vector_store %arg14[%c0_104, %c15_105, %c1_106], %200 {strides = array<i32>} : memref<1x36x4xf32, #tpu.memory_space<vmem>>, vector<1x6x1xf32>,
    %201 = vector.extract_strided_slice %188 {offsets = [3, 3], sizes = [5, 1], strides = [1, 1]} : vector<8x8xf32> to vector<5x1xf32>
    %c0_107 = arith.constant 0 : index
    %c21_108 = arith.constant 21 : index
    %c1_109 = arith.constant 1 : index
    %202 = vector.load %arg14[%c0_107, %c21_108, %c1_109] : memref<1x36x4xf32, #tpu.memory_space<vmem>>, vector<1x5x1xf32>
    %203 = vector.shape_cast %202 : vector<1x5x1xf32> to vector<5x1xf32>
    %204 = vector.shape_cast %201 : vector<5x1xf32> to vector<1x5x1xf32>
    tpu.vector_store %arg14[%c0_107, %c21_108, %c1_109], %204 {strides = array<i32>} : memref<1x36x4xf32, #tpu.memory_space<vmem>>, vector<1x5x1xf32>,
    %205 = vector.extract_strided_slice %188 {offsets = [4, 4], sizes = [4, 1], strides = [1, 1]} : vector<8x8xf32> to vector<4x1xf32>
    %c0_110 = arith.constant 0 : index
    %c26_111 = arith.constant 26 : index
    %c1_112 = arith.constant 1 : index
    %206 = vector.load %arg14[%c0_110, %c26_111, %c1_112] : memref<1x36x4xf32, #tpu.memory_space<vmem>>, vector<1x4x1xf32>
    %207 = vector.shape_cast %206 : vector<1x4x1xf32> to vector<4x1xf32>
    %208 = vector.shape_cast %205 : vector<4x1xf32> to vector<1x4x1xf32>
    tpu.vector_store %arg14[%c0_110, %c26_111, %c1_112], %208 {strides = array<i32>} : memref<1x36x4xf32, #tpu.memory_space<vmem>>, vector<1x4x1xf32>,
    %209 = vector.extract_strided_slice %188 {offsets = [5, 5], sizes = [3, 1], strides = [1, 1]} : vector<8x8xf32> to vector<3x1xf32>
    %c0_113 = arith.constant 0 : index
    %c30_114 = arith.constant 30 : index
    %c1_115 = arith.constant 1 : index
    %210 = vector.load %arg14[%c0_113, %c30_114, %c1_115] : memref<1x36x4xf32, #tpu.memory_space<vmem>>, vector<1x3x1xf32>
    %211 = vector.shape_cast %210 : vector<1x3x1xf32> to vector<3x1xf32>
    %212 = vector.shape_cast %209 : vector<3x1xf32> to vector<1x3x1xf32>
    tpu.vector_store %arg14[%c0_113, %c30_114, %c1_115], %212 {strides = array<i32>} : memref<1x36x4xf32, #tpu.memory_space<vmem>>, vector<1x3x1xf32>,
    %213 = vector.extract_strided_slice %188 {offsets = [6, 6], sizes = [2, 1], strides = [1, 1]} : vector<8x8xf32> to vector<2x1xf32>
    %c0_116 = arith.constant 0 : index
    %c33_117 = arith.constant 33 : index
    %c1_118 = arith.constant 1 : index
    %214 = vector.load %arg14[%c0_116, %c33_117, %c1_118] : memref<1x36x4xf32, #tpu.memory_space<vmem>>, vector<1x2x1xf32>
    %215 = vector.shape_cast %214 : vector<1x2x1xf32> to vector<2x1xf32>
    %216 = vector.shape_cast %213 : vector<2x1xf32> to vector<1x2x1xf32>
    tpu.vector_store %arg14[%c0_116, %c33_117, %c1_118], %216 {strides = array<i32>} : memref<1x36x4xf32, #tpu.memory_space<vmem>>, vector<1x2x1xf32>,
    %217 = vector.extract_strided_slice %188 {offsets = [7, 7], sizes = [1, 1], strides = [1, 1]} : vector<8x8xf32> to vector<1x1xf32>
    %c0_119 = arith.constant 0 : index
    %c35_120 = arith.constant 35 : index
    %c1_121 = arith.constant 1 : index
    %218 = vector.load %arg14[%c0_119, %c35_120, %c1_121] : memref<1x36x4xf32, #tpu.memory_space<vmem>>, vector<1x1x1xf32>
    %219 = vector.shape_cast %218 : vector<1x1x1xf32> to vector<1x1xf32>
    %220 = vector.shape_cast %217 : vector<1x1xf32> to vector<1x1x1xf32>
    tpu.vector_store %arg14[%c0_119, %c35_120, %c1_121], %220 {strides = array<i32>} : memref<1x36x4xf32, #tpu.memory_space<vmem>>, vector<1x1x1xf32>,
    %221 = tpu.transpose %128, [1, 0] : vector<8x8xf32> -> vector<8x8xf32>
    %222 = vector.extract_strided_slice %221 {offsets = [0, 0], sizes = [8, 1], strides = [1, 1]} : vector<8x8xf32> to vector<8x1xf32>
    %c0_122 = arith.constant 0 : index
    %c0_123 = arith.constant 0 : index
    %c2 = arith.constant 2 : index
    %223 = vector.load %arg14[%c0_122, %c0_123, %c2] : memref<1x36x4xf32, #tpu.memory_space<vmem>>, vector<1x8x1xf32>
    %224 = vector.shape_cast %223 : vector<1x8x1xf32> to vector<8x1xf32>
    %225 = vector.shape_cast %222 : vector<8x1xf32> to vector<1x8x1xf32>
    tpu.vector_store %arg14[%c0_122, %c0_123, %c2], %225 {strides = array<i32>} : memref<1x36x4xf32, #tpu.memory_space<vmem>>, vector<1x8x1xf32>,
    %226 = vector.extract_strided_slice %221 {offsets = [1, 1], sizes = [7, 1], strides = [1, 1]} : vector<8x8xf32> to vector<7x1xf32>
    %c0_124 = arith.constant 0 : index
    %c8_125 = arith.constant 8 : index
    %c2_126 = arith.constant 2 : index
    %227 = vector.load %arg14[%c0_124, %c8_125, %c2_126] : memref<1x36x4xf32, #tpu.memory_space<vmem>>, vector<1x7x1xf32>
    %228 = vector.shape_cast %227 : vector<1x7x1xf32> to vector<7x1xf32>
    %229 = vector.shape_cast %226 : vector<7x1xf32> to vector<1x7x1xf32>
    tpu.vector_store %arg14[%c0_124, %c8_125, %c2_126], %229 {strides = array<i32>} : memref<1x36x4xf32, #tpu.memory_space<vmem>>, vector<1x7x1xf32>,
    %230 = vector.extract_strided_slice %221 {offsets = [2, 2], sizes = [6, 1], strides = [1, 1]} : vector<8x8xf32> to vector<6x1xf32>
    %c0_127 = arith.constant 0 : index
    %c15_128 = arith.constant 15 : index
    %c2_129 = arith.constant 2 : index
    %231 = vector.load %arg14[%c0_127, %c15_128, %c2_129] : memref<1x36x4xf32, #tpu.memory_space<vmem>>, vector<1x6x1xf32>
    %232 = vector.shape_cast %231 : vector<1x6x1xf32> to vector<6x1xf32>
    %233 = vector.shape_cast %230 : vector<6x1xf32> to vector<1x6x1xf32>
    tpu.vector_store %arg14[%c0_127, %c15_128, %c2_129], %233 {strides = array<i32>} : memref<1x36x4xf32, #tpu.memory_space<vmem>>, vector<1x6x1xf32>,
    %234 = vector.extract_strided_slice %221 {offsets = [3, 3], sizes = [5, 1], strides = [1, 1]} : vector<8x8xf32> to vector<5x1xf32>
    %c0_130 = arith.constant 0 : index
    %c21_131 = arith.constant 21 : index
    %c2_132 = arith.constant 2 : index
    %235 = vector.load %arg14[%c0_130, %c21_131, %c2_132] : memref<1x36x4xf32, #tpu.memory_space<vmem>>, vector<1x5x1xf32>
    %236 = vector.shape_cast %235 : vector<1x5x1xf32> to vector<5x1xf32>
    %237 = vector.shape_cast %234 : vector<5x1xf32> to vector<1x5x1xf32>
    tpu.vector_store %arg14[%c0_130, %c21_131, %c2_132], %237 {strides = array<i32>} : memref<1x36x4xf32, #tpu.memory_space<vmem>>, vector<1x5x1xf32>,
    %238 = vector.extract_strided_slice %221 {offsets = [4, 4], sizes = [4, 1], strides = [1, 1]} : vector<8x8xf32> to vector<4x1xf32>
    %c0_133 = arith.constant 0 : index
    %c26_134 = arith.constant 26 : index
    %c2_135 = arith.constant 2 : index
    %239 = vector.load %arg14[%c0_133, %c26_134, %c2_135] : memref<1x36x4xf32, #tpu.memory_space<vmem>>, vector<1x4x1xf32>
    %240 = vector.shape_cast %239 : vector<1x4x1xf32> to vector<4x1xf32>
    %241 = vector.shape_cast %238 : vector<4x1xf32> to vector<1x4x1xf32>
    tpu.vector_store %arg14[%c0_133, %c26_134, %c2_135], %241 {strides = array<i32>} : memref<1x36x4xf32, #tpu.memory_space<vmem>>, vector<1x4x1xf32>,
    %242 = vector.extract_strided_slice %221 {offsets = [5, 5], sizes = [3, 1], strides = [1, 1]} : vector<8x8xf32> to vector<3x1xf32>
    %c0_136 = arith.constant 0 : index
    %c30_137 = arith.constant 30 : index
    %c2_138 = arith.constant 2 : index
    %243 = vector.load %arg14[%c0_136, %c30_137, %c2_138] : memref<1x36x4xf32, #tpu.memory_space<vmem>>, vector<1x3x1xf32>
    %244 = vector.shape_cast %243 : vector<1x3x1xf32> to vector<3x1xf32>
    %245 = vector.shape_cast %242 : vector<3x1xf32> to vector<1x3x1xf32>
    tpu.vector_store %arg14[%c0_136, %c30_137, %c2_138], %245 {strides = array<i32>} : memref<1x36x4xf32, #tpu.memory_space<vmem>>, vector<1x3x1xf32>,
    %246 = vector.extract_strided_slice %221 {offsets = [6, 6], sizes = [2, 1], strides = [1, 1]} : vector<8x8xf32> to vector<2x1xf32>
    %c0_139 = arith.constant 0 : index
    %c33_140 = arith.constant 33 : index
    %c2_141 = arith.constant 2 : index
    %247 = vector.load %arg14[%c0_139, %c33_140, %c2_141] : memref<1x36x4xf32, #tpu.memory_space<vmem>>, vector<1x2x1xf32>
    %248 = vector.shape_cast %247 : vector<1x2x1xf32> to vector<2x1xf32>
    %249 = vector.shape_cast %246 : vector<2x1xf32> to vector<1x2x1xf32>
    tpu.vector_store %arg14[%c0_139, %c33_140, %c2_141], %249 {strides = array<i32>} : memref<1x36x4xf32, #tpu.memory_space<vmem>>, vector<1x2x1xf32>,
    %250 = vector.extract_strided_slice %221 {offsets = [7, 7], sizes = [1, 1], strides = [1, 1]} : vector<8x8xf32> to vector<1x1xf32>
    %c0_142 = arith.constant 0 : index
    %c35_143 = arith.constant 35 : index
    %c2_144 = arith.constant 2 : index
    %251 = vector.load %arg14[%c0_142, %c35_143, %c2_144] : memref<1x36x4xf32, #tpu.memory_space<vmem>>, vector<1x1x1xf32>
    %252 = vector.shape_cast %251 : vector<1x1x1xf32> to vector<1x1xf32>
    %253 = vector.shape_cast %250 : vector<1x1xf32> to vector<1x1x1xf32>
    tpu.vector_store %arg14[%c0_142, %c35_143, %c2_144], %253 {strides = array<i32>} : memref<1x36x4xf32, #tpu.memory_space<vmem>>, vector<1x1x1xf32>,
    %254 = tpu.transpose %141, [1, 0] : vector<8x8xf32> -> vector<8x8xf32>
    %255 = vector.extract_strided_slice %254 {offsets = [0, 0], sizes = [8, 1], strides = [1, 1]} : vector<8x8xf32> to vector<8x1xf32>
    %c0_145 = arith.constant 0 : index
    %c0_146 = arith.constant 0 : index
    %c3 = arith.constant 3 : index
    %256 = vector.load %arg14[%c0_145, %c0_146, %c3] : memref<1x36x4xf32, #tpu.memory_space<vmem>>, vector<1x8x1xf32>
    %257 = vector.shape_cast %256 : vector<1x8x1xf32> to vector<8x1xf32>
    %258 = vector.shape_cast %255 : vector<8x1xf32> to vector<1x8x1xf32>
    tpu.vector_store %arg14[%c0_145, %c0_146, %c3], %258 {strides = array<i32>} : memref<1x36x4xf32, #tpu.memory_space<vmem>>, vector<1x8x1xf32>,
    %259 = vector.extract_strided_slice %254 {offsets = [1, 1], sizes = [7, 1], strides = [1, 1]} : vector<8x8xf32> to vector<7x1xf32>
    %c0_147 = arith.constant 0 : index
    %c8_148 = arith.constant 8 : index
    %c3_149 = arith.constant 3 : index
    %260 = vector.load %arg14[%c0_147, %c8_148, %c3_149] : memref<1x36x4xf32, #tpu.memory_space<vmem>>, vector<1x7x1xf32>
    %261 = vector.shape_cast %260 : vector<1x7x1xf32> to vector<7x1xf32>
    %262 = vector.shape_cast %259 : vector<7x1xf32> to vector<1x7x1xf32>
    tpu.vector_store %arg14[%c0_147, %c8_148, %c3_149], %262 {strides = array<i32>} : memref<1x36x4xf32, #tpu.memory_space<vmem>>, vector<1x7x1xf32>,
    %263 = vector.extract_strided_slice %254 {offsets = [2, 2], sizes = [6, 1], strides = [1, 1]} : vector<8x8xf32> to vector<6x1xf32>
    %c0_150 = arith.constant 0 : index
    %c15_151 = arith.constant 15 : index
    %c3_152 = arith.constant 3 : index
    %264 = vector.load %arg14[%c0_150, %c15_151, %c3_152] : memref<1x36x4xf32, #tpu.memory_space<vmem>>, vector<1x6x1xf32>
    %265 = vector.shape_cast %264 : vector<1x6x1xf32> to vector<6x1xf32>
    %266 = vector.shape_cast %263 : vector<6x1xf32> to vector<1x6x1xf32>
    tpu.vector_store %arg14[%c0_150, %c15_151, %c3_152], %266 {strides = array<i32>} : memref<1x36x4xf32, #tpu.memory_space<vmem>>, vector<1x6x1xf32>,
    %267 = vector.extract_strided_slice %254 {offsets = [3, 3], sizes = [5, 1], strides = [1, 1]} : vector<8x8xf32> to vector<5x1xf32>
    %c0_153 = arith.constant 0 : index
    %c21_154 = arith.constant 21 : index
    %c3_155 = arith.constant 3 : index
    %268 = vector.load %arg14[%c0_153, %c21_154, %c3_155] : memref<1x36x4xf32, #tpu.memory_space<vmem>>, vector<1x5x1xf32>
    %269 = vector.shape_cast %268 : vector<1x5x1xf32> to vector<5x1xf32>
    %270 = vector.shape_cast %267 : vector<5x1xf32> to vector<1x5x1xf32>
    tpu.vector_store %arg14[%c0_153, %c21_154, %c3_155], %270 {strides = array<i32>} : memref<1x36x4xf32, #tpu.memory_space<vmem>>, vector<1x5x1xf32>,
    %271 = vector.extract_strided_slice %254 {offsets = [4, 4], sizes = [4, 1], strides = [1, 1]} : vector<8x8xf32> to vector<4x1xf32>
    %c0_156 = arith.constant 0 : index
    %c26_157 = arith.constant 26 : index
    %c3_158 = arith.constant 3 : index
    %272 = vector.load %arg14[%c0_156, %c26_157, %c3_158] : memref<1x36x4xf32, #tpu.memory_space<vmem>>, vector<1x4x1xf32>
    %273 = vector.shape_cast %272 : vector<1x4x1xf32> to vector<4x1xf32>
    %274 = vector.shape_cast %271 : vector<4x1xf32> to vector<1x4x1xf32>
    tpu.vector_store %arg14[%c0_156, %c26_157, %c3_158], %274 {strides = array<i32>} : memref<1x36x4xf32, #tpu.memory_space<vmem>>, vector<1x4x1xf32>,
    %275 = vector.extract_strided_slice %254 {offsets = [5, 5], sizes = [3, 1], strides = [1, 1]} : vector<8x8xf32> to vector<3x1xf32>
    %c0_159 = arith.constant 0 : index
    %c30_160 = arith.constant 30 : index
    %c3_161 = arith.constant 3 : index
    %276 = vector.load %arg14[%c0_159, %c30_160, %c3_161] : memref<1x36x4xf32, #tpu.memory_space<vmem>>, vector<1x3x1xf32>
    %277 = vector.shape_cast %276 : vector<1x3x1xf32> to vector<3x1xf32>
    %278 = vector.shape_cast %275 : vector<3x1xf32> to vector<1x3x1xf32>
    tpu.vector_store %arg14[%c0_159, %c30_160, %c3_161], %278 {strides = array<i32>} : memref<1x36x4xf32, #tpu.memory_space<vmem>>, vector<1x3x1xf32>,
    %279 = vector.extract_strided_slice %254 {offsets = [6, 6], sizes = [2, 1], strides = [1, 1]} : vector<8x8xf32> to vector<2x1xf32>
    %c0_162 = arith.constant 0 : index
    %c33_163 = arith.constant 33 : index
    %c3_164 = arith.constant 3 : index
    %280 = vector.load %arg14[%c0_162, %c33_163, %c3_164] : memref<1x36x4xf32, #tpu.memory_space<vmem>>, vector<1x2x1xf32>
    %281 = vector.shape_cast %280 : vector<1x2x1xf32> to vector<2x1xf32>
    %282 = vector.shape_cast %279 : vector<2x1xf32> to vector<1x2x1xf32>
    tpu.vector_store %arg14[%c0_162, %c33_163, %c3_164], %282 {strides = array<i32>} : memref<1x36x4xf32, #tpu.memory_space<vmem>>, vector<1x2x1xf32>,
    %283 = vector.extract_strided_slice %254 {offsets = [7, 7], sizes = [1, 1], strides = [1, 1]} : vector<8x8xf32> to vector<1x1xf32>
    %c0_165 = arith.constant 0 : index
    %c35_166 = arith.constant 35 : index
    %c3_167 = arith.constant 3 : index
    %284 = vector.load %arg14[%c0_165, %c35_166, %c3_167] : memref<1x36x4xf32, #tpu.memory_space<vmem>>, vector<1x1x1xf32>
    %285 = vector.shape_cast %284 : vector<1x1x1xf32> to vector<1x1xf32>
    %286 = vector.shape_cast %283 : vector<1x1xf32> to vector<1x1x1xf32>
    tpu.vector_store %arg14[%c0_165, %c35_166, %c3_167], %286 {strides = array<i32>} : memref<1x36x4xf32, #tpu.memory_space<vmem>>, vector<1x1x1xf32>,
    %287 = tpu.iota {dimensions = array<i32: 0>} : vector<8x8xi32>
    %288 = tpu.iota {dimensions = array<i32: 1>} : vector<8x8xi32>
    %289 = arith.cmpi sgt, %288, %287 : vector<8x8xi32>
    %cst_168 = arith.constant 0.000000e+00 : f32
    %290 = vector.broadcast %cst_168 : f32 to vector<8x8xf32>
    %291 = arith.select %289, %102, %290 : vector<8x8xi1>, vector<8x8xf32>
    %292 = arith.cmpi eq, %288, %287 : vector<8x8xi32>
    %cst_169 = arith.constant 0.000000e+00 : f32
    %293 = vector.broadcast %cst_169 : f32 to vector<8x8xf32>
    %294 = arith.select %292, %102, %293 : vector<8x8xi1>, vector<8x8xf32>
    %295 = tpu.transpose %291, [1, 0] : vector<8x8xf32> -> vector<8x8xf32>
    %296 = arith.addf %291, %295 : vector<8x8xf32>
    %297 = arith.addf %296, %294 : vector<8x8xf32>
    %cst_170 = arith.constant 0.000000e+00 : f32
    %298 = vector.broadcast %cst_170 : f32 to vector<8x8xf32>
    %299 = arith.cmpf one, %297, %298 : vector<8x8xf32>
    %300 = arith.extui %299 : vector<8x8xi1> to vector<8x8xi32>
    %301 = arith.sitofp %300 : vector<8x8xi32> to vector<8x8xf32>
    %cst_171 = arith.constant dense<0xFF800000> : vector<8xf32>
    %302 = vector.multi_reduction <maximumf>, %297, %cst_171 [1] : vector<8x8xf32> to vector<8xf32>
    %303 = vector.shape_cast %302 : vector<8xf32> to vector<8x1xf32>
    %304 = vector.broadcast %303 : vector<8x1xf32> to vector<8x8xf32>
    %305 = arith.subf %297, %304 : vector<8x8xf32>
    %306 = math.exp %305 : vector<8x8xf32>
    %cst_172 = arith.constant dense<0.000000e+00> : vector<8xf32>
    %307 = vector.multi_reduction <add>, %306, %cst_172 [1] : vector<8x8xf32> to vector<8xf32>
    %308 = vector.shape_cast %307 : vector<8xf32> to vector<8x1xf32>
    %309 = vector.broadcast %308 : vector<8x1xf32> to vector<8x8xf32>
    %310 = arith.divf %306, %309 : vector<8x8xf32>
    %311 = arith.mulf %310, %301 : vector<8x8xf32>
    %312 = arith.cmpi sgt, %288, %287 : vector<8x8xi32>
    %cst_173 = arith.constant 0.000000e+00 : f32
    %313 = vector.broadcast %cst_173 : f32 to vector<8x8xf32>
    %314 = arith.select %312, %115, %313 : vector<8x8xi1>, vector<8x8xf32>
    %315 = arith.cmpi eq, %288, %287 : vector<8x8xi32>
    %cst_174 = arith.constant 0.000000e+00 : f32
    %316 = vector.broadcast %cst_174 : f32 to vector<8x8xf32>
    %317 = arith.select %315, %115, %316 : vector<8x8xi1>, vector<8x8xf32>
    %318 = tpu.transpose %314, [1, 0] : vector<8x8xf32> -> vector<8x8xf32>
    %319 = arith.addf %314, %318 : vector<8x8xf32>
    %320 = arith.addf %319, %317 : vector<8x8xf32>
    %cst_175 = arith.constant 0.000000e+00 : f32
    %321 = vector.broadcast %cst_175 : f32 to vector<8x8xf32>
    %322 = arith.cmpf one, %320, %321 : vector<8x8xf32>
    %323 = arith.extui %322 : vector<8x8xi1> to vector<8x8xi32>
    %324 = arith.sitofp %323 : vector<8x8xi32> to vector<8x8xf32>
    %cst_176 = arith.constant dense<0xFF800000> : vector<8xf32>
    %325 = vector.multi_reduction <maximumf>, %320, %cst_176 [1] : vector<8x8xf32> to vector<8xf32>
    %326 = vector.shape_cast %325 : vector<8xf32> to vector<8x1xf32>
    %327 = vector.broadcast %326 : vector<8x1xf32> to vector<8x8xf32>
    %328 = arith.subf %320, %327 : vector<8x8xf32>
    %329 = math.exp %328 : vector<8x8xf32>
    %cst_177 = arith.constant dense<0.000000e+00> : vector<8xf32>
    %330 = vector.multi_reduction <add>, %329, %cst_177 [1] : vector<8x8xf32> to vector<8xf32>
    %331 = vector.shape_cast %330 : vector<8xf32> to vector<8x1xf32>
    %332 = vector.broadcast %331 : vector<8x1xf32> to vector<8x8xf32>
    %333 = arith.divf %329, %332 : vector<8x8xf32>
    %334 = arith.mulf %333, %324 : vector<8x8xf32>
    %335 = arith.cmpi sgt, %288, %287 : vector<8x8xi32>
    %cst_178 = arith.constant 0.000000e+00 : f32
    %336 = vector.broadcast %cst_178 : f32 to vector<8x8xf32>
    %337 = arith.select %335, %128, %336 : vector<8x8xi1>, vector<8x8xf32>
    %338 = arith.cmpi eq, %288, %287 : vector<8x8xi32>
    %cst_179 = arith.constant 0.000000e+00 : f32
    %339 = vector.broadcast %cst_179 : f32 to vector<8x8xf32>
    %340 = arith.select %338, %128, %339 : vector<8x8xi1>, vector<8x8xf32>
    %341 = tpu.transpose %337, [1, 0] : vector<8x8xf32> -> vector<8x8xf32>
    %342 = arith.addf %337, %341 : vector<8x8xf32>
    %343 = arith.addf %342, %340 : vector<8x8xf32>
    %cst_180 = arith.constant 0.000000e+00 : f32
    %344 = vector.broadcast %cst_180 : f32 to vector<8x8xf32>
    %345 = arith.cmpf one, %343, %344 : vector<8x8xf32>
    %346 = arith.extui %345 : vector<8x8xi1> to vector<8x8xi32>
    %347 = arith.sitofp %346 : vector<8x8xi32> to vector<8x8xf32>
    %cst_181 = arith.constant dense<0xFF800000> : vector<8xf32>
    %348 = vector.multi_reduction <maximumf>, %343, %cst_181 [1] : vector<8x8xf32> to vector<8xf32>
    %349 = vector.shape_cast %348 : vector<8xf32> to vector<8x1xf32>
    %350 = vector.broadcast %349 : vector<8x1xf32> to vector<8x8xf32>
    %351 = arith.subf %343, %350 : vector<8x8xf32>
    %352 = math.exp %351 : vector<8x8xf32>
    %cst_182 = arith.constant dense<0.000000e+00> : vector<8xf32>
    %353 = vector.multi_reduction <add>, %352, %cst_182 [1] : vector<8x8xf32> to vector<8xf32>
    %354 = vector.shape_cast %353 : vector<8xf32> to vector<8x1xf32>
    %355 = vector.broadcast %354 : vector<8x1xf32> to vector<8x8xf32>
    %356 = arith.divf %352, %355 : vector<8x8xf32>
    %357 = arith.mulf %356, %347 : vector<8x8xf32>
    %358 = arith.cmpi sgt, %288, %287 : vector<8x8xi32>
    %cst_183 = arith.constant 0.000000e+00 : f32
    %359 = vector.broadcast %cst_183 : f32 to vector<8x8xf32>
    %360 = arith.select %358, %141, %359 : vector<8x8xi1>, vector<8x8xf32>
    %361 = arith.cmpi eq, %288, %287 : vector<8x8xi32>
    %cst_184 = arith.constant 0.000000e+00 : f32
    %362 = vector.broadcast %cst_184 : f32 to vector<8x8xf32>
    %363 = arith.select %361, %141, %362 : vector<8x8xi1>, vector<8x8xf32>
    %364 = tpu.transpose %360, [1, 0] : vector<8x8xf32> -> vector<8x8xf32>
    %365 = arith.addf %360, %364 : vector<8x8xf32>
    %366 = arith.addf %365, %363 : vector<8x8xf32>
    %cst_185 = arith.constant 0.000000e+00 : f32
    %367 = vector.broadcast %cst_185 : f32 to vector<8x8xf32>
    %368 = arith.cmpf one, %366, %367 : vector<8x8xf32>
    %369 = arith.extui %368 : vector<8x8xi1> to vector<8x8xi32>
    %370 = arith.sitofp %369 : vector<8x8xi32> to vector<8x8xf32>
    %cst_186 = arith.constant dense<0xFF800000> : vector<8xf32>
    %371 = vector.multi_reduction <maximumf>, %366, %cst_186 [1] : vector<8x8xf32> to vector<8xf32>
    %372 = vector.shape_cast %371 : vector<8xf32> to vector<8x1xf32>
    %373 = vector.broadcast %372 : vector<8x1xf32> to vector<8x8xf32>
    %374 = arith.subf %366, %373 : vector<8x8xf32>
    %375 = math.exp %374 : vector<8x8xf32>
    %cst_187 = arith.constant dense<0.000000e+00> : vector<8xf32>
    %376 = vector.multi_reduction <add>, %375, %cst_187 [1] : vector<8x8xf32> to vector<8xf32>
    %377 = vector.shape_cast %376 : vector<8xf32> to vector<8x1xf32>
    %378 = vector.broadcast %377 : vector<8x1xf32> to vector<8x8xf32>
    %379 = arith.divf %375, %378 : vector<8x8xf32>
    %380 = arith.mulf %379, %370 : vector<8x8xf32>
    %381 = arith.cmpi sgt, %288, %287 : vector<8x8xi32>
    %cst_188 = arith.constant 0.000000e+00 : f32
    %382 = vector.broadcast %cst_188 : f32 to vector<8x8xf32>
    %383 = arith.select %381, %154, %382 : vector<8x8xi1>, vector<8x8xf32>
    %384 = arith.cmpi eq, %288, %287 : vector<8x8xi32>
    %cst_189 = arith.constant 0.000000e+00 : f32
    %385 = vector.broadcast %cst_189 : f32 to vector<8x8xf32>
    %386 = arith.select %384, %154, %385 : vector<8x8xi1>, vector<8x8xf32>
    %387 = tpu.transpose %383, [1, 0] : vector<8x8xf32> -> vector<8x8xf32>
    %388 = arith.addf %383, %387 : vector<8x8xf32>
    %389 = arith.addf %388, %386 : vector<8x8xf32>
    %cst_190 = arith.constant 0.000000e+00 : f32
    %390 = vector.broadcast %cst_190 : f32 to vector<8x8xf32>
    %391 = arith.cmpf one, %389, %390 : vector<8x8xf32>
    %392 = arith.extui %391 : vector<8x8xi1> to vector<8x8xi32>
    %393 = arith.sitofp %392 : vector<8x8xi32> to vector<8x8xf32>
    %cst_191 = arith.constant dense<0xFF800000> : vector<8xf32>
    %394 = vector.multi_reduction <maximumf>, %389, %cst_191 [1] : vector<8x8xf32> to vector<8xf32>
    %395 = vector.shape_cast %394 : vector<8xf32> to vector<8x1xf32>
    %396 = vector.broadcast %395 : vector<8x1xf32> to vector<8x8xf32>
    %397 = arith.subf %389, %396 : vector<8x8xf32>
    %398 = math.exp %397 : vector<8x8xf32>
    %cst_192 = arith.constant dense<0.000000e+00> : vector<8xf32>
    %399 = vector.multi_reduction <add>, %398, %cst_192 [1] : vector<8x8xf32> to vector<8xf32>
    %400 = vector.shape_cast %399 : vector<8xf32> to vector<8x1xf32>
    %401 = vector.broadcast %400 : vector<8x1xf32> to vector<8x8xf32>
    %402 = arith.divf %398, %401 : vector<8x8xf32>
    %403 = arith.mulf %402, %393 : vector<8x8xf32>
    %c0_193 = arith.constant 0 : index
    %c0_194 = arith.constant 0 : index
    %c0_195 = arith.constant 0 : index
    %404 = vector.load %arg12[%c0_193, %c0_194, %c0_195] : memref<2x32x160xf32, #tpu.memory_space<vmem>>, vector<1x32x160xf32>
    %405 = vector.shape_cast %404 : vector<1x32x160xf32> to vector<32x160xf32>
    %cst_196 = arith.constant dense<0.000000e+00> : vector<8x160xf32>
    %406 = tpu.matmul %1, %405, %cst_196 {dimension_numbers = #tpu.dot_dimension_numbers<[1], [0], [0], [1], [0, 0, 1, 1], [], []>} : vector<8x32xf32>, vector<32x160xf32>, vector<8x160xf32> -> vector<8x160xf32>
    %cst_197 = arith.constant 0.000000e+00 : f32
    %407 = vector.broadcast %cst_197 : f32 to vector<8x32xf32>
    %408 = vector.extract_strided_slice %406 {offsets = [0, 0], sizes = [8, 32], strides = [1, 1]} : vector<8x160xf32> to vector<8x32xf32>
    %cst_198 = arith.constant dense<0.000000e+00> : vector<8x32xf32>
    %409 = tpu.matmul %311, %408, %cst_198 {dimension_numbers = #tpu.dot_dimension_numbers<[1], [0], [0], [1], [0, 0, 1, 1], [], []>} : vector<8x8xf32>, vector<8x32xf32>, vector<8x32xf32> -> vector<8x32xf32>
    %cst_199 = arith.constant 0.000000e+00 : f32
    %410 = vector.broadcast %cst_199 : f32 to vector<8x32xf32>
    %411 = arith.maximumf %409, %410 : vector<8x32xf32>
    %412 = arith.addf %407, %411 : vector<8x32xf32>
    %413 = vector.extract_strided_slice %406 {offsets = [0, 32], sizes = [8, 32], strides = [1, 1]} : vector<8x160xf32> to vector<8x32xf32>
    %cst_200 = arith.constant dense<0.000000e+00> : vector<8x32xf32>
    %414 = tpu.matmul %334, %413, %cst_200 {dimension_numbers = #tpu.dot_dimension_numbers<[1], [0], [0], [1], [0, 0, 1, 1], [], []>} : vector<8x8xf32>, vector<8x32xf32>, vector<8x32xf32> -> vector<8x32xf32>
    %cst_201 = arith.constant 0.000000e+00 : f32
    %415 = vector.broadcast %cst_201 : f32 to vector<8x32xf32>
    %416 = arith.maximumf %414, %415 : vector<8x32xf32>
    %417 = arith.addf %412, %416 : vector<8x32xf32>
    %418 = vector.extract_strided_slice %406 {offsets = [0, 64], sizes = [8, 32], strides = [1, 1]} : vector<8x160xf32> to vector<8x32xf32>
    %cst_202 = arith.constant dense<0.000000e+00> : vector<8x32xf32>
    %419 = tpu.matmul %357, %418, %cst_202 {dimension_numbers = #tpu.dot_dimension_numbers<[1], [0], [0], [1], [0, 0, 1, 1], [], []>} : vector<8x8xf32>, vector<8x32xf32>, vector<8x32xf32> -> vector<8x32xf32>
    %cst_203 = arith.constant 0.000000e+00 : f32
    %420 = vector.broadcast %cst_203 : f32 to vector<8x32xf32>
    %421 = arith.maximumf %419, %420 : vector<8x32xf32>
    %422 = arith.addf %417, %421 : vector<8x32xf32>
    %423 = vector.extract_strided_slice %406 {offsets = [0, 96], sizes = [8, 32], strides = [1, 1]} : vector<8x160xf32> to vector<8x32xf32>
    %cst_204 = arith.constant dense<0.000000e+00> : vector<8x32xf32>
    %424 = tpu.matmul %380, %423, %cst_204 {dimension_numbers = #tpu.dot_dimension_numbers<[1], [0], [0], [1], [0, 0, 1, 1], [], []>} : vector<8x8xf32>, vector<8x32xf32>, vector<8x32xf32> -> vector<8x32xf32>
    %cst_205 = arith.constant 0.000000e+00 : f32
    %425 = vector.broadcast %cst_205 : f32 to vector<8x32xf32>
    %426 = arith.maximumf %424, %425 : vector<8x32xf32>
    %427 = arith.addf %422, %426 : vector<8x32xf32>
    %428 = vector.extract_strided_slice %406 {offsets = [0, 128], sizes = [8, 32], strides = [1, 1]} : vector<8x160xf32> to vector<8x32xf32>
    %cst_206 = arith.constant dense<0.000000e+00> : vector<8x32xf32>
    %429 = tpu.matmul %403, %428, %cst_206 {dimension_numbers = #tpu.dot_dimension_numbers<[1], [0], [0], [1], [0, 0, 1, 1], [], []>} : vector<8x8xf32>, vector<8x32xf32>, vector<8x32xf32> -> vector<8x32xf32>
    %cst_207 = arith.constant 0.000000e+00 : f32
    %430 = vector.broadcast %cst_207 : f32 to vector<8x32xf32>
    %431 = arith.maximumf %429, %430 : vector<8x32xf32>
    %432 = arith.addf %427, %431 : vector<8x32xf32>
    %cst_208 = arith.constant 0.000000e+00 : f32
    %433 = vector.broadcast %cst_208 : f32 to vector<8x32xf32>
    %434 = arith.maximumf %432, %433 : vector<8x32xf32>
    %cst_209 = arith.constant 5.000000e+00 : f32
    %435 = vector.broadcast %cst_209 : f32 to vector<8x32xf32>
    %436 = arith.divf %434, %435 : vector<8x32xf32>
    %cst_210 = arith.constant dense<0.000000e+00> : vector<8xf32>
    %437 = vector.multi_reduction <add>, %436, %cst_210 [1] : vector<8x32xf32> to vector<8xf32>
    %438 = vector.shape_cast %437 : vector<8xf32> to vector<8x1xf32>
    %cst_211 = arith.constant 3.200000e+01 : f32
    %439 = vector.broadcast %cst_211 : f32 to vector<8x1xf32>
    %440 = arith.divf %438, %439 : vector<8x1xf32>
    %441 = vector.broadcast %440 : vector<8x1xf32> to vector<8x32xf32>
    %442 = arith.subf %436, %441 : vector<8x32xf32>
    %443 = arith.mulf %442, %442 : vector<8x32xf32>
    %cst_212 = arith.constant dense<0.000000e+00> : vector<8xf32>
    %444 = vector.multi_reduction <add>, %443, %cst_212 [1] : vector<8x32xf32> to vector<8xf32>
    %445 = vector.shape_cast %444 : vector<8xf32> to vector<8x1xf32>
    %cst_213 = arith.constant 3.200000e+01 : f32
    %446 = vector.broadcast %cst_213 : f32 to vector<8x1xf32>
    %447 = arith.divf %445, %446 : vector<8x1xf32>
    %448 = vector.broadcast %440 : vector<8x1xf32> to vector<8x32xf32>
    %449 = arith.subf %436, %448 : vector<8x32xf32>
    %cst_214 = arith.constant 9.99999974E-6 : f32
    %450 = vector.broadcast %cst_214 : f32 to vector<8x1xf32>
    %451 = arith.addf %447, %450 : vector<8x1xf32>
    %452 = math.rsqrt %451 : vector<8x1xf32>
    %453 = vector.broadcast %452 : vector<8x1xf32> to vector<8x32xf32>
    %454 = arith.mulf %449, %453 : vector<8x32xf32>
    %c1_215 = arith.constant 1 : index
    %c0_216 = arith.constant 0 : index
    %c0_217 = arith.constant 0 : index
    %455 = vector.load %arg12[%c1_215, %c0_216, %c0_217] : memref<2x32x160xf32, #tpu.memory_space<vmem>>, vector<1x32x160xf32>
    %456 = vector.shape_cast %455 : vector<1x32x160xf32> to vector<32x160xf32>
    %cst_218 = arith.constant dense<0.000000e+00> : vector<8x160xf32>
    %457 = tpu.matmul %454, %456, %cst_218 {dimension_numbers = #tpu.dot_dimension_numbers<[1], [0], [0], [1], [0, 0, 1, 1], [], []>} : vector<8x32xf32>, vector<32x160xf32>, vector<8x160xf32> -> vector<8x160xf32>
    %cst_219 = arith.constant 0.000000e+00 : f32
    %458 = vector.broadcast %cst_219 : f32 to vector<8x32xf32>
    %459 = vector.extract_strided_slice %457 {offsets = [0, 0], sizes = [8, 32], strides = [1, 1]} : vector<8x160xf32> to vector<8x32xf32>
    %cst_220 = arith.constant dense<0.000000e+00> : vector<8x32xf32>
    %460 = tpu.matmul %311, %459, %cst_220 {dimension_numbers = #tpu.dot_dimension_numbers<[1], [0], [0], [1], [0, 0, 1, 1], [], []>} : vector<8x8xf32>, vector<8x32xf32>, vector<8x32xf32> -> vector<8x32xf32>
    %cst_221 = arith.constant 0.000000e+00 : f32
    %461 = vector.broadcast %cst_221 : f32 to vector<8x32xf32>
    %462 = arith.maximumf %460, %461 : vector<8x32xf32>
    %463 = arith.addf %458, %462 : vector<8x32xf32>
    %464 = vector.extract_strided_slice %457 {offsets = [0, 32], sizes = [8, 32], strides = [1, 1]} : vector<8x160xf32> to vector<8x32xf32>
    %cst_222 = arith.constant dense<0.000000e+00> : vector<8x32xf32>
    %465 = tpu.matmul %334, %464, %cst_222 {dimension_numbers = #tpu.dot_dimension_numbers<[1], [0], [0], [1], [0, 0, 1, 1], [], []>} : vector<8x8xf32>, vector<8x32xf32>, vector<8x32xf32> -> vector<8x32xf32>
    %cst_223 = arith.constant 0.000000e+00 : f32
    %466 = vector.broadcast %cst_223 : f32 to vector<8x32xf32>
    %467 = arith.maximumf %465, %466 : vector<8x32xf32>
    %468 = arith.addf %463, %467 : vector<8x32xf32>
    %469 = vector.extract_strided_slice %457 {offsets = [0, 64], sizes = [8, 32], strides = [1, 1]} : vector<8x160xf32> to vector<8x32xf32>
    %cst_224 = arith.constant dense<0.000000e+00> : vector<8x32xf32>
    %470 = tpu.matmul %357, %469, %cst_224 {dimension_numbers = #tpu.dot_dimension_numbers<[1], [0], [0], [1], [0, 0, 1, 1], [], []>} : vector<8x8xf32>, vector<8x32xf32>, vector<8x32xf32> -> vector<8x32xf32>
    %cst_225 = arith.constant 0.000000e+00 : f32
    %471 = vector.broadcast %cst_225 : f32 to vector<8x32xf32>
    %472 = arith.maximumf %470, %471 : vector<8x32xf32>
    %473 = arith.addf %468, %472 : vector<8x32xf32>
    %474 = vector.extract_strided_slice %457 {offsets = [0, 96], sizes = [8, 32], strides = [1, 1]} : vector<8x160xf32> to vector<8x32xf32>
    %cst_226 = arith.constant dense<0.000000e+00> : vector<8x32xf32>
    %475 = tpu.matmul %380, %474, %cst_226 {dimension_numbers = #tpu.dot_dimension_numbers<[1], [0], [0], [1], [0, 0, 1, 1], [], []>} : vector<8x8xf32>, vector<8x32xf32>, vector<8x32xf32> -> vector<8x32xf32>
    %cst_227 = arith.constant 0.000000e+00 : f32
    %476 = vector.broadcast %cst_227 : f32 to vector<8x32xf32>
    %477 = arith.maximumf %475, %476 : vector<8x32xf32>
    %478 = arith.addf %473, %477 : vector<8x32xf32>
    %479 = vector.extract_strided_slice %457 {offsets = [0, 128], sizes = [8, 32], strides = [1, 1]} : vector<8x160xf32> to vector<8x32xf32>
    %cst_228 = arith.constant dense<0.000000e+00> : vector<8x32xf32>
    %480 = tpu.matmul %403, %479, %cst_228 {dimension_numbers = #tpu.dot_dimension_numbers<[1], [0], [0], [1], [0, 0, 1, 1], [], []>} : vector<8x8xf32>, vector<8x32xf32>, vector<8x32xf32> -> vector<8x32xf32>
    %cst_229 = arith.constant 0.000000e+00 : f32
    %481 = vector.broadcast %cst_229 : f32 to vector<8x32xf32>
    %482 = arith.maximumf %480, %481 : vector<8x32xf32>
    %483 = arith.addf %478, %482 : vector<8x32xf32>
    %cst_230 = arith.constant 0.000000e+00 : f32
    %484 = vector.broadcast %cst_230 : f32 to vector<8x32xf32>
    %485 = arith.maximumf %483, %484 : vector<8x32xf32>
    %cst_231 = arith.constant 5.000000e+00 : f32
    %486 = vector.broadcast %cst_231 : f32 to vector<8x32xf32>
    %487 = arith.divf %485, %486 : vector<8x32xf32>
    %cst_232 = arith.constant dense<0.000000e+00> : vector<8xf32>
    %488 = vector.multi_reduction <add>, %487, %cst_232 [1] : vector<8x32xf32> to vector<8xf32>
    %489 = vector.shape_cast %488 : vector<8xf32> to vector<8x1xf32>
    %cst_233 = arith.constant 3.200000e+01 : f32
    %490 = vector.broadcast %cst_233 : f32 to vector<8x1xf32>
    %491 = arith.divf %489, %490 : vector<8x1xf32>
    %492 = vector.broadcast %491 : vector<8x1xf32> to vector<8x32xf32>
    %493 = arith.subf %487, %492 : vector<8x32xf32>
    %494 = arith.mulf %493, %493 : vector<8x32xf32>
    %cst_234 = arith.constant dense<0.000000e+00> : vector<8xf32>
    %495 = vector.multi_reduction <add>, %494, %cst_234 [1] : vector<8x32xf32> to vector<8xf32>
    %496 = vector.shape_cast %495 : vector<8xf32> to vector<8x1xf32>
    %cst_235 = arith.constant 3.200000e+01 : f32
    %497 = vector.broadcast %cst_235 : f32 to vector<8x1xf32>
    %498 = arith.divf %496, %497 : vector<8x1xf32>
    %499 = vector.broadcast %491 : vector<8x1xf32> to vector<8x32xf32>
    %500 = arith.subf %487, %499 : vector<8x32xf32>
    %cst_236 = arith.constant 9.99999974E-6 : f32
    %501 = vector.broadcast %cst_236 : f32 to vector<8x1xf32>
    %502 = arith.addf %498, %501 : vector<8x1xf32>
    %503 = math.rsqrt %502 : vector<8x1xf32>
    %504 = vector.broadcast %503 : vector<8x1xf32> to vector<8x32xf32>
    %505 = arith.mulf %500, %504 : vector<8x32xf32>
    %c0_237 = arith.constant 0 : index
    %c0_238 = arith.constant 0 : index
    %c0_239 = arith.constant 0 : index
    %506 = vector.load %arg13[%c0_237, %c0_238, %c0_239] : memref<1x8x32xf32, #tpu.memory_space<vmem>>, vector<1x8x32xf32>
    %507 = vector.shape_cast %506 : vector<1x8x32xf32> to vector<8x32xf32>
    %508 = vector.shape_cast %505 : vector<8x32xf32> to vector<1x8x32xf32>
    tpu.vector_store %arg13[%c0_237, %c0_238, %c0_239], %508 {strides = array<i32>} : memref<1x8x32xf32, #tpu.memory_space<vmem>>, vector<1x8x32xf32>,
    return
  }
  func.func @transform_0(%arg0: i32) -> (i32, i32, i32) {
    %c0_i32 = arith.constant 0 : i32
    %c0_i32_0 = arith.constant 0 : i32
    %c0_i32_1 = arith.constant 0 : i32
    return %arg0, %c0_i32, %c0_i32_0 : i32, i32, i32
  }
  func.func @transform_1(%arg0: i32) -> (i32, i32, i32) {
    %c0_i32 = arith.constant 0 : i32
    %c0_i32_0 = arith.constant 0 : i32
    %c0_i32_1 = arith.constant 0 : i32
    return %arg0, %c0_i32, %c0_i32_0 : i32, i32, i32
  }
  func.func @transform_2(%arg0: i32) -> (i32, i32) {
    %c0_i32 = arith.constant 0 : i32
    %c0_i32_0 = arith.constant 0 : i32
    %c0_i32_1 = arith.constant 0 : i32
    return %c0_i32, %c0_i32_0 : i32, i32
  }
  func.func @transform_3(%arg0: i32) -> (i32, i32) {
    %c0_i32 = arith.constant 0 : i32
    %c0_i32_0 = arith.constant 0 : i32
    %c0_i32_1 = arith.constant 0 : i32
    return %c0_i32, %c0_i32_0 : i32, i32
  }
  func.func @transform_4(%arg0: i32) -> (i32, i32) {
    %c0_i32 = arith.constant 0 : i32
    %c0_i32_0 = arith.constant 0 : i32
    %c0_i32_1 = arith.constant 0 : i32
    return %c0_i32, %c0_i32_0 : i32, i32
  }
  func.func @transform_5(%arg0: i32) -> (i32, i32) {
    %c0_i32 = arith.constant 0 : i32
    %c0_i32_0 = arith.constant 0 : i32
    %c0_i32_1 = arith.constant 0 : i32
    return %c0_i32, %c0_i32_0 : i32, i32
  }
  func.func @transform_6(%arg0: i32) -> (i32, i32) {
    %c0_i32 = arith.constant 0 : i32
    %c0_i32_0 = arith.constant 0 : i32
    %c0_i32_1 = arith.constant 0 : i32
    return %c0_i32, %c0_i32_0 : i32, i32
  }
  func.func @transform_7(%arg0: i32) -> (i32, i32) {
    %c0_i32 = arith.constant 0 : i32
    %c0_i32_0 = arith.constant 0 : i32
    %c0_i32_1 = arith.constant 0 : i32
    return %c0_i32, %c0_i32_0 : i32, i32
  }
  func.func @transform_8(%arg0: i32) -> (i32, i32) {
    %c0_i32 = arith.constant 0 : i32
    %c0_i32_0 = arith.constant 0 : i32
    %c0_i32_1 = arith.constant 0 : i32
    return %c0_i32, %c0_i32_0 : i32, i32
  }
  func.func @transform_9(%arg0: i32) -> (i32, i32) {
    %c0_i32 = arith.constant 0 : i32
    %c0_i32_0 = arith.constant 0 : i32
    %c0_i32_1 = arith.constant 0 : i32
    return %c0_i32, %c0_i32_0 : i32, i32
  }
  func.func @transform_10(%arg0: i32) -> (i32, i32) {
    %c0_i32 = arith.constant 0 : i32
    %c0_i32_0 = arith.constant 0 : i32
    %c0_i32_1 = arith.constant 0 : i32
    return %c0_i32, %c0_i32_0 : i32, i32
  }
  func.func @transform_11(%arg0: i32) -> (i32, i32, i32) {
    %c0_i32 = arith.constant 0 : i32
    %c0_i32_0 = arith.constant 0 : i32
    %c0_i32_1 = arith.constant 0 : i32
    %c0_i32_2 = arith.constant 0 : i32
    return %c0_i32, %c0_i32_0, %c0_i32_1 : i32, i32, i32
  }
  func.func @transform_12(%arg0: i32) -> (i32, i32, i32) {
    %c0_i32 = arith.constant 0 : i32
    %c0_i32_0 = arith.constant 0 : i32
    %c0_i32_1 = arith.constant 0 : i32
    return %arg0, %c0_i32, %c0_i32_0 : i32, i32, i32
  }
  func.func @transform_13(%arg0: i32) -> (i32, i32, i32) {
    %c0_i32 = arith.constant 0 : i32
    %c0_i32_0 = arith.constant 0 : i32
    %c0_i32_1 = arith.constant 0 : i32
    return %arg0, %c0_i32, %c0_i32_0 : i32, i32, i32
  }
  func.func @transform_14(%arg0: i32) -> (i32, i32, i32) {
    %c0_i32 = arith.constant 0 : i32
    %c0_i32_0 = arith.constant 0 : i32
    %c0_i32_1 = arith.constant 0 : i32
    return %arg0, %c0_i32, %c0_i32_0 : i32, i32, i32
  }
}

module attributes {stable_mosaic.version = 11 : i64} {
  func.func @_pred_kernel(%arg0: i32, %arg1: memref<1x8x32xf32, #tpu.memory_space<vmem>>, %arg2: memref<1x8x32xf32, #tpu.memory_space<vmem>>, %arg3: memref<1x8x1xf32, #tpu.memory_space<vmem>>, %arg4: memref<8x64xf32, #tpu.memory_space<vmem>>, %arg5: memref<8x64xf32, #tpu.memory_space<vmem>>, %arg6: memref<64x64xf32, #tpu.memory_space<vmem>>, %arg7: memref<32x128xf32, #tpu.memory_space<vmem>>, %arg8: memref<32x128xf32, #tpu.memory_space<vmem>>, %arg9: memref<1x128xf32, #tpu.memory_space<vmem>>, %arg10: memref<32x256xf32, #tpu.memory_space<vmem>>, %arg11: memref<32x256xf32, #tpu.memory_space<vmem>>, %arg12: memref<1x256xf32, #tpu.memory_space<vmem>>, %arg13: memref<256x384xf32, #tpu.memory_space<vmem>>, %arg14: memref<1x384xf32, #tpu.memory_space<vmem>>, %arg15: memref<1x36x3xf32, #tpu.memory_space<vmem>>, %arg16: memref<1x36x1xf32, #tpu.memory_space<vmem>>) attributes {dimension_semantics = [#tpu.dimension_semantics<parallel>], iteration_bounds = array<i64: 2>, scalar_prefetch = 0 : i64, scratch_operands = 0 : i64, tpu.core_type = #tpu.core_type<tc>, window_params = [{transform_indices = @transform_0, window_bounds = array<i64: 1, 8, 32>}, {transform_indices = @transform_1, window_bounds = array<i64: 1, 8, 32>}, {transform_indices = @transform_2, window_bounds = array<i64: 1, 8, 1>}, {pipeline_mode = #tpu.pipeline_mode<synchronous>, transform_indices = @transform_3, window_bounds = array<i64: 8, 64>}, {pipeline_mode = #tpu.pipeline_mode<synchronous>, transform_indices = @transform_4, window_bounds = array<i64: 8, 64>}, {pipeline_mode = #tpu.pipeline_mode<synchronous>, transform_indices = @transform_5, window_bounds = array<i64: 64, 64>}, {pipeline_mode = #tpu.pipeline_mode<synchronous>, transform_indices = @transform_6, window_bounds = array<i64: 32, 128>}, {pipeline_mode = #tpu.pipeline_mode<synchronous>, transform_indices = @transform_7, window_bounds = array<i64: 32, 128>}, {pipeline_mode = #tpu.pipeline_mode<synchronous>, transform_indices = @transform_8, window_bounds = array<i64: 1, 128>}, {pipeline_mode = #tpu.pipeline_mode<synchronous>, transform_indices = @transform_9, window_bounds = array<i64: 32, 256>}, {pipeline_mode = #tpu.pipeline_mode<synchronous>, transform_indices = @transform_10, window_bounds = array<i64: 32, 256>}, {pipeline_mode = #tpu.pipeline_mode<synchronous>, transform_indices = @transform_11, window_bounds = array<i64: 1, 256>}, {pipeline_mode = #tpu.pipeline_mode<synchronous>, transform_indices = @transform_12, window_bounds = array<i64: 256, 384>}, {pipeline_mode = #tpu.pipeline_mode<synchronous>, transform_indices = @transform_13, window_bounds = array<i64: 1, 384>}, {transform_indices = @transform_14, window_bounds = array<i64: 1, 36, 3>}, {transform_indices = @transform_15, window_bounds = array<i64: 1, 36, 1>}]} {
    %c0 = arith.constant 0 : index
    %c0_0 = arith.constant 0 : index
    %c0_1 = arith.constant 0 : index
    %0 = vector.load %arg1[%c0, %c0_0, %c0_1] : memref<1x8x32xf32, #tpu.memory_space<vmem>>, vector<1x8x32xf32>
    %1 = vector.shape_cast %0 : vector<1x8x32xf32> to vector<8x32xf32>
    %c0_2 = arith.constant 0 : index
    %c0_3 = arith.constant 0 : index
    %c0_4 = arith.constant 0 : index
    %2 = vector.load %arg2[%c0_2, %c0_3, %c0_4] : memref<1x8x32xf32, #tpu.memory_space<vmem>>, vector<1x8x32xf32>
    %3 = vector.shape_cast %2 : vector<1x8x32xf32> to vector<8x32xf32>
    %c0_5 = arith.constant 0 : index
    %c0_6 = arith.constant 0 : index
    %c0_7 = arith.constant 0 : index
    %4 = vector.load %arg3[%c0_5, %c0_6, %c0_7] : memref<1x8x1xf32, #tpu.memory_space<vmem>>, vector<1x8x1xf32>
    %5 = vector.shape_cast %4 : vector<1x8x1xf32> to vector<8x1xf32>
    %c0_8 = arith.constant 0 : index
    %c0_9 = arith.constant 0 : index
    %6 = vector.load %arg4[%c0_8, %c0_9] : memref<8x64xf32, #tpu.memory_space<vmem>>, vector<8x64xf32>
    %c0_10 = arith.constant 0 : index
    %c0_11 = arith.constant 0 : index
    %7 = vector.load %arg5[%c0_10, %c0_11] : memref<8x64xf32, #tpu.memory_space<vmem>>, vector<8x64xf32>
    %c0_12 = arith.constant 0 : index
    %c0_13 = arith.constant 0 : index
    %8 = vector.load %arg6[%c0_12, %c0_13] : memref<64x64xf32, #tpu.memory_space<vmem>>, vector<64x64xf32>
    %c0_14 = arith.constant 0 : index
    %c0_15 = arith.constant 0 : index
    %9 = vector.load %arg7[%c0_14, %c0_15] : memref<32x128xf32, #tpu.memory_space<vmem>>, vector<32x128xf32>
    %cst = arith.constant dense<0.000000e+00> : vector<8x128xf32>
    %10 = tpu.matmul %1, %9, %cst {dimension_numbers = #tpu.dot_dimension_numbers<[1], [0], [0], [1], [0, 0, 1, 1], [], []>} : vector<8x32xf32>, vector<32x128xf32>, vector<8x128xf32> -> vector<8x128xf32>
    %c0_16 = arith.constant 0 : index
    %c0_17 = arith.constant 0 : index
    %11 = vector.load %arg8[%c0_16, %c0_17] : memref<32x128xf32, #tpu.memory_space<vmem>>, vector<32x128xf32>
    %cst_18 = arith.constant dense<0.000000e+00> : vector<8x128xf32>
    %12 = tpu.matmul %3, %11, %cst_18 {dimension_numbers = #tpu.dot_dimension_numbers<[1], [0], [0], [1], [0, 0, 1, 1], [], []>} : vector<8x32xf32>, vector<32x128xf32>, vector<8x128xf32> -> vector<8x128xf32>
    %13 = arith.addf %10, %12 : vector<8x128xf32>
    %c0_19 = arith.constant 0 : index
    %c0_20 = arith.constant 0 : index
    %14 = vector.load %arg9[%c0_19, %c0_20] : memref<1x128xf32, #tpu.memory_space<vmem>>, vector<1x128xf32>
    %15 = vector.broadcast %14 : vector<1x128xf32> to vector<8x128xf32>
    %16 = arith.addf %13, %15 : vector<8x128xf32>
    %17 = vector.broadcast %5 : vector<8x1xf32> to vector<8x128xf32>
    %18 = arith.mulf %16, %17 : vector<8x128xf32>
    %19 = vector.extract_strided_slice %18 {offsets = [0, 0], sizes = [8, 64], strides = [1, 1]} : vector<8x128xf32> to vector<8x64xf32>
    %20 = arith.mulf %19, %6 : vector<8x64xf32>
    %cst_21 = arith.constant dense<0.000000e+00> : vector<8x64xf32>
    %21 = tpu.matmul %19, %8, %cst_21 {dimension_numbers = #tpu.dot_dimension_numbers<[1], [0], [0], [1], [0, 0, 1, 1], [], []>} : vector<8x64xf32>, vector<64x64xf32>, vector<8x64xf32> -> vector<8x64xf32>
    %22 = arith.mulf %21, %7 : vector<8x64xf32>
    %23 = arith.addf %20, %22 : vector<8x64xf32>
    %24 = vector.extract_strided_slice %18 {offsets = [0, 64], sizes = [8, 64], strides = [1, 1]} : vector<8x128xf32> to vector<8x64xf32>
    %25 = arith.mulf %24, %6 : vector<8x64xf32>
    %cst_22 = arith.constant dense<0.000000e+00> : vector<8x64xf32>
    %26 = tpu.matmul %24, %8, %cst_22 {dimension_numbers = #tpu.dot_dimension_numbers<[1], [0], [0], [1], [0, 0, 1, 1], [], []>} : vector<8x64xf32>, vector<64x64xf32>, vector<8x64xf32> -> vector<8x64xf32>
    %27 = arith.mulf %26, %7 : vector<8x64xf32>
    %28 = arith.addf %25, %27 : vector<8x64xf32>
    %cst_23 = arith.constant dense<0.000000e+00> : vector<8x8xf32>
    %29 = tpu.matmul %23, %28, %cst_23 {dimension_numbers = #tpu.dot_dimension_numbers<[1], [1], [0], [0], [0, 0, 1, 0], [], []>} : vector<8x64xf32>, vector<8x64xf32>, vector<8x8xf32> -> vector<8x8xf32>
    %cst_24 = arith.constant 1.250000e-01 : f32
    %30 = vector.broadcast %cst_24 : f32 to vector<8x8xf32>
    %31 = arith.mulf %29, %30 : vector<8x8xf32>
    %32 = tpu.transpose %31, [1, 0] : vector<8x8xf32> -> vector<8x8xf32>
    %33 = vector.extract_strided_slice %32 {offsets = [0, 0], sizes = [8, 1], strides = [1, 1]} : vector<8x8xf32> to vector<8x1xf32>
    %cst_25 = arith.constant 0.000000e+00 : f32
    %34 = vector.broadcast %cst_25 : f32 to vector<8x1xf32>
    %35 = arith.maximumf %33, %34 : vector<8x1xf32>
    %c0_26 = arith.constant 0 : index
    %c0_27 = arith.constant 0 : index
    %c0_28 = arith.constant 0 : index
    %36 = vector.load %arg16[%c0_26, %c0_27, %c0_28] : memref<1x36x1xf32, #tpu.memory_space<vmem>>, vector<1x8x1xf32>
    %37 = vector.shape_cast %36 : vector<1x8x1xf32> to vector<8x1xf32>
    %38 = vector.shape_cast %35 : vector<8x1xf32> to vector<1x8x1xf32>
    tpu.vector_store %arg16[%c0_26, %c0_27, %c0_28], %38 {strides = array<i32>} : memref<1x36x1xf32, #tpu.memory_space<vmem>>, vector<1x8x1xf32>,
    %39 = vector.extract_strided_slice %32 {offsets = [1, 1], sizes = [7, 1], strides = [1, 1]} : vector<8x8xf32> to vector<7x1xf32>
    %cst_29 = arith.constant 0.000000e+00 : f32
    %40 = vector.broadcast %cst_29 : f32 to vector<7x1xf32>
    %41 = arith.maximumf %39, %40 : vector<7x1xf32>
    %c0_30 = arith.constant 0 : index
    %c8 = arith.constant 8 : index
    %c0_31 = arith.constant 0 : index
    %42 = vector.load %arg16[%c0_30, %c8, %c0_31] : memref<1x36x1xf32, #tpu.memory_space<vmem>>, vector<1x7x1xf32>
    %43 = vector.shape_cast %42 : vector<1x7x1xf32> to vector<7x1xf32>
    %44 = vector.shape_cast %41 : vector<7x1xf32> to vector<1x7x1xf32>
    tpu.vector_store %arg16[%c0_30, %c8, %c0_31], %44 {strides = array<i32>} : memref<1x36x1xf32, #tpu.memory_space<vmem>>, vector<1x7x1xf32>,
    %45 = vector.extract_strided_slice %32 {offsets = [2, 2], sizes = [6, 1], strides = [1, 1]} : vector<8x8xf32> to vector<6x1xf32>
    %cst_32 = arith.constant 0.000000e+00 : f32
    %46 = vector.broadcast %cst_32 : f32 to vector<6x1xf32>
    %47 = arith.maximumf %45, %46 : vector<6x1xf32>
    %c0_33 = arith.constant 0 : index
    %c15 = arith.constant 15 : index
    %c0_34 = arith.constant 0 : index
    %48 = vector.load %arg16[%c0_33, %c15, %c0_34] : memref<1x36x1xf32, #tpu.memory_space<vmem>>, vector<1x6x1xf32>
    %49 = vector.shape_cast %48 : vector<1x6x1xf32> to vector<6x1xf32>
    %50 = vector.shape_cast %47 : vector<6x1xf32> to vector<1x6x1xf32>
    tpu.vector_store %arg16[%c0_33, %c15, %c0_34], %50 {strides = array<i32>} : memref<1x36x1xf32, #tpu.memory_space<vmem>>, vector<1x6x1xf32>,
    %51 = vector.extract_strided_slice %32 {offsets = [3, 3], sizes = [5, 1], strides = [1, 1]} : vector<8x8xf32> to vector<5x1xf32>
    %cst_35 = arith.constant 0.000000e+00 : f32
    %52 = vector.broadcast %cst_35 : f32 to vector<5x1xf32>
    %53 = arith.maximumf %51, %52 : vector<5x1xf32>
    %c0_36 = arith.constant 0 : index
    %c21 = arith.constant 21 : index
    %c0_37 = arith.constant 0 : index
    %54 = vector.load %arg16[%c0_36, %c21, %c0_37] : memref<1x36x1xf32, #tpu.memory_space<vmem>>, vector<1x5x1xf32>
    %55 = vector.shape_cast %54 : vector<1x5x1xf32> to vector<5x1xf32>
    %56 = vector.shape_cast %53 : vector<5x1xf32> to vector<1x5x1xf32>
    tpu.vector_store %arg16[%c0_36, %c21, %c0_37], %56 {strides = array<i32>} : memref<1x36x1xf32, #tpu.memory_space<vmem>>, vector<1x5x1xf32>,
    %57 = vector.extract_strided_slice %32 {offsets = [4, 4], sizes = [4, 1], strides = [1, 1]} : vector<8x8xf32> to vector<4x1xf32>
    %cst_38 = arith.constant 0.000000e+00 : f32
    %58 = vector.broadcast %cst_38 : f32 to vector<4x1xf32>
    %59 = arith.maximumf %57, %58 : vector<4x1xf32>
    %c0_39 = arith.constant 0 : index
    %c26 = arith.constant 26 : index
    %c0_40 = arith.constant 0 : index
    %60 = vector.load %arg16[%c0_39, %c26, %c0_40] : memref<1x36x1xf32, #tpu.memory_space<vmem>>, vector<1x4x1xf32>
    %61 = vector.shape_cast %60 : vector<1x4x1xf32> to vector<4x1xf32>
    %62 = vector.shape_cast %59 : vector<4x1xf32> to vector<1x4x1xf32>
    tpu.vector_store %arg16[%c0_39, %c26, %c0_40], %62 {strides = array<i32>} : memref<1x36x1xf32, #tpu.memory_space<vmem>>, vector<1x4x1xf32>,
    %63 = vector.extract_strided_slice %32 {offsets = [5, 5], sizes = [3, 1], strides = [1, 1]} : vector<8x8xf32> to vector<3x1xf32>
    %cst_41 = arith.constant 0.000000e+00 : f32
    %64 = vector.broadcast %cst_41 : f32 to vector<3x1xf32>
    %65 = arith.maximumf %63, %64 : vector<3x1xf32>
    %c0_42 = arith.constant 0 : index
    %c30 = arith.constant 30 : index
    %c0_43 = arith.constant 0 : index
    %66 = vector.load %arg16[%c0_42, %c30, %c0_43] : memref<1x36x1xf32, #tpu.memory_space<vmem>>, vector<1x3x1xf32>
    %67 = vector.shape_cast %66 : vector<1x3x1xf32> to vector<3x1xf32>
    %68 = vector.shape_cast %65 : vector<3x1xf32> to vector<1x3x1xf32>
    tpu.vector_store %arg16[%c0_42, %c30, %c0_43], %68 {strides = array<i32>} : memref<1x36x1xf32, #tpu.memory_space<vmem>>, vector<1x3x1xf32>,
    %69 = vector.extract_strided_slice %32 {offsets = [6, 6], sizes = [2, 1], strides = [1, 1]} : vector<8x8xf32> to vector<2x1xf32>
    %cst_44 = arith.constant 0.000000e+00 : f32
    %70 = vector.broadcast %cst_44 : f32 to vector<2x1xf32>
    %71 = arith.maximumf %69, %70 : vector<2x1xf32>
    %c0_45 = arith.constant 0 : index
    %c33 = arith.constant 33 : index
    %c0_46 = arith.constant 0 : index
    %72 = vector.load %arg16[%c0_45, %c33, %c0_46] : memref<1x36x1xf32, #tpu.memory_space<vmem>>, vector<1x2x1xf32>
    %73 = vector.shape_cast %72 : vector<1x2x1xf32> to vector<2x1xf32>
    %74 = vector.shape_cast %71 : vector<2x1xf32> to vector<1x2x1xf32>
    tpu.vector_store %arg16[%c0_45, %c33, %c0_46], %74 {strides = array<i32>} : memref<1x36x1xf32, #tpu.memory_space<vmem>>, vector<1x2x1xf32>,
    %75 = vector.extract_strided_slice %32 {offsets = [7, 7], sizes = [1, 1], strides = [1, 1]} : vector<8x8xf32> to vector<1x1xf32>
    %cst_47 = arith.constant 0.000000e+00 : f32
    %76 = vector.broadcast %cst_47 : f32 to vector<1x1xf32>
    %77 = arith.maximumf %75, %76 : vector<1x1xf32>
    %c0_48 = arith.constant 0 : index
    %c35 = arith.constant 35 : index
    %c0_49 = arith.constant 0 : index
    %78 = vector.load %arg16[%c0_48, %c35, %c0_49] : memref<1x36x1xf32, #tpu.memory_space<vmem>>, vector<1x1x1xf32>
    %79 = vector.shape_cast %78 : vector<1x1x1xf32> to vector<1x1xf32>
    %80 = vector.shape_cast %77 : vector<1x1xf32> to vector<1x1x1xf32>
    tpu.vector_store %arg16[%c0_48, %c35, %c0_49], %80 {strides = array<i32>} : memref<1x36x1xf32, #tpu.memory_space<vmem>>, vector<1x1x1xf32>,
    %c0_50 = arith.constant 0 : index
    %c0_51 = arith.constant 0 : index
    %81 = vector.load %arg10[%c0_50, %c0_51] : memref<32x256xf32, #tpu.memory_space<vmem>>, vector<32x256xf32>
    %cst_52 = arith.constant dense<0.000000e+00> : vector<8x256xf32>
    %82 = tpu.matmul %1, %81, %cst_52 {dimension_numbers = #tpu.dot_dimension_numbers<[1], [0], [0], [1], [0, 0, 1, 1], [], []>} : vector<8x32xf32>, vector<32x256xf32>, vector<8x256xf32> -> vector<8x256xf32>
    %c0_53 = arith.constant 0 : index
    %c0_54 = arith.constant 0 : index
    %83 = vector.load %arg11[%c0_53, %c0_54] : memref<32x256xf32, #tpu.memory_space<vmem>>, vector<32x256xf32>
    %cst_55 = arith.constant dense<0.000000e+00> : vector<8x256xf32>
    %84 = tpu.matmul %3, %83, %cst_55 {dimension_numbers = #tpu.dot_dimension_numbers<[1], [0], [0], [1], [0, 0, 1, 1], [], []>} : vector<8x32xf32>, vector<32x256xf32>, vector<8x256xf32> -> vector<8x256xf32>
    %85 = arith.addf %82, %84 : vector<8x256xf32>
    %c0_56 = arith.constant 0 : index
    %c0_57 = arith.constant 0 : index
    %86 = vector.load %arg12[%c0_56, %c0_57] : memref<1x256xf32, #tpu.memory_space<vmem>>, vector<1x256xf32>
    %87 = vector.broadcast %86 : vector<1x256xf32> to vector<8x256xf32>
    %88 = arith.addf %85, %87 : vector<8x256xf32>
    %cst_58 = arith.constant 0.000000e+00 : f32
    %89 = vector.broadcast %cst_58 : f32 to vector<8x256xf32>
    %90 = arith.maximumf %88, %89 : vector<8x256xf32>
    %c0_59 = arith.constant 0 : index
    %c0_60 = arith.constant 0 : index
    %91 = vector.load %arg13[%c0_59, %c0_60] : memref<256x384xf32, #tpu.memory_space<vmem>>, vector<256x384xf32>
    %cst_61 = arith.constant dense<0.000000e+00> : vector<8x384xf32>
    %92 = tpu.matmul %90, %91, %cst_61 {dimension_numbers = #tpu.dot_dimension_numbers<[1], [0], [0], [1], [0, 0, 1, 1], [], []>} : vector<8x256xf32>, vector<256x384xf32>, vector<8x384xf32> -> vector<8x384xf32>
    %c0_62 = arith.constant 0 : index
    %c0_63 = arith.constant 0 : index
    %93 = vector.load %arg14[%c0_62, %c0_63] : memref<1x384xf32, #tpu.memory_space<vmem>>, vector<1x384xf32>
    %94 = vector.broadcast %93 : vector<1x384xf32> to vector<8x384xf32>
    %95 = arith.addf %92, %94 : vector<8x384xf32>
    %96 = vector.broadcast %5 : vector<8x1xf32> to vector<8x384xf32>
    %97 = arith.mulf %95, %96 : vector<8x384xf32>
    %98 = vector.extract_strided_slice %97 {offsets = [0, 0], sizes = [8, 64], strides = [1, 1]} : vector<8x384xf32> to vector<8x64xf32>
    %99 = arith.mulf %98, %6 : vector<8x64xf32>
    %cst_64 = arith.constant dense<0.000000e+00> : vector<8x64xf32>
    %100 = tpu.matmul %98, %8, %cst_64 {dimension_numbers = #tpu.dot_dimension_numbers<[1], [0], [0], [1], [0, 0, 1, 1], [], []>} : vector<8x64xf32>, vector<64x64xf32>, vector<8x64xf32> -> vector<8x64xf32>
    %101 = arith.mulf %100, %7 : vector<8x64xf32>
    %102 = arith.addf %99, %101 : vector<8x64xf32>
    %103 = vector.extract_strided_slice %97 {offsets = [0, 192], sizes = [8, 64], strides = [1, 1]} : vector<8x384xf32> to vector<8x64xf32>
    %104 = arith.mulf %103, %6 : vector<8x64xf32>
    %cst_65 = arith.constant dense<0.000000e+00> : vector<8x64xf32>
    %105 = tpu.matmul %103, %8, %cst_65 {dimension_numbers = #tpu.dot_dimension_numbers<[1], [0], [0], [1], [0, 0, 1, 1], [], []>} : vector<8x64xf32>, vector<64x64xf32>, vector<8x64xf32> -> vector<8x64xf32>
    %106 = arith.mulf %105, %7 : vector<8x64xf32>
    %107 = arith.addf %104, %106 : vector<8x64xf32>
    %cst_66 = arith.constant dense<0.000000e+00> : vector<8x8xf32>
    %108 = tpu.matmul %102, %107, %cst_66 {dimension_numbers = #tpu.dot_dimension_numbers<[1], [1], [0], [0], [0, 0, 1, 0], [], []>} : vector<8x64xf32>, vector<8x64xf32>, vector<8x8xf32> -> vector<8x8xf32>
    %cst_67 = arith.constant 1.250000e-01 : f32
    %109 = vector.broadcast %cst_67 : f32 to vector<8x8xf32>
    %110 = arith.mulf %108, %109 : vector<8x8xf32>
    %111 = vector.extract_strided_slice %97 {offsets = [0, 64], sizes = [8, 64], strides = [1, 1]} : vector<8x384xf32> to vector<8x64xf32>
    %112 = arith.mulf %111, %6 : vector<8x64xf32>
    %cst_68 = arith.constant dense<0.000000e+00> : vector<8x64xf32>
    %113 = tpu.matmul %111, %8, %cst_68 {dimension_numbers = #tpu.dot_dimension_numbers<[1], [0], [0], [1], [0, 0, 1, 1], [], []>} : vector<8x64xf32>, vector<64x64xf32>, vector<8x64xf32> -> vector<8x64xf32>
    %114 = arith.mulf %113, %7 : vector<8x64xf32>
    %115 = arith.addf %112, %114 : vector<8x64xf32>
    %116 = vector.extract_strided_slice %97 {offsets = [0, 256], sizes = [8, 64], strides = [1, 1]} : vector<8x384xf32> to vector<8x64xf32>
    %117 = arith.mulf %116, %6 : vector<8x64xf32>
    %cst_69 = arith.constant dense<0.000000e+00> : vector<8x64xf32>
    %118 = tpu.matmul %116, %8, %cst_69 {dimension_numbers = #tpu.dot_dimension_numbers<[1], [0], [0], [1], [0, 0, 1, 1], [], []>} : vector<8x64xf32>, vector<64x64xf32>, vector<8x64xf32> -> vector<8x64xf32>
    %119 = arith.mulf %118, %7 : vector<8x64xf32>
    %120 = arith.addf %117, %119 : vector<8x64xf32>
    %cst_70 = arith.constant dense<0.000000e+00> : vector<8x8xf32>
    %121 = tpu.matmul %115, %120, %cst_70 {dimension_numbers = #tpu.dot_dimension_numbers<[1], [1], [0], [0], [0, 0, 1, 0], [], []>} : vector<8x64xf32>, vector<8x64xf32>, vector<8x8xf32> -> vector<8x8xf32>
    %cst_71 = arith.constant 1.250000e-01 : f32
    %122 = vector.broadcast %cst_71 : f32 to vector<8x8xf32>
    %123 = arith.mulf %121, %122 : vector<8x8xf32>
    %124 = vector.extract_strided_slice %97 {offsets = [0, 128], sizes = [8, 64], strides = [1, 1]} : vector<8x384xf32> to vector<8x64xf32>
    %125 = arith.mulf %124, %6 : vector<8x64xf32>
    %cst_72 = arith.constant dense<0.000000e+00> : vector<8x64xf32>
    %126 = tpu.matmul %124, %8, %cst_72 {dimension_numbers = #tpu.dot_dimension_numbers<[1], [0], [0], [1], [0, 0, 1, 1], [], []>} : vector<8x64xf32>, vector<64x64xf32>, vector<8x64xf32> -> vector<8x64xf32>
    %127 = arith.mulf %126, %7 : vector<8x64xf32>
    %128 = arith.addf %125, %127 : vector<8x64xf32>
    %129 = vector.extract_strided_slice %97 {offsets = [0, 320], sizes = [8, 64], strides = [1, 1]} : vector<8x384xf32> to vector<8x64xf32>
    %130 = arith.mulf %129, %6 : vector<8x64xf32>
    %cst_73 = arith.constant dense<0.000000e+00> : vector<8x64xf32>
    %131 = tpu.matmul %129, %8, %cst_73 {dimension_numbers = #tpu.dot_dimension_numbers<[1], [0], [0], [1], [0, 0, 1, 1], [], []>} : vector<8x64xf32>, vector<64x64xf32>, vector<8x64xf32> -> vector<8x64xf32>
    %132 = arith.mulf %131, %7 : vector<8x64xf32>
    %133 = arith.addf %130, %132 : vector<8x64xf32>
    %cst_74 = arith.constant dense<0.000000e+00> : vector<8x8xf32>
    %134 = tpu.matmul %128, %133, %cst_74 {dimension_numbers = #tpu.dot_dimension_numbers<[1], [1], [0], [0], [0, 0, 1, 0], [], []>} : vector<8x64xf32>, vector<8x64xf32>, vector<8x8xf32> -> vector<8x8xf32>
    %cst_75 = arith.constant 1.250000e-01 : f32
    %135 = vector.broadcast %cst_75 : f32 to vector<8x8xf32>
    %136 = arith.mulf %134, %135 : vector<8x8xf32>
    %137 = tpu.transpose %110, [1, 0] : vector<8x8xf32> -> vector<8x8xf32>
    %138 = vector.extract_strided_slice %137 {offsets = [0, 0], sizes = [8, 1], strides = [1, 1]} : vector<8x8xf32> to vector<8x1xf32>
    %c0_76 = arith.constant 0 : index
    %c0_77 = arith.constant 0 : index
    %c0_78 = arith.constant 0 : index
    %139 = vector.load %arg15[%c0_76, %c0_77, %c0_78] : memref<1x36x3xf32, #tpu.memory_space<vmem>>, vector<1x8x1xf32>
    %140 = vector.shape_cast %139 : vector<1x8x1xf32> to vector<8x1xf32>
    %141 = vector.shape_cast %138 : vector<8x1xf32> to vector<1x8x1xf32>
    tpu.vector_store %arg15[%c0_76, %c0_77, %c0_78], %141 {strides = array<i32>} : memref<1x36x3xf32, #tpu.memory_space<vmem>>, vector<1x8x1xf32>,
    %142 = vector.extract_strided_slice %137 {offsets = [1, 1], sizes = [7, 1], strides = [1, 1]} : vector<8x8xf32> to vector<7x1xf32>
    %c0_79 = arith.constant 0 : index
    %c8_80 = arith.constant 8 : index
    %c0_81 = arith.constant 0 : index
    %143 = vector.load %arg15[%c0_79, %c8_80, %c0_81] : memref<1x36x3xf32, #tpu.memory_space<vmem>>, vector<1x7x1xf32>
    %144 = vector.shape_cast %143 : vector<1x7x1xf32> to vector<7x1xf32>
    %145 = vector.shape_cast %142 : vector<7x1xf32> to vector<1x7x1xf32>
    tpu.vector_store %arg15[%c0_79, %c8_80, %c0_81], %145 {strides = array<i32>} : memref<1x36x3xf32, #tpu.memory_space<vmem>>, vector<1x7x1xf32>,
    %146 = vector.extract_strided_slice %137 {offsets = [2, 2], sizes = [6, 1], strides = [1, 1]} : vector<8x8xf32> to vector<6x1xf32>
    %c0_82 = arith.constant 0 : index
    %c15_83 = arith.constant 15 : index
    %c0_84 = arith.constant 0 : index
    %147 = vector.load %arg15[%c0_82, %c15_83, %c0_84] : memref<1x36x3xf32, #tpu.memory_space<vmem>>, vector<1x6x1xf32>
    %148 = vector.shape_cast %147 : vector<1x6x1xf32> to vector<6x1xf32>
    %149 = vector.shape_cast %146 : vector<6x1xf32> to vector<1x6x1xf32>
    tpu.vector_store %arg15[%c0_82, %c15_83, %c0_84], %149 {strides = array<i32>} : memref<1x36x3xf32, #tpu.memory_space<vmem>>, vector<1x6x1xf32>,
    %150 = vector.extract_strided_slice %137 {offsets = [3, 3], sizes = [5, 1], strides = [1, 1]} : vector<8x8xf32> to vector<5x1xf32>
    %c0_85 = arith.constant 0 : index
    %c21_86 = arith.constant 21 : index
    %c0_87 = arith.constant 0 : index
    %151 = vector.load %arg15[%c0_85, %c21_86, %c0_87] : memref<1x36x3xf32, #tpu.memory_space<vmem>>, vector<1x5x1xf32>
    %152 = vector.shape_cast %151 : vector<1x5x1xf32> to vector<5x1xf32>
    %153 = vector.shape_cast %150 : vector<5x1xf32> to vector<1x5x1xf32>
    tpu.vector_store %arg15[%c0_85, %c21_86, %c0_87], %153 {strides = array<i32>} : memref<1x36x3xf32, #tpu.memory_space<vmem>>, vector<1x5x1xf32>,
    %154 = vector.extract_strided_slice %137 {offsets = [4, 4], sizes = [4, 1], strides = [1, 1]} : vector<8x8xf32> to vector<4x1xf32>
    %c0_88 = arith.constant 0 : index
    %c26_89 = arith.constant 26 : index
    %c0_90 = arith.constant 0 : index
    %155 = vector.load %arg15[%c0_88, %c26_89, %c0_90] : memref<1x36x3xf32, #tpu.memory_space<vmem>>, vector<1x4x1xf32>
    %156 = vector.shape_cast %155 : vector<1x4x1xf32> to vector<4x1xf32>
    %157 = vector.shape_cast %154 : vector<4x1xf32> to vector<1x4x1xf32>
    tpu.vector_store %arg15[%c0_88, %c26_89, %c0_90], %157 {strides = array<i32>} : memref<1x36x3xf32, #tpu.memory_space<vmem>>, vector<1x4x1xf32>,
    %158 = vector.extract_strided_slice %137 {offsets = [5, 5], sizes = [3, 1], strides = [1, 1]} : vector<8x8xf32> to vector<3x1xf32>
    %c0_91 = arith.constant 0 : index
    %c30_92 = arith.constant 30 : index
    %c0_93 = arith.constant 0 : index
    %159 = vector.load %arg15[%c0_91, %c30_92, %c0_93] : memref<1x36x3xf32, #tpu.memory_space<vmem>>, vector<1x3x1xf32>
    %160 = vector.shape_cast %159 : vector<1x3x1xf32> to vector<3x1xf32>
    %161 = vector.shape_cast %158 : vector<3x1xf32> to vector<1x3x1xf32>
    tpu.vector_store %arg15[%c0_91, %c30_92, %c0_93], %161 {strides = array<i32>} : memref<1x36x3xf32, #tpu.memory_space<vmem>>, vector<1x3x1xf32>,
    %162 = vector.extract_strided_slice %137 {offsets = [6, 6], sizes = [2, 1], strides = [1, 1]} : vector<8x8xf32> to vector<2x1xf32>
    %c0_94 = arith.constant 0 : index
    %c33_95 = arith.constant 33 : index
    %c0_96 = arith.constant 0 : index
    %163 = vector.load %arg15[%c0_94, %c33_95, %c0_96] : memref<1x36x3xf32, #tpu.memory_space<vmem>>, vector<1x2x1xf32>
    %164 = vector.shape_cast %163 : vector<1x2x1xf32> to vector<2x1xf32>
    %165 = vector.shape_cast %162 : vector<2x1xf32> to vector<1x2x1xf32>
    tpu.vector_store %arg15[%c0_94, %c33_95, %c0_96], %165 {strides = array<i32>} : memref<1x36x3xf32, #tpu.memory_space<vmem>>, vector<1x2x1xf32>,
    %166 = vector.extract_strided_slice %137 {offsets = [7, 7], sizes = [1, 1], strides = [1, 1]} : vector<8x8xf32> to vector<1x1xf32>
    %c0_97 = arith.constant 0 : index
    %c35_98 = arith.constant 35 : index
    %c0_99 = arith.constant 0 : index
    %167 = vector.load %arg15[%c0_97, %c35_98, %c0_99] : memref<1x36x3xf32, #tpu.memory_space<vmem>>, vector<1x1x1xf32>
    %168 = vector.shape_cast %167 : vector<1x1x1xf32> to vector<1x1xf32>
    %169 = vector.shape_cast %166 : vector<1x1xf32> to vector<1x1x1xf32>
    tpu.vector_store %arg15[%c0_97, %c35_98, %c0_99], %169 {strides = array<i32>} : memref<1x36x3xf32, #tpu.memory_space<vmem>>, vector<1x1x1xf32>,
    %170 = tpu.transpose %123, [1, 0] : vector<8x8xf32> -> vector<8x8xf32>
    %171 = vector.extract_strided_slice %170 {offsets = [0, 0], sizes = [8, 1], strides = [1, 1]} : vector<8x8xf32> to vector<8x1xf32>
    %c0_100 = arith.constant 0 : index
    %c0_101 = arith.constant 0 : index
    %c1 = arith.constant 1 : index
    %172 = vector.load %arg15[%c0_100, %c0_101, %c1] : memref<1x36x3xf32, #tpu.memory_space<vmem>>, vector<1x8x1xf32>
    %173 = vector.shape_cast %172 : vector<1x8x1xf32> to vector<8x1xf32>
    %174 = vector.shape_cast %171 : vector<8x1xf32> to vector<1x8x1xf32>
    tpu.vector_store %arg15[%c0_100, %c0_101, %c1], %174 {strides = array<i32>} : memref<1x36x3xf32, #tpu.memory_space<vmem>>, vector<1x8x1xf32>,
    %175 = vector.extract_strided_slice %170 {offsets = [1, 1], sizes = [7, 1], strides = [1, 1]} : vector<8x8xf32> to vector<7x1xf32>
    %c0_102 = arith.constant 0 : index
    %c8_103 = arith.constant 8 : index
    %c1_104 = arith.constant 1 : index
    %176 = vector.load %arg15[%c0_102, %c8_103, %c1_104] : memref<1x36x3xf32, #tpu.memory_space<vmem>>, vector<1x7x1xf32>
    %177 = vector.shape_cast %176 : vector<1x7x1xf32> to vector<7x1xf32>
    %178 = vector.shape_cast %175 : vector<7x1xf32> to vector<1x7x1xf32>
    tpu.vector_store %arg15[%c0_102, %c8_103, %c1_104], %178 {strides = array<i32>} : memref<1x36x3xf32, #tpu.memory_space<vmem>>, vector<1x7x1xf32>,
    %179 = vector.extract_strided_slice %170 {offsets = [2, 2], sizes = [6, 1], strides = [1, 1]} : vector<8x8xf32> to vector<6x1xf32>
    %c0_105 = arith.constant 0 : index
    %c15_106 = arith.constant 15 : index
    %c1_107 = arith.constant 1 : index
    %180 = vector.load %arg15[%c0_105, %c15_106, %c1_107] : memref<1x36x3xf32, #tpu.memory_space<vmem>>, vector<1x6x1xf32>
    %181 = vector.shape_cast %180 : vector<1x6x1xf32> to vector<6x1xf32>
    %182 = vector.shape_cast %179 : vector<6x1xf32> to vector<1x6x1xf32>
    tpu.vector_store %arg15[%c0_105, %c15_106, %c1_107], %182 {strides = array<i32>} : memref<1x36x3xf32, #tpu.memory_space<vmem>>, vector<1x6x1xf32>,
    %183 = vector.extract_strided_slice %170 {offsets = [3, 3], sizes = [5, 1], strides = [1, 1]} : vector<8x8xf32> to vector<5x1xf32>
    %c0_108 = arith.constant 0 : index
    %c21_109 = arith.constant 21 : index
    %c1_110 = arith.constant 1 : index
    %184 = vector.load %arg15[%c0_108, %c21_109, %c1_110] : memref<1x36x3xf32, #tpu.memory_space<vmem>>, vector<1x5x1xf32>
    %185 = vector.shape_cast %184 : vector<1x5x1xf32> to vector<5x1xf32>
    %186 = vector.shape_cast %183 : vector<5x1xf32> to vector<1x5x1xf32>
    tpu.vector_store %arg15[%c0_108, %c21_109, %c1_110], %186 {strides = array<i32>} : memref<1x36x3xf32, #tpu.memory_space<vmem>>, vector<1x5x1xf32>,
    %187 = vector.extract_strided_slice %170 {offsets = [4, 4], sizes = [4, 1], strides = [1, 1]} : vector<8x8xf32> to vector<4x1xf32>
    %c0_111 = arith.constant 0 : index
    %c26_112 = arith.constant 26 : index
    %c1_113 = arith.constant 1 : index
    %188 = vector.load %arg15[%c0_111, %c26_112, %c1_113] : memref<1x36x3xf32, #tpu.memory_space<vmem>>, vector<1x4x1xf32>
    %189 = vector.shape_cast %188 : vector<1x4x1xf32> to vector<4x1xf32>
    %190 = vector.shape_cast %187 : vector<4x1xf32> to vector<1x4x1xf32>
    tpu.vector_store %arg15[%c0_111, %c26_112, %c1_113], %190 {strides = array<i32>} : memref<1x36x3xf32, #tpu.memory_space<vmem>>, vector<1x4x1xf32>,
    %191 = vector.extract_strided_slice %170 {offsets = [5, 5], sizes = [3, 1], strides = [1, 1]} : vector<8x8xf32> to vector<3x1xf32>
    %c0_114 = arith.constant 0 : index
    %c30_115 = arith.constant 30 : index
    %c1_116 = arith.constant 1 : index
    %192 = vector.load %arg15[%c0_114, %c30_115, %c1_116] : memref<1x36x3xf32, #tpu.memory_space<vmem>>, vector<1x3x1xf32>
    %193 = vector.shape_cast %192 : vector<1x3x1xf32> to vector<3x1xf32>
    %194 = vector.shape_cast %191 : vector<3x1xf32> to vector<1x3x1xf32>
    tpu.vector_store %arg15[%c0_114, %c30_115, %c1_116], %194 {strides = array<i32>} : memref<1x36x3xf32, #tpu.memory_space<vmem>>, vector<1x3x1xf32>,
    %195 = vector.extract_strided_slice %170 {offsets = [6, 6], sizes = [2, 1], strides = [1, 1]} : vector<8x8xf32> to vector<2x1xf32>
    %c0_117 = arith.constant 0 : index
    %c33_118 = arith.constant 33 : index
    %c1_119 = arith.constant 1 : index
    %196 = vector.load %arg15[%c0_117, %c33_118, %c1_119] : memref<1x36x3xf32, #tpu.memory_space<vmem>>, vector<1x2x1xf32>
    %197 = vector.shape_cast %196 : vector<1x2x1xf32> to vector<2x1xf32>
    %198 = vector.shape_cast %195 : vector<2x1xf32> to vector<1x2x1xf32>
    tpu.vector_store %arg15[%c0_117, %c33_118, %c1_119], %198 {strides = array<i32>} : memref<1x36x3xf32, #tpu.memory_space<vmem>>, vector<1x2x1xf32>,
    %199 = vector.extract_strided_slice %170 {offsets = [7, 7], sizes = [1, 1], strides = [1, 1]} : vector<8x8xf32> to vector<1x1xf32>
    %c0_120 = arith.constant 0 : index
    %c35_121 = arith.constant 35 : index
    %c1_122 = arith.constant 1 : index
    %200 = vector.load %arg15[%c0_120, %c35_121, %c1_122] : memref<1x36x3xf32, #tpu.memory_space<vmem>>, vector<1x1x1xf32>
    %201 = vector.shape_cast %200 : vector<1x1x1xf32> to vector<1x1xf32>
    %202 = vector.shape_cast %199 : vector<1x1xf32> to vector<1x1x1xf32>
    tpu.vector_store %arg15[%c0_120, %c35_121, %c1_122], %202 {strides = array<i32>} : memref<1x36x3xf32, #tpu.memory_space<vmem>>, vector<1x1x1xf32>,
    %203 = tpu.transpose %136, [1, 0] : vector<8x8xf32> -> vector<8x8xf32>
    %204 = vector.extract_strided_slice %203 {offsets = [0, 0], sizes = [8, 1], strides = [1, 1]} : vector<8x8xf32> to vector<8x1xf32>
    %c0_123 = arith.constant 0 : index
    %c0_124 = arith.constant 0 : index
    %c2 = arith.constant 2 : index
    %205 = vector.load %arg15[%c0_123, %c0_124, %c2] : memref<1x36x3xf32, #tpu.memory_space<vmem>>, vector<1x8x1xf32>
    %206 = vector.shape_cast %205 : vector<1x8x1xf32> to vector<8x1xf32>
    %207 = vector.shape_cast %204 : vector<8x1xf32> to vector<1x8x1xf32>
    tpu.vector_store %arg15[%c0_123, %c0_124, %c2], %207 {strides = array<i32>} : memref<1x36x3xf32, #tpu.memory_space<vmem>>, vector<1x8x1xf32>,
    %208 = vector.extract_strided_slice %203 {offsets = [1, 1], sizes = [7, 1], strides = [1, 1]} : vector<8x8xf32> to vector<7x1xf32>
    %c0_125 = arith.constant 0 : index
    %c8_126 = arith.constant 8 : index
    %c2_127 = arith.constant 2 : index
    %209 = vector.load %arg15[%c0_125, %c8_126, %c2_127] : memref<1x36x3xf32, #tpu.memory_space<vmem>>, vector<1x7x1xf32>
    %210 = vector.shape_cast %209 : vector<1x7x1xf32> to vector<7x1xf32>
    %211 = vector.shape_cast %208 : vector<7x1xf32> to vector<1x7x1xf32>
    tpu.vector_store %arg15[%c0_125, %c8_126, %c2_127], %211 {strides = array<i32>} : memref<1x36x3xf32, #tpu.memory_space<vmem>>, vector<1x7x1xf32>,
    %212 = vector.extract_strided_slice %203 {offsets = [2, 2], sizes = [6, 1], strides = [1, 1]} : vector<8x8xf32> to vector<6x1xf32>
    %c0_128 = arith.constant 0 : index
    %c15_129 = arith.constant 15 : index
    %c2_130 = arith.constant 2 : index
    %213 = vector.load %arg15[%c0_128, %c15_129, %c2_130] : memref<1x36x3xf32, #tpu.memory_space<vmem>>, vector<1x6x1xf32>
    %214 = vector.shape_cast %213 : vector<1x6x1xf32> to vector<6x1xf32>
    %215 = vector.shape_cast %212 : vector<6x1xf32> to vector<1x6x1xf32>
    tpu.vector_store %arg15[%c0_128, %c15_129, %c2_130], %215 {strides = array<i32>} : memref<1x36x3xf32, #tpu.memory_space<vmem>>, vector<1x6x1xf32>,
    %216 = vector.extract_strided_slice %203 {offsets = [3, 3], sizes = [5, 1], strides = [1, 1]} : vector<8x8xf32> to vector<5x1xf32>
    %c0_131 = arith.constant 0 : index
    %c21_132 = arith.constant 21 : index
    %c2_133 = arith.constant 2 : index
    %217 = vector.load %arg15[%c0_131, %c21_132, %c2_133] : memref<1x36x3xf32, #tpu.memory_space<vmem>>, vector<1x5x1xf32>
    %218 = vector.shape_cast %217 : vector<1x5x1xf32> to vector<5x1xf32>
    %219 = vector.shape_cast %216 : vector<5x1xf32> to vector<1x5x1xf32>
    tpu.vector_store %arg15[%c0_131, %c21_132, %c2_133], %219 {strides = array<i32>} : memref<1x36x3xf32, #tpu.memory_space<vmem>>, vector<1x5x1xf32>,
    %220 = vector.extract_strided_slice %203 {offsets = [4, 4], sizes = [4, 1], strides = [1, 1]} : vector<8x8xf32> to vector<4x1xf32>
    %c0_134 = arith.constant 0 : index
    %c26_135 = arith.constant 26 : index
    %c2_136 = arith.constant 2 : index
    %221 = vector.load %arg15[%c0_134, %c26_135, %c2_136] : memref<1x36x3xf32, #tpu.memory_space<vmem>>, vector<1x4x1xf32>
    %222 = vector.shape_cast %221 : vector<1x4x1xf32> to vector<4x1xf32>
    %223 = vector.shape_cast %220 : vector<4x1xf32> to vector<1x4x1xf32>
    tpu.vector_store %arg15[%c0_134, %c26_135, %c2_136], %223 {strides = array<i32>} : memref<1x36x3xf32, #tpu.memory_space<vmem>>, vector<1x4x1xf32>,
    %224 = vector.extract_strided_slice %203 {offsets = [5, 5], sizes = [3, 1], strides = [1, 1]} : vector<8x8xf32> to vector<3x1xf32>
    %c0_137 = arith.constant 0 : index
    %c30_138 = arith.constant 30 : index
    %c2_139 = arith.constant 2 : index
    %225 = vector.load %arg15[%c0_137, %c30_138, %c2_139] : memref<1x36x3xf32, #tpu.memory_space<vmem>>, vector<1x3x1xf32>
    %226 = vector.shape_cast %225 : vector<1x3x1xf32> to vector<3x1xf32>
    %227 = vector.shape_cast %224 : vector<3x1xf32> to vector<1x3x1xf32>
    tpu.vector_store %arg15[%c0_137, %c30_138, %c2_139], %227 {strides = array<i32>} : memref<1x36x3xf32, #tpu.memory_space<vmem>>, vector<1x3x1xf32>,
    %228 = vector.extract_strided_slice %203 {offsets = [6, 6], sizes = [2, 1], strides = [1, 1]} : vector<8x8xf32> to vector<2x1xf32>
    %c0_140 = arith.constant 0 : index
    %c33_141 = arith.constant 33 : index
    %c2_142 = arith.constant 2 : index
    %229 = vector.load %arg15[%c0_140, %c33_141, %c2_142] : memref<1x36x3xf32, #tpu.memory_space<vmem>>, vector<1x2x1xf32>
    %230 = vector.shape_cast %229 : vector<1x2x1xf32> to vector<2x1xf32>
    %231 = vector.shape_cast %228 : vector<2x1xf32> to vector<1x2x1xf32>
    tpu.vector_store %arg15[%c0_140, %c33_141, %c2_142], %231 {strides = array<i32>} : memref<1x36x3xf32, #tpu.memory_space<vmem>>, vector<1x2x1xf32>,
    %232 = vector.extract_strided_slice %203 {offsets = [7, 7], sizes = [1, 1], strides = [1, 1]} : vector<8x8xf32> to vector<1x1xf32>
    %c0_143 = arith.constant 0 : index
    %c35_144 = arith.constant 35 : index
    %c2_145 = arith.constant 2 : index
    %233 = vector.load %arg15[%c0_143, %c35_144, %c2_145] : memref<1x36x3xf32, #tpu.memory_space<vmem>>, vector<1x1x1xf32>
    %234 = vector.shape_cast %233 : vector<1x1x1xf32> to vector<1x1xf32>
    %235 = vector.shape_cast %232 : vector<1x1xf32> to vector<1x1x1xf32>
    tpu.vector_store %arg15[%c0_143, %c35_144, %c2_145], %235 {strides = array<i32>} : memref<1x36x3xf32, #tpu.memory_space<vmem>>, vector<1x1x1xf32>,
    return
  }
  func.func @transform_0(%arg0: i32) -> (i32, i32, i32) {
    %c0_i32 = arith.constant 0 : i32
    %c0_i32_0 = arith.constant 0 : i32
    %c0_i32_1 = arith.constant 0 : i32
    return %arg0, %c0_i32, %c0_i32_0 : i32, i32, i32
  }
  func.func @transform_1(%arg0: i32) -> (i32, i32, i32) {
    %c0_i32 = arith.constant 0 : i32
    %c0_i32_0 = arith.constant 0 : i32
    %c0_i32_1 = arith.constant 0 : i32
    return %arg0, %c0_i32, %c0_i32_0 : i32, i32, i32
  }
  func.func @transform_2(%arg0: i32) -> (i32, i32, i32) {
    %c0_i32 = arith.constant 0 : i32
    %c0_i32_0 = arith.constant 0 : i32
    %c0_i32_1 = arith.constant 0 : i32
    return %arg0, %c0_i32, %c0_i32_0 : i32, i32, i32
  }
  func.func @transform_3(%arg0: i32) -> (i32, i32) {
    %c0_i32 = arith.constant 0 : i32
    %c0_i32_0 = arith.constant 0 : i32
    %c0_i32_1 = arith.constant 0 : i32
    return %c0_i32, %c0_i32_0 : i32, i32
  }
  func.func @transform_4(%arg0: i32) -> (i32, i32) {
    %c0_i32 = arith.constant 0 : i32
    %c0_i32_0 = arith.constant 0 : i32
    %c0_i32_1 = arith.constant 0 : i32
    return %c0_i32, %c0_i32_0 : i32, i32
  }
  func.func @transform_5(%arg0: i32) -> (i32, i32) {
    %c0_i32 = arith.constant 0 : i32
    %c0_i32_0 = arith.constant 0 : i32
    %c0_i32_1 = arith.constant 0 : i32
    return %c0_i32, %c0_i32_0 : i32, i32
  }
  func.func @transform_6(%arg0: i32) -> (i32, i32) {
    %c0_i32 = arith.constant 0 : i32
    %c0_i32_0 = arith.constant 0 : i32
    %c0_i32_1 = arith.constant 0 : i32
    return %c0_i32, %c0_i32_0 : i32, i32
  }
  func.func @transform_7(%arg0: i32) -> (i32, i32) {
    %c0_i32 = arith.constant 0 : i32
    %c0_i32_0 = arith.constant 0 : i32
    %c0_i32_1 = arith.constant 0 : i32
    return %c0_i32, %c0_i32_0 : i32, i32
  }
  func.func @transform_8(%arg0: i32) -> (i32, i32) {
    %c0_i32 = arith.constant 0 : i32
    %c0_i32_0 = arith.constant 0 : i32
    %c0_i32_1 = arith.constant 0 : i32
    return %c0_i32, %c0_i32_0 : i32, i32
  }
  func.func @transform_9(%arg0: i32) -> (i32, i32) {
    %c0_i32 = arith.constant 0 : i32
    %c0_i32_0 = arith.constant 0 : i32
    %c0_i32_1 = arith.constant 0 : i32
    return %c0_i32, %c0_i32_0 : i32, i32
  }
  func.func @transform_10(%arg0: i32) -> (i32, i32) {
    %c0_i32 = arith.constant 0 : i32
    %c0_i32_0 = arith.constant 0 : i32
    %c0_i32_1 = arith.constant 0 : i32
    return %c0_i32, %c0_i32_0 : i32, i32
  }
  func.func @transform_11(%arg0: i32) -> (i32, i32) {
    %c0_i32 = arith.constant 0 : i32
    %c0_i32_0 = arith.constant 0 : i32
    %c0_i32_1 = arith.constant 0 : i32
    return %c0_i32, %c0_i32_0 : i32, i32
  }
  func.func @transform_12(%arg0: i32) -> (i32, i32) {
    %c0_i32 = arith.constant 0 : i32
    %c0_i32_0 = arith.constant 0 : i32
    %c0_i32_1 = arith.constant 0 : i32
    return %c0_i32, %c0_i32_0 : i32, i32
  }
  func.func @transform_13(%arg0: i32) -> (i32, i32) {
    %c0_i32 = arith.constant 0 : i32
    %c0_i32_0 = arith.constant 0 : i32
    %c0_i32_1 = arith.constant 0 : i32
    return %c0_i32, %c0_i32_0 : i32, i32
  }
  func.func @transform_14(%arg0: i32) -> (i32, i32, i32) {
    %c0_i32 = arith.constant 0 : i32
    %c0_i32_0 = arith.constant 0 : i32
    %c0_i32_1 = arith.constant 0 : i32
    return %arg0, %c0_i32, %c0_i32_0 : i32, i32, i32
  }
  func.func @transform_15(%arg0: i32) -> (i32, i32, i32) {
    %c0_i32 = arith.constant 0 : i32
    %c0_i32_0 = arith.constant 0 : i32
    %c0_i32_1 = arith.constant 0 : i32
    return %arg0, %c0_i32, %c0_i32_0 : i32, i32, i32
  }
}

</mosaic_0001>

<llo_original>
// kernel: token_pair_modeling_forward.3
$region0: #{token_pair_modeling_forward.3}
  #allocation0 [shape = 'u32[]', space=smem, size = 0x4, offset = 0x4, fixed_abs, tag = 'smem constant byte address 0x4 - core index']
  #allocation1 [shape = 'u32[144,128]{1,0:T(1,128)}', space=vmem, size = 0x12000, scoped, tag = 'internal scratch']
  %s0 = inlined_call_operand.vmem [shape: f32[2,8,32], index: 0, kind: input, shape index: {}]
  %s1 = inlined_call_operand.vmem [shape: f32[2,8,32], index: 1, kind: input, shape index: {}]
  %s2 = inlined_call_operand.vmem [shape: f32[2,8,1], index: 2, kind: input, shape index: {}]
  %s3 = inlined_call_operand.vmem [shape: f32[8,64], index: 3, kind: input, shape index: {}]
  %s4 = inlined_call_operand.vmem [shape: f32[8,64], index: 4, kind: input, shape index: {}]
  %s5 = inlined_call_operand.vmem [shape: f32[64,64], index: 5, kind: input, shape index: {}]
  %s6 = inlined_call_operand.vmem [shape: f32[32,128], index: 6, kind: input, shape index: {}]
  %s7 = inlined_call_operand.vmem [shape: f32[32,128], index: 7, kind: input, shape index: {}]
  %s8 = inlined_call_operand.vmem [shape: f32[1,128], index: 8, kind: input, shape index: {}]
  %s9 = inlined_call_operand.vmem [shape: f32[32,256], index: 9, kind: input, shape index: {}]
  %s10 = inlined_call_operand.vmem [shape: f32[32,256], index: 10, kind: input, shape index: {}]
  %s11 = inlined_call_operand.vmem [shape: f32[1,256], index: 11, kind: input, shape index: {}]
  %s12 = inlined_call_operand.vmem [shape: f32[256,384], index: 12, kind: input, shape index: {}]
  %s13 = inlined_call_operand.vmem [shape: f32[1,384], index: 13, kind: input, shape index: {}]
  %s14 = inlined_call_operand.vmem [shape: f32[2,36,3], index: 14, kind: output, shape index: {0}]
  %s15 = inlined_call_operand.vmem [shape: f32[2,36,1], index: 15, kind: output, shape index: {1}]
  %16 = xla_tuple %s14, %s15
  %s17 = sld [smem:[#allocation0]]
  $region97: #{token_pair_modeling_forward.3} parent=0
    _
  %s19 = ssub.s32 1, %s17
  %s20 = scalar_select 0, %s19, %s17
  loop: start=0, step=1, limit=4
  $region2: #{token_pair_modeling_forward.3} parent=0 // loop_pre_header
    _
  $region3: #{token_pair_modeling_forward.3} parent=0 // loop_header
    %s22 = sphi 0, %s26
    %p23 = scmp.ge.s32.totalorder %s22, 4
    %s32 = sphi 0, %s34
    %s35 = sphi 0, %s32
    %s36 = sphi 0, %s35
    %s52 = sphi 0, %s36
    %s58 = sphi 0, %s60
    %s61 = sphi 0, %s58
    %s62 = sphi 0, %s61
    %s78 = sphi 0, %s62
    %s84 = sphi 0, %s86
    %s87 = sphi 0, %s84
    %s88 = sphi 0, %s87
    %s104 = sphi 0, %s88
    %s108 = sphi 0, %s108
    %s110 = sphi 0, %s108
    %s111 = sphi 0, %s110
    %s125 = sphi 0, %s111
    %s129 = sphi 0, %s129
    %s131 = sphi 0, %s129
    %s132 = sphi 0, %s131
    %s146 = sphi 0, %s132
    %s150 = sphi 0, %s150
    %s152 = sphi 0, %s150
    %s153 = sphi 0, %s152
    %s167 = sphi 0, %s153
    %s171 = sphi 0, %s171
    %s173 = sphi 0, %s171
    %s174 = sphi 0, %s173
    %s188 = sphi 0, %s174
    %s192 = sphi 0, %s192
    %s194 = sphi 0, %s192
    %s195 = sphi 0, %s194
    %s209 = sphi 0, %s195
    %s213 = sphi 0, %s213
    %s215 = sphi 0, %s213
    %s216 = sphi 0, %s215
    %s230 = sphi 0, %s216
    %s234 = sphi 0, %s234
    %s236 = sphi 0, %s234
    %s237 = sphi 0, %s236
    %s251 = sphi 0, %s237
    %s255 = sphi 0, %s255
    %s257 = sphi 0, %s255
    %s258 = sphi 0, %s257
    %s272 = sphi 0, %s258
    %s276 = sphi 0, %s276
    %s278 = sphi 0, %s276
    %s279 = sphi 0, %s278
    %s293 = sphi 0, %s279
    %s297 = sphi 0, %s297
    %s299 = sphi 0, %s297
    %s300 = sphi 0, %s299
    %s314 = sphi 0, %s300
    %s318 = sphi 0, %s318
    %s320 = sphi 0, %s318
    %s321 = sphi 0, %s320
    %s335 = sphi 0, %s321
    %s341 = sphi 0, %s343
    %s344 = sphi 0, %s341
    %s345 = sphi 0, %s344
    %s361 = sphi 0, %s345
    %s367 = sphi 0, %s369
    %s370 = sphi 0, %s367
    %s371 = sphi 0, %s370
    %s387 = sphi 0, %s371
  $region4: #{token_pair_modeling_forward.3} parent=0 // loop_header_branch
    %25 = sbr.rel (%p23) target = $region8
  $region5: #{token_pair_modeling_forward.3} parent=0 // loop_body
    %s27 = ssub.s32 %s22, 1
    %s28 = ssub.s32 %s22, 2
    %s29 = sadd.s32 %s22, 1
    %s30 = ssub.s32 %s22, %s29
    %p31 = scmp.eq.s32.totalorder %s30, 0
    %s33 = sadd.s32 %s32, 1
    %s34 = scalar_select %p31, %s32, %s33
    %p37 = pneg %p31
    %p38 = scmp.eq.s32.totalorder %s22, 1
    %p39 = por %p37, %p38
    %p40 = scmp.ne.s32.totalorder %s32, %s35
    %p41 = scmp.eq.s32.totalorder %s22, 0
    %p42 = por %p40, %p41
    %p43 = scmp.ne.s32.totalorder %s32, %s35
    %p44 = scmp.eq.s32.totalorder %s27, 1
    %p45 = por %p43, %p44
    %p46 = scmp.ne.s32.totalorder %s35, %s36
    %p47 = scmp.eq.s32.totalorder %s27, 0
    %p48 = por %p46, %p47
    %p49 = scmp.ne.s32.totalorder %s35, %s36
    %p50 = scmp.eq.s32.totalorder %s28, 1
    %p51 = por %p49, %p50
    %p53 = scmp.ne.s32.totalorder %s36, %s52
    %p54 = scmp.eq.s32.totalorder %s28, 0
    %p55 = por %p53, %p54
    %s56 = ssub.s32 %s22, %s29
    %p57 = scmp.eq.s32.totalorder %s56, 0
    %s59 = sadd.s32 %s58, 1
    %s60 = scalar_select %p57, %s58, %s59
    %p63 = pneg %p57
    %p64 = scmp.eq.s32.totalorder %s22, 1
    %p65 = por %p63, %p64
    %p66 = scmp.ne.s32.totalorder %s58, %s61
    %p67 = scmp.eq.s32.totalorder %s22, 0
    %p68 = por %p66, %p67
    %p69 = scmp.ne.s32.totalorder %s58, %s61
    %p70 = scmp.eq.s32.totalorder %s27, 1
    %p71 = por %p69, %p70
    %p72 = scmp.ne.s32.totalorder %s61, %s62
    %p73 = scmp.eq.s32.totalorder %s27, 0
    %p74 = por %p72, %p73
    %p75 = scmp.ne.s32.totalorder %s61, %s62
    %p76 = scmp.eq.s32.totalorder %s28, 1
    %p77 = por %p75, %p76
    %p79 = scmp.ne.s32.totalorder %s62, %s78
    %p80 = scmp.eq.s32.totalorder %s28, 0
    %p81 = por %p79, %p80
    %s82 = ssub.s32 %s22, %s29
    %p83 = scmp.eq.s32.totalorder %s82, 0
    %s85 = sadd.s32 %s84, 1
    %s86 = scalar_select %p83, %s84, %s85
    %p89 = pneg %p83
    %p90 = scmp.eq.s32.totalorder %s22, 1
    %p91 = por %p89, %p90
    %p92 = scmp.ne.s32.totalorder %s84, %s87
    %p93 = scmp.eq.s32.totalorder %s22, 0
    %p94 = por %p92, %p93
    %p95 = scmp.ne.s32.totalorder %s84, %s87
    %p96 = scmp.eq.s32.totalorder %s27, 1
    %p97 = por %p95, %p96
    %p98 = scmp.ne.s32.totalorder %s87, %s88
    %p99 = scmp.eq.s32.totalorder %s27, 0
    %p100 = por %p98, %p99
    %p101 = scmp.ne.s32.totalorder %s87, %s88
    %p102 = scmp.eq.s32.totalorder %s28, 1
    %p103 = por %p101, %p102
    %p105 = scmp.ne.s32.totalorder %s88, %s104
    %p106 = scmp.eq.s32.totalorder %s28, 0
    %p107 = por %p105, %p106
    %s109 = sadd.s32 %s108, 1
    %p112 = scmp.eq.s32.totalorder %s22, 1
    %p113 = scmp.ne.s32.totalorder %s108, %s110
    %p114 = scmp.eq.s32.totalorder %s22, 0
    %p115 = por %p113, %p114
    %p116 = scmp.ne.s32.totalorder %s108, %s110
    %p117 = scmp.eq.s32.totalorder %s27, 1
    %p118 = por %p116, %p117
    %p119 = scmp.ne.s32.totalorder %s110, %s111
    %p120 = scmp.eq.s32.totalorder %s27, 0
    %p121 = por %p119, %p120
    %p122 = scmp.ne.s32.totalorder %s110, %s111
    %p123 = scmp.eq.s32.totalorder %s28, 1
    %p124 = por %p122, %p123
    %p126 = scmp.ne.s32.totalorder %s111, %s125
    %p127 = scmp.eq.s32.totalorder %s28, 0
    %p128 = por %p126, %p127
    %s130 = sadd.s32 %s129, 1
    %p133 = scmp.eq.s32.totalorder %s22, 1
    %p134 = scmp.ne.s32.totalorder %s129, %s131
    %p135 = scmp.eq.s32.totalorder %s22, 0
    %p136 = por %p134, %p135
    %p137 = scmp.ne.s32.totalorder %s129, %s131
    %p138 = scmp.eq.s32.totalorder %s27, 1
    %p139 = por %p137, %p138
    %p140 = scmp.ne.s32.totalorder %s131, %s132
    %p141 = scmp.eq.s32.totalorder %s27, 0
    %p142 = por %p140, %p141
    %p143 = scmp.ne.s32.totalorder %s131, %s132
    %p144 = scmp.eq.s32.totalorder %s28, 1
    %p145 = por %p143, %p144
    %p147 = scmp.ne.s32.totalorder %s132, %s146
    %p148 = scmp.eq.s32.totalorder %s28, 0
    %p149 = por %p147, %p148
    %s151 = sadd.s32 %s150, 1
    %p154 = scmp.eq.s32.totalorder %s22, 1
    %p155 = scmp.ne.s32.totalorder %s150, %s152
    %p156 = scmp.eq.s32.totalorder %s22, 0
    %p157 = por %p155, %p156
    %p158 = scmp.ne.s32.totalorder %s150, %s152
    %p159 = scmp.eq.s32.totalorder %s27, 1
    %p160 = por %p158, %p159
    %p161 = scmp.ne.s32.totalorder %s152, %s153
    %p162 = scmp.eq.s32.totalorder %s27, 0
    %p163 = por %p161, %p162
    %p164 = scmp.ne.s32.totalorder %s152, %s153
    %p165 = scmp.eq.s32.totalorder %s28, 1
    %p166 = por %p164, %p165
    %p168 = scmp.ne.s32.totalorder %s153, %s167
    %p169 = scmp.eq.s32.totalorder %s28, 0
    %p170 = por %p168, %p169
    %s172 = sadd.s32 %s171, 1
    %p175 = scmp.eq.s32.totalorder %s22, 1
    %p176 = scmp.ne.s32.totalorder %s171, %s173
    %p177 = scmp.eq.s32.totalorder %s22, 0
    %p178 = por %p176, %p177
    %p179 = scmp.ne.s32.totalorder %s171, %s173
    %p180 = scmp.eq.s32.totalorder %s27, 1
    %p181 = por %p179, %p180
    %p182 = scmp.ne.s32.totalorder %s173, %s174
    %p183 = scmp.eq.s32.totalorder %s27, 0
    %p184 = por %p182, %p183
    %p185 = scmp.ne.s32.totalorder %s173, %s174
    %p186 = scmp.eq.s32.totalorder %s28, 1
    %p187 = por %p185, %p186
    %p189 = scmp.ne.s32.totalorder %s174, %s188
    %p190 = scmp.eq.s32.totalorder %s28, 0
    %p191 = por %p189, %p190
    %s193 = sadd.s32 %s192, 1
    %p196 = scmp.eq.s32.totalorder %s22, 1
    %p197 = scmp.ne.s32.totalorder %s192, %s194
    %p198 = scmp.eq.s32.totalorder %s22, 0
    %p199 = por %p197, %p198
    %p200 = scmp.ne.s32.totalorder %s192, %s194
    %p201 = scmp.eq.s32.totalorder %s27, 1
    %p202 = por %p200, %p201
    %p203 = scmp.ne.s32.totalorder %s194, %s195
    %p204 = scmp.eq.s32.totalorder %s27, 0
    %p205 = por %p203, %p204
    %p206 = scmp.ne.s32.totalorder %s194, %s195
    %p207 = scmp.eq.s32.totalorder %s28, 1
    %p208 = por %p206, %p207
    %p210 = scmp.ne.s32.totalorder %s195, %s209
    %p211 = scmp.eq.s32.totalorder %s28, 0
    %p212 = por %p210, %p211
    %s214 = sadd.s32 %s213, 1
    %p217 = scmp.eq.s32.totalorder %s22, 1
    %p218 = scmp.ne.s32.totalorder %s213, %s215
    %p219 = scmp.eq.s32.totalorder %s22, 0
    %p220 = por %p218, %p219
    %p221 = scmp.ne.s32.totalorder %s213, %s215
    %p222 = scmp.eq.s32.totalorder %s27, 1
    %p223 = por %p221, %p222
    %p224 = scmp.ne.s32.totalorder %s215, %s216
    %p225 = scmp.eq.s32.totalorder %s27, 0
    %p226 = por %p224, %p225
    %p227 = scmp.ne.s32.totalorder %s215, %s216
    %p228 = scmp.eq.s32.totalorder %s28, 1
    %p229 = por %p227, %p228
    %p231 = scmp.ne.s32.totalorder %s216, %s230
    %p232 = scmp.eq.s32.totalorder %s28, 0
    %p233 = por %p231, %p232
    %s235 = sadd.s32 %s234, 1
    %p238 = scmp.eq.s32.totalorder %s22, 1
    %p239 = scmp.ne.s32.totalorder %s234, %s236
    %p240 = scmp.eq.s32.totalorder %s22, 0
    %p241 = por %p239, %p240
    %p242 = scmp.ne.s32.totalorder %s234, %s236
    %p243 = scmp.eq.s32.totalorder %s27, 1
    %p244 = por %p242, %p243
    %p245 = scmp.ne.s32.totalorder %s236, %s237
    %p246 = scmp.eq.s32.totalorder %s27, 0
    %p247 = por %p245, %p246
    %p248 = scmp.ne.s32.totalorder %s236, %s237
    %p249 = scmp.eq.s32.totalorder %s28, 1
    %p250 = por %p248, %p249
    %p252 = scmp.ne.s32.totalorder %s237, %s251
    %p253 = scmp.eq.s32.totalorder %s28, 0
    %p254 = por %p252, %p253
    %s256 = sadd.s32 %s255, 1
    %p259 = scmp.eq.s32.totalorder %s22, 1
    %p260 = scmp.ne.s32.totalorder %s255, %s257
    %p261 = scmp.eq.s32.totalorder %s22, 0
    %p262 = por %p260, %p261
    %p263 = scmp.ne.s32.totalorder %s255, %s257
    %p264 = scmp.eq.s32.totalorder %s27, 1
    %p265 = por %p263, %p264
    %p266 = scmp.ne.s32.totalorder %s257, %s258
    %p267 = scmp.eq.s32.totalorder %s27, 0
    %p268 = por %p266, %p267
    %p269 = scmp.ne.s32.totalorder %s257, %s258
    %p270 = scmp.eq.s32.totalorder %s28, 1
    %p271 = por %p269, %p270
    %p273 = scmp.ne.s32.totalorder %s258, %s272
    %p274 = scmp.eq.s32.totalorder %s28, 0
    %p275 = por %p273, %p274
    %s277 = sadd.s32 %s276, 1
    %p280 = scmp.eq.s32.totalorder %s22, 1
    %p281 = scmp.ne.s32.totalorder %s276, %s278
    %p282 = scmp.eq.s32.totalorder %s22, 0
    %p283 = por %p281, %p282
    %p284 = scmp.ne.s32.totalorder %s276, %s278
    %p285 = scmp.eq.s32.totalorder %s27, 1
    %p286 = por %p284, %p285
    %p287 = scmp.ne.s32.totalorder %s278, %s279
    %p288 = scmp.eq.s32.totalorder %s27, 0
    %p289 = por %p287, %p288
    %p290 = scmp.ne.s32.totalorder %s278, %s279
    %p291 = scmp.eq.s32.totalorder %s28, 1
    %p292 = por %p290, %p291
    %p294 = scmp.ne.s32.totalorder %s279, %s293
    %p295 = scmp.eq.s32.totalorder %s28, 0
    %p296 = por %p294, %p295
    %s298 = sadd.s32 %s297, 1
    %p301 = scmp.eq.s32.totalorder %s22, 1
    %p302 = scmp.ne.s32.totalorder %s297, %s299
    %p303 = scmp.eq.s32.totalorder %s22, 0
    %p304 = por %p302, %p303
    %p305 = scmp.ne.s32.totalorder %s297, %s299
    %p306 = scmp.eq.s32.totalorder %s27, 1
    %p307 = por %p305, %p306
    %p308 = scmp.ne.s32.totalorder %s299, %s300
    %p309 = scmp.eq.s32.totalorder %s27, 0
    %p310 = por %p308, %p309
    %p311 = scmp.ne.s32.totalorder %s299, %s300
    %p312 = scmp.eq.s32.totalorder %s28, 1
    %p313 = por %p311, %p312
    %p315 = scmp.ne.s32.totalorder %s300, %s314
    %p316 = scmp.eq.s32.totalorder %s28, 0
    %p317 = por %p315, %p316
    %s319 = sadd.s32 %s318, 1
    %p322 = scmp.eq.s32.totalorder %s22, 1
    %p323 = scmp.ne.s32.totalorder %s318, %s320
    %p324 = scmp.eq.s32.totalorder %s22, 0
    %p325 = por %p323, %p324
    %p326 = scmp.ne.s32.totalorder %s318, %s320
    %p327 = scmp.eq.s32.totalorder %s27, 1
    %p328 = por %p326, %p327
    %p329 = scmp.ne.s32.totalorder %s320, %s321
    %p330 = scmp.eq.s32.totalorder %s27, 0
    %p331 = por %p329, %p330
    %p332 = scmp.ne.s32.totalorder %s320, %s321
    %p333 = scmp.eq.s32.totalorder %s28, 1
    %p334 = por %p332, %p333
    %p336 = scmp.ne.s32.totalorder %s321, %s335
    %p337 = scmp.eq.s32.totalorder %s28, 0
    %p338 = por %p336, %p337
    %s339 = ssub.s32 %s22, %s29
    %p340 = scmp.eq.s32.totalorder %s339, 0
    %s342 = sadd.s32 %s341, 1
    %s343 = scalar_select %p340, %s341, %s342
    %p346 = pneg %p340
    %p347 = scmp.eq.s32.totalorder %s22, 1
    %p348 = por %p346, %p347
    %p349 = scmp.ne.s32.totalorder %s341, %s344
    %p350 = scmp.eq.s32.totalorder %s22, 0
    %p351 = por %p349, %p350
    %p352 = scmp.ne.s32.totalorder %s341, %s344
    %p353 = scmp.eq.s32.totalorder %s27, 1
    %p354 = por %p352, %p353
    %p355 = scmp.ne.s32.totalorder %s344, %s345
    %p356 = scmp.eq.s32.totalorder %s27, 0
    %p357 = por %p355, %p356
    %p358 = scmp.ne.s32.totalorder %s344, %s345
    %p359 = scmp.eq.s32.totalorder %s28, 1
    %p360 = por %p358, %p359
    %p362 = scmp.ne.s32.totalorder %s345, %s361
    %p363 = scmp.eq.s32.totalorder %s28, 0
    %p364 = por %p362, %p363
    %s365 = ssub.s32 %s22, %s29
    %p366 = scmp.eq.s32.totalorder %s365, 0
    %s368 = sadd.s32 %s367, 1
    %s369 = scalar_select %p366, %s367, %s368
    %p372 = pneg %p366
    %p373 = scmp.eq.s32.totalorder %s22, 1
    %p374 = por %p372, %p373
    %p375 = scmp.ne.s32.totalorder %s367, %s370
    %p376 = scmp.eq.s32.totalorder %s22, 0
    %p377 = por %p375, %p376
    %p378 = scmp.ne.s32.totalorder %s367, %s370
    %p379 = scmp.eq.s32.totalorder %s27, 1
    %p380 = por %p378, %p379
    %p381 = scmp.ne.s32.totalorder %s370, %s371
    %p382 = scmp.eq.s32.totalorder %s27, 0
    %p383 = por %p381, %p382
    %p384 = scmp.ne.s32.totalorder %s370, %s371
    %p385 = scmp.eq.s32.totalorder %s28, 1
    %p386 = por %p384, %p385
    %p388 = scmp.ne.s32.totalorder %s371, %s387
    %p389 = scmp.eq.s32.totalorder %s28, 0
    %p390 = por %p388, %p389
    %p391 = scmp.le.s32.totalorder 1, %s22
    %p392 = scmp.lt.s32.totalorder %s22, 3
    %p393 = pnand %p391, %p392
    %p394 = pneg %p393
    // Predicated region
    $region9: #{token_pair_modeling_forward.3} parent=5 // pred_check
      _
    $region10: #{token_pair_modeling_forward.3} parent=5 // pred_check_branch
      %396 = sbr.rel (%p393) target = $region12
    $region11: #{token_pair_modeling_forward.3} parent=5 // pred_region
      %s397 = ssub.s32 %s22, 1
      // Predicated region
      $region13: #{token_pair_modeling_forward.3} parent=11 // pred_check
        %p398 = pneg %p121
      $region14: #{token_pair_modeling_forward.3} parent=11 // pred_check_branch
        %400 = sbr.rel (%p398) target = $region16
      $region15: #{token_pair_modeling_forward.3} parent=11 // pred_region
        _
      $region16: #{token_pair_modeling_forward.3} parent=11 // pred_fallthru
        _
      // Predicated region
      $region17: #{token_pair_modeling_forward.3} parent=11 // pred_check
        %p401 = pneg %p142
      $region18: #{token_pair_modeling_forward.3} parent=11 // pred_check_branch
        %403 = sbr.rel (%p401) target = $region20
      $region19: #{token_pair_modeling_forward.3} parent=11 // pred_region
        _
      $region20: #{token_pair_modeling_forward.3} parent=11 // pred_fallthru
        _
      // Predicated region
      $region21: #{token_pair_modeling_forward.3} parent=11 // pred_check
        %p404 = pneg %p163
      $region22: #{token_pair_modeling_forward.3} parent=11 // pred_check_branch
        %406 = sbr.rel (%p404) target = $region24
      $region23: #{token_pair_modeling_forward.3} parent=11 // pred_region
        _
      $region24: #{token_pair_modeling_forward.3} parent=11 // pred_fallthru
        _
      // Predicated region
      $region25: #{token_pair_modeling_forward.3} parent=11 // pred_check
        %p407 = pneg %p184
      $region26: #{token_pair_modeling_forward.3} parent=11 // pred_check_branch
        %409 = sbr.rel (%p407) target = $region28
      $region27: #{token_pair_modeling_forward.3} parent=11 // pred_region
        _
      $region28: #{token_pair_modeling_forward.3} parent=11 // pred_fallthru
        _
      // Predicated region
      $region29: #{token_pair_modeling_forward.3} parent=11 // pred_check
        %p410 = pneg %p205
      $region30: #{token_pair_modeling_forward.3} parent=11 // pred_check_branch
        %412 = sbr.rel (%p410) target = $region32
      $region31: #{token_pair_modeling_forward.3} parent=11 // pred_region
        _
      $region32: #{token_pair_modeling_forward.3} parent=11 // pred_fallthru
        _
      // Predicated region
      $region33: #{token_pair_modeling_forward.3} parent=11 // pred_check
        %p413 = pneg %p226
      $region34: #{token_pair_modeling_forward.3} parent=11 // pred_check_branch
        %415 = sbr.rel (%p413) target = $region36
      $region35: #{token_pair_modeling_forward.3} parent=11 // pred_region
        _
      $region36: #{token_pair_modeling_forward.3} parent=11 // pred_fallthru
        _
      // Predicated region
      $region37: #{token_pair_modeling_forward.3} parent=11 // pred_check
        %p416 = pneg %p247
      $region38: #{token_pair_modeling_forward.3} parent=11 // pred_check_branch
        %418 = sbr.rel (%p416) target = $region40
      $region39: #{token_pair_modeling_forward.3} parent=11 // pred_region
        _
      $region40: #{token_pair_modeling_forward.3} parent=11 // pred_fallthru
        _
      // Predicated region
      $region41: #{token_pair_modeling_forward.3} parent=11 // pred_check
        %p419 = pneg %p268
      $region42: #{token_pair_modeling_forward.3} parent=11 // pred_check_branch
        %421 = sbr.rel (%p419) target = $region44
      $region43: #{token_pair_modeling_forward.3} parent=11 // pred_region
        _
      $region44: #{token_pair_modeling_forward.3} parent=11 // pred_fallthru
        _
      // Predicated region
      $region45: #{token_pair_modeling_forward.3} parent=11 // pred_check
        %p422 = pneg %p289
      $region46: #{token_pair_modeling_forward.3} parent=11 // pred_check_branch
        %424 = sbr.rel (%p422) target = $region48
      $region47: #{token_pair_modeling_forward.3} parent=11 // pred_region
        _
      $region48: #{token_pair_modeling_forward.3} parent=11 // pred_fallthru
        _
      // Predicated region
      $region49: #{token_pair_modeling_forward.3} parent=11 // pred_check
        %p425 = pneg %p310
      $region50: #{token_pair_modeling_forward.3} parent=11 // pred_check_branch
        %427 = sbr.rel (%p425) target = $region52
      $region51: #{token_pair_modeling_forward.3} parent=11 // pred_region
        _
      $region52: #{token_pair_modeling_forward.3} parent=11 // pred_fallthru
        _
      // Predicated region
      $region53: #{token_pair_modeling_forward.3} parent=11 // pred_check
        %p428 = pneg %p331
      $region54: #{token_pair_modeling_forward.3} parent=11 // pred_check_branch
        %430 = sbr.rel (%p428) target = $region56
      $region55: #{token_pair_modeling_forward.3} parent=11 // pred_region
        _
      $region56: #{token_pair_modeling_forward.3} parent=11 // pred_fallthru
        _
    $region12: #{token_pair_modeling_forward.3} parent=5 // pred_fallthru
      _
    %p431 = scmp.lt.s32.totalorder %s22, 2
    // Predicated region
    $region57: #{token_pair_modeling_forward.3} parent=5 // pred_check
      %p432 = pneg %p431
    $region58: #{token_pair_modeling_forward.3} parent=5 // pred_check_branch
      %434 = sbr.rel (%p432) target = $region60
    $region59: #{token_pair_modeling_forward.3} parent=5 // pred_region
      // Predicated region
      $region61: #{token_pair_modeling_forward.3} parent=59 // pred_check
        %p435 = pneg %p42
      $region62: #{token_pair_modeling_forward.3} parent=59 // pred_check_branch
        %437 = sbr.rel (%p435) target = $region64
      $region63: #{token_pair_modeling_forward.3} parent=59 // pred_region
        %p438 = scmp.lt.s32.totalorder %s22, 1
        %s439 = scalar_select %p438, %s22, 1
        %s440 = smul.addr %s439, 8
        %s441 = scalar_lea.vmem %s0, %s440
      $region64: #{token_pair_modeling_forward.3} parent=59 // pred_fallthru
        _
      // Predicated region
      $region65: #{token_pair_modeling_forward.3} parent=59 // pred_check
        %p442 = pneg %p68
      $region66: #{token_pair_modeling_forward.3} parent=59 // pred_check_branch
        %444 = sbr.rel (%p442) target = $region68
      $region67: #{token_pair_modeling_forward.3} parent=59 // pred_region
        %p445 = scmp.lt.s32.totalorder %s22, 1
        %s446 = scalar_select %p445, %s22, 1
        %s447 = smul.addr %s446, 8
        %s448 = scalar_lea.vmem %s1, %s447
      $region68: #{token_pair_modeling_forward.3} parent=59 // pred_fallthru
        _
      // Predicated region
      $region69: #{token_pair_modeling_forward.3} parent=59 // pred_check
        %p449 = pneg %p94
      $region70: #{token_pair_modeling_forward.3} parent=59 // pred_check_branch
        %451 = sbr.rel (%p449) target = $region72
      $region71: #{token_pair_modeling_forward.3} parent=59 // pred_region
        %p452 = scmp.lt.s32.totalorder %s22, 1
        %s453 = scalar_select %p452, %s22, 1
        %s454 = smul.addr %s453, 8
        %s455 = scalar_lea.vmem %s2, %s454
      $region72: #{token_pair_modeling_forward.3} parent=59 // pred_fallthru
        _
    $region60: #{token_pair_modeling_forward.3} parent=5 // pred_fallthru
      _
    %p456 = scmp.le.s32.totalorder 1, %s22
    %p457 = scmp.lt.s32.totalorder %s22, 3
    %p458 = pnand %p456, %p457
    %p459 = pneg %p458
    // Predicated region
    $region73: #{token_pair_modeling_forward.3} parent=5 // pred_check
      _
    $region74: #{token_pair_modeling_forward.3} parent=5 // pred_check_branch
      %461 = sbr.rel (%p458) target = $region76
    $region75: #{token_pair_modeling_forward.3} parent=5 // pred_region
      %s462 = ssub.s32 %s22, 1
      %p463 = scmp.lt.s32.totalorder %s27, 1
      %s464 = scalar_select %p463, %s27, 1
      %s465 = smul.addr %s464, 8
      %s466 = scalar_lea.vmem %s0, %s465
      %p467 = pneg %p48
      %p468 = pneg %p45
      %p469 = scmp.lt.s32.totalorder %s27, 1
      %s470 = scalar_select %p469, %s27, 1
      %s471 = smul.addr %s470, 8
      %s472 = scalar_lea.vmem %s1, %s471
      %p473 = pneg %p74
      %p474 = pneg %p71
      %p475 = scmp.lt.s32.totalorder %s27, 1
      %s476 = scalar_select %p475, %s27, 1
      %s477 = smul.addr %s476, 8
      %s478 = scalar_lea.vmem %s2, %s477
      %p479 = pneg %p100
      %p480 = pneg %p97
      %p481 = pneg %p121
      %p482 = pneg %p118
      %p483 = pneg %p142
      %p484 = pneg %p139
      %p485 = pneg %p163
      %p486 = pneg %p160
      %p487 = pneg %p184
      %p488 = pneg %p181
      %p489 = pneg %p205
      %p490 = pneg %p202
      %p491 = pneg %p226
      %p492 = pneg %p223
      %p493 = pneg %p247
      %p494 = pneg %p244
      %p495 = pneg %p268
      %p496 = pneg %p265
      %p497 = pneg %p289
      %p498 = pneg %p286
      %p499 = pneg %p310
      %p500 = pneg %p307
      %p501 = pneg %p331
      %p502 = pneg %p328
      %p503 = pneg %p357
      %p504 = pneg %p354
      %p505 = scmp.lt.s32.totalorder %s27, 1
      %s506 = scalar_select %p505, %s27, 1
      %s507 = smul.addr %s506, 5
      %s508 = smul.addr %s507, 8
      %s509 = scalar_lea.vmem %s14, %s508
      %p510 = pneg %p383
      %p511 = pneg %p380
      %p512 = scmp.lt.s32.totalorder %s27, 1
      %s513 = scalar_select %p512, %s27, 1
      %s514 = smul.addr %s513, 5
      %s515 = smul.addr %s514, 8
      %s516 = scalar_lea.vmem %s15, %s515
      %p517 = scmp.lt.s32.totalorder %s27, 1
      %s518 = scalar_select %p517, %s27, 1
      %s519 = smul.addr %s518, 8
      %s520 = scalar_lea.vmem %s0, %s519
      %p521 = scmp.lt.s32.totalorder %s27, 1
      %s522 = scalar_select %p521, %s27, 1
      %s523 = smul.addr %s522, 8
      %s524 = scalar_lea.vmem %s1, %s523
      %p525 = scmp.lt.s32.totalorder %s27, 1
      %s526 = scalar_select %p525, %s27, 1
      %s527 = smul.addr %s526, 8
      %s528 = scalar_lea.vmem %s2, %s527
      %p529 = scmp.lt.s32.totalorder %s27, 1
      %s530 = scalar_select %p529, %s27, 1
      %s531 = smul.addr %s530, 5
      %s532 = smul.addr %s531, 8
      %s533 = scalar_lea.vmem %s14, %s532
      %p534 = scmp.lt.s32.totalorder %s27, 1
      %s535 = scalar_select %p534, %s27, 1
      %s536 = smul.addr %s535, 5
      %s537 = smul.addr %s536, 8
      %s538 = scalar_lea.vmem %s15, %s537
      %v539 = vld [vmem:[%s520] sm:$0xff]
      %v540 = vld [vmem:[%s524] sm:$0xff]
      %v541 = vld [vmem:[%s528] sm:$0xff]
      %v542 = vld [vmem:[%s3] sm:$0xff]
      %v543 = vld [vmem:[%s4] sm:$0xff]
      %v544 = vld [vmem:[%s5] sm:$0xff]
      %v545 = vld [vmem:[%s5 + $0x8] sm:$0xff]
      %v546 = vld [vmem:[%s5 + $0x10] sm:$0xff]
      %v547 = vld [vmem:[%s5 + $0x18] sm:$0xff]
      %v548 = vld [vmem:[%s5 + $0x20] sm:$0xff]
      %v549 = vld [vmem:[%s5 + $0x28] sm:$0xff]
      %v550 = vld [vmem:[%s5 + $0x30] sm:$0xff]
      %v551 = vld [vmem:[%s5 + $0x38] sm:$0xff]
      %v552 = vld [vmem:[%s6] sm:$0xff]
      %v553 = vld [vmem:[%s6 + $0x8] sm:$0xff]
      %v554 = vld [vmem:[%s6 + $0x10] sm:$0xff]
      %v555 = vld [vmem:[%s6 + $0x18] sm:$0xff]
      %v556 = vld [vmem:[%s7] sm:$0xff]
      %v557 = vld [vmem:[%s7 + $0x8] sm:$0xff]
      %v558 = vld [vmem:[%s7 + $0x10] sm:$0xff]
      %v559 = vld [vmem:[%s7 + $0x18] sm:$0xff]
      %vm560 = vcmask 261120
      %v562 = vsel %vm560, %v540, 0
      %564 = vmatprep.subr.mxu0 0.0
      %565 = vmatpush1.msra.mxu0 0.0
      %566 = vmatprep.subr.mxu0 0.0
      %567 = vmatpush1.msra.mxu0 0.0
      %568 = vmatprep.subr.mxu0 0.0
      %569 = vmatpush1.msra.mxu0 0.0
      %570 = vmatprep.subr.mxu0 0.0
      %571 = vmatpush1.msra.mxu0 0.0
      %572 = vmatprep.subr.mxu0 0.0
      %573 = vmatpush1.msra.mxu0 0.0
      %574 = vmatprep.subr.mxu0 0.0
      %575 = vmatpush1.msra.mxu0 0.0
      %576 = vmatprep.subr.mxu0 0.0
      %577 = vmatpush1.msra.mxu0 0.0
      %578 = vmatprep.subr.mxu0 0.0
      %579 = vmatpush1.msra.mxu0 0.0
      %580 = vmatprep.subr.mxu0 0.0
      %581 = vmatpush1.msra.mxu0 0.0
      %582 = vmatprep.subr.mxu0 0.0
      %583 = vmatpush1.msra.mxu0 0.0
      %584 = vmatprep.subr.mxu0 0.0
      %585 = vmatpush1.msra.mxu0 0.0
      %586 = vmatprep.subr.mxu0 0.0
      %587 = vmatpush1.msra.mxu0 0.0
      %588 = vmatprep.subr.mxu0 0.0
      %589 = vmatpush1.msra.mxu0 %v559
      %590 = vmatprep.subr.mxu0 0.0
      %591 = vmatpush1.msra.mxu0 %v558
      %592 = vmatprep.subr.mxu0 0.0
      %593 = vmatpush1.msra.mxu0 %v557
      %594 = vmatprep.subr.mxu0 0.0
      %595 = vmatpush1.msra.mxu0 %v556
      %596 = vmatprep.subr.mxu0 0.0
      %597 = vmatpush2.msra.mxu0 0.0
      %598 = vmatprep.subr.mxu0 0.0
      %599 = vmatpush2.msra.mxu0 0.0
      %600 = vmatprep.subr.mxu0 0.0
      %601 = vmatpush2.msra.mxu0 0.0
      %602 = vmatprep.subr.mxu0 0.0
      %603 = vmatpush2.msra.mxu0 0.0
      %604 = vmatprep.subr.mxu0 0.0
      %605 = vmatpush2.msra.mxu0 0.0
      %606 = vmatprep.subr.mxu0 0.0
      %607 = vmatpush2.msra.mxu0 0.0
      %608 = vmatprep.subr.mxu0 0.0
      %609 = vmatpush2.msra.mxu0 0.0
      %610 = vmatprep.subr.mxu0 0.0
      %611 = vmatpush2.msra.mxu0 0.0
      %612 = vmatprep.subr.mxu0 0.0
      %613 = vmatpush2.msra.mxu0 0.0
      %614 = vmatprep.subr.mxu0 0.0
      %615 = vmatpush2.msra.mxu0 0.0
      %616 = vmatprep.subr.mxu0 0.0
      %617 = vmatpush2.msra.mxu0 0.0
      %618 = vmatprep.subr.mxu0 0.0
      %619 = vmatpush2.msra.mxu0 0.0
      %620 = vmatprep.subr.mxu0 0.0
      %621 = vmatpush2.msra.mxu0 0.0
      %622 = vmatprep.subr.mxu0 0.0
      %623 = vmatpush2.msra.mxu0 0.0
      %624 = vmatprep.subr.mxu0 0.0
      %625 = vmatpush2.msra.mxu0 0.0
      %626 = vmatprep.subr.mxu0 0.0
      %627 = vmatpush2.msra.mxu0 0.0
      %628 = vmatprep.mubr.f32.mxu0 0.0
      %629 = vmatmul.mubr.f32.gmra.mxu0 %v562
      %v630 = vpop.f32.mrf.mxu0
      %v631 = vadd.f32 0.0, %v630
      %v632 = vpop.f32.mrf.mxu0
      %633 = vdwg.mxu0
      %v635 = vsel %vm560, %v539, 0
      %637 = vmatprep.subr.mxu0 0.0
      %638 = vmatpush1.msra.mxu0 0.0
      %639 = vmatprep.subr.mxu0 0.0
      %640 = vmatpush1.msra.mxu0 0.0
      %641 = vmatprep.subr.mxu0 0.0
      %642 = vmatpush1.msra.mxu0 0.0
      %643 = vmatprep.subr.mxu0 0.0
      %644 = vmatpush1.msra.mxu0 0.0
      %645 = vmatprep.subr.mxu0 0.0
      %646 = vmatpush1.msra.mxu0 0.0
      %647 = vmatprep.subr.mxu0 0.0
      %648 = vmatpush1.msra.mxu0 0.0
      %649 = vmatprep.subr.mxu0 0.0
      %650 = vmatpush1.msra.mxu0 0.0
      %651 = vmatprep.subr.mxu0 0.0
      %652 = vmatpush1.msra.mxu0 0.0
      %653 = vmatprep.subr.mxu0 0.0
      %654 = vmatpush1.msra.mxu0 0.0
      %655 = vmatprep.subr.mxu0 0.0
      %656 = vmatpush1.msra.mxu0 0.0
      %657 = vmatprep.subr.mxu0 0.0
      %658 = vmatpush1.msra.mxu0 0.0
      %659 = vmatprep.subr.mxu0 0.0
      %660 = vmatpush1.msra.mxu0 0.0
      %661 = vmatprep.subr.mxu0 0.0
      %662 = vmatpush1.msra.mxu0 %v555
      %663 = vmatprep.subr.mxu0 0.0
      %664 = vmatpush1.msra.mxu0 %v554
      %665 = vmatprep.subr.mxu0 0.0
      %666 = vmatpush1.msra.mxu0 %v553
      %667 = vmatprep.subr.mxu0 0.0
      %668 = vmatpush1.msra.mxu0 %v552
      %669 = vmatprep.subr.mxu0 0.0
      %670 = vmatpush2.msra.mxu0 0.0
      %671 = vmatprep.subr.mxu0 0.0
      %672 = vmatpush2.msra.mxu0 0.0
      %673 = vmatprep.subr.mxu0 0.0
      %674 = vmatpush2.msra.mxu0 0.0
      %675 = vmatprep.subr.mxu0 0.0
      %676 = vmatpush2.msra.mxu0 0.0
      %677 = vmatprep.subr.mxu0 0.0
      %678 = vmatpush2.msra.mxu0 0.0
      %679 = vmatprep.subr.mxu0 0.0
      %680 = vmatpush2.msra.mxu0 0.0
      %681 = vmatprep.subr.mxu0 0.0
      %682 = vmatpush2.msra.mxu0 0.0
      %683 = vmatprep.subr.mxu0 0.0
      %684 = vmatpush2.msra.mxu0 0.0
      %685 = vmatprep.subr.mxu0 0.0
      %686 = vmatpush2.msra.mxu0 0.0
      %687 = vmatprep.subr.mxu0 0.0
      %688 = vmatpush2.msra.mxu0 0.0
      %689 = vmatprep.subr.mxu0 0.0
      %690 = vmatpush2.msra.mxu0 0.0
      %691 = vmatprep.subr.mxu0 0.0
      %692 = vmatpush2.msra.mxu0 0.0
      %693 = vmatprep.subr.mxu0 0.0
      %694 = vmatpush2.msra.mxu0 0.0
      %695 = vmatprep.subr.mxu0 0.0
      %696 = vmatpush2.msra.mxu0 0.0
      %697 = vmatprep.subr.mxu0 0.0
      %698 = vmatpush2.msra.mxu0 0.0
      %699 = vmatprep.subr.mxu0 0.0
      %700 = vmatpush2.msra.mxu0 0.0
      %701 = vmatprep.mubr.f32.mxu0 0.0
      %702 = vmatmul.mubr.f32.gmra.mxu0 %v635
      %v703 = vpop.f32.mrf.mxu0
      %v704 = vadd.f32 %v631, %v703
      %v705 = vpop.f32.mrf.mxu0
      %706 = vdwg.mxu0
      %v707 = vld [vmem:[%s8] sm:$0x1]
      %v709 = vlaneseq
      %v710 = vshrl.u32 %v709, 7
      %v711 = vsub.s32 0, %v710
      %v712 = vrot.slane %v707, %v711
      %v714 = vadd.f32 %v704, %v712
      %716 = vset.pattern.permute.xlu0 0
      %717 = vperm.xlu0 %716, %v541
      %v718 = vpop.permute.xlu0 %717
      %v720 = vmul.f32 %v714, %v718
      %v721 = vmul.f32 %v720, %v542
      %vm722 = vcmask 523264
      %v724 = vsel %vm722, %v720, 0
      %726 = vmatprep.subr.mxu0 0.0
      %727 = vmatpush1.msra.mxu0 0.0
      %728 = vmatprep.subr.mxu0 0.0
      %729 = vmatpush1.msra.mxu0 0.0
      %730 = vmatprep.subr.mxu0 0.0
      %731 = vmatpush1.msra.mxu0 0.0
      %732 = vmatprep.subr.mxu0 0.0
      %733 = vmatpush1.msra.mxu0 0.0
      %734 = vmatprep.subr.mxu0 0.0
      %735 = vmatpush1.msra.mxu0 0.0
      %736 = vmatprep.subr.mxu0 0.0
      %737 = vmatpush1.msra.mxu0 0.0
      %738 = vmatprep.subr.mxu0 0.0
      %739 = vmatpush1.msra.mxu0 0.0
      %740 = vmatprep.subr.mxu0 0.0
      %741 = vmatpush1.msra.mxu0 0.0
      %742 = vmatprep.subr.mxu0 0.0
      %743 = vmatpush1.msra.mxu0 %v551
      %744 = vmatprep.subr.mxu0 0.0
      %745 = vmatpush1.msra.mxu0 %v550
      %746 = vmatprep.subr.mxu0 0.0
      %747 = vmatpush1.msra.mxu0 %v549
      %748 = vmatprep.subr.mxu0 0.0
      %749 = vmatpush1.msra.mxu0 %v548
      %750 = vmatprep.subr.mxu0 0.0
      %751 = vmatpush1.msra.mxu0 %v547
      %752 = vmatprep.subr.mxu0 0.0
      %753 = vmatpush1.msra.mxu0 %v546
      %754 = vmatprep.subr.mxu0 0.0
      %755 = vmatpush1.msra.mxu0 %v545
      %756 = vmatprep.subr.mxu0 0.0
      %757 = vmatpush1.msra.mxu0 %v544
      %758 = vmatprep.subr.mxu0 0.0
      %759 = vmatpush2.msra.mxu0 0.0
      %760 = vmatprep.subr.mxu0 0.0
      %761 = vmatpush2.msra.mxu0 0.0
      %762 = vmatprep.subr.mxu0 0.0
      %763 = vmatpush2.msra.mxu0 0.0
      %764 = vmatprep.subr.mxu0 0.0
      %765 = vmatpush2.msra.mxu0 0.0
      %766 = vmatprep.subr.mxu0 0.0
      %767 = vmatpush2.msra.mxu0 0.0
      %768 = vmatprep.subr.mxu0 0.0
      %769 = vmatpush2.msra.mxu0 0.0
      %770 = vmatprep.subr.mxu0 0.0
      %771 = vmatpush2.msra.mxu0 0.0
      %772 = vmatprep.subr.mxu0 0.0
      %773 = vmatpush2.msra.mxu0 0.0
      %774 = vmatprep.subr.mxu0 0.0
      %775 = vmatpush2.msra.mxu0 0.0
      %776 = vmatprep.subr.mxu0 0.0
      %777 = vmatpush2.msra.mxu0 0.0
      %778 = vmatprep.subr.mxu0 0.0
      %779 = vmatpush2.msra.mxu0 0.0
      %780 = vmatprep.subr.mxu0 0.0
      %781 = vmatpush2.msra.mxu0 0.0
      %782 = vmatprep.subr.mxu0 0.0
      %783 = vmatpush2.msra.mxu0 0.0
      %784 = vmatprep.subr.mxu0 0.0
      %785 = vmatpush2.msra.mxu0 0.0
      %786 = vmatprep.subr.mxu0 0.0
      %787 = vmatpush2.msra.mxu0 0.0
      %788 = vmatprep.subr.mxu0 0.0
      %789 = vmatpush2.msra.mxu0 0.0
      %790 = vmatprep.mubr.f32.mxu0 0.0
      %791 = vmatmul.mubr.f32.gmra.mxu0 %v724
      %v792 = vpop.f32.mrf.mxu0
      %v793 = vadd.f32 0.0, %v792
      %v794 = vpop.f32.mrf.mxu0
      %795 = vdwg.mxu0
      %v796 = vmul.f32 %v793, %v543
      %v797 = vadd.f32 %v721, %v796
      %799 = vrot.lane.b32.xlu0 %v542, 64
      %v800 = vpop.permute.xlu0 %799
      %v802 = vmul.f32 %v720, %v800
      %803 = vrot.lane.b32.xlu0 %v720, 64
      %v804 = vpop.permute.xlu0 %803
      %v805 = vsel %vm722, %v804, 0
      %807 = vmatprep.subr.mxu0 0.0
      %808 = vmatpush1.msra.mxu0 0.0
      %809 = vmatprep.subr.mxu0 0.0
      %810 = vmatpush1.msra.mxu0 0.0
      %811 = vmatprep.subr.mxu0 0.0
      %812 = vmatpush1.msra.mxu0 0.0
      %813 = vmatprep.subr.mxu0 0.0
      %814 = vmatpush1.msra.mxu0 0.0
      %815 = vmatprep.subr.mxu0 0.0
      %816 = vmatpush1.msra.mxu0 0.0
      %817 = vmatprep.subr.mxu0 0.0
      %818 = vmatpush1.msra.mxu0 0.0
      %819 = vmatprep.subr.mxu0 0.0
      %820 = vmatpush1.msra.mxu0 0.0
      %821 = vmatprep.subr.mxu0 0.0
      %822 = vmatpush1.msra.mxu0 0.0
      %823 = vmatprep.subr.mxu0 0.0
      %824 = vmatpush1.msra.mxu0 %v551
      %825 = vmatprep.subr.mxu0 0.0
      %826 = vmatpush1.msra.mxu0 %v550
      %827 = vmatprep.subr.mxu0 0.0
      %828 = vmatpush1.msra.mxu0 %v549
      %829 = vmatprep.subr.mxu0 0.0
      %830 = vmatpush1.msra.mxu0 %v548
      %831 = vmatprep.subr.mxu0 0.0
      %832 = vmatpush1.msra.mxu0 %v547
      %833 = vmatprep.subr.mxu0 0.0
      %834 = vmatpush1.msra.mxu0 %v546
      %835 = vmatprep.subr.mxu0 0.0
      %836 = vmatpush1.msra.mxu0 %v545
      %837 = vmatprep.subr.mxu0 0.0
      %838 = vmatpush1.msra.mxu0 %v544
      %839 = vmatprep.subr.mxu0 0.0
      %840 = vmatpush2.msra.mxu0 0.0
      %841 = vmatprep.subr.mxu0 0.0
      %842 = vmatpush2.msra.mxu0 0.0
      %843 = vmatprep.subr.mxu0 0.0
      %844 = vmatpush2.msra.mxu0 0.0
      %845 = vmatprep.subr.mxu0 0.0
      %846 = vmatpush2.msra.mxu0 0.0
      %847 = vmatprep.subr.mxu0 0.0
      %848 = vmatpush2.msra.mxu0 0.0
      %849 = vmatprep.subr.mxu0 0.0
      %850 = vmatpush2.msra.mxu0 0.0
      %851 = vmatprep.subr.mxu0 0.0
      %852 = vmatpush2.msra.mxu0 0.0
      %853 = vmatprep.subr.mxu0 0.0
      %854 = vmatpush2.msra.mxu0 0.0
      %855 = vmatprep.subr.mxu0 0.0
      %856 = vmatpush2.msra.mxu0 0.0
      %857 = vmatprep.subr.mxu0 0.0
      %858 = vmatpush2.msra.mxu0 0.0
      %859 = vmatprep.subr.mxu0 0.0
      %860 = vmatpush2.msra.mxu0 0.0
      %861 = vmatprep.subr.mxu0 0.0
      %862 = vmatpush2.msra.mxu0 0.0
      %863 = vmatprep.subr.mxu0 0.0
      %864 = vmatpush2.msra.mxu0 0.0
      %865 = vmatprep.subr.mxu0 0.0
      %866 = vmatpush2.msra.mxu0 0.0
      %867 = vmatprep.subr.mxu0 0.0
      %868 = vmatpush2.msra.mxu0 0.0
      %869 = vmatprep.subr.mxu0 0.0
      %870 = vmatpush2.msra.mxu0 0.0
      %871 = vmatprep.mubr.f32.mxu0 0.0
      %872 = vmatmul.mubr.f32.gmra.mxu0 %v805
      %v873 = vpop.f32.mrf.mxu0
      %v874 = vadd.f32 0.0, %v873
      %v875 = vpop.f32.mrf.mxu0
      %876 = vdwg.mxu0
      %v877 = vmul.f32 %v874, %v543
      %879 = vrot.lane.b32.xlu0 %v877, 64
      %v880 = vpop.permute.xlu0 %879
      %v882 = vadd.f32 %v802, %v880
      %884 = vrot.lane.b32.xlu0 %v882, 64
      %v885 = vpop.permute.xlu0 %884
      %v887 = vsel %vm722, %v797, 0
      %v889 = vsel %vm722, %v885, 0
      %891 = vmatprep.subr.mxu0 0.0
      %892 = vmatpush1.xpose.msra.mxu0 0.0
      %893 = vmatprep.subr.mxu0 0.0
      %894 = vmatpush1.xpose.msra.mxu0 0.0
      %895 = vmatprep.subr.mxu0 0.0
      %896 = vmatpush1.xpose.msra.mxu0 0.0
      %897 = vmatprep.subr.mxu0 0.0
      %898 = vmatpush1.xpose.msra.mxu0 0.0
      %899 = vmatprep.subr.mxu0 0.0
      %900 = vmatpush1.xpose.msra.mxu0 0.0
      %901 = vmatprep.subr.mxu0 0.0
      %902 = vmatpush1.xpose.msra.mxu0 0.0
      %903 = vmatprep.subr.mxu0 0.0
      %904 = vmatpush1.xpose.msra.mxu0 0.0
      %905 = vmatprep.subr.mxu0 0.0
      %906 = vmatpush1.xpose.msra.mxu0 0.0
      %907 = vmatprep.subr.mxu0 0.0
      %908 = vmatpush1.xpose.msra.mxu0 0.0
      %909 = vmatprep.subr.mxu0 0.0
      %910 = vmatpush1.xpose.msra.mxu0 0.0
      %911 = vmatprep.subr.mxu0 0.0
      %912 = vmatpush1.xpose.msra.mxu0 0.0
      %913 = vmatprep.subr.mxu0 0.0
      %914 = vmatpush1.xpose.msra.mxu0 0.0
      %915 = vmatprep.subr.mxu0 0.0
      %916 = vmatpush1.xpose.msra.mxu0 0.0
      %917 = vmatprep.subr.mxu0 0.0
      %918 = vmatpush1.xpose.msra.mxu0 0.0
      %919 = vmatprep.subr.mxu0 0.0
      %920 = vmatpush1.xpose.msra.mxu0 0.0
      %921 = vmatprep.subr.mxu0 0.0
      %922 = vmatpush1.xpose.msra.mxu0 %v889
      %923 = vmatprep.subr.mxu0 0.0
      %924 = vmatpush2.xpose.msra.mxu0 0.0
      %925 = vmatprep.subr.mxu0 0.0
      %926 = vmatpush2.xpose.msra.mxu0 0.0
      %927 = vmatprep.subr.mxu0 0.0
      %928 = vmatpush2.xpose.msra.mxu0 0.0
      %929 = vmatprep.subr.mxu0 0.0
      %930 = vmatpush2.xpose.msra.mxu0 0.0
      %931 = vmatprep.subr.mxu0 0.0
      %932 = vmatpush2.xpose.msra.mxu0 0.0
      %933 = vmatprep.subr.mxu0 0.0
      %934 = vmatpush2.xpose.msra.mxu0 0.0
      %935 = vmatprep.subr.mxu0 0.0
      %936 = vmatpush2.xpose.msra.mxu0 0.0
      %937 = vmatprep.subr.mxu0 0.0
      %938 = vmatpush2.xpose.msra.mxu0 0.0
      %939 = vmatprep.subr.mxu0 0.0
      %940 = vmatpush2.xpose.msra.mxu0 0.0
      %941 = vmatprep.subr.mxu0 0.0
      %942 = vmatpush2.xpose.msra.mxu0 0.0
      %943 = vmatprep.subr.mxu0 0.0
      %944 = vmatpush2.xpose.msra.mxu0 0.0
      %945 = vmatprep.subr.mxu0 0.0
      %946 = vmatpush2.xpose.msra.mxu0 0.0
      %947 = vmatprep.subr.mxu0 0.0
      %948 = vmatpush2.xpose.msra.mxu0 0.0
      %949 = vmatprep.subr.mxu0 0.0
      %950 = vmatpush2.xpose.msra.mxu0 0.0
      %951 = vmatprep.subr.mxu0 0.0
      %952 = vmatpush2.xpose.msra.mxu0 0.0
      %953 = vmatprep.subr.mxu0 0.0
      %954 = vmatpush2.xpose.msra.mxu0 0.0
      %955 = vmatprep.mubr.f32.mxu0 0.0
      %956 = vmatmul.mubr.f32.gmra.mxu0 %v887
      %v957 = vpop.f32.mrf.mxu0
      %v958 = vadd.f32 0.0, %v957
      %v959 = vpop.f32.mrf.mxu0
      %960 = vdwg.mxu0
      %v961 = vmul.f32 %v958, 0.125
      %962 = vxpose.xlu0.b32.start [1/16] %v961, 128
      %963 = vxpose.xlu0.b32.cont [2/16] 0.0, 128
      %964 = vxpose.xlu0.b32.cont [3/16] 0.0, 128
      %965 = vxpose.xlu0.b32.cont [4/16] 0.0, 128
      %966 = vxpose.xlu0.b32.cont [5/16] 0.0, 128
      %967 = vxpose.xlu0.b32.cont [6/16] 0.0, 128
      %968 = vxpose.xlu0.b32.cont [7/16] 0.0, 128
      %969 = vxpose.xlu0.b32.cont [8/16] 0.0, 128
      %970 = vxpose.xlu0.b32.cont [9/16] 0.0, 128
      %971 = vxpose.xlu0.b32.cont [10/16] 0.0, 128
      %972 = vxpose.xlu0.b32.cont [11/16] 0.0, 128
      %973 = vxpose.xlu0.b32.cont [12/16] 0.0, 128
      %974 = vxpose.xlu0.b32.cont [13/16] 0.0, 128
      %975 = vxpose.xlu0.b32.cont [14/16] 0.0, 128
      %976 = vxpose.xlu0.b32.cont [15/16] 0.0, 128
      %977 = vxpose.xlu0.b32.end [16/16] 0.0, 128
      %v978 = vpop.trf.xlu0
      %v979 = vpop.trf.xlu0
      %v980 = vpop.trf.xlu0
      %v981 = vpop.trf.xlu0
      %v982 = vpop.trf.xlu0
      %v983 = vpop.trf.xlu0
      %v984 = vpop.trf.xlu0
      %v985 = vpop.trf.xlu0
      %v986 = vpop.trf.xlu0
      %v987 = vpop.trf.xlu0
      %v988 = vpop.trf.xlu0
      %v989 = vpop.trf.xlu0
      %v990 = vpop.trf.xlu0
      %v991 = vpop.trf.xlu0
      %v992 = vpop.trf.xlu0
      %v993 = vpop.trf.xlu0
      %v994 = vmax.f32 %v978, 0.0
      %vm995 = vcmask 7168
      %996 = vst.msk [vmem:[%s538] sm:$0xff] %vm995, %v994
      %998 = vrot.lane.b32.xlu0 %v994, 127
      %v999 = vpop.permute.xlu0 %998
      %vm1001 = vcmask 7169
      %1002 = vst.msk [vmem:[%s538 + $0x7] sm:$0xfe] %vm1001, %v999
      %1003 = vrot.lane.b32.xlu0 %v994, 126
      %v1004 = vpop.permute.xlu0 %1003
      %vm1006 = vcmask 7170
      %1007 = vst.msk [vmem:[%s538 + $0xd] sm:$0xfc] %vm1006, %v1004
      %1008 = vrot.lane.b32.xlu0 %v994, 125
      %v1009 = vpop.permute.xlu0 %1008
      %vm1011 = vcmask 7171
      %1012 = vst.msk [vmem:[%s538 + $0x12] sm:$0xf8] %vm1011, %v1009
      %1013 = vrot.lane.b32.xlu0 %v994, 124
      %v1014 = vpop.permute.xlu0 %1013
      %vm1016 = vcmask 7172
      %1017 = vst.msk [vmem:[%s538 + $0x16] sm:$0xf0] %vm1016, %v1014
      %1018 = vrot.lane.b32.xlu0 %v994, 123
      %v1019 = vpop.permute.xlu0 %1018
      %vm1021 = vcmask 7173
      %1022 = vst.msk [vmem:[%s538 + $0x19] sm:$0xe0] %vm1021, %v1019
      %1023 = vrot.lane.b32.xlu0 %v994, 122
      %v1024 = vpop.permute.xlu0 %1023
      %vm1026 = vcmask 7174
      %1027 = vst.msk [vmem:[%s538 + $0x1b] sm:$0xc0] %vm1026, %v1024
      %1028 = vrot.lane.b32.xlu0 %v994, 121
      %v1029 = vpop.permute.xlu0 %1028
      %vm1031 = vcmask 7175
      %1032 = vst.msk [vmem:[%s538 + $0x1c] sm:$0x80] %vm1031, %v1029
      %v1033 = vld [vmem:[%s9] sm:$0xff]
      %v1034 = vld [vmem:[%s9 + $0x8] sm:$0xff]
      %v1035 = vld [vmem:[%s9 + $0x10] sm:$0xff]
      %v1036 = vld [vmem:[%s9 + $0x18] sm:$0xff]
      %v1037 = vld [vmem:[%s9 + $0x20] sm:$0xff]
      %v1038 = vld [vmem:[%s9 + $0x28] sm:$0xff]
      %v1039 = vld [vmem:[%s9 + $0x30] sm:$0xff]
      %v1040 = vld [vmem:[%s9 + $0x38] sm:$0xff]
      %v1041 = vld [vmem:[%s10] sm:$0xff]
      %v1042 = vld [vmem:[%s10 + $0x8] sm:$0xff]
      %v1043 = vld [vmem:[%s10 + $0x10] sm:$0xff]
      %v1044 = vld [vmem:[%s10 + $0x18] sm:$0xff]
      %v1045 = vld [vmem:[%s10 + $0x20] sm:$0xff]
      %v1046 = vld [vmem:[%s10 + $0x28] sm:$0xff]
      %v1047 = vld [vmem:[%s10 + $0x30] sm:$0xff]
      %v1048 = vld [vmem:[%s10 + $0x38] sm:$0xff]
      %1049 = vmatprep.subr.mxu0 0.0
      %1050 = vmatpush1.msra.mxu0 0.0
      %1051 = vmatprep.subr.mxu0 0.0
      %1052 = vmatpush1.msra.mxu0 0.0
      %1053 = vmatprep.subr.mxu0 0.0
      %1054 = vmatpush1.msra.mxu0 0.0
      %1055 = vmatprep.subr.mxu0 0.0
      %1056 = vmatpush1.msra.mxu0 0.0
      %1057 = vmatprep.subr.mxu0 0.0
      %1058 = vmatpush1.msra.mxu0 0.0
      %1059 = vmatprep.subr.mxu0 0.0
      %1060 = vmatpush1.msra.mxu0 0.0
      %1061 = vmatprep.subr.mxu0 0.0
      %1062 = vmatpush1.msra.mxu0 0.0
      %1063 = vmatprep.subr.mxu0 0.0
      %1064 = vmatpush1.msra.mxu0 0.0
      %1065 = vmatprep.subr.mxu0 0.0
      %1066 = vmatpush1.msra.mxu0 0.0
      %1067 = vmatprep.subr.mxu0 0.0
      %1068 = vmatpush1.msra.mxu0 0.0
      %1069 = vmatprep.subr.mxu0 0.0
      %1070 = vmatpush1.msra.mxu0 0.0
      %1071 = vmatprep.subr.mxu0 0.0
      %1072 = vmatpush1.msra.mxu0 0.0
      %1073 = vmatprep.subr.mxu0 %v1048
      %1074 = vmatpush1.msra.mxu0 %v1047
      %1075 = vmatprep.subr.mxu0 %v1046
      %1076 = vmatpush1.msra.mxu0 %v1045
      %1077 = vmatprep.subr.mxu0 %v1044
      %1078 = vmatpush1.msra.mxu0 %v1043
      %1079 = vmatprep.subr.mxu0 %v1042
      %1080 = vmatpush1.msra.mxu0 %v1041
      %1081 = vmatprep.subr.mxu0 0.0
      %1082 = vmatpush2.msra.mxu0 0.0
      %1083 = vmatprep.subr.mxu0 0.0
      %1084 = vmatpush2.msra.mxu0 0.0
      %1085 = vmatprep.subr.mxu0 0.0
      %1086 = vmatpush2.msra.mxu0 0.0
      %1087 = vmatprep.subr.mxu0 0.0
      %1088 = vmatpush2.msra.mxu0 0.0
      %1089 = vmatprep.subr.mxu0 0.0
      %1090 = vmatpush2.msra.mxu0 0.0
      %1091 = vmatprep.subr.mxu0 0.0
      %1092 = vmatpush2.msra.mxu0 0.0
      %1093 = vmatprep.subr.mxu0 0.0
      %1094 = vmatpush2.msra.mxu0 0.0
      %1095 = vmatprep.subr.mxu0 0.0
      %1096 = vmatpush2.msra.mxu0 0.0
      %1097 = vmatprep.subr.mxu0 0.0
      %1098 = vmatpush2.msra.mxu0 0.0
      %1099 = vmatprep.subr.mxu0 0.0
      %1100 = vmatpush2.msra.mxu0 0.0
      %1101 = vmatprep.subr.mxu0 0.0
      %1102 = vmatpush2.msra.mxu0 0.0
      %1103 = vmatprep.subr.mxu0 0.0
      %1104 = vmatpush2.msra.mxu0 0.0
      %1105 = vmatprep.subr.mxu0 0.0
      %1106 = vmatpush2.msra.mxu0 0.0
      %1107 = vmatprep.subr.mxu0 0.0
      %1108 = vmatpush2.msra.mxu0 0.0
      %1109 = vmatprep.subr.mxu0 0.0
      %1110 = vmatpush2.msra.mxu0 0.0
      %1111 = vmatprep.subr.mxu0 0.0
      %1112 = vmatpush2.msra.mxu0 0.0
      %1113 = vmatprep.mubr.f32.mxu0 0.0
      %1114 = vmatmul.mubr.f32.gmra.mxu0 %v562
      %v1115 = vpop.f32.mrf.mxu0
      %v1116 = vadd.f32 0.0, %v1115
      %v1117 = vpop.f32.mrf.mxu0
      %v1118 = vadd.f32 0.0, %v1117
      %1119 = vdwg.mxu0
      %1120 = vmatprep.subr.mxu0 0.0
      %1121 = vmatpush1.msra.mxu0 0.0
      %1122 = vmatprep.subr.mxu0 0.0
      %1123 = vmatpush1.msra.mxu0 0.0
      %1124 = vmatprep.subr.mxu0 0.0
      %1125 = vmatpush1.msra.mxu0 0.0
      %1126 = vmatprep.subr.mxu0 0.0
      %1127 = vmatpush1.msra.mxu0 0.0
      %1128 = vmatprep.subr.mxu0 0.0
      %1129 = vmatpush1.msra.mxu0 0.0
      %1130 = vmatprep.subr.mxu0 0.0
      %1131 = vmatpush1.msra.mxu0 0.0
      %1132 = vmatprep.subr.mxu0 0.0
      %1133 = vmatpush1.msra.mxu0 0.0
      %1134 = vmatprep.subr.mxu0 0.0
      %1135 = vmatpush1.msra.mxu0 0.0
      %1136 = vmatprep.subr.mxu0 0.0
      %1137 = vmatpush1.msra.mxu0 0.0
      %1138 = vmatprep.subr.mxu0 0.0
      %1139 = vmatpush1.msra.mxu0 0.0
      %1140 = vmatprep.subr.mxu0 0.0
      %1141 = vmatpush1.msra.mxu0 0.0
      %1142 = vmatprep.subr.mxu0 0.0
      %1143 = vmatpush1.msra.mxu0 0.0
      %1144 = vmatprep.subr.mxu0 %v1040
      %1145 = vmatpush1.msra.mxu0 %v1039
      %1146 = vmatprep.subr.mxu0 %v1038
      %1147 = vmatpush1.msra.mxu0 %v1037
      %1148 = vmatprep.subr.mxu0 %v1036
      %1149 = vmatpush1.msra.mxu0 %v1035
      %1150 = vmatprep.subr.mxu0 %v1034
      %1151 = vmatpush1.msra.mxu0 %v1033
      %1152 = vmatprep.subr.mxu0 0.0
      %1153 = vmatpush2.msra.mxu0 0.0
      %1154 = vmatprep.subr.mxu0 0.0
      %1155 = vmatpush2.msra.mxu0 0.0
      %1156 = vmatprep.subr.mxu0 0.0
      %1157 = vmatpush2.msra.mxu0 0.0
      %1158 = vmatprep.subr.mxu0 0.0
      %1159 = vmatpush2.msra.mxu0 0.0
      %1160 = vmatprep.subr.mxu0 0.0
      %1161 = vmatpush2.msra.mxu0 0.0
      %1162 = vmatprep.subr.mxu0 0.0
      %1163 = vmatpush2.msra.mxu0 0.0
      %1164 = vmatprep.subr.mxu0 0.0
      %1165 = vmatpush2.msra.mxu0 0.0
      %1166 = vmatprep.subr.mxu0 0.0
      %1167 = vmatpush2.msra.mxu0 0.0
      %1168 = vmatprep.subr.mxu0 0.0
      %1169 = vmatpush2.msra.mxu0 0.0
      %1170 = vmatprep.subr.mxu0 0.0
      %1171 = vmatpush2.msra.mxu0 0.0
      %1172 = vmatprep.subr.mxu0 0.0
      %1173 = vmatpush2.msra.mxu0 0.0
      %1174 = vmatprep.subr.mxu0 0.0
      %1175 = vmatpush2.msra.mxu0 0.0
      %1176 = vmatprep.subr.mxu0 0.0
      %1177 = vmatpush2.msra.mxu0 0.0
      %1178 = vmatprep.subr.mxu0 0.0
      %1179 = vmatpush2.msra.mxu0 0.0
      %1180 = vmatprep.subr.mxu0 0.0
      %1181 = vmatpush2.msra.mxu0 0.0
      %1182 = vmatprep.subr.mxu0 0.0
      %1183 = vmatpush2.msra.mxu0 0.0
      %1184 = vmatprep.mubr.f32.mxu0 0.0
      %1185 = vmatmul.mubr.f32.gmra.mxu0 %v635
      %v1186 = vpop.f32.mrf.mxu0
      %v1187 = vadd.f32 %v1116, %v1186
      %v1188 = vpop.f32.mrf.mxu0
      %v1189 = vadd.f32 %v1118, %v1188
      %1190 = vdwg.mxu0
      %v1191 = vld [vmem:[%s11] sm:$0x3]
      %v1193 = vlaneseq
      %v1194 = vshrl.u32 %v1193, 7
      %v1195 = vsub.s32 0, %v1194
      %v1196 = vrot.slane %v1191, %v1195
      %v1197 = vlaneseq
      %v1198 = vshrl.u32 %v1197, 7
      %v1199 = vsub.s32 1, %v1198
      %v1200 = vrot.slane %v1191, %v1199
      %v1203 = vadd.f32 %v1187, %v1196
      %v1204 = vadd.f32 %v1189, %v1200
      %v1205 = vmax.f32 %v1203, 0.0
      %v1206 = vmax.f32 %v1204, 0.0
      %v1207 = vld [vmem:[%s12] sm:$0xff]
      %v1208 = vld [vmem:[%s12 + $0x8] sm:$0xff]
      %v1209 = vld [vmem:[%s12 + $0x10] sm:$0xff]
      %v1210 = vld [vmem:[%s12 + $0x18] sm:$0xff]
      %v1211 = vld [vmem:[%s12 + $0x20] sm:$0xff]
      %v1212 = vld [vmem:[%s12 + $0x28] sm:$0xff]
      %v1213 = vld [vmem:[%s12 + $0x30] sm:$0xff]
      %v1214 = vld [vmem:[%s12 + $0x38] sm:$0xff]
      %v1215 = vld [vmem:[%s12 + $0x40] sm:$0xff]
      %v1216 = vld [vmem:[%s12 + $0x48] sm:$0xff]
      %v1217 = vld [vmem:[%s12 + $0x50] sm:$0xff]
      %v1218 = vld [vmem:[%s12 + $0x58] sm:$0xff]
      %v1219 = vld [vmem:[%s12 + $0x60] sm:$0xff]
      %v1220 = vld [vmem:[%s12 + $0x68] sm:$0xff]
      %v1221 = vld [vmem:[%s12 + $0x70] sm:$0xff]
      %v1222 = vld [vmem:[%s12 + $0x78] sm:$0xff]
      %v1223 = vld [vmem:[%s12 + $0x80] sm:$0xff]
      %v1224 = vld [vmem:[%s12 + $0x88] sm:$0xff]
      %v1225 = vld [vmem:[%s12 + $0x90] sm:$0xff]
      %v1226 = vld [vmem:[%s12 + $0x98] sm:$0xff]
      %v1227 = vld [vmem:[%s12 + $0xa0] sm:$0xff]
      %v1228 = vld [vmem:[%s12 + $0xa8] sm:$0xff]
      %v1229 = vld [vmem:[%s12 + $0xb0] sm:$0xff]
      %v1230 = vld [vmem:[%s12 + $0xb8] sm:$0xff]
      %v1231 = vld [vmem:[%s12 + $0xc0] sm:$0xff]
      %v1232 = vld [vmem:[%s12 + $0xc8] sm:$0xff]
      %v1233 = vld [vmem:[%s12 + $0xd0] sm:$0xff]
      %v1234 = vld [vmem:[%s12 + $0xd8] sm:$0xff]
      %v1235 = vld [vmem:[%s12 + $0xe0] sm:$0xff]
      %v1236 = vld [vmem:[%s12 + $0xe8] sm:$0xff]
      %v1237 = vld [vmem:[%s12 + $0xf0] sm:$0xff]
      %v1238 = vld [vmem:[%s12 + $0xf8] sm:$0xff]
      %v1239 = vld [vmem:[%s12 + $0x100] sm:$0xff]
      %v1240 = vld [vmem:[%s12 + $0x108] sm:$0xff]
      %v1241 = vld [vmem:[%s12 + $0x110] sm:$0xff]
      %v1242 = vld [vmem:[%s12 + $0x118] sm:$0xff]
      %v1243 = vld [vmem:[%s12 + $0x120] sm:$0xff]
      %v1244 = vld [vmem:[%s12 + $0x128] sm:$0xff]
      %v1245 = vld [vmem:[%s12 + $0x130] sm:$0xff]
      %v1246 = vld [vmem:[%s12 + $0x138] sm:$0xff]
      %v1247 = vld [vmem:[%s12 + $0x140] sm:$0xff]
      %v1248 = vld [vmem:[%s12 + $0x148] sm:$0xff]
      %v1249 = vld [vmem:[%s12 + $0x150] sm:$0xff]
      %v1250 = vld [vmem:[%s12 + $0x158] sm:$0xff]
      %v1251 = vld [vmem:[%s12 + $0x160] sm:$0xff]
      %v1252 = vld [vmem:[%s12 + $0x168] sm:$0xff]
      %v1253 = vld [vmem:[%s12 + $0x170] sm:$0xff]
      %v1254 = vld [vmem:[%s12 + $0x178] sm:$0xff]
      %v1255 = vld [vmem:[%s12 + $0x180] sm:$0xff]
      %v1256 = vld [vmem:[%s12 + $0x188] sm:$0xff]
      %v1257 = vld [vmem:[%s12 + $0x190] sm:$0xff]
      %v1258 = vld [vmem:[%s12 + $0x198] sm:$0xff]
      %v1259 = vld [vmem:[%s12 + $0x1a0] sm:$0xff]
      %v1260 = vld [vmem:[%s12 + $0x1a8] sm:$0xff]
      %v1261 = vld [vmem:[%s12 + $0x1b0] sm:$0xff]
      %v1262 = vld [vmem:[%s12 + $0x1b8] sm:$0xff]
      %v1263 = vld [vmem:[%s12 + $0x1c0] sm:$0xff]
      %v1264 = vld [vmem:[%s12 + $0x1c8] sm:$0xff]
      %v1265 = vld [vmem:[%s12 + $0x1d0] sm:$0xff]
      %v1266 = vld [vmem:[%s12 + $0x1d8] sm:$0xff]
      %v1267 = vld [vmem:[%s12 + $0x1e0] sm:$0xff]
      %v1268 = vld [vmem:[%s12 + $0x1e8] sm:$0xff]
      %v1269 = vld [vmem:[%s12 + $0x1f0] sm:$0xff]
      %v1270 = vld [vmem:[%s12 + $0x1f8] sm:$0xff]
      %v1271 = vld [vmem:[%s12 + $0x200] sm:$0xff]
      %v1272 = vld [vmem:[%s12 + $0x208] sm:$0xff]
      %v1273 = vld [vmem:[%s12 + $0x210] sm:$0xff]
      %v1274 = vld [vmem:[%s12 + $0x218] sm:$0xff]
      %v1275 = vld [vmem:[%s12 + $0x220] sm:$0xff]
      %v1276 = vld [vmem:[%s12 + $0x228] sm:$0xff]
      %v1277 = vld [vmem:[%s12 + $0x230] sm:$0xff]
      %v1278 = vld [vmem:[%s12 + $0x238] sm:$0xff]
      %v1279 = vld [vmem:[%s12 + $0x240] sm:$0xff]
      %v1280 = vld [vmem:[%s12 + $0x248] sm:$0xff]
      %v1281 = vld [vmem:[%s12 + $0x250] sm:$0xff]
      %v1282 = vld [vmem:[%s12 + $0x258] sm:$0xff]
      %v1283 = vld [vmem:[%s12 + $0x260] sm:$0xff]
      %v1284 = vld [vmem:[%s12 + $0x268] sm:$0xff]
      %v1285 = vld [vmem:[%s12 + $0x270] sm:$0xff]
      %v1286 = vld [vmem:[%s12 + $0x278] sm:$0xff]
      %v1287 = vld [vmem:[%s12 + $0x280] sm:$0xff]
      %v1288 = vld [vmem:[%s12 + $0x288] sm:$0xff]
      %v1289 = vld [vmem:[%s12 + $0x290] sm:$0xff]
      %v1290 = vld [vmem:[%s12 + $0x298] sm:$0xff]
      %v1291 = vld [vmem:[%s12 + $0x2a0] sm:$0xff]
      %v1292 = vld [vmem:[%s12 + $0x2a8] sm:$0xff]
      %v1293 = vld [vmem:[%s12 + $0x2b0] sm:$0xff]
      %v1294 = vld [vmem:[%s12 + $0x2b8] sm:$0xff]
      %v1295 = vld [vmem:[%s12 + $0x2c0] sm:$0xff]
      %v1296 = vld [vmem:[%s12 + $0x2c8] sm:$0xff]
      %v1297 = vld [vmem:[%s12 + $0x2d0] sm:$0xff]
      %v1298 = vld [vmem:[%s12 + $0x2d8] sm:$0xff]
      %v1299 = vld [vmem:[%s12 + $0x2e0] sm:$0xff]
      %v1300 = vld [vmem:[%s12 + $0x2e8] sm:$0xff]
      %v1301 = vld [vmem:[%s12 + $0x2f0] sm:$0xff]
      %v1302 = vld [vmem:[%s12 + $0x2f8] sm:$0xff]
      %v1303 = vld [vmem:[%s13] sm:$0x7]
      %v1305 = vlaneseq
      %v1306 = vshrl.u32 %v1305, 7
      %v1307 = vsub.s32 0, %v1306
      %v1308 = vrot.slane %v1303, %v1307
      %v1309 = vlaneseq
      %v1310 = vshrl.u32 %v1309, 7
      %v1311 = vsub.s32 1, %v1310
      %v1312 = vrot.slane %v1303, %v1311
      %v1313 = vlaneseq
      %v1314 = vshrl.u32 %v1313, 7
      %v1315 = vsub.s32 2, %v1314
      %v1316 = vrot.slane %v1303, %v1315
      %1320 = vmatprep.subr.mxu0 %v1253
      %1321 = vmatpush1.msra.mxu0 %v1252
      %1322 = vmatprep.subr.mxu0 %v1250
      %1323 = vmatpush1.msra.mxu0 %v1249
      %1324 = vmatprep.subr.mxu0 %v1247
      %1325 = vmatpush1.msra.mxu0 %v1246
      %1326 = vmatprep.subr.mxu0 %v1244
      %1327 = vmatpush1.msra.mxu0 %v1243
      %1328 = vmatprep.subr.mxu0 %v1241
      %1329 = vmatpush1.msra.mxu0 %v1240
      %1330 = vmatprep.subr.mxu0 %v1238
      %1331 = vmatpush1.msra.mxu0 %v1237
      %1332 = vmatprep.subr.mxu0 %v1235
      %1333 = vmatpush1.msra.mxu0 %v1234
      %1334 = vmatprep.subr.mxu0 %v1232
      %1335 = vmatpush1.msra.mxu0 %v1231
      %1336 = vmatprep.subr.mxu0 %v1229
      %1337 = vmatpush1.msra.mxu0 %v1228
      %1338 = vmatprep.subr.mxu0 %v1226
      %1339 = vmatpush1.msra.mxu0 %v1225
      %1340 = vmatprep.subr.mxu0 %v1223
      %1341 = vmatpush1.msra.mxu0 %v1222
      %1342 = vmatprep.subr.mxu0 %v1220
      %1343 = vmatpush1.msra.mxu0 %v1219
      %1344 = vmatprep.subr.mxu0 %v1217
      %1345 = vmatpush1.msra.mxu0 %v1216
      %1346 = vmatprep.subr.mxu0 %v1214
      %1347 = vmatpush1.msra.mxu0 %v1213
      %1348 = vmatprep.subr.mxu0 %v1211
      %1349 = vmatpush1.msra.mxu0 %v1210
      %1350 = vmatprep.subr.mxu0 %v1208
      %1351 = vmatpush1.msra.mxu0 %v1207
      %1352 = vmatprep.subr.mxu0 %v1301
      %1353 = vmatpush2.msra.mxu0 %v1300
      %1354 = vmatprep.subr.mxu0 %v1298
      %1355 = vmatpush2.msra.mxu0 %v1297
      %1356 = vmatprep.subr.mxu0 %v1295
      %1357 = vmatpush2.msra.mxu0 %v1294
      %1358 = vmatprep.subr.mxu0 %v1292
      %1359 = vmatpush2.msra.mxu0 %v1291
      %1360 = vmatprep.subr.mxu0 %v1289
      %1361 = vmatpush2.msra.mxu0 %v1288
      %1362 = vmatprep.subr.mxu0 %v1286
      %1363 = vmatpush2.msra.mxu0 %v1285
      %1364 = vmatprep.subr.mxu0 %v1283
      %1365 = vmatpush2.msra.mxu0 %v1282
      %1366 = vmatprep.subr.mxu0 %v1280
      %1367 = vmatpush2.msra.mxu0 %v1279
      %1368 = vmatprep.subr.mxu0 %v1277
      %1369 = vmatpush2.msra.mxu0 %v1276
      %1370 = vmatprep.subr.mxu0 %v1274
      %1371 = vmatpush2.msra.mxu0 %v1273
      %1372 = vmatprep.subr.mxu0 %v1271
      %1373 = vmatpush2.msra.mxu0 %v1270
      %1374 = vmatprep.subr.mxu0 %v1268
      %1375 = vmatpush2.msra.mxu0 %v1267
      %1376 = vmatprep.subr.mxu0 %v1265
      %1377 = vmatpush2.msra.mxu0 %v1264
      %1378 = vmatprep.subr.mxu0 %v1262
      %1379 = vmatpush2.msra.mxu0 %v1261
      %1380 = vmatprep.subr.mxu0 %v1259
      %1381 = vmatpush2.msra.mxu0 %v1258
      %1382 = vmatprep.subr.mxu0 %v1256
      %1383 = vmatpush2.msra.mxu0 %v1255
      %1384 = vmatprep.mubr.f32.mxu0 %v1206
      %1385 = vmatmul.mubr.f32.gmra.mxu0 %v1205
      %v1386 = vpop.f32.mrf.mxu0
      %v1387 = vadd.f32 %v1308, %v1386
      %v1388 = vpop.f32.mrf.mxu0
      %v1389 = vadd.f32 %v1312, %v1388
      %1390 = vdwg.mxu0
      %1391 = vmatprep.subr.mxu0 0.0
      %1392 = vmatpush1.msra.mxu0 %v1254
      %1393 = vmatprep.subr.mxu0 0.0
      %1394 = vmatpush1.msra.mxu0 %v1251
      %1395 = vmatprep.subr.mxu0 0.0
      %1396 = vmatpush1.msra.mxu0 %v1248
      %1397 = vmatprep.subr.mxu0 0.0
      %1398 = vmatpush1.msra.mxu0 %v1245
      %1399 = vmatprep.subr.mxu0 0.0
      %1400 = vmatpush1.msra.mxu0 %v1242
      %1401 = vmatprep.subr.mxu0 0.0
      %1402 = vmatpush1.msra.mxu0 %v1239
      %1403 = vmatprep.subr.mxu0 0.0
      %1404 = vmatpush1.msra.mxu0 %v1236
      %1405 = vmatprep.subr.mxu0 0.0
      %1406 = vmatpush1.msra.mxu0 %v1233
      %1407 = vmatprep.subr.mxu0 0.0
      %1408 = vmatpush1.msra.mxu0 %v1230
      %1409 = vmatprep.subr.mxu0 0.0
      %1410 = vmatpush1.msra.mxu0 %v1227
      %1411 = vmatprep.subr.mxu0 0.0
      %1412 = vmatpush1.msra.mxu0 %v1224
      %1413 = vmatprep.subr.mxu0 0.0
      %1414 = vmatpush1.msra.mxu0 %v1221
      %1415 = vmatprep.subr.mxu0 0.0
      %1416 = vmatpush1.msra.mxu0 %v1218
      %1417 = vmatprep.subr.mxu0 0.0
      %1418 = vmatpush1.msra.mxu0 %v1215
      %1419 = vmatprep.subr.mxu0 0.0
      %1420 = vmatpush1.msra.mxu0 %v1212
      %1421 = vmatprep.subr.mxu0 0.0
      %1422 = vmatpush1.msra.mxu0 %v1209
      %1423 = vmatprep.subr.mxu0 0.0
      %1424 = vmatpush2.msra.mxu0 %v1302
      %1425 = vmatprep.subr.mxu0 0.0
      %1426 = vmatpush2.msra.mxu0 %v1299
      %1427 = vmatprep.subr.mxu0 0.0
      %1428 = vmatpush2.msra.mxu0 %v1296
      %1429 = vmatprep.subr.mxu0 0.0
      %1430 = vmatpush2.msra.mxu0 %v1293
      %1431 = vmatprep.subr.mxu0 0.0
      %1432 = vmatpush2.msra.mxu0 %v1290
      %1433 = vmatprep.subr.mxu0 0.0
      %1434 = vmatpush2.msra.mxu0 %v1287
      %1435 = vmatprep.subr.mxu0 0.0
      %1436 = vmatpush2.msra.mxu0 %v1284
      %1437 = vmatprep.subr.mxu0 0.0
      %1438 = vmatpush2.msra.mxu0 %v1281
      %1439 = vmatprep.subr.mxu0 0.0
      %1440 = vmatpush2.msra.mxu0 %v1278
      %1441 = vmatprep.subr.mxu0 0.0
      %1442 = vmatpush2.msra.mxu0 %v1275
      %1443 = vmatprep.subr.mxu0 0.0
      %1444 = vmatpush2.msra.mxu0 %v1272
      %1445 = vmatprep.subr.mxu0 0.0
      %1446 = vmatpush2.msra.mxu0 %v1269
      %1447 = vmatprep.subr.mxu0 0.0
      %1448 = vmatpush2.msra.mxu0 %v1266
      %1449 = vmatprep.subr.mxu0 0.0
      %1450 = vmatpush2.msra.mxu0 %v1263
      %1451 = vmatprep.subr.mxu0 0.0
      %1452 = vmatpush2.msra.mxu0 %v1260
      %1453 = vmatprep.subr.mxu0 0.0
      %1454 = vmatpush2.msra.mxu0 %v1257
      %1455 = vmatprep.mubr.f32.mxu0 %v1206
      %1456 = vmatmul.mubr.f32.gmra.mxu0 %v1205
      %v1457 = vpop.f32.mrf.mxu0
      %v1458 = vadd.f32 %v1316, %v1457
      %v1459 = vpop.f32.mrf.mxu0
      %1460 = vdwg.mxu0
      %v1461 = vmul.f32 %v1387, %v718
      %v1462 = vmul.f32 %v1389, %v718
      %v1463 = vmul.f32 %v1458, %v718
      %v1464 = vmul.f32 %v1461, %v542
      %v1466 = vsel %vm722, %v1461, 0
      %1468 = vmatprep.subr.mxu0 0.0
      %1469 = vmatpush1.msra.mxu0 0.0
      %1470 = vmatprep.subr.mxu0 0.0
      %1471 = vmatpush1.msra.mxu0 0.0
      %1472 = vmatprep.subr.mxu0 0.0
      %1473 = vmatpush1.msra.mxu0 0.0
      %1474 = vmatprep.subr.mxu0 0.0
      %1475 = vmatpush1.msra.mxu0 0.0
      %1476 = vmatprep.subr.mxu0 0.0
      %1477 = vmatpush1.msra.mxu0 0.0
      %1478 = vmatprep.subr.mxu0 0.0
      %1479 = vmatpush1.msra.mxu0 0.0
      %1480 = vmatprep.subr.mxu0 0.0
      %1481 = vmatpush1.msra.mxu0 0.0
      %1482 = vmatprep.subr.mxu0 0.0
      %1483 = vmatpush1.msra.mxu0 0.0
      %1484 = vmatprep.subr.mxu0 0.0
      %1485 = vmatpush1.msra.mxu0 %v551
      %1486 = vmatprep.subr.mxu0 0.0
      %1487 = vmatpush1.msra.mxu0 %v550
      %1488 = vmatprep.subr.mxu0 0.0
      %1489 = vmatpush1.msra.mxu0 %v549
      %1490 = vmatprep.subr.mxu0 0.0
      %1491 = vmatpush1.msra.mxu0 %v548
      %1492 = vmatprep.subr.mxu0 0.0
      %1493 = vmatpush1.msra.mxu0 %v547
      %1494 = vmatprep.subr.mxu0 0.0
      %1495 = vmatpush1.msra.mxu0 %v546
      %1496 = vmatprep.subr.mxu0 0.0
      %1497 = vmatpush1.msra.mxu0 %v545
      %1498 = vmatprep.subr.mxu0 0.0
      %1499 = vmatpush1.msra.mxu0 %v544
      %1500 = vmatprep.subr.mxu0 0.0
      %1501 = vmatpush2.msra.mxu0 0.0
      %1502 = vmatprep.subr.mxu0 0.0
      %1503 = vmatpush2.msra.mxu0 0.0
      %1504 = vmatprep.subr.mxu0 0.0
      %1505 = vmatpush2.msra.mxu0 0.0
      %1506 = vmatprep.subr.mxu0 0.0
      %1507 = vmatpush2.msra.mxu0 0.0
      %1508 = vmatprep.subr.mxu0 0.0
      %1509 = vmatpush2.msra.mxu0 0.0
      %1510 = vmatprep.subr.mxu0 0.0
      %1511 = vmatpush2.msra.mxu0 0.0
      %1512 = vmatprep.subr.mxu0 0.0
      %1513 = vmatpush2.msra.mxu0 0.0
      %1514 = vmatprep.subr.mxu0 0.0
      %1515 = vmatpush2.msra.mxu0 0.0
      %1516 = vmatprep.subr.mxu0 0.0
      %1517 = vmatpush2.msra.mxu0 0.0
      %1518 = vmatprep.subr.mxu0 0.0
      %1519 = vmatpush2.msra.mxu0 0.0
      %1520 = vmatprep.subr.mxu0 0.0
      %1521 = vmatpush2.msra.mxu0 0.0
      %1522 = vmatprep.subr.mxu0 0.0
      %1523 = vmatpush2.msra.mxu0 0.0
      %1524 = vmatprep.subr.mxu0 0.0
      %1525 = vmatpush2.msra.mxu0 0.0
      %1526 = vmatprep.subr.mxu0 0.0
      %1527 = vmatpush2.msra.mxu0 0.0
      %1528 = vmatprep.subr.mxu0 0.0
      %1529 = vmatpush2.msra.mxu0 0.0
      %1530 = vmatprep.subr.mxu0 0.0
      %1531 = vmatpush2.msra.mxu0 0.0
      %1532 = vmatprep.mubr.f32.mxu0 0.0
      %1533 = vmatmul.mubr.f32.gmra.mxu0 %v1466
      %v1534 = vpop.f32.mrf.mxu0
      %v1535 = vadd.f32 0.0, %v1534
      %v1536 = vpop.f32.mrf.mxu0
      %1537 = vdwg.mxu0
      %v1538 = vmul.f32 %v1535, %v543
      %v1539 = vadd.f32 %v1464, %v1538
      %v1540 = vmul.f32 %v1462, %v800
      %1542 = vrot.lane.b32.xlu0 %v1462, 64
      %v1543 = vpop.permute.xlu0 %1542
      %v1544 = vsel %vm722, %v1543, 0
      %1546 = vmatprep.subr.mxu0 0.0
      %1547 = vmatpush1.msra.mxu0 0.0
      %1548 = vmatprep.subr.mxu0 0.0
      %1549 = vmatpush1.msra.mxu0 0.0
      %1550 = vmatprep.subr.mxu0 0.0
      %1551 = vmatpush1.msra.mxu0 0.0
      %1552 = vmatprep.subr.mxu0 0.0
      %1553 = vmatpush1.msra.mxu0 0.0
      %1554 = vmatprep.subr.mxu0 0.0
      %1555 = vmatpush1.msra.mxu0 0.0
      %1556 = vmatprep.subr.mxu0 0.0
      %1557 = vmatpush1.msra.mxu0 0.0
      %1558 = vmatprep.subr.mxu0 0.0
      %1559 = vmatpush1.msra.mxu0 0.0
      %1560 = vmatprep.subr.mxu0 0.0
      %1561 = vmatpush1.msra.mxu0 0.0
      %1562 = vmatprep.subr.mxu0 0.0
      %1563 = vmatpush1.msra.mxu0 %v551
      %1564 = vmatprep.subr.mxu0 0.0
      %1565 = vmatpush1.msra.mxu0 %v550
      %1566 = vmatprep.subr.mxu0 0.0
      %1567 = vmatpush1.msra.mxu0 %v549
      %1568 = vmatprep.subr.mxu0 0.0
      %1569 = vmatpush1.msra.mxu0 %v548
      %1570 = vmatprep.subr.mxu0 0.0
      %1571 = vmatpush1.msra.mxu0 %v547
      %1572 = vmatprep.subr.mxu0 0.0
      %1573 = vmatpush1.msra.mxu0 %v546
      %1574 = vmatprep.subr.mxu0 0.0
      %1575 = vmatpush1.msra.mxu0 %v545
      %1576 = vmatprep.subr.mxu0 0.0
      %1577 = vmatpush1.msra.mxu0 %v544
      %1578 = vmatprep.subr.mxu0 0.0
      %1579 = vmatpush2.msra.mxu0 0.0
      %1580 = vmatprep.subr.mxu0 0.0
      %1581 = vmatpush2.msra.mxu0 0.0
      %1582 = vmatprep.subr.mxu0 0.0
      %1583 = vmatpush2.msra.mxu0 0.0
      %1584 = vmatprep.subr.mxu0 0.0
      %1585 = vmatpush2.msra.mxu0 0.0
      %1586 = vmatprep.subr.mxu0 0.0
      %1587 = vmatpush2.msra.mxu0 0.0
      %1588 = vmatprep.subr.mxu0 0.0
      %1589 = vmatpush2.msra.mxu0 0.0
      %1590 = vmatprep.subr.mxu0 0.0
      %1591 = vmatpush2.msra.mxu0 0.0
      %1592 = vmatprep.subr.mxu0 0.0
      %1593 = vmatpush2.msra.mxu0 0.0
      %1594 = vmatprep.subr.mxu0 0.0
      %1595 = vmatpush2.msra.mxu0 0.0
      %1596 = vmatprep.subr.mxu0 0.0
      %1597 = vmatpush2.msra.mxu0 0.0
      %1598 = vmatprep.subr.mxu0 0.0
      %1599 = vmatpush2.msra.mxu0 0.0
      %1600 = vmatprep.subr.mxu0 0.0
      %1601 = vmatpush2.msra.mxu0 0.0
      %1602 = vmatprep.subr.mxu0 0.0
      %1603 = vmatpush2.msra.mxu0 0.0
      %1604 = vmatprep.subr.mxu0 0.0
      %1605 = vmatpush2.msra.mxu0 0.0
      %1606 = vmatprep.subr.mxu0 0.0
      %1607 = vmatpush2.msra.mxu0 0.0
      %1608 = vmatprep.subr.mxu0 0.0
      %1609 = vmatpush2.msra.mxu0 0.0
      %1610 = vmatprep.mubr.f32.mxu0 0.0
      %1611 = vmatmul.mubr.f32.gmra.mxu0 %v1544
      %v1612 = vpop.f32.mrf.mxu0
      %v1613 = vadd.f32 0.0, %v1612
      %v1614 = vpop.f32.mrf.mxu0
      %1615 = vdwg.mxu0
      %v1616 = vmul.f32 %v1613, %v543
      %1618 = vrot.lane.b32.xlu0 %v1616, 64
      %v1619 = vpop.permute.xlu0 %1618
      %v1621 = vadd.f32 %v1540, %v1619
      %1623 = vrot.lane.b32.xlu0 %v1621, 64
      %v1624 = vpop.permute.xlu0 %1623
      %v1626 = vsel %vm722, %v1539, 0
      %v1628 = vsel %vm722, %v1624, 0
      %1630 = vmatprep.subr.mxu0 0.0
      %1631 = vmatpush1.xpose.msra.mxu0 0.0
      %1632 = vmatprep.subr.mxu0 0.0
      %1633 = vmatpush1.xpose.msra.mxu0 0.0
      %1634 = vmatprep.subr.mxu0 0.0
      %1635 = vmatpush1.xpose.msra.mxu0 0.0
      %1636 = vmatprep.subr.mxu0 0.0
      %1637 = vmatpush1.xpose.msra.mxu0 0.0
      %1638 = vmatprep.subr.mxu0 0.0
      %1639 = vmatpush1.xpose.msra.mxu0 0.0
      %1640 = vmatprep.subr.mxu0 0.0
      %1641 = vmatpush1.xpose.msra.mxu0 0.0
      %1642 = vmatprep.subr.mxu0 0.0
      %1643 = vmatpush1.xpose.msra.mxu0 0.0
      %1644 = vmatprep.subr.mxu0 0.0
      %1645 = vmatpush1.xpose.msra.mxu0 0.0
      %1646 = vmatprep.subr.mxu0 0.0
      %1647 = vmatpush1.xpose.msra.mxu0 0.0
      %1648 = vmatprep.subr.mxu0 0.0
      %1649 = vmatpush1.xpose.msra.mxu0 0.0
      %1650 = vmatprep.subr.mxu0 0.0
      %1651 = vmatpush1.xpose.msra.mxu0 0.0
      %1652 = vmatprep.subr.mxu0 0.0
      %1653 = vmatpush1.xpose.msra.mxu0 0.0
      %1654 = vmatprep.subr.mxu0 0.0
      %1655 = vmatpush1.xpose.msra.mxu0 0.0
      %1656 = vmatprep.subr.mxu0 0.0
      %1657 = vmatpush1.xpose.msra.mxu0 0.0
      %1658 = vmatprep.subr.mxu0 0.0
      %1659 = vmatpush1.xpose.msra.mxu0 0.0
      %1660 = vmatprep.subr.mxu0 0.0
      %1661 = vmatpush1.xpose.msra.mxu0 %v1628
      %1662 = vmatprep.subr.mxu0 0.0
      %1663 = vmatpush2.xpose.msra.mxu0 0.0
      %1664 = vmatprep.subr.mxu0 0.0
      %1665 = vmatpush2.xpose.msra.mxu0 0.0
      %1666 = vmatprep.subr.mxu0 0.0
      %1667 = vmatpush2.xpose.msra.mxu0 0.0
      %1668 = vmatprep.subr.mxu0 0.0
      %1669 = vmatpush2.xpose.msra.mxu0 0.0
      %1670 = vmatprep.subr.mxu0 0.0
      %1671 = vmatpush2.xpose.msra.mxu0 0.0
      %1672 = vmatprep.subr.mxu0 0.0
      %1673 = vmatpush2.xpose.msra.mxu0 0.0
      %1674 = vmatprep.subr.mxu0 0.0
      %1675 = vmatpush2.xpose.msra.mxu0 0.0
      %1676 = vmatprep.subr.mxu0 0.0
      %1677 = vmatpush2.xpose.msra.mxu0 0.0
      %1678 = vmatprep.subr.mxu0 0.0
      %1679 = vmatpush2.xpose.msra.mxu0 0.0
      %1680 = vmatprep.subr.mxu0 0.0
      %1681 = vmatpush2.xpose.msra.mxu0 0.0
      %1682 = vmatprep.subr.mxu0 0.0
      %1683 = vmatpush2.xpose.msra.mxu0 0.0
      %1684 = vmatprep.subr.mxu0 0.0
      %1685 = vmatpush2.xpose.msra.mxu0 0.0
      %1686 = vmatprep.subr.mxu0 0.0
      %1687 = vmatpush2.xpose.msra.mxu0 0.0
      %1688 = vmatprep.subr.mxu0 0.0
      %1689 = vmatpush2.xpose.msra.mxu0 0.0
      %1690 = vmatprep.subr.mxu0 0.0
      %1691 = vmatpush2.xpose.msra.mxu0 0.0
      %1692 = vmatprep.subr.mxu0 0.0
      %1693 = vmatpush2.xpose.msra.mxu0 0.0
      %1694 = vmatprep.mubr.f32.mxu0 0.0
      %1695 = vmatmul.mubr.f32.gmra.mxu0 %v1626
      %v1696 = vpop.f32.mrf.mxu0
      %v1697 = vadd.f32 0.0, %v1696
      %v1698 = vpop.f32.mrf.mxu0
      %1699 = vdwg.mxu0
      %v1700 = vmul.f32 %v1697, 0.125
      %v1701 = vmul.f32 %v1461, %v800
      %1702 = vrot.lane.b32.xlu0 %v1461, 64
      %v1703 = vpop.permute.xlu0 %1702
      %v1704 = vsel %vm722, %v1703, 0
      %1706 = vmatprep.subr.mxu0 0.0
      %1707 = vmatpush1.msra.mxu0 0.0
      %1708 = vmatprep.subr.mxu0 0.0
      %1709 = vmatpush1.msra.mxu0 0.0
      %1710 = vmatprep.subr.mxu0 0.0
      %1711 = vmatpush1.msra.mxu0 0.0
      %1712 = vmatprep.subr.mxu0 0.0
      %1713 = vmatpush1.msra.mxu0 0.0
      %1714 = vmatprep.subr.mxu0 0.0
      %1715 = vmatpush1.msra.mxu0 0.0
      %1716 = vmatprep.subr.mxu0 0.0
      %1717 = vmatpush1.msra.mxu0 0.0
      %1718 = vmatprep.subr.mxu0 0.0
      %1719 = vmatpush1.msra.mxu0 0.0
      %1720 = vmatprep.subr.mxu0 0.0
      %1721 = vmatpush1.msra.mxu0 0.0
      %1722 = vmatprep.subr.mxu0 0.0
      %1723 = vmatpush1.msra.mxu0 %v551
      %1724 = vmatprep.subr.mxu0 0.0
      %1725 = vmatpush1.msra.mxu0 %v550
      %1726 = vmatprep.subr.mxu0 0.0
      %1727 = vmatpush1.msra.mxu0 %v549
      %1728 = vmatprep.subr.mxu0 0.0
      %1729 = vmatpush1.msra.mxu0 %v548
      %1730 = vmatprep.subr.mxu0 0.0
      %1731 = vmatpush1.msra.mxu0 %v547
      %1732 = vmatprep.subr.mxu0 0.0
      %1733 = vmatpush1.msra.mxu0 %v546
      %1734 = vmatprep.subr.mxu0 0.0
      %1735 = vmatpush1.msra.mxu0 %v545
      %1736 = vmatprep.subr.mxu0 0.0
      %1737 = vmatpush1.msra.mxu0 %v544
      %1738 = vmatprep.subr.mxu0 0.0
      %1739 = vmatpush2.msra.mxu0 0.0
      %1740 = vmatprep.subr.mxu0 0.0
      %1741 = vmatpush2.msra.mxu0 0.0
      %1742 = vmatprep.subr.mxu0 0.0
      %1743 = vmatpush2.msra.mxu0 0.0
      %1744 = vmatprep.subr.mxu0 0.0
      %1745 = vmatpush2.msra.mxu0 0.0
      %1746 = vmatprep.subr.mxu0 0.0
      %1747 = vmatpush2.msra.mxu0 0.0
      %1748 = vmatprep.subr.mxu0 0.0
      %1749 = vmatpush2.msra.mxu0 0.0
      %1750 = vmatprep.subr.mxu0 0.0
      %1751 = vmatpush2.msra.mxu0 0.0
      %1752 = vmatprep.subr.mxu0 0.0
      %1753 = vmatpush2.msra.mxu0 0.0
      %1754 = vmatprep.subr.mxu0 0.0
      %1755 = vmatpush2.msra.mxu0 0.0
      %1756 = vmatprep.subr.mxu0 0.0
      %1757 = vmatpush2.msra.mxu0 0.0
      %1758 = vmatprep.subr.mxu0 0.0
      %1759 = vmatpush2.msra.mxu0 0.0
      %1760 = vmatprep.subr.mxu0 0.0
      %1761 = vmatpush2.msra.mxu0 0.0
      %1762 = vmatprep.subr.mxu0 0.0
      %1763 = vmatpush2.msra.mxu0 0.0
      %1764 = vmatprep.subr.mxu0 0.0
      %1765 = vmatpush2.msra.mxu0 0.0
      %1766 = vmatprep.subr.mxu0 0.0
      %1767 = vmatpush2.msra.mxu0 0.0
      %1768 = vmatprep.subr.mxu0 0.0
      %1769 = vmatpush2.msra.mxu0 0.0
      %1770 = vmatprep.mubr.f32.mxu0 0.0
      %1771 = vmatmul.mubr.f32.gmra.mxu0 %v1704
      %v1772 = vpop.f32.mrf.mxu0
      %v1773 = vadd.f32 0.0, %v1772
      %v1774 = vpop.f32.mrf.mxu0
      %1775 = vdwg.mxu0
      %v1776 = vmul.f32 %v1773, %v543
      %1778 = vrot.lane.b32.xlu0 %v1776, 64
      %v1779 = vpop.permute.xlu0 %1778
      %v1781 = vadd.f32 %v1701, %v1779
      %v1782 = vmul.f32 %v1463, %v542
      %v1784 = vsel %vm722, %v1463, 0
      %1786 = vmatprep.subr.mxu0 0.0
      %1787 = vmatpush1.msra.mxu0 0.0
      %1788 = vmatprep.subr.mxu0 0.0
      %1789 = vmatpush1.msra.mxu0 0.0
      %1790 = vmatprep.subr.mxu0 0.0
      %1791 = vmatpush1.msra.mxu0 0.0
      %1792 = vmatprep.subr.mxu0 0.0
      %1793 = vmatpush1.msra.mxu0 0.0
      %1794 = vmatprep.subr.mxu0 0.0
      %1795 = vmatpush1.msra.mxu0 0.0
      %1796 = vmatprep.subr.mxu0 0.0
      %1797 = vmatpush1.msra.mxu0 0.0
      %1798 = vmatprep.subr.mxu0 0.0
      %1799 = vmatpush1.msra.mxu0 0.0
      %1800 = vmatprep.subr.mxu0 0.0
      %1801 = vmatpush1.msra.mxu0 0.0
      %1802 = vmatprep.subr.mxu0 0.0
      %1803 = vmatpush1.msra.mxu0 %v551
      %1804 = vmatprep.subr.mxu0 0.0
      %1805 = vmatpush1.msra.mxu0 %v550
      %1806 = vmatprep.subr.mxu0 0.0
      %1807 = vmatpush1.msra.mxu0 %v549
      %1808 = vmatprep.subr.mxu0 0.0
      %1809 = vmatpush1.msra.mxu0 %v548
      %1810 = vmatprep.subr.mxu0 0.0
      %1811 = vmatpush1.msra.mxu0 %v547
      %1812 = vmatprep.subr.mxu0 0.0
      %1813 = vmatpush1.msra.mxu0 %v546
      %1814 = vmatprep.subr.mxu0 0.0
      %1815 = vmatpush1.msra.mxu0 %v545
      %1816 = vmatprep.subr.mxu0 0.0
      %1817 = vmatpush1.msra.mxu0 %v544
      %1818 = vmatprep.subr.mxu0 0.0
      %1819 = vmatpush2.msra.mxu0 0.0
      %1820 = vmatprep.subr.mxu0 0.0
      %1821 = vmatpush2.msra.mxu0 0.0
      %1822 = vmatprep.subr.mxu0 0.0
      %1823 = vmatpush2.msra.mxu0 0.0
      %1824 = vmatprep.subr.mxu0 0.0
      %1825 = vmatpush2.msra.mxu0 0.0
      %1826 = vmatprep.subr.mxu0 0.0
      %1827 = vmatpush2.msra.mxu0 0.0
      %1828 = vmatprep.subr.mxu0 0.0
      %1829 = vmatpush2.msra.mxu0 0.0
      %1830 = vmatprep.subr.mxu0 0.0
      %1831 = vmatpush2.msra.mxu0 0.0
      %1832 = vmatprep.subr.mxu0 0.0
      %1833 = vmatpush2.msra.mxu0 0.0
      %1834 = vmatprep.subr.mxu0 0.0
      %1835 = vmatpush2.msra.mxu0 0.0
      %1836 = vmatprep.subr.mxu0 0.0
      %1837 = vmatpush2.msra.mxu0 0.0
      %1838 = vmatprep.subr.mxu0 0.0
      %1839 = vmatpush2.msra.mxu0 0.0
      %1840 = vmatprep.subr.mxu0 0.0
      %1841 = vmatpush2.msra.mxu0 0.0
      %1842 = vmatprep.subr.mxu0 0.0
      %1843 = vmatpush2.msra.mxu0 0.0
      %1844 = vmatprep.subr.mxu0 0.0
      %1845 = vmatpush2.msra.mxu0 0.0
      %1846 = vmatprep.subr.mxu0 0.0
      %1847 = vmatpush2.msra.mxu0 0.0
      %1848 = vmatprep.subr.mxu0 0.0
      %1849 = vmatpush2.msra.mxu0 0.0
      %1850 = vmatprep.mubr.f32.mxu0 0.0
      %1851 = vmatmul.mubr.f32.gmra.mxu0 %v1784
      %v1852 = vpop.f32.mrf.mxu0
      %v1853 = vadd.f32 0.0, %v1852
      %v1854 = vpop.f32.mrf.mxu0
      %1855 = vdwg.mxu0
      %v1856 = vmul.f32 %v1853, %v543
      %v1857 = vadd.f32 %v1782, %v1856
      %1859 = vrot.lane.b32.xlu0 %v1781, 64
      %v1860 = vpop.permute.xlu0 %1859
      %v1861 = vsel %vm722, %v1860, 0
      %v1864 = vsel %vm722, %v1857, 0
      %1866 = vmatprep.subr.mxu0 0.0
      %1867 = vmatpush1.xpose.msra.mxu0 0.0
      %1868 = vmatprep.subr.mxu0 0.0
      %1869 = vmatpush1.xpose.msra.mxu0 0.0
      %1870 = vmatprep.subr.mxu0 0.0
      %1871 = vmatpush1.xpose.msra.mxu0 0.0
      %1872 = vmatprep.subr.mxu0 0.0
      %1873 = vmatpush1.xpose.msra.mxu0 0.0
      %1874 = vmatprep.subr.mxu0 0.0
      %1875 = vmatpush1.xpose.msra.mxu0 0.0
      %1876 = vmatprep.subr.mxu0 0.0
      %1877 = vmatpush1.xpose.msra.mxu0 0.0
      %1878 = vmatprep.subr.mxu0 0.0
      %1879 = vmatpush1.xpose.msra.mxu0 0.0
      %1880 = vmatprep.subr.mxu0 0.0
      %1881 = vmatpush1.xpose.msra.mxu0 0.0
      %1882 = vmatprep.subr.mxu0 0.0
      %1883 = vmatpush1.xpose.msra.mxu0 0.0
      %1884 = vmatprep.subr.mxu0 0.0
      %1885 = vmatpush1.xpose.msra.mxu0 0.0
      %1886 = vmatprep.subr.mxu0 0.0
      %1887 = vmatpush1.xpose.msra.mxu0 0.0
      %1888 = vmatprep.subr.mxu0 0.0
      %1889 = vmatpush1.xpose.msra.mxu0 0.0
      %1890 = vmatprep.subr.mxu0 0.0
      %1891 = vmatpush1.xpose.msra.mxu0 0.0
      %1892 = vmatprep.subr.mxu0 0.0
      %1893 = vmatpush1.xpose.msra.mxu0 0.0
      %1894 = vmatprep.subr.mxu0 0.0
      %1895 = vmatpush1.xpose.msra.mxu0 0.0
      %1896 = vmatprep.subr.mxu0 0.0
      %1897 = vmatpush1.xpose.msra.mxu0 %v1864
      %1898 = vmatprep.subr.mxu0 0.0
      %1899 = vmatpush2.xpose.msra.mxu0 0.0
      %1900 = vmatprep.subr.mxu0 0.0
      %1901 = vmatpush2.xpose.msra.mxu0 0.0
      %1902 = vmatprep.subr.mxu0 0.0
      %1903 = vmatpush2.xpose.msra.mxu0 0.0
      %1904 = vmatprep.subr.mxu0 0.0
      %1905 = vmatpush2.xpose.msra.mxu0 0.0
      %1906 = vmatprep.subr.mxu0 0.0
      %1907 = vmatpush2.xpose.msra.mxu0 0.0
      %1908 = vmatprep.subr.mxu0 0.0
      %1909 = vmatpush2.xpose.msra.mxu0 0.0
      %1910 = vmatprep.subr.mxu0 0.0
      %1911 = vmatpush2.xpose.msra.mxu0 0.0
      %1912 = vmatprep.subr.mxu0 0.0
      %1913 = vmatpush2.xpose.msra.mxu0 0.0
      %1914 = vmatprep.subr.mxu0 0.0
      %1915 = vmatpush2.xpose.msra.mxu0 0.0
      %1916 = vmatprep.subr.mxu0 0.0
      %1917 = vmatpush2.xpose.msra.mxu0 0.0
      %1918 = vmatprep.subr.mxu0 0.0
      %1919 = vmatpush2.xpose.msra.mxu0 0.0
      %1920 = vmatprep.subr.mxu0 0.0
      %1921 = vmatpush2.xpose.msra.mxu0 0.0
      %1922 = vmatprep.subr.mxu0 0.0
      %1923 = vmatpush2.xpose.msra.mxu0 0.0
      %1924 = vmatprep.subr.mxu0 0.0
      %1925 = vmatpush2.xpose.msra.mxu0 0.0
      %1926 = vmatprep.subr.mxu0 0.0
      %1927 = vmatpush2.xpose.msra.mxu0 0.0
      %1928 = vmatprep.subr.mxu0 0.0
      %1929 = vmatpush2.xpose.msra.mxu0 0.0
      %1930 = vmatprep.mubr.f32.mxu0 0.0
      %1931 = vmatmul.mubr.f32.gmra.mxu0 %v1861
      %v1932 = vpop.f32.mrf.mxu0
      %v1933 = vadd.f32 0.0, %v1932
      %v1934 = vpop.f32.mrf.mxu0
      %1935 = vdwg.mxu0
      %v1936 = vmul.f32 %v1933, 0.125
      %v1937 = vmul.f32 %v1462, %v542
      %v1938 = vsel %vm722, %v1462, 0
      %1940 = vmatprep.subr.mxu0 0.0
      %1941 = vmatpush1.msra.mxu0 0.0
      %1942 = vmatprep.subr.mxu0 0.0
      %1943 = vmatpush1.msra.mxu0 0.0
      %1944 = vmatprep.subr.mxu0 0.0
      %1945 = vmatpush1.msra.mxu0 0.0
      %1946 = vmatprep.subr.mxu0 0.0
      %1947 = vmatpush1.msra.mxu0 0.0
      %1948 = vmatprep.subr.mxu0 0.0
      %1949 = vmatpush1.msra.mxu0 0.0
      %1950 = vmatprep.subr.mxu0 0.0
      %1951 = vmatpush1.msra.mxu0 0.0
      %1952 = vmatprep.subr.mxu0 0.0
      %1953 = vmatpush1.msra.mxu0 0.0
      %1954 = vmatprep.subr.mxu0 0.0
      %1955 = vmatpush1.msra.mxu0 0.0
      %1956 = vmatprep.subr.mxu0 0.0
      %1957 = vmatpush1.msra.mxu0 %v551
      %1958 = vmatprep.subr.mxu0 0.0
      %1959 = vmatpush1.msra.mxu0 %v550
      %1960 = vmatprep.subr.mxu0 0.0
      %1961 = vmatpush1.msra.mxu0 %v549
      %1962 = vmatprep.subr.mxu0 0.0
      %1963 = vmatpush1.msra.mxu0 %v548
      %1964 = vmatprep.subr.mxu0 0.0
      %1965 = vmatpush1.msra.mxu0 %v547
      %1966 = vmatprep.subr.mxu0 0.0
      %1967 = vmatpush1.msra.mxu0 %v546
      %1968 = vmatprep.subr.mxu0 0.0
      %1969 = vmatpush1.msra.mxu0 %v545
      %1970 = vmatprep.subr.mxu0 0.0
      %1971 = vmatpush1.msra.mxu0 %v544
      %1972 = vmatprep.subr.mxu0 0.0
      %1973 = vmatpush2.msra.mxu0 0.0
      %1974 = vmatprep.subr.mxu0 0.0
      %1975 = vmatpush2.msra.mxu0 0.0
      %1976 = vmatprep.subr.mxu0 0.0
      %1977 = vmatpush2.msra.mxu0 0.0
      %1978 = vmatprep.subr.mxu0 0.0
      %1979 = vmatpush2.msra.mxu0 0.0
      %1980 = vmatprep.subr.mxu0 0.0
      %1981 = vmatpush2.msra.mxu0 0.0
      %1982 = vmatprep.subr.mxu0 0.0
      %1983 = vmatpush2.msra.mxu0 0.0
      %1984 = vmatprep.subr.mxu0 0.0
      %1985 = vmatpush2.msra.mxu0 0.0
      %1986 = vmatprep.subr.mxu0 0.0
      %1987 = vmatpush2.msra.mxu0 0.0
      %1988 = vmatprep.subr.mxu0 0.0
      %1989 = vmatpush2.msra.mxu0 0.0
      %1990 = vmatprep.subr.mxu0 0.0
      %1991 = vmatpush2.msra.mxu0 0.0
      %1992 = vmatprep.subr.mxu0 0.0
      %1993 = vmatpush2.msra.mxu0 0.0
      %1994 = vmatprep.subr.mxu0 0.0
      %1995 = vmatpush2.msra.mxu0 0.0
      %1996 = vmatprep.subr.mxu0 0.0
      %1997 = vmatpush2.msra.mxu0 0.0
      %1998 = vmatprep.subr.mxu0 0.0
      %1999 = vmatpush2.msra.mxu0 0.0
      %2000 = vmatprep.subr.mxu0 0.0
      %2001 = vmatpush2.msra.mxu0 0.0
      %2002 = vmatprep.subr.mxu0 0.0
      %2003 = vmatpush2.msra.mxu0 0.0
      %2004 = vmatprep.mubr.f32.mxu0 0.0
      %2005 = vmatmul.mubr.f32.gmra.mxu0 %v1938
      %v2006 = vpop.f32.mrf.mxu0
      %v2007 = vadd.f32 0.0, %v2006
      %v2008 = vpop.f32.mrf.mxu0
      %2009 = vdwg.mxu0
      %v2010 = vmul.f32 %v2007, %v543
      %v2011 = vadd.f32 %v1937, %v2010
      %v2012 = vmul.f32 %v1463, %v800
      %2013 = vrot.lane.b32.xlu0 %v1463, 64
      %v2014 = vpop.permute.xlu0 %2013
      %v2015 = vsel %vm722, %v2014, 0
      %2017 = vmatprep.subr.mxu0 0.0
      %2018 = vmatpush1.msra.mxu0 0.0
      %2019 = vmatprep.subr.mxu0 0.0
      %2020 = vmatpush1.msra.mxu0 0.0
      %2021 = vmatprep.subr.mxu0 0.0
      %2022 = vmatpush1.msra.mxu0 0.0
      %2023 = vmatprep.subr.mxu0 0.0
      %2024 = vmatpush1.msra.mxu0 0.0
      %2025 = vmatprep.subr.mxu0 0.0
      %2026 = vmatpush1.msra.mxu0 0.0
      %2027 = vmatprep.subr.mxu0 0.0
      %2028 = vmatpush1.msra.mxu0 0.0
      %2029 = vmatprep.subr.mxu0 0.0
      %2030 = vmatpush1.msra.mxu0 0.0
      %2031 = vmatprep.subr.mxu0 0.0
      %2032 = vmatpush1.msra.mxu0 0.0
      %2033 = vmatprep.subr.mxu0 0.0
      %2034 = vmatpush1.msra.mxu0 %v551
      %2035 = vmatprep.subr.mxu0 0.0
      %2036 = vmatpush1.msra.mxu0 %v550
      %2037 = vmatprep.subr.mxu0 0.0
      %2038 = vmatpush1.msra.mxu0 %v549
      %2039 = vmatprep.subr.mxu0 0.0
      %2040 = vmatpush1.msra.mxu0 %v548
      %2041 = vmatprep.subr.mxu0 0.0
      %2042 = vmatpush1.msra.mxu0 %v547
      %2043 = vmatprep.subr.mxu0 0.0
      %2044 = vmatpush1.msra.mxu0 %v546
      %2045 = vmatprep.subr.mxu0 0.0
      %2046 = vmatpush1.msra.mxu0 %v545
      %2047 = vmatprep.subr.mxu0 0.0
      %2048 = vmatpush1.msra.mxu0 %v544
      %2049 = vmatprep.subr.mxu0 0.0
      %2050 = vmatpush2.msra.mxu0 0.0
      %2051 = vmatprep.subr.mxu0 0.0
      %2052 = vmatpush2.msra.mxu0 0.0
      %2053 = vmatprep.subr.mxu0 0.0
      %2054 = vmatpush2.msra.mxu0 0.0
      %2055 = vmatprep.subr.mxu0 0.0
      %2056 = vmatpush2.msra.mxu0 0.0
      %2057 = vmatprep.subr.mxu0 0.0
      %2058 = vmatpush2.msra.mxu0 0.0
      %2059 = vmatprep.subr.mxu0 0.0
      %2060 = vmatpush2.msra.mxu0 0.0
      %2061 = vmatprep.subr.mxu0 0.0
      %2062 = vmatpush2.msra.mxu0 0.0
      %2063 = vmatprep.subr.mxu0 0.0
      %2064 = vmatpush2.msra.mxu0 0.0
      %2065 = vmatprep.subr.mxu0 0.0
      %2066 = vmatpush2.msra.mxu0 0.0
      %2067 = vmatprep.subr.mxu0 0.0
      %2068 = vmatpush2.msra.mxu0 0.0
      %2069 = vmatprep.subr.mxu0 0.0
      %2070 = vmatpush2.msra.mxu0 0.0
      %2071 = vmatprep.subr.mxu0 0.0
      %2072 = vmatpush2.msra.mxu0 0.0
      %2073 = vmatprep.subr.mxu0 0.0
      %2074 = vmatpush2.msra.mxu0 0.0
      %2075 = vmatprep.subr.mxu0 0.0
      %2076 = vmatpush2.msra.mxu0 0.0
      %2077 = vmatprep.subr.mxu0 0.0
      %2078 = vmatpush2.msra.mxu0 0.0
      %2079 = vmatprep.subr.mxu0 0.0
      %2080 = vmatpush2.msra.mxu0 0.0
      %2081 = vmatprep.mubr.f32.mxu0 0.0
      %2082 = vmatmul.mubr.f32.gmra.mxu0 %v2015
      %v2083 = vpop.f32.mrf.mxu0
      %v2084 = vadd.f32 0.0, %v2083
      %v2085 = vpop.f32.mrf.mxu0
      %2086 = vdwg.mxu0
      %v2087 = vmul.f32 %v2084, %v543
      %2089 = vrot.lane.b32.xlu0 %v2087, 64
      %v2090 = vpop.permute.xlu0 %2089
      %v2092 = vadd.f32 %v2012, %v2090
      %2094 = vrot.lane.b32.xlu0 %v2092, 64
      %v2095 = vpop.permute.xlu0 %2094
      %v2097 = vsel %vm722, %v2011, 0
      %v2099 = vsel %vm722, %v2095, 0
      %2101 = vmatprep.subr.mxu0 0.0
      %2102 = vmatpush1.xpose.msra.mxu0 0.0
      %2103 = vmatprep.subr.mxu0 0.0
      %2104 = vmatpush1.xpose.msra.mxu0 0.0
      %2105 = vmatprep.subr.mxu0 0.0
      %2106 = vmatpush1.xpose.msra.mxu0 0.0
      %2107 = vmatprep.subr.mxu0 0.0
      %2108 = vmatpush1.xpose.msra.mxu0 0.0
      %2109 = vmatprep.subr.mxu0 0.0
      %2110 = vmatpush1.xpose.msra.mxu0 0.0
      %2111 = vmatprep.subr.mxu0 0.0
      %2112 = vmatpush1.xpose.msra.mxu0 0.0
      %2113 = vmatprep.subr.mxu0 0.0
      %2114 = vmatpush1.xpose.msra.mxu0 0.0
      %2115 = vmatprep.subr.mxu0 0.0
      %2116 = vmatpush1.xpose.msra.mxu0 0.0
      %2117 = vmatprep.subr.mxu0 0.0
      %2118 = vmatpush1.xpose.msra.mxu0 0.0
      %2119 = vmatprep.subr.mxu0 0.0
      %2120 = vmatpush1.xpose.msra.mxu0 0.0
      %2121 = vmatprep.subr.mxu0 0.0
      %2122 = vmatpush1.xpose.msra.mxu0 0.0
      %2123 = vmatprep.subr.mxu0 0.0
      %2124 = vmatpush1.xpose.msra.mxu0 0.0
      %2125 = vmatprep.subr.mxu0 0.0
      %2126 = vmatpush1.xpose.msra.mxu0 0.0
      %2127 = vmatprep.subr.mxu0 0.0
      %2128 = vmatpush1.xpose.msra.mxu0 0.0
      %2129 = vmatprep.subr.mxu0 0.0
      %2130 = vmatpush1.xpose.msra.mxu0 0.0
      %2131 = vmatprep.subr.mxu0 0.0
      %2132 = vmatpush1.xpose.msra.mxu0 %v2099
      %2133 = vmatprep.subr.mxu0 0.0
      %2134 = vmatpush2.xpose.msra.mxu0 0.0
      %2135 = vmatprep.subr.mxu0 0.0
      %2136 = vmatpush2.xpose.msra.mxu0 0.0
      %2137 = vmatprep.subr.mxu0 0.0
      %2138 = vmatpush2.xpose.msra.mxu0 0.0
      %2139 = vmatprep.subr.mxu0 0.0
      %2140 = vmatpush2.xpose.msra.mxu0 0.0
      %2141 = vmatprep.subr.mxu0 0.0
      %2142 = vmatpush2.xpose.msra.mxu0 0.0
      %2143 = vmatprep.subr.mxu0 0.0
      %2144 = vmatpush2.xpose.msra.mxu0 0.0
      %2145 = vmatprep.subr.mxu0 0.0
      %2146 = vmatpush2.xpose.msra.mxu0 0.0
      %2147 = vmatprep.subr.mxu0 0.0
      %2148 = vmatpush2.xpose.msra.mxu0 0.0
      %2149 = vmatprep.subr.mxu0 0.0
      %2150 = vmatpush2.xpose.msra.mxu0 0.0
      %2151 = vmatprep.subr.mxu0 0.0
      %2152 = vmatpush2.xpose.msra.mxu0 0.0
      %2153 = vmatprep.subr.mxu0 0.0
      %2154 = vmatpush2.xpose.msra.mxu0 0.0
      %2155 = vmatprep.subr.mxu0 0.0
      %2156 = vmatpush2.xpose.msra.mxu0 0.0
      %2157 = vmatprep.subr.mxu0 0.0
      %2158 = vmatpush2.xpose.msra.mxu0 0.0
      %2159 = vmatprep.subr.mxu0 0.0
      %2160 = vmatpush2.xpose.msra.mxu0 0.0
      %2161 = vmatprep.subr.mxu0 0.0
      %2162 = vmatpush2.xpose.msra.mxu0 0.0
      %2163 = vmatprep.subr.mxu0 0.0
      %2164 = vmatpush2.xpose.msra.mxu0 0.0
      %2165 = vmatprep.mubr.f32.mxu0 0.0
      %2166 = vmatmul.mubr.f32.gmra.mxu0 %v2097
      %v2167 = vpop.f32.mrf.mxu0
      %v2168 = vadd.f32 0.0, %v2167
      %v2169 = vpop.f32.mrf.mxu0
      %2170 = vdwg.mxu0
      %v2171 = vmul.f32 %v2168, 0.125
      %2172 = vxpose.xlu0.b32.start [1/16] %v1700, 128
      %2173 = vxpose.xlu0.b32.cont [2/16] 0.0, 128
      %2174 = vxpose.xlu0.b32.cont [3/16] 0.0, 128
      %2175 = vxpose.xlu0.b32.cont [4/16] 0.0, 128
      %2176 = vxpose.xlu0.b32.cont [5/16] 0.0, 128
      %2177 = vxpose.xlu0.b32.cont [6/16] 0.0, 128
      %2178 = vxpose.xlu0.b32.cont [7/16] 0.0, 128
      %2179 = vxpose.xlu0.b32.cont [8/16] 0.0, 128
      %2180 = vxpose.xlu0.b32.cont [9/16] 0.0, 128
      %2181 = vxpose.xlu0.b32.cont [10/16] 0.0, 128
      %2182 = vxpose.xlu0.b32.cont [11/16] 0.0, 128
      %2183 = vxpose.xlu0.b32.cont [12/16] 0.0, 128
      %2184 = vxpose.xlu0.b32.cont [13/16] 0.0, 128
      %2185 = vxpose.xlu0.b32.cont [14/16] 0.0, 128
      %2186 = vxpose.xlu0.b32.cont [15/16] 0.0, 128
      %2187 = vxpose.xlu0.b32.end [16/16] 0.0, 128
      %v2188 = vpop.trf.xlu0
      %v2189 = vpop.trf.xlu0
      %v2190 = vpop.trf.xlu0
      %v2191 = vpop.trf.xlu0
      %v2192 = vpop.trf.xlu0
      %v2193 = vpop.trf.xlu0
      %v2194 = vpop.trf.xlu0
      %v2195 = vpop.trf.xlu0
      %v2196 = vpop.trf.xlu0
      %v2197 = vpop.trf.xlu0
      %v2198 = vpop.trf.xlu0
      %v2199 = vpop.trf.xlu0
      %v2200 = vpop.trf.xlu0
      %v2201 = vpop.trf.xlu0
      %v2202 = vpop.trf.xlu0
      %v2203 = vpop.trf.xlu0
      %2204 = vst.msk [vmem:[%s533] sm:$0xff] %vm995, %v2188
      %2206 = vrot.lane.b32.xlu0 %v2188, 127
      %v2207 = vpop.permute.xlu0 %2206
      %2209 = vst.msk [vmem:[%s533 + $0x7] sm:$0xfe] %vm1001, %v2207
      %2210 = vrot.lane.b32.xlu0 %v2188, 126
      %v2211 = vpop.permute.xlu0 %2210
      %2213 = vst.msk [vmem:[%s533 + $0xd] sm:$0xfc] %vm1006, %v2211
      %2214 = vrot.lane.b32.xlu0 %v2188, 125
      %v2215 = vpop.permute.xlu0 %2214
      %2217 = vst.msk [vmem:[%s533 + $0x12] sm:$0xf8] %vm1011, %v2215
      %2218 = vrot.lane.b32.xlu0 %v2188, 124
      %v2219 = vpop.permute.xlu0 %2218
      %2221 = vst.msk [vmem:[%s533 + $0x16] sm:$0xf0] %vm1016, %v2219
      %2222 = vrot.lane.b32.xlu0 %v2188, 123
      %v2223 = vpop.permute.xlu0 %2222
      %2225 = vst.msk [vmem:[%s533 + $0x19] sm:$0xe0] %vm1021, %v2223
      %2226 = vrot.lane.b32.xlu0 %v2188, 122
      %v2227 = vpop.permute.xlu0 %2226
      %2229 = vst.msk [vmem:[%s533 + $0x1b] sm:$0xc0] %vm1026, %v2227
      %2230 = vrot.lane.b32.xlu0 %v2188, 121
      %v2231 = vpop.permute.xlu0 %2230
      %2233 = vst.msk [vmem:[%s533 + $0x1c] sm:$0x80] %vm1031, %v2231
      %2234 = vxpose.xlu0.b32.start [1/16] %v1936, 128
      %2235 = vxpose.xlu0.b32.cont [2/16] 0.0, 128
      %2236 = vxpose.xlu0.b32.cont [3/16] 0.0, 128
      %2237 = vxpose.xlu0.b32.cont [4/16] 0.0, 128
      %2238 = vxpose.xlu0.b32.cont [5/16] 0.0, 128
      %2239 = vxpose.xlu0.b32.cont [6/16] 0.0, 128
      %2240 = vxpose.xlu0.b32.cont [7/16] 0.0, 128
      %2241 = vxpose.xlu0.b32.cont [8/16] 0.0, 128
      %2242 = vxpose.xlu0.b32.cont [9/16] 0.0, 128
      %2243 = vxpose.xlu0.b32.cont [10/16] 0.0, 128
      %2244 = vxpose.xlu0.b32.cont [11/16] 0.0, 128
      %2245 = vxpose.xlu0.b32.cont [12/16] 0.0, 128
      %2246 = vxpose.xlu0.b32.cont [13/16] 0.0, 128
      %2247 = vxpose.xlu0.b32.cont [14/16] 0.0, 128
      %2248 = vxpose.xlu0.b32.cont [15/16] 0.0, 128
      %2249 = vxpose.xlu0.b32.end [16/16] 0.0, 128
      %v2250 = vpop.trf.xlu0
      %v2251 = vpop.trf.xlu0
      %v2252 = vpop.trf.xlu0
      %v2253 = vpop.trf.xlu0
      %v2254 = vpop.trf.xlu0
      %v2255 = vpop.trf.xlu0
      %v2256 = vpop.trf.xlu0
      %v2257 = vpop.trf.xlu0
      %v2258 = vpop.trf.xlu0
      %v2259 = vpop.trf.xlu0
      %v2260 = vpop.trf.xlu0
      %v2261 = vpop.trf.xlu0
      %v2262 = vpop.trf.xlu0
      %v2263 = vpop.trf.xlu0
      %v2264 = vpop.trf.xlu0
      %v2265 = vpop.trf.xlu0
      %2267 = vrot.lane.b32.xlu0 %v2250, 1
      %v2268 = vpop.permute.xlu0 %2267
      %vm2270 = vcmask 15368
      %2271 = vst.msk [vmem:[%s533] sm:$0xff] %vm2270, %v2268
      %vm2272 = vcmask 15369
      %2273 = vst.msk [vmem:[%s533 + $0x7] sm:$0xfe] %vm2272, %v2250
      %2274 = vrot.lane.b32.xlu0 %v2250, 127
      %v2275 = vpop.permute.xlu0 %2274
      %vm2277 = vcmask 15370
      %2278 = vst.msk [vmem:[%s533 + $0xd] sm:$0xfc] %vm2277, %v2275
      %2279 = vrot.lane.b32.xlu0 %v2250, 126
      %v2280 = vpop.permute.xlu0 %2279
      %vm2282 = vcmask 15371
      %2283 = vst.msk [vmem:[%s533 + $0x12] sm:$0xf8] %vm2282, %v2280
      %2284 = vrot.lane.b32.xlu0 %v2250, 125
      %v2285 = vpop.permute.xlu0 %2284
      %vm2287 = vcmask 15372
      %2288 = vst.msk [vmem:[%s533 + $0x16] sm:$0xf0] %vm2287, %v2285
      %2289 = vrot.lane.b32.xlu0 %v2250, 124
      %v2290 = vpop.permute.xlu0 %2289
      %vm2292 = vcmask 15373
      %2293 = vst.msk [vmem:[%s533 + $0x19] sm:$0xe0] %vm2292, %v2290
      %2294 = vrot.lane.b32.xlu0 %v2250, 123
      %v2295 = vpop.permute.xlu0 %2294
      %vm2297 = vcmask 15374
      %2298 = vst.msk [vmem:[%s533 + $0x1b] sm:$0xc0] %vm2297, %v2295
      %2299 = vrot.lane.b32.xlu0 %v2250, 122
      %v2300 = vpop.permute.xlu0 %2299
      %vm2302 = vcmask 15375
      %2303 = vst.msk [vmem:[%s533 + $0x1c] sm:$0x80] %vm2302, %v2300
      %2304 = vxpose.xlu0.b32.start [1/16] %v2171, 128
      %2305 = vxpose.xlu0.b32.cont [2/16] 0.0, 128
      %2306 = vxpose.xlu0.b32.cont [3/16] 0.0, 128
      %2307 = vxpose.xlu0.b32.cont [4/16] 0.0, 128
      %2308 = vxpose.xlu0.b32.cont [5/16] 0.0, 128
      %2309 = vxpose.xlu0.b32.cont [6/16] 0.0, 128
      %2310 = vxpose.xlu0.b32.cont [7/16] 0.0, 128
      %2311 = vxpose.xlu0.b32.cont [8/16] 0.0, 128
      %2312 = vxpose.xlu0.b32.cont [9/16] 0.0, 128
      %2313 = vxpose.xlu0.b32.cont [10/16] 0.0, 128
      %2314 = vxpose.xlu0.b32.cont [11/16] 0.0, 128
      %2315 = vxpose.xlu0.b32.cont [12/16] 0.0, 128
      %2316 = vxpose.xlu0.b32.cont [13/16] 0.0, 128
      %2317 = vxpose.xlu0.b32.cont [14/16] 0.0, 128
      %2318 = vxpose.xlu0.b32.cont [15/16] 0.0, 128
      %2319 = vxpose.xlu0.b32.end [16/16] 0.0, 128
      %v2320 = vpop.trf.xlu0
      %v2321 = vpop.trf.xlu0
      %v2322 = vpop.trf.xlu0
      %v2323 = vpop.trf.xlu0
      %v2324 = vpop.trf.xlu0
      %v2325 = vpop.trf.xlu0
      %v2326 = vpop.trf.xlu0
      %v2327 = vpop.trf.xlu0
      %v2328 = vpop.trf.xlu0
      %v2329 = vpop.trf.xlu0
      %v2330 = vpop.trf.xlu0
      %v2331 = vpop.trf.xlu0
      %v2332 = vpop.trf.xlu0
      %v2333 = vpop.trf.xlu0
      %v2334 = vpop.trf.xlu0
      %v2335 = vpop.trf.xlu0
      %2337 = vrot.lane.b32.xlu0 %v2320, 2
      %v2338 = vpop.permute.xlu0 %2337
      %vm2340 = vcmask 23568
      %2341 = vst.msk [vmem:[%s533] sm:$0xff] %vm2340, %v2338
      %2342 = vrot.lane.b32.xlu0 %v2320, 1
      %v2343 = vpop.permute.xlu0 %2342
      %vm2345 = vcmask 23569
      %2346 = vst.msk [vmem:[%s533 + $0x7] sm:$0xfe] %vm2345, %v2343
      %vm2347 = vcmask 23570
      %2348 = vst.msk [vmem:[%s533 + $0xd] sm:$0xfc] %vm2347, %v2320
      %2349 = vrot.lane.b32.xlu0 %v2320, 127
      %v2350 = vpop.permute.xlu0 %2349
      %vm2352 = vcmask 23571
      %2353 = vst.msk [vmem:[%s533 + $0x12] sm:$0xf8] %vm2352, %v2350
      %2354 = vrot.lane.b32.xlu0 %v2320, 126
      %v2355 = vpop.permute.xlu0 %2354
      %vm2357 = vcmask 23572
      %2358 = vst.msk [vmem:[%s533 + $0x16] sm:$0xf0] %vm2357, %v2355
      %2359 = vrot.lane.b32.xlu0 %v2320, 125
      %v2360 = vpop.permute.xlu0 %2359
      %vm2362 = vcmask 23573
      %2363 = vst.msk [vmem:[%s533 + $0x19] sm:$0xe0] %vm2362, %v2360
      %2364 = vrot.lane.b32.xlu0 %v2320, 124
      %v2365 = vpop.permute.xlu0 %2364
      %vm2367 = vcmask 23574
      %2368 = vst.msk [vmem:[%s533 + $0x1b] sm:$0xc0] %vm2367, %v2365
      %2369 = vrot.lane.b32.xlu0 %v2320, 123
      %v2370 = vpop.permute.xlu0 %2369
      %vm2372 = vcmask 23575
      %2373 = vst.msk [vmem:[%s533 + $0x1c] sm:$0x80] %vm2372, %v2370
      %p2374 = scmp.lt.s32.totalorder %s27, 1
      %s2375 = scalar_select %p2374, %s27, 1
      %s2376 = smul.addr %s2375, 5
      %s2377 = smul.addr %s2376, 8
      %s2378 = scalar_lea.vmem %s14, %s2377
      %p2379 = scmp.lt.s32.totalorder %s27, 1
      %s2380 = scalar_select %p2379, %s27, 1
      %s2381 = smul.addr %s2380, 5
      %s2382 = smul.addr %s2381, 8
      %s2383 = scalar_lea.vmem %s15, %s2382
      // Predicated region
      $region77: #{token_pair_modeling_forward.3} parent=75 // pred_check
        %p2384 = pneg %p354
      $region78: #{token_pair_modeling_forward.3} parent=75 // pred_check_branch
        %2386 = sbr.rel (%p2384) target = $region80
      $region79: #{token_pair_modeling_forward.3} parent=75 // pred_region
        _
      $region80: #{token_pair_modeling_forward.3} parent=75 // pred_fallthru
        _
      // Predicated region
      $region81: #{token_pair_modeling_forward.3} parent=75 // pred_check
        %p2387 = pneg %p380
      $region82: #{token_pair_modeling_forward.3} parent=75 // pred_check_branch
        %2389 = sbr.rel (%p2387) target = $region84
      $region83: #{token_pair_modeling_forward.3} parent=75 // pred_region
        _
      $region84: #{token_pair_modeling_forward.3} parent=75 // pred_fallthru
        _
    $region76: #{token_pair_modeling_forward.3} parent=5 // pred_fallthru
      _
    %p2390 = scmp.le.s32.totalorder 2, %s22
    // Predicated region
    $region85: #{token_pair_modeling_forward.3} parent=5 // pred_check
      %p2391 = pneg %p2390
    $region86: #{token_pair_modeling_forward.3} parent=5 // pred_check_branch
      %2393 = sbr.rel (%p2391) target = $region88
    $region87: #{token_pair_modeling_forward.3} parent=5 // pred_region
      %s2394 = ssub.s32 %s22, 2
      // Predicated region
      $region89: #{token_pair_modeling_forward.3} parent=87 // pred_check
        %p2395 = pneg %p360
      $region90: #{token_pair_modeling_forward.3} parent=87 // pred_check_branch
        %2397 = sbr.rel (%p2395) target = $region92
      $region91: #{token_pair_modeling_forward.3} parent=87 // pred_region
        %p2398 = scmp.lt.s32.totalorder %s28, 1
        %s2399 = scalar_select %p2398, %s28, 1
        %s2400 = smul.addr %s2399, 5
        %s2401 = smul.addr %s2400, 8
        %s2402 = scalar_lea.vmem %s14, %s2401
      $region92: #{token_pair_modeling_forward.3} parent=87 // pred_fallthru
        _
      // Predicated region
      $region93: #{token_pair_modeling_forward.3} parent=87 // pred_check
        %p2403 = pneg %p386
      $region94: #{token_pair_modeling_forward.3} parent=87 // pred_check_branch
        %2405 = sbr.rel (%p2403) target = $region96
      $region95: #{token_pair_modeling_forward.3} parent=87 // pred_region
        %p2406 = scmp.lt.s32.totalorder %s28, 1
        %s2407 = scalar_select %p2406, %s28, 1
        %s2408 = smul.addr %s2407, 5
        %s2409 = smul.addr %s2408, 8
        %s2410 = scalar_lea.vmem %s15, %s2409
      $region96: #{token_pair_modeling_forward.3} parent=87 // pred_fallthru
        _
    $region88: #{token_pair_modeling_forward.3} parent=5 // pred_fallthru
      _
  $region6: #{token_pair_modeling_forward.3} parent=0 // loop_footer
    %s26 = sadd.s32 1, %s22
  $region7: #{token_pair_modeling_forward.3} parent=0 // loop_footer_branch
    %21 = sbr.rel target = $region3
  $region8: #{token_pair_modeling_forward.3} parent=0 // loop_exit
    _

// kernel: token_pair_modeling_forward.2
$region0: #{token_pair_modeling_forward.2}
  #allocation0 [shape = 'u32[]', space=smem, size = 0x4, offset = 0x4, fixed_abs, tag = 'smem constant byte address 0x4 - core index']
  #allocation1 [shape = 'u32[144,128]{1,0:T(1,128)}', space=vmem, size = 0x12000, scoped, tag = 'internal scratch']
  %s0 = inlined_call_operand.vmem [shape: f32[2,8,32], index: 0, kind: input, shape index: {}]
  %s1 = inlined_call_operand.vmem [shape: f32[2,8,1], index: 1, kind: input, shape index: {}]
  %s2 = inlined_call_operand.vmem [shape: f32[8,64], index: 2, kind: input, shape index: {}]
  %s3 = inlined_call_operand.vmem [shape: f32[8,64], index: 3, kind: input, shape index: {}]
  %s4 = inlined_call_operand.hbm [shape: f32[64,64], index: 4, kind: input, shape index: {}]
  %s5 = inlined_call_operand.hbm [shape: f32[32,128], index: 5, kind: input, shape index: {}]
  %s6 = inlined_call_operand.hbm [shape: f32[1,128], index: 6, kind: input, shape index: {}]
  %s7 = inlined_call_operand.hbm [shape: f32[32,352], index: 7, kind: input, shape index: {}]
  %s8 = inlined_call_operand.hbm [shape: f32[1,352], index: 8, kind: input, shape index: {}]
  %s9 = inlined_call_operand.hbm [shape: f32[352,640], index: 9, kind: input, shape index: {}]
  %s10 = inlined_call_operand.hbm [shape: f32[1,640], index: 10, kind: input, shape index: {}]
  %s11 = inlined_call_operand.hbm [shape: f32[2,32,160], index: 11, kind: input, shape index: {}]
  %s12 = inlined_call_operand.vmem [shape: f32[2,8,32], index: 12, kind: output, shape index: {0}]
  %s13 = inlined_call_operand.vmem [shape: f32[2,36,4], index: 13, kind: output, shape index: {1}]
  %s14 = inlined_call_operand.vmem [shape: f32[2,36,1], index: 14, kind: output, shape index: {2}]
  %15 = xla_tuple %s12, %s13, %s14
  %s16 = sld [smem:[#allocation0]]
  $region129: #{token_pair_modeling_forward.2} parent=0
    _
  %s18 = ssub.s32 1, %s16
  %s19 = scalar_select 0, %s18, %s16
  $region1: #{token_pair_modeling_forward.2} parent=0
    #allocation2 [shape = 'u8[32768]{0}', space=vmem, size = 0x8000, scoped, tag = 'input window, operand 4, single buffered']
    #allocation3 [shape = 's32[2]{0}', space=sflag, size = 0x8, scoped, tag = 'scoped memory for token_pair_modeling_forward.2']
    #allocation4 [shape = 'u8[16384]{0}', space=vmem, size = 0x4000, scoped, tag = 'input window, operand 5, single buffered']
    #allocation5 [shape = 's32[1]{0}', space=sflag, size = 0x4, scoped, tag = 'scoped memory for token_pair_modeling_forward.2']
    #allocation6 [shape = 'u8[512]{0}', space=vmem, size = 0x400, scoped, tag = 'input window, operand 6, single buffered']
    #allocation7 [shape = 'u8[49152]{0}', space=vmem, size = 0xc000, scoped, tag = 'input window, operand 7, single buffered']
    #allocation8 [shape = 's32[1]{0}', space=sflag, size = 0x4, scoped, tag = 'scoped memory for token_pair_modeling_forward.2']
    #allocation9 [shape = 'u8[1536]{0}', space=vmem, size = 0x800, scoped, tag = 'input window, operand 8, single buffered']
    #allocation10 [shape = 'u8[901120]{0}', space=vmem, size = 0xdc000, scoped, tag = 'input window, operand 9, single buffered']
    #allocation11 [shape = 's32[1]{0}', space=sflag, size = 0x4, scoped, tag = 'scoped memory for token_pair_modeling_forward.2']
    #allocation12 [shape = 'u8[2560]{0}', space=vmem, size = 0xc00, scoped, tag = 'input window, operand 10, single buffered']
    #allocation13 [shape = 'u8[65536]{0}', space=vmem, size = 0x10000, scoped, tag = 'input window, operand 11, single buffered']
    #allocation14 [shape = 's32[1]{0}', space=sflag, size = 0x4, scoped, tag = 'scoped memory for token_pair_modeling_forward.2']
    %20 = vsyncpa [#allocation3], 0
    %21 = vsyncpa [#allocation5], 0
    %22 = vsyncpa [#allocation8], 0
    %23 = vsyncpa [#allocation11], 0
    %24 = vsyncpa [#allocation14], 0
    loop: start=0, step=1, limit=4
    $region2: #{token_pair_modeling_forward.2} parent=1 // loop_pre_header
      _
    $region3: #{token_pair_modeling_forward.2} parent=1 // loop_header
      %s26 = sphi 0, %s30
      %p27 = scmp.ge.s32.totalorder %s26, 4
      %s36 = sphi 0, %s38
      %s39 = sphi 0, %s36
      %s40 = sphi 0, %s39
      %s56 = sphi 0, %s40
      %s62 = sphi 0, %s64
      %s65 = sphi 0, %s62
      %s66 = sphi 0, %s65
      %s82 = sphi 0, %s66
      %s86 = sphi 0, %s86
      %s88 = sphi 0, %s86
      %s89 = sphi 0, %s88
      %s103 = sphi 0, %s89
      %s107 = sphi 0, %s107
      %s109 = sphi 0, %s107
      %s110 = sphi 0, %s109
      %s124 = sphi 0, %s110
      %s128 = sphi 0, %s128
      %s130 = sphi 0, %s128
      %s131 = sphi 0, %s130
      %s145 = sphi 0, %s131
      %s149 = sphi 0, %s149
      %s151 = sphi 0, %s149
      %s152 = sphi 0, %s151
      %s166 = sphi 0, %s152
      %s170 = sphi 0, %s170
      %s172 = sphi 0, %s170
      %s173 = sphi 0, %s172
      %s187 = sphi 0, %s173
      %s191 = sphi 0, %s191
      %s193 = sphi 0, %s191
      %s194 = sphi 0, %s193
      %s208 = sphi 0, %s194
      %s212 = sphi 0, %s212
      %s214 = sphi 0, %s212
      %s215 = sphi 0, %s214
      %s229 = sphi 0, %s215
      %s233 = sphi 0, %s233
      %s235 = sphi 0, %s233
      %s236 = sphi 0, %s235
      %s250 = sphi 0, %s236
      %s254 = sphi 0, %s254
      %s256 = sphi 0, %s254
      %s257 = sphi 0, %s256
      %s271 = sphi 0, %s257
      %s275 = sphi 0, %s275
      %s277 = sphi 0, %s275
      %s278 = sphi 0, %s277
      %s292 = sphi 0, %s278
      %s298 = sphi 0, %s300
      %s301 = sphi 0, %s298
      %s302 = sphi 0, %s301
      %s318 = sphi 0, %s302
      %s324 = sphi 0, %s326
      %s327 = sphi 0, %s324
      %s328 = sphi 0, %s327
      %s344 = sphi 0, %s328
      %s350 = sphi 0, %s352
      %s353 = sphi 0, %s350
      %s354 = sphi 0, %s353
      %s370 = sphi 0, %s354
    $region4: #{token_pair_modeling_forward.2} parent=1 // loop_header_branch
      %29 = sbr.rel (%p27) target = $region8
    $region5: #{token_pair_modeling_forward.2} parent=1 // loop_body
      %s31 = ssub.s32 %s26, 1
      %s32 = ssub.s32 %s26, 2
      %s33 = sadd.s32 %s26, 1
      %s34 = ssub.s32 %s26, %s33
      %p35 = scmp.eq.s32.totalorder %s34, 0
      %s37 = sadd.s32 %s36, 1
      %s38 = scalar_select %p35, %s36, %s37
      %p41 = pneg %p35
      %p42 = scmp.eq.s32.totalorder %s26, 1
      %p43 = por %p41, %p42
      %p44 = scmp.ne.s32.totalorder %s36, %s39
      %p45 = scmp.eq.s32.totalorder %s26, 0
      %p46 = por %p44, %p45
      %p47 = scmp.ne.s32.totalorder %s36, %s39
      %p48 = scmp.eq.s32.totalorder %s31, 1
      %p49 = por %p47, %p48
      %p50 = scmp.ne.s32.totalorder %s39, %s40
      %p51 = scmp.eq.s32.totalorder %s31, 0
      %p52 = por %p50, %p51
      %p53 = scmp.ne.s32.totalorder %s39, %s40
      %p54 = scmp.eq.s32.totalorder %s32, 1
      %p55 = por %p53, %p54
      %p57 = scmp.ne.s32.totalorder %s40, %s56
      %p58 = scmp.eq.s32.totalorder %s32, 0
      %p59 = por %p57, %p58
      %s60 = ssub.s32 %s26, %s33
      %p61 = scmp.eq.s32.totalorder %s60, 0
      %s63 = sadd.s32 %s62, 1
      %s64 = scalar_select %p61, %s62, %s63
      %p67 = pneg %p61
      %p68 = scmp.eq.s32.totalorder %s26, 1
      %p69 = por %p67, %p68
      %p70 = scmp.ne.s32.totalorder %s62, %s65
      %p71 = scmp.eq.s32.totalorder %s26, 0
      %p72 = por %p70, %p71
      %p73 = scmp.ne.s32.totalorder %s62, %s65
      %p74 = scmp.eq.s32.totalorder %s31, 1
      %p75 = por %p73, %p74
      %p76 = scmp.ne.s32.totalorder %s65, %s66
      %p77 = scmp.eq.s32.totalorder %s31, 0
      %p78 = por %p76, %p77
      %p79 = scmp.ne.s32.totalorder %s65, %s66
      %p80 = scmp.eq.s32.totalorder %s32, 1
      %p81 = por %p79, %p80
      %p83 = scmp.ne.s32.totalorder %s66, %s82
      %p84 = scmp.eq.s32.totalorder %s32, 0
      %p85 = por %p83, %p84
      %s87 = sadd.s32 %s86, 1
      %p90 = scmp.eq.s32.totalorder %s26, 1
      %p91 = scmp.ne.s32.totalorder %s86, %s88
      %p92 = scmp.eq.s32.totalorder %s26, 0
      %p93 = por %p91, %p92
      %p94 = scmp.ne.s32.totalorder %s86, %s88
      %p95 = scmp.eq.s32.totalorder %s31, 1
      %p96 = por %p94, %p95
      %p97 = scmp.ne.s32.totalorder %s88, %s89
      %p98 = scmp.eq.s32.totalorder %s31, 0
      %p99 = por %p97, %p98
      %p100 = scmp.ne.s32.totalorder %s88, %s89
      %p101 = scmp.eq.s32.totalorder %s32, 1
      %p102 = por %p100, %p101
      %p104 = scmp.ne.s32.totalorder %s89, %s103
      %p105 = scmp.eq.s32.totalorder %s32, 0
      %p106 = por %p104, %p105
      %s108 = sadd.s32 %s107, 1
      %p111 = scmp.eq.s32.totalorder %s26, 1
      %p112 = scmp.ne.s32.totalorder %s107, %s109
      %p113 = scmp.eq.s32.totalorder %s26, 0
      %p114 = por %p112, %p113
      %p115 = scmp.ne.s32.totalorder %s107, %s109
      %p116 = scmp.eq.s32.totalorder %s31, 1
      %p117 = por %p115, %p116
      %p118 = scmp.ne.s32.totalorder %s109, %s110
      %p119 = scmp.eq.s32.totalorder %s31, 0
      %p120 = por %p118, %p119
      %p121 = scmp.ne.s32.totalorder %s109, %s110
      %p122 = scmp.eq.s32.totalorder %s32, 1
      %p123 = por %p121, %p122
      %p125 = scmp.ne.s32.totalorder %s110, %s124
      %p126 = scmp.eq.s32.totalorder %s32, 0
      %p127 = por %p125, %p126
      %s129 = sadd.s32 %s128, 1
      %p132 = scmp.eq.s32.totalorder %s26, 1
      %p133 = scmp.ne.s32.totalorder %s128, %s130
      %p134 = scmp.eq.s32.totalorder %s26, 0
      %p135 = por %p133, %p134
      %p136 = scmp.ne.s32.totalorder %s128, %s130
      %p137 = scmp.eq.s32.totalorder %s31, 1
      %p138 = por %p136, %p137
      %p139 = scmp.ne.s32.totalorder %s130, %s131
      %p140 = scmp.eq.s32.totalorder %s31, 0
      %p141 = por %p139, %p140
      %p142 = scmp.ne.s32.totalorder %s130, %s131
      %p143 = scmp.eq.s32.totalorder %s32, 1
      %p144 = por %p142, %p143
      %p146 = scmp.ne.s32.totalorder %s131, %s145
      %p147 = scmp.eq.s32.totalorder %s32, 0
      %p148 = por %p146, %p147
      %s150 = sadd.s32 %s149, 1
      %p153 = scmp.eq.s32.totalorder %s26, 1
      %p154 = scmp.ne.s32.totalorder %s149, %s151
      %p155 = scmp.eq.s32.totalorder %s26, 0
      %p156 = por %p154, %p155
      %p157 = scmp.ne.s32.totalorder %s149, %s151
      %p158 = scmp.eq.s32.totalorder %s31, 1
      %p159 = por %p157, %p158
      %p160 = scmp.ne.s32.totalorder %s151, %s152
      %p161 = scmp.eq.s32.totalorder %s31, 0
      %p162 = por %p160, %p161
      %p163 = scmp.ne.s32.totalorder %s151, %s152
      %p164 = scmp.eq.s32.totalorder %s32, 1
      %p165 = por %p163, %p164
      %p167 = scmp.ne.s32.totalorder %s152, %s166
      %p168 = scmp.eq.s32.totalorder %s32, 0
      %p169 = por %p167, %p168
      %s171 = sadd.s32 %s170, 1
      %p174 = scmp.eq.s32.totalorder %s26, 1
      %p175 = scmp.ne.s32.totalorder %s170, %s172
      %p176 = scmp.eq.s32.totalorder %s26, 0
      %p177 = por %p175, %p176
      %p178 = scmp.ne.s32.totalorder %s170, %s172
      %p179 = scmp.eq.s32.totalorder %s31, 1
      %p180 = por %p178, %p179
      %p181 = scmp.ne.s32.totalorder %s172, %s173
      %p182 = scmp.eq.s32.totalorder %s31, 0
      %p183 = por %p181, %p182
      %p184 = scmp.ne.s32.totalorder %s172, %s173
      %p185 = scmp.eq.s32.totalorder %s32, 1
      %p186 = por %p184, %p185
      %p188 = scmp.ne.s32.totalorder %s173, %s187
      %p189 = scmp.eq.s32.totalorder %s32, 0
      %p190 = por %p188, %p189
      %s192 = sadd.s32 %s191, 1
      %p195 = scmp.eq.s32.totalorder %s26, 1
      %p196 = scmp.ne.s32.totalorder %s191, %s193
      %p197 = scmp.eq.s32.totalorder %s26, 0
      %p198 = por %p196, %p197
      %p199 = scmp.ne.s32.totalorder %s191, %s193
      %p200 = scmp.eq.s32.totalorder %s31, 1
      %p201 = por %p199, %p200
      %p202 = scmp.ne.s32.totalorder %s193, %s194
      %p203 = scmp.eq.s32.totalorder %s31, 0
      %p204 = por %p202, %p203
      %p205 = scmp.ne.s32.totalorder %s193, %s194
      %p206 = scmp.eq.s32.totalorder %s32, 1
      %p207 = por %p205, %p206
      %p209 = scmp.ne.s32.totalorder %s194, %s208
      %p210 = scmp.eq.s32.totalorder %s32, 0
      %p211 = por %p209, %p210
      %s213 = sadd.s32 %s212, 1
      %p216 = scmp.eq.s32.totalorder %s26, 1
      %p217 = scmp.ne.s32.totalorder %s212, %s214
      %p218 = scmp.eq.s32.totalorder %s26, 0
      %p219 = por %p217, %p218
      %p220 = scmp.ne.s32.totalorder %s212, %s214
      %p221 = scmp.eq.s32.totalorder %s31, 1
      %p222 = por %p220, %p221
      %p223 = scmp.ne.s32.totalorder %s214, %s215
      %p224 = scmp.eq.s32.totalorder %s31, 0
      %p225 = por %p223, %p224
      %p226 = scmp.ne.s32.totalorder %s214, %s215
      %p227 = scmp.eq.s32.totalorder %s32, 1
      %p228 = por %p226, %p227
      %p230 = scmp.ne.s32.totalorder %s215, %s229
      %p231 = scmp.eq.s32.totalorder %s32, 0
      %p232 = por %p230, %p231
      %s234 = sadd.s32 %s233, 1
      %p237 = scmp.eq.s32.totalorder %s26, 1
      %p238 = scmp.ne.s32.totalorder %s233, %s235
      %p239 = scmp.eq.s32.totalorder %s26, 0
      %p240 = por %p238, %p239
      %p241 = scmp.ne.s32.totalorder %s233, %s235
      %p242 = scmp.eq.s32.totalorder %s31, 1
      %p243 = por %p241, %p242
      %p244 = scmp.ne.s32.totalorder %s235, %s236
      %p245 = scmp.eq.s32.totalorder %s31, 0
      %p246 = por %p244, %p245
      %p247 = scmp.ne.s32.totalorder %s235, %s236
      %p248 = scmp.eq.s32.totalorder %s32, 1
      %p249 = por %p247, %p248
      %p251 = scmp.ne.s32.totalorder %s236, %s250
      %p252 = scmp.eq.s32.totalorder %s32, 0
      %p253 = por %p251, %p252
      %s255 = sadd.s32 %s254, 1
      %p258 = scmp.eq.s32.totalorder %s26, 1
      %p259 = scmp.ne.s32.totalorder %s254, %s256
      %p260 = scmp.eq.s32.totalorder %s26, 0
      %p261 = por %p259, %p260
      %p262 = scmp.ne.s32.totalorder %s254, %s256
      %p263 = scmp.eq.s32.totalorder %s31, 1
      %p264 = por %p262, %p263
      %p265 = scmp.ne.s32.totalorder %s256, %s257
      %p266 = scmp.eq.s32.totalorder %s31, 0
      %p267 = por %p265, %p266
      %p268 = scmp.ne.s32.totalorder %s256, %s257
      %p269 = scmp.eq.s32.totalorder %s32, 1
      %p270 = por %p268, %p269
      %p272 = scmp.ne.s32.totalorder %s257, %s271
      %p273 = scmp.eq.s32.totalorder %s32, 0
      %p274 = por %p272, %p273
      %s276 = sadd.s32 %s275, 1
      %p279 = scmp.eq.s32.totalorder %s26, 1
      %p280 = scmp.ne.s32.totalorder %s275, %s277
      %p281 = scmp.eq.s32.totalorder %s26, 0
      %p282 = por %p280, %p281
      %p283 = scmp.ne.s32.totalorder %s275, %s277
      %p284 = scmp.eq.s32.totalorder %s31, 1
      %p285 = por %p283, %p284
      %p286 = scmp.ne.s32.totalorder %s277, %s278
      %p287 = scmp.eq.s32.totalorder %s31, 0
      %p288 = por %p286, %p287
      %p289 = scmp.ne.s32.totalorder %s277, %s278
      %p290 = scmp.eq.s32.totalorder %s32, 1
      %p291 = por %p289, %p290
      %p293 = scmp.ne.s32.totalorder %s278, %s292
      %p294 = scmp.eq.s32.totalorder %s32, 0
      %p295 = por %p293, %p294
      %s296 = ssub.s32 %s26, %s33
      %p297 = scmp.eq.s32.totalorder %s296, 0
      %s299 = sadd.s32 %s298, 1
      %s300 = scalar_select %p297, %s298, %s299
      %p303 = pneg %p297
      %p304 = scmp.eq.s32.totalorder %s26, 1
      %p305 = por %p303, %p304
      %p306 = scmp.ne.s32.totalorder %s298, %s301
      %p307 = scmp.eq.s32.totalorder %s26, 0
      %p308 = por %p306, %p307
      %p309 = scmp.ne.s32.totalorder %s298, %s301
      %p310 = scmp.eq.s32.totalorder %s31, 1
      %p311 = por %p309, %p310
      %p312 = scmp.ne.s32.totalorder %s301, %s302
      %p313 = scmp.eq.s32.totalorder %s31, 0
      %p314 = por %p312, %p313
      %p315 = scmp.ne.s32.totalorder %s301, %s302
      %p316 = scmp.eq.s32.totalorder %s32, 1
      %p317 = por %p315, %p316
      %p319 = scmp.ne.s32.totalorder %s302, %s318
      %p320 = scmp.eq.s32.totalorder %s32, 0
      %p321 = por %p319, %p320
      %s322 = ssub.s32 %s26, %s33
      %p323 = scmp.eq.s32.totalorder %s322, 0
      %s325 = sadd.s32 %s324, 1
      %s326 = scalar_select %p323, %s324, %s325
      %p329 = pneg %p323
      %p330 = scmp.eq.s32.totalorder %s26, 1
      %p331 = por %p329, %p330
      %p332 = scmp.ne.s32.totalorder %s324, %s327
      %p333 = scmp.eq.s32.totalorder %s26, 0
      %p334 = por %p332, %p333
      %p335 = scmp.ne.s32.totalorder %s324, %s327
      %p336 = scmp.eq.s32.totalorder %s31, 1
      %p337 = por %p335, %p336
      %p338 = scmp.ne.s32.totalorder %s327, %s328
      %p339 = scmp.eq.s32.totalorder %s31, 0
      %p340 = por %p338, %p339
      %p341 = scmp.ne.s32.totalorder %s327, %s328
      %p342 = scmp.eq.s32.totalorder %s32, 1
      %p343 = por %p341, %p342
      %p345 = scmp.ne.s32.totalorder %s328, %s344
      %p346 = scmp.eq.s32.totalorder %s32, 0
      %p347 = por %p345, %p346
      %s348 = ssub.s32 %s26, %s33
      %p349 = scmp.eq.s32.totalorder %s348, 0
      %s351 = sadd.s32 %s350, 1
      %s352 = scalar_select %p349, %s350, %s351
      %p355 = pneg %p349
      %p356 = scmp.eq.s32.totalorder %s26, 1
      %p357 = por %p355, %p356
      %p358 = scmp.ne.s32.totalorder %s350, %s353
      %p359 = scmp.eq.s32.totalorder %s26, 0
      %p360 = por %p358, %p359
      %p361 = scmp.ne.s32.totalorder %s350, %s353
      %p362 = scmp.eq.s32.totalorder %s31, 1
      %p363 = por %p361, %p362
      %p364 = scmp.ne.s32.totalorder %s353, %s354
      %p365 = scmp.eq.s32.totalorder %s31, 0
      %p366 = por %p364, %p365
      %p367 = scmp.ne.s32.totalorder %s353, %s354
      %p368 = scmp.eq.s32.totalorder %s32, 1
      %p369 = por %p367, %p368
      %p371 = scmp.ne.s32.totalorder %s354, %s370
      %p372 = scmp.eq.s32.totalorder %s32, 0
      %p373 = por %p371, %p372
      %p374 = scmp.le.s32.totalorder 1, %s26
      %p375 = scmp.lt.s32.totalorder %s26, 3
      %p376 = pnand %p374, %p375
      %p377 = pneg %p376
      // Predicated region
      $region9: #{token_pair_modeling_forward.2} parent=5 // pred_check
        _
      $region10: #{token_pair_modeling_forward.2} parent=5 // pred_check_branch
        %379 = sbr.rel (%p376) target = $region12
      $region11: #{token_pair_modeling_forward.2} parent=5 // pred_region
        %s380 = ssub.s32 %s26, 1
        // Predicated region
        $region13: #{token_pair_modeling_forward.2} parent=11 // pred_check
          %p381 = pneg %p99
        $region14: #{token_pair_modeling_forward.2} parent=11 // pred_check_branch
          %383 = sbr.rel (%p381) target = $region16
        $region15: #{token_pair_modeling_forward.2} parent=11 // pred_region
          _
        $region16: #{token_pair_modeling_forward.2} parent=11 // pred_fallthru
          _
        // Predicated region
        $region17: #{token_pair_modeling_forward.2} parent=11 // pred_check
          %p384 = pneg %p120
        $region18: #{token_pair_modeling_forward.2} parent=11 // pred_check_branch
          %386 = sbr.rel (%p384) target = $region20
        $region19: #{token_pair_modeling_forward.2} parent=11 // pred_region
          _
        $region20: #{token_pair_modeling_forward.2} parent=11 // pred_fallthru
          _
        // Predicated region
        $region21: #{token_pair_modeling_forward.2} parent=11 // pred_check
          %p387 = pneg %p141
        $region22: #{token_pair_modeling_forward.2} parent=11 // pred_check_branch
          %389 = sbr.rel (%p387) target = $region24
        $region23: #{token_pair_modeling_forward.2} parent=11 // pred_region
          %s391 = ssub.s32 1024, 1024
          %392 = vsyncadd [#allocation3], %s391
          %s393 = sshll.u32 [#allocation2], 4
          %s394 = int_to_ptr.vmem [resolvable:$true] %s393
          %399 = dma.hbm_to_vmem [thread:$0]  %s4, 1024, %s394, [#allocation3], 128, 128, 8
        $region24: #{token_pair_modeling_forward.2} parent=11 // pred_fallthru
          _
        // Predicated region
        $region25: #{token_pair_modeling_forward.2} parent=11 // pred_check
          %p400 = pneg %p162
        $region26: #{token_pair_modeling_forward.2} parent=11 // pred_check_branch
          %402 = sbr.rel (%p400) target = $region28
        $region27: #{token_pair_modeling_forward.2} parent=11 // pred_region
          %s404 = ssub.s32 512, 512
          %405 = vsyncadd [#allocation5], %s404
          %s406 = sshll.u32 [#allocation4], 4
          %s407 = int_to_ptr.vmem [resolvable:$true] %s406
          %412 = dma.hbm_to_vmem [thread:$0]  %s5, 512, %s407, [#allocation5], 128, 128, 8
        $region28: #{token_pair_modeling_forward.2} parent=11 // pred_fallthru
          _
        // Predicated region
        $region29: #{token_pair_modeling_forward.2} parent=11 // pred_check
          %p413 = pneg %p183
        $region30: #{token_pair_modeling_forward.2} parent=11 // pred_check_branch
          %415 = sbr.rel (%p413) target = $region32
        $region31: #{token_pair_modeling_forward.2} parent=11 // pred_region
          %s417 = ssub.s32 16, 16
          %418 = vsyncadd [#allocation5], %s417
          %s420 = sshll.u32 [#allocation6], 4
          %s421 = int_to_ptr.vmem [resolvable:$true] %s420
          %423 = dma.hbm_to_vmem [thread:$0]  %s6, 16, %s421, [#allocation5]
        $region32: #{token_pair_modeling_forward.2} parent=11 // pred_fallthru
          _
        // Predicated region
        $region33: #{token_pair_modeling_forward.2} parent=11 // pred_check
          %p424 = pneg %p204
        $region34: #{token_pair_modeling_forward.2} parent=11 // pred_check_branch
          %426 = sbr.rel (%p424) target = $region36
        $region35: #{token_pair_modeling_forward.2} parent=11 // pred_region
          %s428 = ssub.s32 1536, 1536
          %429 = vsyncadd [#allocation8], %s428
          %s430 = sshll.u32 [#allocation7], 4
          %s431 = int_to_ptr.vmem [resolvable:$true] %s430
          %436 = dma.hbm_to_vmem [thread:$0]  %s7, 1536, %s431, [#allocation8], 384, 384, 24
        $region36: #{token_pair_modeling_forward.2} parent=11 // pred_fallthru
          _
        // Predicated region
        $region37: #{token_pair_modeling_forward.2} parent=11 // pred_check
          %p437 = pneg %p225
        $region38: #{token_pair_modeling_forward.2} parent=11 // pred_check_branch
          %439 = sbr.rel (%p437) target = $region40
        $region39: #{token_pair_modeling_forward.2} parent=11 // pred_region
          %s441 = ssub.s32 48, 48
          %442 = vsyncadd [#allocation8], %s441
          %s444 = sshll.u32 [#allocation9], 4
          %s445 = int_to_ptr.vmem [resolvable:$true] %s444
          %447 = dma.hbm_to_vmem [thread:$0]  %s8, 48, %s445, [#allocation8]
        $region40: #{token_pair_modeling_forward.2} parent=11 // pred_fallthru
          _
        // Predicated region
        $region41: #{token_pair_modeling_forward.2} parent=11 // pred_check
          %p448 = pneg %p246
        $region42: #{token_pair_modeling_forward.2} parent=11 // pred_check_branch
          %450 = sbr.rel (%p448) target = $region44
        $region43: #{token_pair_modeling_forward.2} parent=11 // pred_region
          %s452 = ssub.s32 28160, 28160
          %453 = vsyncadd [#allocation11], %s452
          %s454 = sshll.u32 [#allocation10], 4
          %s455 = int_to_ptr.vmem [resolvable:$true] %s454
          %460 = dma.hbm_to_vmem [thread:$0]  %s9, 28160, %s455, [#allocation11], 640, 640, 40
        $region44: #{token_pair_modeling_forward.2} parent=11 // pred_fallthru
          _
        // Predicated region
        $region45: #{token_pair_modeling_forward.2} parent=11 // pred_check
          %p461 = pneg %p267
        $region46: #{token_pair_modeling_forward.2} parent=11 // pred_check_branch
          %463 = sbr.rel (%p461) target = $region48
        $region47: #{token_pair_modeling_forward.2} parent=11 // pred_region
          %s465 = ssub.s32 80, 80
          %466 = vsyncadd [#allocation11], %s465
          %s468 = sshll.u32 [#allocation12], 4
          %s469 = int_to_ptr.vmem [resolvable:$true] %s468
          %471 = dma.hbm_to_vmem [thread:$0]  %s10, 80, %s469, [#allocation11]
        $region48: #{token_pair_modeling_forward.2} parent=11 // pred_fallthru
          _
        // Predicated region
        $region49: #{token_pair_modeling_forward.2} parent=11 // pred_check
          %p472 = pneg %p288
        $region50: #{token_pair_modeling_forward.2} parent=11 // pred_check_branch
          %474 = sbr.rel (%p472) target = $region52
        $region51: #{token_pair_modeling_forward.2} parent=11 // pred_region
          %s476 = ssub.s32 2048, 2048
          %477 = vsyncadd [#allocation14], %s476
          %s478 = sshll.u32 [#allocation13], 4
          %s479 = int_to_ptr.vmem [resolvable:$true] %s478
          %484 = dma.hbm_to_vmem [thread:$0]  %s11, 2048, %s479, [#allocation14], 256, 256, 16
        $region52: #{token_pair_modeling_forward.2} parent=11 // pred_fallthru
          _
      $region12: #{token_pair_modeling_forward.2} parent=5 // pred_fallthru
        _
      %p485 = scmp.lt.s32.totalorder %s26, 2
      // Predicated region
      $region53: #{token_pair_modeling_forward.2} parent=5 // pred_check
        %p486 = pneg %p485
      $region54: #{token_pair_modeling_forward.2} parent=5 // pred_check_branch
        %488 = sbr.rel (%p486) target = $region56
      $region55: #{token_pair_modeling_forward.2} parent=5 // pred_region
        // Predicated region
        $region57: #{token_pair_modeling_forward.2} parent=55 // pred_check
          %p489 = pneg %p46
        $region58: #{token_pair_modeling_forward.2} parent=55 // pred_check_branch
          %491 = sbr.rel (%p489) target = $region60
        $region59: #{token_pair_modeling_forward.2} parent=55 // pred_region
          %p492 = scmp.lt.s32.totalorder %s26, 1
          %s493 = scalar_select %p492, %s26, 1
          %s494 = smul.addr %s493, 8
          %s495 = scalar_lea.vmem %s0, %s494
        $region60: #{token_pair_modeling_forward.2} parent=55 // pred_fallthru
          _
        // Predicated region
        $region61: #{token_pair_modeling_forward.2} parent=55 // pred_check
          %p496 = pneg %p72
        $region62: #{token_pair_modeling_forward.2} parent=55 // pred_check_branch
          %498 = sbr.rel (%p496) target = $region64
        $region63: #{token_pair_modeling_forward.2} parent=55 // pred_region
          %p499 = scmp.lt.s32.totalorder %s26, 1
          %s500 = scalar_select %p499, %s26, 1
          %s501 = smul.addr %s500, 8
          %s502 = scalar_lea.vmem %s1, %s501
        $region64: #{token_pair_modeling_forward.2} parent=55 // pred_fallthru
          _
      $region56: #{token_pair_modeling_forward.2} parent=5 // pred_fallthru
        _
      %p503 = scmp.le.s32.totalorder 1, %s26
      %p504 = scmp.lt.s32.totalorder %s26, 3
      %p505 = pnand %p503, %p504
      %p506 = pneg %p505
      // Predicated region
      $region65: #{token_pair_modeling_forward.2} parent=5 // pred_check
        _
      $region66: #{token_pair_modeling_forward.2} parent=5 // pred_check_branch
        %508 = sbr.rel (%p505) target = $region68
      $region67: #{token_pair_modeling_forward.2} parent=5 // pred_region
        %s509 = ssub.s32 %s26, 1
        // Predicated region
        $region69: #{token_pair_modeling_forward.2} parent=67 // pred_check
          %p510 = pneg %p141
        $region70: #{token_pair_modeling_forward.2} parent=67 // pred_check_branch
          %512 = sbr.rel (%p510) target = $region72
        $region71: #{token_pair_modeling_forward.2} parent=67 // pred_region
          %513 = dma.done [#allocation3], 1024
        $region72: #{token_pair_modeling_forward.2} parent=67 // pred_fallthru
          _
        // Predicated region
        $region73: #{token_pair_modeling_forward.2} parent=67 // pred_check
          %p514 = pneg %p162
        $region74: #{token_pair_modeling_forward.2} parent=67 // pred_check_branch
          %516 = sbr.rel (%p514) target = $region76
        $region75: #{token_pair_modeling_forward.2} parent=67 // pred_region
          %517 = dma.done [#allocation5], 512
        $region76: #{token_pair_modeling_forward.2} parent=67 // pred_fallthru
          _
        // Predicated region
        $region77: #{token_pair_modeling_forward.2} parent=67 // pred_check
          %p518 = pneg %p183
        $region78: #{token_pair_modeling_forward.2} parent=67 // pred_check_branch
          %520 = sbr.rel (%p518) target = $region80
        $region79: #{token_pair_modeling_forward.2} parent=67 // pred_region
          %521 = dma.done [#allocation5], 16
        $region80: #{token_pair_modeling_forward.2} parent=67 // pred_fallthru
          _
        // Predicated region
        $region81: #{token_pair_modeling_forward.2} parent=67 // pred_check
          %p522 = pneg %p204
        $region82: #{token_pair_modeling_forward.2} parent=67 // pred_check_branch
          %524 = sbr.rel (%p522) target = $region84
        $region83: #{token_pair_modeling_forward.2} parent=67 // pred_region
          %525 = dma.done [#allocation8], 1536
        $region84: #{token_pair_modeling_forward.2} parent=67 // pred_fallthru
          _
        // Predicated region
        $region85: #{token_pair_modeling_forward.2} parent=67 // pred_check
          %p526 = pneg %p225
        $region86: #{token_pair_modeling_forward.2} parent=67 // pred_check_branch
          %528 = sbr.rel (%p526) target = $region88
        $region87: #{token_pair_modeling_forward.2} parent=67 // pred_region
          %529 = dma.done [#allocation8], 48
        $region88: #{token_pair_modeling_forward.2} parent=67 // pred_fallthru
          _
        // Predicated region
        $region89: #{token_pair_modeling_forward.2} parent=67 // pred_check
          %p530 = pneg %p246
        $region90: #{token_pair_modeling_forward.2} parent=67 // pred_check_branch
          %532 = sbr.rel (%p530) target = $region92
        $region91: #{token_pair_modeling_forward.2} parent=67 // pred_region
          %533 = dma.done [#allocation11], 28160
        $region92: #{token_pair_modeling_forward.2} parent=67 // pred_fallthru
          _
        // Predicated region
        $region93: #{token_pair_modeling_forward.2} parent=67 // pred_check
          %p534 = pneg %p267
        $region94: #{token_pair_modeling_forward.2} parent=67 // pred_check_branch
          %536 = sbr.rel (%p534) target = $region96
        $region95: #{token_pair_modeling_forward.2} parent=67 // pred_region
          %537 = dma.done [#allocation11], 80
        $region96: #{token_pair_modeling_forward.2} parent=67 // pred_fallthru
          _
        // Predicated region
        $region97: #{token_pair_modeling_forward.2} parent=67 // pred_check
          %p538 = pneg %p288
        $region98: #{token_pair_modeling_forward.2} parent=67 // pred_check_branch
          %540 = sbr.rel (%p538) target = $region100
        $region99: #{token_pair_modeling_forward.2} parent=67 // pred_region
          %541 = dma.done [#allocation14], 2048
        $region100: #{token_pair_modeling_forward.2} parent=67 // pred_fallthru
          _
        %p542 = scmp.lt.s32.totalorder %s31, 1
        %s543 = scalar_select %p542, %s31, 1
        %s544 = smul.addr %s543, 8
        %s545 = scalar_lea.vmem %s0, %s544
        %p546 = pneg %p52
        %p547 = pneg %p49
        %p548 = scmp.lt.s32.totalorder %s31, 1
        %s549 = scalar_select %p548, %s31, 1
        %s550 = smul.addr %s549, 8
        %s551 = scalar_lea.vmem %s1, %s550
        %p552 = pneg %p78
        %p553 = pneg %p75
        %p554 = pneg %p99
        %p555 = pneg %p96
        %p556 = pneg %p120
        %p557 = pneg %p117
        %p558 = pneg %p141
        %p559 = pneg %p138
        %p560 = pneg %p162
        %p561 = pneg %p159
        %p562 = pneg %p183
        %p563 = pneg %p180
        %p564 = pneg %p204
        %p565 = pneg %p201
        %p566 = pneg %p225
        %p567 = pneg %p222
        %p568 = pneg %p246
        %p569 = pneg %p243
        %p570 = pneg %p267
        %p571 = pneg %p264
        %p572 = pneg %p288
        %p573 = pneg %p285
        %p574 = pneg %p314
        %p575 = pneg %p311
        %p576 = scmp.lt.s32.totalorder %s31, 1
        %s577 = scalar_select %p576, %s31, 1
        %s578 = smul.addr %s577, 8
        %s579 = scalar_lea.vmem %s12, %s578
        %p580 = pneg %p340
        %p581 = pneg %p337
        %p582 = scmp.lt.s32.totalorder %s31, 1
        %s583 = scalar_select %p582, %s31, 1
        %s584 = smul.addr %s583, 5
        %s585 = smul.addr %s584, 8
        %s586 = scalar_lea.vmem %s13, %s585
        %p587 = pneg %p366
        %p588 = pneg %p363
        %p589 = scmp.lt.s32.totalorder %s31, 1
        %s590 = scalar_select %p589, %s31, 1
        %s591 = smul.addr %s590, 5
        %s592 = smul.addr %s591, 8
        %s593 = scalar_lea.vmem %s14, %s592
        %p594 = scmp.lt.s32.totalorder %s31, 1
        %s595 = scalar_select %p594, %s31, 1
        %s596 = smul.addr %s595, 8
        %s597 = scalar_lea.vmem %s0, %s596
        %p598 = scmp.lt.s32.totalorder %s31, 1
        %s599 = scalar_select %p598, %s31, 1
        %s600 = smul.addr %s599, 8
        %s601 = scalar_lea.vmem %s1, %s600
        %p602 = scmp.lt.s32.totalorder %s31, 1
        %s603 = scalar_select %p602, %s31, 1
        %s604 = smul.addr %s603, 8
        %s605 = scalar_lea.vmem %s12, %s604
        %p606 = scmp.lt.s32.totalorder %s31, 1
        %s607 = scalar_select %p606, %s31, 1
        %s608 = smul.addr %s607, 5
        %s609 = smul.addr %s608, 8
        %s610 = scalar_lea.vmem %s13, %s609
        %p611 = scmp.lt.s32.totalorder %s31, 1
        %s612 = scalar_select %p611, %s31, 1
        %s613 = smul.addr %s612, 5
        %s614 = smul.addr %s613, 8
        %s615 = scalar_lea.vmem %s14, %s614
        %v616 = vld [vmem:[%s597] sm:$0xff]
        %v617 = vld [vmem:[%s601] sm:$0xff]
        %v618 = vld [vmem:[%s2] sm:$0xff]
        %v619 = vld [vmem:[%s3] sm:$0xff]
        %v620 = vld [vmem:[#allocation2] sm:$0xff]
        %v621 = vld [vmem:[#allocation2 + $0x8] sm:$0xff]
        %v622 = vld [vmem:[#allocation2 + $0x10] sm:$0xff]
        %v623 = vld [vmem:[#allocation2 + $0x18] sm:$0xff]
        %v624 = vld [vmem:[#allocation2 + $0x20] sm:$0xff]
        %v625 = vld [vmem:[#allocation2 + $0x28] sm:$0xff]
        %v626 = vld [vmem:[#allocation2 + $0x30] sm:$0xff]
        %v627 = vld [vmem:[#allocation2 + $0x38] sm:$0xff]
        %v628 = vld [vmem:[#allocation4] sm:$0xff]
        %v629 = vld [vmem:[#allocation4 + $0x8] sm:$0xff]
        %v630 = vld [vmem:[#allocation4 + $0x10] sm:$0xff]
        %v631 = vld [vmem:[#allocation4 + $0x18] sm:$0xff]
        %v632 = vld [vmem:[#allocation6] sm:$0x1]
        %v634 = vlaneseq
        %v635 = vshrl.u32 %v634, 7
        %v636 = vsub.s32 0, %v635
        %v637 = vrot.slane %v632, %v636
        %vm639 = vcmask 261120
        %v641 = vsel %vm639, %v616, 0
        %643 = vmatprep.subr.mxu0 0.0
        %644 = vmatpush1.msra.mxu0 0.0
        %645 = vmatprep.subr.mxu0 0.0
        %646 = vmatpush1.msra.mxu0 0.0
        %647 = vmatprep.subr.mxu0 0.0
        %648 = vmatpush1.msra.mxu0 0.0
        %649 = vmatprep.subr.mxu0 0.0
        %650 = vmatpush1.msra.mxu0 0.0
        %651 = vmatprep.subr.mxu0 0.0
        %652 = vmatpush1.msra.mxu0 0.0
        %653 = vmatprep.subr.mxu0 0.0
        %654 = vmatpush1.msra.mxu0 0.0
        %655 = vmatprep.subr.mxu0 0.0
        %656 = vmatpush1.msra.mxu0 0.0
        %657 = vmatprep.subr.mxu0 0.0
        %658 = vmatpush1.msra.mxu0 0.0
        %659 = vmatprep.subr.mxu0 0.0
        %660 = vmatpush1.msra.mxu0 0.0
        %661 = vmatprep.subr.mxu0 0.0
        %662 = vmatpush1.msra.mxu0 0.0
        %663 = vmatprep.subr.mxu0 0.0
        %664 = vmatpush1.msra.mxu0 0.0
        %665 = vmatprep.subr.mxu0 0.0
        %666 = vmatpush1.msra.mxu0 0.0
        %667 = vmatprep.subr.mxu0 0.0
        %668 = vmatpush1.msra.mxu0 %v631
        %669 = vmatprep.subr.mxu0 0.0
        %670 = vmatpush1.msra.mxu0 %v630
        %671 = vmatprep.subr.mxu0 0.0
        %672 = vmatpush1.msra.mxu0 %v629
        %673 = vmatprep.subr.mxu0 0.0
        %674 = vmatpush1.msra.mxu0 %v628
        %675 = vmatprep.subr.mxu0 0.0
        %676 = vmatpush2.msra.mxu0 0.0
        %677 = vmatprep.subr.mxu0 0.0
        %678 = vmatpush2.msra.mxu0 0.0
        %679 = vmatprep.subr.mxu0 0.0
        %680 = vmatpush2.msra.mxu0 0.0
        %681 = vmatprep.subr.mxu0 0.0
        %682 = vmatpush2.msra.mxu0 0.0
        %683 = vmatprep.subr.mxu0 0.0
        %684 = vmatpush2.msra.mxu0 0.0
        %685 = vmatprep.subr.mxu0 0.0
        %686 = vmatpush2.msra.mxu0 0.0
        %687 = vmatprep.subr.mxu0 0.0
        %688 = vmatpush2.msra.mxu0 0.0
        %689 = vmatprep.subr.mxu0 0.0
        %690 = vmatpush2.msra.mxu0 0.0
        %691 = vmatprep.subr.mxu0 0.0
        %692 = vmatpush2.msra.mxu0 0.0
        %693 = vmatprep.subr.mxu0 0.0
        %694 = vmatpush2.msra.mxu0 0.0
        %695 = vmatprep.subr.mxu0 0.0
        %696 = vmatpush2.msra.mxu0 0.0
        %697 = vmatprep.subr.mxu0 0.0
        %698 = vmatpush2.msra.mxu0 0.0
        %699 = vmatprep.subr.mxu0 0.0
        %700 = vmatpush2.msra.mxu0 0.0
        %701 = vmatprep.subr.mxu0 0.0
        %702 = vmatpush2.msra.mxu0 0.0
        %703 = vmatprep.subr.mxu0 0.0
        %704 = vmatpush2.msra.mxu0 0.0
        %705 = vmatprep.subr.mxu0 0.0
        %706 = vmatpush2.msra.mxu0 0.0
        %707 = vmatprep.mubr.f32.mxu0 0.0
        %708 = vmatmul.mubr.f32.gmra.mxu0 %v641
        %v709 = vpop.f32.mrf.mxu0
        %v710 = vadd.f32 %v637, %v709
        %v711 = vpop.f32.mrf.mxu0
        %712 = vdwg.mxu0
        %714 = vset.pattern.permute.xlu0 0
        %715 = vperm.xlu0 %714, %v617
        %v716 = vpop.permute.xlu0 %715
        %v718 = vmul.f32 %v710, %v716
        %v719 = vmul.f32 %v718, %v618
        %vm720 = vcmask 523264
        %v722 = vsel %vm720, %v718, 0
        %724 = vmatprep.subr.mxu0 0.0
        %725 = vmatpush1.msra.mxu0 0.0
        %726 = vmatprep.subr.mxu0 0.0
        %727 = vmatpush1.msra.mxu0 0.0
        %728 = vmatprep.subr.mxu0 0.0
        %729 = vmatpush1.msra.mxu0 0.0
        %730 = vmatprep.subr.mxu0 0.0
        %731 = vmatpush1.msra.mxu0 0.0
        %732 = vmatprep.subr.mxu0 0.0
        %733 = vmatpush1.msra.mxu0 0.0
        %734 = vmatprep.subr.mxu0 0.0
        %735 = vmatpush1.msra.mxu0 0.0
        %736 = vmatprep.subr.mxu0 0.0
        %737 = vmatpush1.msra.mxu0 0.0
        %738 = vmatprep.subr.mxu0 0.0
        %739 = vmatpush1.msra.mxu0 0.0
        %740 = vmatprep.subr.mxu0 0.0
        %741 = vmatpush1.msra.mxu0 %v627
        %742 = vmatprep.subr.mxu0 0.0
        %743 = vmatpush1.msra.mxu0 %v626
        %744 = vmatprep.subr.mxu0 0.0
        %745 = vmatpush1.msra.mxu0 %v625
        %746 = vmatprep.subr.mxu0 0.0
        %747 = vmatpush1.msra.mxu0 %v624
        %748 = vmatprep.subr.mxu0 0.0
        %749 = vmatpush1.msra.mxu0 %v623
        %750 = vmatprep.subr.mxu0 0.0
        %751 = vmatpush1.msra.mxu0 %v622
        %752 = vmatprep.subr.mxu0 0.0
        %753 = vmatpush1.msra.mxu0 %v621
        %754 = vmatprep.subr.mxu0 0.0
        %755 = vmatpush1.msra.mxu0 %v620
        %756 = vmatprep.subr.mxu0 0.0
        %757 = vmatpush2.msra.mxu0 0.0
        %758 = vmatprep.subr.mxu0 0.0
        %759 = vmatpush2.msra.mxu0 0.0
        %760 = vmatprep.subr.mxu0 0.0
        %761 = vmatpush2.msra.mxu0 0.0
        %762 = vmatprep.subr.mxu0 0.0
        %763 = vmatpush2.msra.mxu0 0.0
        %764 = vmatprep.subr.mxu0 0.0
        %765 = vmatpush2.msra.mxu0 0.0
        %766 = vmatprep.subr.mxu0 0.0
        %767 = vmatpush2.msra.mxu0 0.0
        %768 = vmatprep.subr.mxu0 0.0
        %769 = vmatpush2.msra.mxu0 0.0
        %770 = vmatprep.subr.mxu0 0.0
        %771 = vmatpush2.msra.mxu0 0.0
        %772 = vmatprep.subr.mxu0 0.0
        %773 = vmatpush2.msra.mxu0 0.0
        %774 = vmatprep.subr.mxu0 0.0
        %775 = vmatpush2.msra.mxu0 0.0
        %776 = vmatprep.subr.mxu0 0.0
        %777 = vmatpush2.msra.mxu0 0.0
        %778 = vmatprep.subr.mxu0 0.0
        %779 = vmatpush2.msra.mxu0 0.0
        %780 = vmatprep.subr.mxu0 0.0
        %781 = vmatpush2.msra.mxu0 0.0
        %782 = vmatprep.subr.mxu0 0.0
        %783 = vmatpush2.msra.mxu0 0.0
        %784 = vmatprep.subr.mxu0 0.0
        %785 = vmatpush2.msra.mxu0 0.0
        %786 = vmatprep.subr.mxu0 0.0
        %787 = vmatpush2.msra.mxu0 0.0
        %788 = vmatprep.mubr.f32.mxu0 0.0
        %789 = vmatmul.mubr.f32.gmra.mxu0 %v722
        %v790 = vpop.f32.mrf.mxu0
        %v791 = vadd.f32 0.0, %v790
        %v792 = vpop.f32.mrf.mxu0
        %793 = vdwg.mxu0
        %v794 = vmul.f32 %v791, %v619
        %v795 = vadd.f32 %v719, %v794
        %797 = vrot.lane.b32.xlu0 %v618, 64
        %v798 = vpop.permute.xlu0 %797
        %v800 = vmul.f32 %v718, %v798
        %801 = vrot.lane.b32.xlu0 %v718, 64
        %v802 = vpop.permute.xlu0 %801
        %v803 = vsel %vm720, %v802, 0
        %805 = vmatprep.subr.mxu0 0.0
        %806 = vmatpush1.msra.mxu0 0.0
        %807 = vmatprep.subr.mxu0 0.0
        %808 = vmatpush1.msra.mxu0 0.0
        %809 = vmatprep.subr.mxu0 0.0
        %810 = vmatpush1.msra.mxu0 0.0
        %811 = vmatprep.subr.mxu0 0.0
        %812 = vmatpush1.msra.mxu0 0.0
        %813 = vmatprep.subr.mxu0 0.0
        %814 = vmatpush1.msra.mxu0 0.0
        %815 = vmatprep.subr.mxu0 0.0
        %816 = vmatpush1.msra.mxu0 0.0
        %817 = vmatprep.subr.mxu0 0.0
        %818 = vmatpush1.msra.mxu0 0.0
        %819 = vmatprep.subr.mxu0 0.0
        %820 = vmatpush1.msra.mxu0 0.0
        %821 = vmatprep.subr.mxu0 0.0
        %822 = vmatpush1.msra.mxu0 %v627
        %823 = vmatprep.subr.mxu0 0.0
        %824 = vmatpush1.msra.mxu0 %v626
        %825 = vmatprep.subr.mxu0 0.0
        %826 = vmatpush1.msra.mxu0 %v625
        %827 = vmatprep.subr.mxu0 0.0
        %828 = vmatpush1.msra.mxu0 %v624
        %829 = vmatprep.subr.mxu0 0.0
        %830 = vmatpush1.msra.mxu0 %v623
        %831 = vmatprep.subr.mxu0 0.0
        %832 = vmatpush1.msra.mxu0 %v622
        %833 = vmatprep.subr.mxu0 0.0
        %834 = vmatpush1.msra.mxu0 %v621
        %835 = vmatprep.subr.mxu0 0.0
        %836 = vmatpush1.msra.mxu0 %v620
        %837 = vmatprep.subr.mxu0 0.0
        %838 = vmatpush2.msra.mxu0 0.0
        %839 = vmatprep.subr.mxu0 0.0
        %840 = vmatpush2.msra.mxu0 0.0
        %841 = vmatprep.subr.mxu0 0.0
        %842 = vmatpush2.msra.mxu0 0.0
        %843 = vmatprep.subr.mxu0 0.0
        %844 = vmatpush2.msra.mxu0 0.0
        %845 = vmatprep.subr.mxu0 0.0
        %846 = vmatpush2.msra.mxu0 0.0
        %847 = vmatprep.subr.mxu0 0.0
        %848 = vmatpush2.msra.mxu0 0.0
        %849 = vmatprep.subr.mxu0 0.0
        %850 = vmatpush2.msra.mxu0 0.0
        %851 = vmatprep.subr.mxu0 0.0
        %852 = vmatpush2.msra.mxu0 0.0
        %853 = vmatprep.subr.mxu0 0.0
        %854 = vmatpush2.msra.mxu0 0.0
        %855 = vmatprep.subr.mxu0 0.0
        %856 = vmatpush2.msra.mxu0 0.0
        %857 = vmatprep.subr.mxu0 0.0
        %858 = vmatpush2.msra.mxu0 0.0
        %859 = vmatprep.subr.mxu0 0.0
        %860 = vmatpush2.msra.mxu0 0.0
        %861 = vmatprep.subr.mxu0 0.0
        %862 = vmatpush2.msra.mxu0 0.0
        %863 = vmatprep.subr.mxu0 0.0
        %864 = vmatpush2.msra.mxu0 0.0
        %865 = vmatprep.subr.mxu0 0.0
        %866 = vmatpush2.msra.mxu0 0.0
        %867 = vmatprep.subr.mxu0 0.0
        %868 = vmatpush2.msra.mxu0 0.0
        %869 = vmatprep.mubr.f32.mxu0 0.0
        %870 = vmatmul.mubr.f32.gmra.mxu0 %v803
        %v871 = vpop.f32.mrf.mxu0
        %v872 = vadd.f32 0.0, %v871
        %v873 = vpop.f32.mrf.mxu0
        %874 = vdwg.mxu0
        %v875 = vmul.f32 %v872, %v619
        %877 = vrot.lane.b32.xlu0 %v875, 64
        %v878 = vpop.permute.xlu0 %877
        %v880 = vadd.f32 %v800, %v878
        %882 = vrot.lane.b32.xlu0 %v880, 64
        %v883 = vpop.permute.xlu0 %882
        %v885 = vsel %vm720, %v795, 0
        %v887 = vsel %vm720, %v883, 0
        %889 = vmatprep.subr.mxu0 0.0
        %890 = vmatpush1.xpose.msra.mxu0 0.0
        %891 = vmatprep.subr.mxu0 0.0
        %892 = vmatpush1.xpose.msra.mxu0 0.0
        %893 = vmatprep.subr.mxu0 0.0
        %894 = vmatpush1.xpose.msra.mxu0 0.0
        %895 = vmatprep.subr.mxu0 0.0
        %896 = vmatpush1.xpose.msra.mxu0 0.0
        %897 = vmatprep.subr.mxu0 0.0
        %898 = vmatpush1.xpose.msra.mxu0 0.0
        %899 = vmatprep.subr.mxu0 0.0
        %900 = vmatpush1.xpose.msra.mxu0 0.0
        %901 = vmatprep.subr.mxu0 0.0
        %902 = vmatpush1.xpose.msra.mxu0 0.0
        %903 = vmatprep.subr.mxu0 0.0
        %904 = vmatpush1.xpose.msra.mxu0 0.0
        %905 = vmatprep.subr.mxu0 0.0
        %906 = vmatpush1.xpose.msra.mxu0 0.0
        %907 = vmatprep.subr.mxu0 0.0
        %908 = vmatpush1.xpose.msra.mxu0 0.0
        %909 = vmatprep.subr.mxu0 0.0
        %910 = vmatpush1.xpose.msra.mxu0 0.0
        %911 = vmatprep.subr.mxu0 0.0
        %912 = vmatpush1.xpose.msra.mxu0 0.0
        %913 = vmatprep.subr.mxu0 0.0
        %914 = vmatpush1.xpose.msra.mxu0 0.0
        %915 = vmatprep.subr.mxu0 0.0
        %916 = vmatpush1.xpose.msra.mxu0 0.0
        %917 = vmatprep.subr.mxu0 0.0
        %918 = vmatpush1.xpose.msra.mxu0 0.0
        %919 = vmatprep.subr.mxu0 0.0
        %920 = vmatpush1.xpose.msra.mxu0 %v887
        %921 = vmatprep.subr.mxu0 0.0
        %922 = vmatpush2.xpose.msra.mxu0 0.0
        %923 = vmatprep.subr.mxu0 0.0
        %924 = vmatpush2.xpose.msra.mxu0 0.0
        %925 = vmatprep.subr.mxu0 0.0
        %926 = vmatpush2.xpose.msra.mxu0 0.0
        %927 = vmatprep.subr.mxu0 0.0
        %928 = vmatpush2.xpose.msra.mxu0 0.0
        %929 = vmatprep.subr.mxu0 0.0
        %930 = vmatpush2.xpose.msra.mxu0 0.0
        %931 = vmatprep.subr.mxu0 0.0
        %932 = vmatpush2.xpose.msra.mxu0 0.0
        %933 = vmatprep.subr.mxu0 0.0
        %934 = vmatpush2.xpose.msra.mxu0 0.0
        %935 = vmatprep.subr.mxu0 0.0
        %936 = vmatpush2.xpose.msra.mxu0 0.0
        %937 = vmatprep.subr.mxu0 0.0
        %938 = vmatpush2.xpose.msra.mxu0 0.0
        %939 = vmatprep.subr.mxu0 0.0
        %940 = vmatpush2.xpose.msra.mxu0 0.0
        %941 = vmatprep.subr.mxu0 0.0
        %942 = vmatpush2.xpose.msra.mxu0 0.0
        %943 = vmatprep.subr.mxu0 0.0
        %944 = vmatpush2.xpose.msra.mxu0 0.0
        %945 = vmatprep.subr.mxu0 0.0
        %946 = vmatpush2.xpose.msra.mxu0 0.0
        %947 = vmatprep.subr.mxu0 0.0
        %948 = vmatpush2.xpose.msra.mxu0 0.0
        %949 = vmatprep.subr.mxu0 0.0
        %950 = vmatpush2.xpose.msra.mxu0 0.0
        %951 = vmatprep.subr.mxu0 0.0
        %952 = vmatpush2.xpose.msra.mxu0 0.0
        %953 = vmatprep.mubr.f32.mxu0 0.0
        %954 = vmatmul.mubr.f32.gmra.mxu0 %v885
        %v955 = vpop.f32.mrf.mxu0
        %v956 = vadd.f32 0.0, %v955
        %v957 = vpop.f32.mrf.mxu0
        %958 = vdwg.mxu0
        %v959 = vmul.f32 %v956, 0.125
        %960 = vxpose.xlu0.b32.start [1/16] %v959, 128
        %961 = vxpose.xlu0.b32.cont [2/16] 0.0, 128
        %962 = vxpose.xlu0.b32.cont [3/16] 0.0, 128
        %963 = vxpose.xlu0.b32.cont [4/16] 0.0, 128
        %964 = vxpose.xlu0.b32.cont [5/16] 0.0, 128
        %965 = vxpose.xlu0.b32.cont [6/16] 0.0, 128
        %966 = vxpose.xlu0.b32.cont [7/16] 0.0, 128
        %967 = vxpose.xlu0.b32.cont [8/16] 0.0, 128
        %968 = vxpose.xlu0.b32.cont [9/16] 0.0, 128
        %969 = vxpose.xlu0.b32.cont [10/16] 0.0, 128
        %970 = vxpose.xlu0.b32.cont [11/16] 0.0, 128
        %971 = vxpose.xlu0.b32.cont [12/16] 0.0, 128
        %972 = vxpose.xlu0.b32.cont [13/16] 0.0, 128
        %973 = vxpose.xlu0.b32.cont [14/16] 0.0, 128
        %974 = vxpose.xlu0.b32.cont [15/16] 0.0, 128
        %975 = vxpose.xlu0.b32.end [16/16] 0.0, 128
        %v976 = vpop.trf.xlu0
        %v977 = vpop.trf.xlu0
        %v978 = vpop.trf.xlu0
        %v979 = vpop.trf.xlu0
        %v980 = vpop.trf.xlu0
        %v981 = vpop.trf.xlu0
        %v982 = vpop.trf.xlu0
        %v983 = vpop.trf.xlu0
        %v984 = vpop.trf.xlu0
        %v985 = vpop.trf.xlu0
        %v986 = vpop.trf.xlu0
        %v987 = vpop.trf.xlu0
        %v988 = vpop.trf.xlu0
        %v989 = vpop.trf.xlu0
        %v990 = vpop.trf.xlu0
        %v991 = vpop.trf.xlu0
        %v992 = vmax.f32 %v976, 0.0
        %vm993 = vcmask 7168
        %994 = vst.msk [vmem:[%s615] sm:$0xff] %vm993, %v992
        %996 = vrot.lane.b32.xlu0 %v992, 127
        %v997 = vpop.permute.xlu0 %996
        %vm999 = vcmask 7169
        %1000 = vst.msk [vmem:[%s615 + $0x7] sm:$0xfe] %vm999, %v997
        %1001 = vrot.lane.b32.xlu0 %v992, 126
        %v1002 = vpop.permute.xlu0 %1001
        %vm1004 = vcmask 7170
        %1005 = vst.msk [vmem:[%s615 + $0xd] sm:$0xfc] %vm1004, %v1002
        %1006 = vrot.lane.b32.xlu0 %v992, 125
        %v1007 = vpop.permute.xlu0 %1006
        %vm1009 = vcmask 7171
        %1010 = vst.msk [vmem:[%s615 + $0x12] sm:$0xf8] %vm1009, %v1007
        %1011 = vrot.lane.b32.xlu0 %v992, 124
        %v1012 = vpop.permute.xlu0 %1011
        %vm1014 = vcmask 7172
        %1015 = vst.msk [vmem:[%s615 + $0x16] sm:$0xf0] %vm1014, %v1012
        %1016 = vrot.lane.b32.xlu0 %v992, 123
        %v1017 = vpop.permute.xlu0 %1016
        %vm1019 = vcmask 7173
        %1020 = vst.msk [vmem:[%s615 + $0x19] sm:$0xe0] %vm1019, %v1017
        %1021 = vrot.lane.b32.xlu0 %v992, 122
        %v1022 = vpop.permute.xlu0 %1021
        %vm1024 = vcmask 7174
        %1025 = vst.msk [vmem:[%s615 + $0x1b] sm:$0xc0] %vm1024, %v1022
        %1026 = vrot.lane.b32.xlu0 %v992, 121
        %v1027 = vpop.permute.xlu0 %1026
        %vm1029 = vcmask 7175
        %1030 = vst.msk [vmem:[%s615 + $0x1c] sm:$0x80] %vm1029, %v1027
        %v1031 = vld [vmem:[#allocation7] sm:$0xff]
        %v1032 = vld [vmem:[#allocation7 + $0x8] sm:$0xff]
        %v1033 = vld [vmem:[#allocation7 + $0x10] sm:$0xff]
        %v1034 = vld [vmem:[#allocation7 + $0x18] sm:$0xff]
        %v1035 = vld [vmem:[#allocation7 + $0x20] sm:$0xff]
        %v1036 = vld [vmem:[#allocation7 + $0x28] sm:$0xff]
        %v1037 = vld [vmem:[#allocation7 + $0x30] sm:$0xff]
        %v1038 = vld [vmem:[#allocation7 + $0x38] sm:$0xff]
        %v1039 = vld [vmem:[#allocation7 + $0x40] sm:$0xff]
        %v1040 = vld [vmem:[#allocation7 + $0x48] sm:$0xff]
        %v1041 = vld [vmem:[#allocation7 + $0x50] sm:$0xff]
        %v1042 = vld [vmem:[#allocation7 + $0x58] sm:$0xff]
        %v1043 = vld [vmem:[#allocation9] sm:$0x7]
        %v1045 = vlaneseq
        %v1046 = vshrl.u32 %v1045, 7
        %v1047 = vsub.s32 0, %v1046
        %v1048 = vrot.slane %v1043, %v1047
        %v1049 = vlaneseq
        %v1050 = vshrl.u32 %v1049, 7
        %v1051 = vsub.s32 1, %v1050
        %v1052 = vrot.slane %v1043, %v1051
        %v1053 = vlaneseq
        %v1054 = vshrl.u32 %v1053, 7
        %v1055 = vsub.s32 2, %v1054
        %v1056 = vrot.slane %v1043, %v1055
        %1060 = vmatprep.subr.mxu0 0.0
        %1061 = vmatpush1.msra.mxu0 0.0
        %1062 = vmatprep.subr.mxu0 0.0
        %1063 = vmatpush1.msra.mxu0 0.0
        %1064 = vmatprep.subr.mxu0 0.0
        %1065 = vmatpush1.msra.mxu0 0.0
        %1066 = vmatprep.subr.mxu0 0.0
        %1067 = vmatpush1.msra.mxu0 0.0
        %1068 = vmatprep.subr.mxu0 0.0
        %1069 = vmatpush1.msra.mxu0 0.0
        %1070 = vmatprep.subr.mxu0 0.0
        %1071 = vmatpush1.msra.mxu0 0.0
        %1072 = vmatprep.subr.mxu0 0.0
        %1073 = vmatpush1.msra.mxu0 0.0
        %1074 = vmatprep.subr.mxu0 0.0
        %1075 = vmatpush1.msra.mxu0 0.0
        %1076 = vmatprep.subr.mxu0 0.0
        %1077 = vmatpush1.msra.mxu0 0.0
        %1078 = vmatprep.subr.mxu0 0.0
        %1079 = vmatpush1.msra.mxu0 0.0
        %1080 = vmatprep.subr.mxu0 0.0
        %1081 = vmatpush1.msra.mxu0 0.0
        %1082 = vmatprep.subr.mxu0 0.0
        %1083 = vmatpush1.msra.mxu0 0.0
        %1084 = vmatprep.subr.mxu0 %v1041
        %1085 = vmatpush1.msra.mxu0 %v1040
        %1086 = vmatprep.subr.mxu0 %v1038
        %1087 = vmatpush1.msra.mxu0 %v1037
        %1088 = vmatprep.subr.mxu0 %v1035
        %1089 = vmatpush1.msra.mxu0 %v1034
        %1090 = vmatprep.subr.mxu0 %v1032
        %1091 = vmatpush1.msra.mxu0 %v1031
        %1092 = vmatprep.subr.mxu0 0.0
        %1093 = vmatpush2.msra.mxu0 0.0
        %1094 = vmatprep.subr.mxu0 0.0
        %1095 = vmatpush2.msra.mxu0 0.0
        %1096 = vmatprep.subr.mxu0 0.0
        %1097 = vmatpush2.msra.mxu0 0.0
        %1098 = vmatprep.subr.mxu0 0.0
        %1099 = vmatpush2.msra.mxu0 0.0
        %1100 = vmatprep.subr.mxu0 0.0
        %1101 = vmatpush2.msra.mxu0 0.0
        %1102 = vmatprep.subr.mxu0 0.0
        %1103 = vmatpush2.msra.mxu0 0.0
        %1104 = vmatprep.subr.mxu0 0.0
        %1105 = vmatpush2.msra.mxu0 0.0
        %1106 = vmatprep.subr.mxu0 0.0
        %1107 = vmatpush2.msra.mxu0 0.0
        %1108 = vmatprep.subr.mxu0 0.0
        %1109 = vmatpush2.msra.mxu0 0.0
        %1110 = vmatprep.subr.mxu0 0.0
        %1111 = vmatpush2.msra.mxu0 0.0
        %1112 = vmatprep.subr.mxu0 0.0
        %1113 = vmatpush2.msra.mxu0 0.0
        %1114 = vmatprep.subr.mxu0 0.0
        %1115 = vmatpush2.msra.mxu0 0.0
        %1116 = vmatprep.subr.mxu0 0.0
        %1117 = vmatpush2.msra.mxu0 0.0
        %1118 = vmatprep.subr.mxu0 0.0
        %1119 = vmatpush2.msra.mxu0 0.0
        %1120 = vmatprep.subr.mxu0 0.0
        %1121 = vmatpush2.msra.mxu0 0.0
        %1122 = vmatprep.subr.mxu0 0.0
        %1123 = vmatpush2.msra.mxu0 0.0
        %1124 = vmatprep.mubr.f32.mxu0 0.0
        %1125 = vmatmul.mubr.f32.gmra.mxu0 %v641
        %v1126 = vpop.f32.mrf.mxu0
        %v1127 = vadd.f32 %v1048, %v1126
        %v1128 = vpop.f32.mrf.mxu0
        %v1129 = vadd.f32 %v1052, %v1128
        %1130 = vdwg.mxu0
        %1131 = vmatprep.subr.mxu0 0.0
        %1132 = vmatpush1.msra.mxu0 0.0
        %1133 = vmatprep.subr.mxu0 0.0
        %1134 = vmatpush1.msra.mxu0 0.0
        %1135 = vmatprep.subr.mxu0 0.0
        %1136 = vmatpush1.msra.mxu0 0.0
        %1137 = vmatprep.subr.mxu0 0.0
        %1138 = vmatpush1.msra.mxu0 0.0
        %1139 = vmatprep.subr.mxu0 0.0
        %1140 = vmatpush1.msra.mxu0 0.0
        %1141 = vmatprep.subr.mxu0 0.0
        %1142 = vmatpush1.msra.mxu0 0.0
        %1143 = vmatprep.subr.mxu0 0.0
        %1144 = vmatpush1.msra.mxu0 0.0
        %1145 = vmatprep.subr.mxu0 0.0
        %1146 = vmatpush1.msra.mxu0 0.0
        %1147 = vmatprep.subr.mxu0 0.0
        %1148 = vmatpush1.msra.mxu0 0.0
        %1149 = vmatprep.subr.mxu0 0.0
        %1150 = vmatpush1.msra.mxu0 0.0
        %1151 = vmatprep.subr.mxu0 0.0
        %1152 = vmatpush1.msra.mxu0 0.0
        %1153 = vmatprep.subr.mxu0 0.0
        %1154 = vmatpush1.msra.mxu0 0.0
        %1155 = vmatprep.subr.mxu0 0.0
        %1156 = vmatpush1.msra.mxu0 %v1042
        %1157 = vmatprep.subr.mxu0 0.0
        %1158 = vmatpush1.msra.mxu0 %v1039
        %1159 = vmatprep.subr.mxu0 0.0
        %1160 = vmatpush1.msra.mxu0 %v1036
        %1161 = vmatprep.subr.mxu0 0.0
        %1162 = vmatpush1.msra.mxu0 %v1033
        %1163 = vmatprep.subr.mxu0 0.0
        %1164 = vmatpush2.msra.mxu0 0.0
        %1165 = vmatprep.subr.mxu0 0.0
        %1166 = vmatpush2.msra.mxu0 0.0
        %1167 = vmatprep.subr.mxu0 0.0
        %1168 = vmatpush2.msra.mxu0 0.0
        %1169 = vmatprep.subr.mxu0 0.0
        %1170 = vmatpush2.msra.mxu0 0.0
        %1171 = vmatprep.subr.mxu0 0.0
        %1172 = vmatpush2.msra.mxu0 0.0
        %1173 = vmatprep.subr.mxu0 0.0
        %1174 = vmatpush2.msra.mxu0 0.0
        %1175 = vmatprep.subr.mxu0 0.0
        %1176 = vmatpush2.msra.mxu0 0.0
        %1177 = vmatprep.subr.mxu0 0.0
        %1178 = vmatpush2.msra.mxu0 0.0
        %1179 = vmatprep.subr.mxu0 0.0
        %1180 = vmatpush2.msra.mxu0 0.0
        %1181 = vmatprep.subr.mxu0 0.0
        %1182 = vmatpush2.msra.mxu0 0.0
        %1183 = vmatprep.subr.mxu0 0.0
        %1184 = vmatpush2.msra.mxu0 0.0
        %1185 = vmatprep.subr.mxu0 0.0
        %1186 = vmatpush2.msra.mxu0 0.0
        %1187 = vmatprep.subr.mxu0 0.0
        %1188 = vmatpush2.msra.mxu0 0.0
        %1189 = vmatprep.subr.mxu0 0.0
        %1190 = vmatpush2.msra.mxu0 0.0
        %1191 = vmatprep.subr.mxu0 0.0
        %1192 = vmatpush2.msra.mxu0 0.0
        %1193 = vmatprep.subr.mxu0 0.0
        %1194 = vmatpush2.msra.mxu0 0.0
        %1195 = vmatprep.mubr.f32.mxu0 0.0
        %1196 = vmatmul.mubr.f32.gmra.mxu0 %v641
        %v1197 = vpop.f32.mrf.mxu0
        %v1198 = vadd.f32 %v1056, %v1197
        %v1199 = vpop.f32.mrf.mxu0
        %1200 = vdwg.mxu0
        %v1201 = vmax.f32 %v1127, 0.0
        %v1202 = vmax.f32 %v1129, 0.0
        %v1203 = vmax.f32 %v1198, 0.0
        %v1204 = vld [vmem:[#allocation10] sm:$0xff]
        %v1205 = vld [vmem:[#allocation10 + $0x8] sm:$0xff]
        %v1206 = vld [vmem:[#allocation10 + $0x10] sm:$0xff]
        %v1207 = vld [vmem:[#allocation10 + $0x18] sm:$0xff]
        %v1208 = vld [vmem:[#allocation10 + $0x20] sm:$0xff]
        %v1209 = vld [vmem:[#allocation10 + $0x28] sm:$0xff]
        %v1210 = vld [vmem:[#allocation10 + $0x30] sm:$0xff]
        %v1211 = vld [vmem:[#allocation10 + $0x38] sm:$0xff]
        %v1212 = vld [vmem:[#allocation10 + $0x40] sm:$0xff]
        %v1213 = vld [vmem:[#allocation10 + $0x48] sm:$0xff]
        %v1214 = vld [vmem:[#allocation10 + $0x50] sm:$0xff]
        %v1215 = vld [vmem:[#allocation10 + $0x58] sm:$0xff]
        %v1216 = vld [vmem:[#allocation10 + $0x60] sm:$0xff]
        %v1217 = vld [vmem:[#allocation10 + $0x68] sm:$0xff]
        %v1218 = vld [vmem:[#allocation10 + $0x70] sm:$0xff]
        %v1219 = vld [vmem:[#allocation10 + $0x78] sm:$0xff]
        %v1220 = vld [vmem:[#allocation10 + $0x80] sm:$0xff]
        %v1221 = vld [vmem:[#allocation10 + $0x88] sm:$0xff]
        %v1222 = vld [vmem:[#allocation10 + $0x90] sm:$0xff]
        %v1223 = vld [vmem:[#allocation10 + $0x98] sm:$0xff]
        %v1224 = vld [vmem:[#allocation10 + $0xa0] sm:$0xff]
        %v1225 = vld [vmem:[#allocation10 + $0xa8] sm:$0xff]
        %v1226 = vld [vmem:[#allocation10 + $0xb0] sm:$0xff]
        %v1227 = vld [vmem:[#allocation10 + $0xb8] sm:$0xff]
        %v1228 = vld [vmem:[#allocation10 + $0xc0] sm:$0xff]
        %v1229 = vld [vmem:[#allocation10 + $0xc8] sm:$0xff]
        %v1230 = vld [vmem:[#allocation10 + $0xd0] sm:$0xff]
        %v1231 = vld [vmem:[#allocation10 + $0xd8] sm:$0xff]
        %v1232 = vld [vmem:[#allocation10 + $0xe0] sm:$0xff]
        %v1233 = vld [vmem:[#allocation10 + $0xe8] sm:$0xff]
        %v1234 = vld [vmem:[#allocation10 + $0xf0] sm:$0xff]
        %v1235 = vld [vmem:[#allocation10 + $0xf8] sm:$0xff]
        %v1236 = vld [vmem:[#allocation10 + $0x100] sm:$0xff]
        %v1237 = vld [vmem:[#allocation10 + $0x108] sm:$0xff]
        %v1238 = vld [vmem:[#allocation10 + $0x110] sm:$0xff]
        %v1239 = vld [vmem:[#allocation10 + $0x118] sm:$0xff]
        %v1240 = vld [vmem:[#allocation10 + $0x120] sm:$0xff]
        %v1241 = vld [vmem:[#allocation10 + $0x128] sm:$0xff]
        %v1242 = vld [vmem:[#allocation10 + $0x130] sm:$0xff]
        %v1243 = vld [vmem:[#allocation10 + $0x138] sm:$0xff]
        %v1244 = vld [vmem:[#allocation10 + $0x140] sm:$0xff]
        %v1245 = vld [vmem:[#allocation10 + $0x148] sm:$0xff]
        %v1246 = vld [vmem:[#allocation10 + $0x150] sm:$0xff]
        %v1247 = vld [vmem:[#allocation10 + $0x158] sm:$0xff]
        %v1248 = vld [vmem:[#allocation10 + $0x160] sm:$0xff]
        %v1249 = vld [vmem:[#allocation10 + $0x168] sm:$0xff]
        %v1250 = vld [vmem:[#allocation10 + $0x170] sm:$0xff]
        %v1251 = vld [vmem:[#allocation10 + $0x178] sm:$0xff]
        %v1252 = vld [vmem:[#allocation10 + $0x180] sm:$0xff]
        %v1253 = vld [vmem:[#allocation10 + $0x188] sm:$0xff]
        %v1254 = vld [vmem:[#allocation10 + $0x190] sm:$0xff]
        %v1255 = vld [vmem:[#allocation10 + $0x198] sm:$0xff]
        %v1256 = vld [vmem:[#allocation10 + $0x1a0] sm:$0xff]
        %v1257 = vld [vmem:[#allocation10 + $0x1a8] sm:$0xff]
        %v1258 = vld [vmem:[#allocation10 + $0x1b0] sm:$0xff]
        %v1259 = vld [vmem:[#allocation10 + $0x1b8] sm:$0xff]
        %v1260 = vld [vmem:[#allocation10 + $0x1c0] sm:$0xff]
        %v1261 = vld [vmem:[#allocation10 + $0x1c8] sm:$0xff]
        %v1262 = vld [vmem:[#allocation10 + $0x1d0] sm:$0xff]
        %v1263 = vld [vmem:[#allocation10 + $0x1d8] sm:$0xff]
        %v1264 = vld [vmem:[#allocation10 + $0x1e0] sm:$0xff]
        %v1265 = vld [vmem:[#allocation10 + $0x1e8] sm:$0xff]
        %v1266 = vld [vmem:[#allocation10 + $0x1f0] sm:$0xff]
        %v1267 = vld [vmem:[#allocation10 + $0x1f8] sm:$0xff]
        %v1268 = vld [vmem:[#allocation10 + $0x200] sm:$0xff]
        %v1269 = vld [vmem:[#allocation10 + $0x208] sm:$0xff]
        %v1270 = vld [vmem:[#allocation10 + $0x210] sm:$0xff]
        %v1271 = vld [vmem:[#allocation10 + $0x218] sm:$0xff]
        %v1272 = vld [vmem:[#allocation10 + $0x220] sm:$0xff]
        %v1273 = vld [vmem:[#allocation10 + $0x228] sm:$0xff]
        %v1274 = vld [vmem:[#allocation10 + $0x230] sm:$0xff]
        %v1275 = vld [vmem:[#allocation10 + $0x238] sm:$0xff]
        %v1276 = vld [vmem:[#allocation10 + $0x240] sm:$0xff]
        %v1277 = vld [vmem:[#allocation10 + $0x248] sm:$0xff]
        %v1278 = vld [vmem:[#allocation10 + $0x250] sm:$0xff]
        %v1279 = vld [vmem:[#allocation10 + $0x258] sm:$0xff]
        %v1280 = vld [vmem:[#allocation10 + $0x260] sm:$0xff]
        %v1281 = vld [vmem:[#allocation10 + $0x268] sm:$0xff]
        %v1282 = vld [vmem:[#allocation10 + $0x270] sm:$0xff]
        %v1283 = vld [vmem:[#allocation10 + $0x278] sm:$0xff]
        %v1284 = vld [vmem:[#allocation10 + $0x280] sm:$0xff]
        %v1285 = vld [vmem:[#allocation10 + $0x288] sm:$0xff]
        %v1286 = vld [vmem:[#allocation10 + $0x290] sm:$0xff]
        %v1287 = vld [vmem:[#allocation10 + $0x298] sm:$0xff]
        %v1288 = vld [vmem:[#allocation10 + $0x2a0] sm:$0xff]
        %v1289 = vld [vmem:[#allocation10 + $0x2a8] sm:$0xff]
        %v1290 = vld [vmem:[#allocation10 + $0x2b0] sm:$0xff]
        %v1291 = vld [vmem:[#allocation10 + $0x2b8] sm:$0xff]
        %v1292 = vld [vmem:[#allocation10 + $0x2c0] sm:$0xff]
        %v1293 = vld [vmem:[#allocation10 + $0x2c8] sm:$0xff]
        %v1294 = vld [vmem:[#allocation10 + $0x2d0] sm:$0xff]
        %v1295 = vld [vmem:[#allocation10 + $0x2d8] sm:$0xff]
        %v1296 = vld [vmem:[#allocation10 + $0x2e0] sm:$0xff]
        %v1297 = vld [vmem:[#allocation10 + $0x2e8] sm:$0xff]
        %v1298 = vld [vmem:[#allocation10 + $0x2f0] sm:$0xff]
        %v1299 = vld [vmem:[#allocation10 + $0x2f8] sm:$0xff]
        %v1300 = vld [vmem:[#allocation10 + $0x300] sm:$0xff]
        %v1301 = vld [vmem:[#allocation10 + $0x308] sm:$0xff]
        %v1302 = vld [vmem:[#allocation10 + $0x310] sm:$0xff]
        %v1303 = vld [vmem:[#allocation10 + $0x318] sm:$0xff]
        %v1304 = vld [vmem:[#allocation10 + $0x320] sm:$0xff]
        %v1305 = vld [vmem:[#allocation10 + $0x328] sm:$0xff]
        %v1306 = vld [vmem:[#allocation10 + $0x330] sm:$0xff]
        %v1307 = vld [vmem:[#allocation10 + $0x338] sm:$0xff]
        %v1308 = vld [vmem:[#allocation10 + $0x340] sm:$0xff]
        %v1309 = vld [vmem:[#allocation10 + $0x348] sm:$0xff]
        %v1310 = vld [vmem:[#allocation10 + $0x350] sm:$0xff]
        %v1311 = vld [vmem:[#allocation10 + $0x358] sm:$0xff]
        %v1312 = vld [vmem:[#allocation10 + $0x360] sm:$0xff]
        %v1313 = vld [vmem:[#allocation10 + $0x368] sm:$0xff]
        %v1314 = vld [vmem:[#allocation10 + $0x370] sm:$0xff]
        %v1315 = vld [vmem:[#allocation10 + $0x378] sm:$0xff]
        %v1316 = vld [vmem:[#allocation10 + $0x380] sm:$0xff]
        %v1317 = vld [vmem:[#allocation10 + $0x388] sm:$0xff]
        %v1318 = vld [vmem:[#allocation10 + $0x390] sm:$0xff]
        %v1319 = vld [vmem:[#allocation10 + $0x398] sm:$0xff]
        %v1320 = vld [vmem:[#allocation10 + $0x3a0] sm:$0xff]
        %v1321 = vld [vmem:[#allocation10 + $0x3a8] sm:$0xff]
        %v1322 = vld [vmem:[#allocation10 + $0x3b0] sm:$0xff]
        %v1323 = vld [vmem:[#allocation10 + $0x3b8] sm:$0xff]
        %v1324 = vld [vmem:[#allocation10 + $0x3c0] sm:$0xff]
        %v1325 = vld [vmem:[#allocation10 + $0x3c8] sm:$0xff]
        %v1326 = vld [vmem:[#allocation10 + $0x3d0] sm:$0xff]
        %v1327 = vld [vmem:[#allocation10 + $0x3d8] sm:$0xff]
        %v1328 = vld [vmem:[#allocation10 + $0x3e0] sm:$0xff]
        %v1329 = vld [vmem:[#allocation10 + $0x3e8] sm:$0xff]
        %v1330 = vld [vmem:[#allocation10 + $0x3f0] sm:$0xff]
        %v1331 = vld [vmem:[#allocation10 + $0x3f8] sm:$0xff]
        %v1332 = vld [vmem:[#allocation10 + $0x400] sm:$0xff]
        %v1333 = vld [vmem:[#allocation10 + $0x408] sm:$0xff]
        %v1334 = vld [vmem:[#allocation10 + $0x410] sm:$0xff]
        %v1335 = vld [vmem:[#allocation10 + $0x418] sm:$0xff]
        %v1336 = vld [vmem:[#allocation10 + $0x420] sm:$0xff]
        %v1337 = vld [vmem:[#allocation10 + $0x428] sm:$0xff]
        %v1338 = vld [vmem:[#allocation10 + $0x430] sm:$0xff]
        %v1339 = vld [vmem:[#allocation10 + $0x438] sm:$0xff]
        %v1340 = vld [vmem:[#allocation10 + $0x440] sm:$0xff]
        %v1341 = vld [vmem:[#allocation10 + $0x448] sm:$0xff]
        %v1342 = vld [vmem:[#allocation10 + $0x450] sm:$0xff]
        %v1343 = vld [vmem:[#allocation10 + $0x458] sm:$0xff]
        %v1344 = vld [vmem:[#allocation10 + $0x460] sm:$0xff]
        %v1345 = vld [vmem:[#allocation10 + $0x468] sm:$0xff]
        %v1346 = vld [vmem:[#allocation10 + $0x470] sm:$0xff]
        %v1347 = vld [vmem:[#allocation10 + $0x478] sm:$0xff]
        %v1348 = vld [vmem:[#allocation10 + $0x480] sm:$0xff]
        %v1349 = vld [vmem:[#allocation10 + $0x488] sm:$0xff]
        %v1350 = vld [vmem:[#allocation10 + $0x490] sm:$0xff]
        %v1351 = vld [vmem:[#allocation10 + $0x498] sm:$0xff]
        %v1352 = vld [vmem:[#allocation10 + $0x4a0] sm:$0xff]
        %v1353 = vld [vmem:[#allocation10 + $0x4a8] sm:$0xff]
        %v1354 = vld [vmem:[#allocation10 + $0x4b0] sm:$0xff]
        %v1355 = vld [vmem:[#allocation10 + $0x4b8] sm:$0xff]
        %v1356 = vld [vmem:[#allocation10 + $0x4c0] sm:$0xff]
        %v1357 = vld [vmem:[#allocation10 + $0x4c8] sm:$0xff]
        %v1358 = vld [vmem:[#allocation10 + $0x4d0] sm:$0xff]
        %v1359 = vld [vmem:[#allocation10 + $0x4d8] sm:$0xff]
        %v1360 = vld [vmem:[#allocation10 + $0x4e0] sm:$0xff]
        %v1361 = vld [vmem:[#allocation10 + $0x4e8] sm:$0xff]
        %v1362 = vld [vmem:[#allocation10 + $0x4f0] sm:$0xff]
        %v1363 = vld [vmem:[#allocation10 + $0x4f8] sm:$0xff]
        %v1364 = vld [vmem:[#allocation10 + $0x500] sm:$0xff]
        %v1365 = vld [vmem:[#allocation10 + $0x508] sm:$0xff]
        %v1366 = vld [vmem:[#allocation10 + $0x510] sm:$0xff]
        %v1367 = vld [vmem:[#allocation10 + $0x518] sm:$0xff]
        %v1368 = vld [vmem:[#allocation10 + $0x520] sm:$0xff]
        %v1369 = vld [vmem:[#allocation10 + $0x528] sm:$0xff]
        %v1370 = vld [vmem:[#allocation10 + $0x530] sm:$0xff]
        %v1371 = vld [vmem:[#allocation10 + $0x538] sm:$0xff]
        %v1372 = vld [vmem:[#allocation10 + $0x540] sm:$0xff]
        %v1373 = vld [vmem:[#allocation10 + $0x548] sm:$0xff]
        %v1374 = vld [vmem:[#allocation10 + $0x550] sm:$0xff]
        %v1375 = vld [vmem:[#allocation10 + $0x558] sm:$0xff]
        %v1376 = vld [vmem:[#allocation10 + $0x560] sm:$0xff]
        %v1377 = vld [vmem:[#allocation10 + $0x568] sm:$0xff]
        %v1378 = vld [vmem:[#allocation10 + $0x570] sm:$0xff]
        %v1379 = vld [vmem:[#allocation10 + $0x578] sm:$0xff]
        %v1380 = vld [vmem:[#allocation10 + $0x580] sm:$0xff]
        %v1381 = vld [vmem:[#allocation10 + $0x588] sm:$0xff]
        %v1382 = vld [vmem:[#allocation10 + $0x590] sm:$0xff]
        %v1383 = vld [vmem:[#allocation10 + $0x598] sm:$0xff]
        %v1384 = vld [vmem:[#allocation10 + $0x5a0] sm:$0xff]
        %v1385 = vld [vmem:[#allocation10 + $0x5a8] sm:$0xff]
        %v1386 = vld [vmem:[#allocation10 + $0x5b0] sm:$0xff]
        %v1387 = vld [vmem:[#allocation10 + $0x5b8] sm:$0xff]
        %v1388 = vld [vmem:[#allocation10 + $0x5c0] sm:$0xff]
        %v1389 = vld [vmem:[#allocation10 + $0x5c8] sm:$0xff]
        %v1390 = vld [vmem:[#allocation10 + $0x5d0] sm:$0xff]
        %v1391 = vld [vmem:[#allocation10 + $0x5d8] sm:$0xff]
        %v1392 = vld [vmem:[#allocation10 + $0x5e0] sm:$0xff]
        %v1393 = vld [vmem:[#allocation10 + $0x5e8] sm:$0xff]
        %v1394 = vld [vmem:[#allocation10 + $0x5f0] sm:$0xff]
        %v1395 = vld [vmem:[#allocation10 + $0x5f8] sm:$0xff]
        %v1396 = vld [vmem:[#allocation10 + $0x600] sm:$0xff]
        %v1397 = vld [vmem:[#allocation10 + $0x608] sm:$0xff]
        %v1398 = vld [vmem:[#allocation10 + $0x610] sm:$0xff]
        %v1399 = vld [vmem:[#allocation10 + $0x618] sm:$0xff]
        %v1400 = vld [vmem:[#allocation10 + $0x620] sm:$0xff]
        %v1401 = vld [vmem:[#allocation10 + $0x628] sm:$0xff]
        %v1402 = vld [vmem:[#allocation10 + $0x630] sm:$0xff]
        %v1403 = vld [vmem:[#allocation10 + $0x638] sm:$0xff]
        %v1404 = vld [vmem:[#allocation10 + $0x640] sm:$0xff]
        %v1405 = vld [vmem:[#allocation10 + $0x648] sm:$0xff]
        %v1406 = vld [vmem:[#allocation10 + $0x650] sm:$0xff]
        %v1407 = vld [vmem:[#allocation10 + $0x658] sm:$0xff]
        %v1408 = vld [vmem:[#allocation10 + $0x660] sm:$0xff]
        %v1409 = vld [vmem:[#allocation10 + $0x668] sm:$0xff]
        %v1410 = vld [vmem:[#allocation10 + $0x670] sm:$0xff]
        %v1411 = vld [vmem:[#allocation10 + $0x678] sm:$0xff]
        %v1412 = vld [vmem:[#allocation10 + $0x680] sm:$0xff]
        %v1413 = vld [vmem:[#allocation10 + $0x688] sm:$0xff]
        %v1414 = vld [vmem:[#allocation10 + $0x690] sm:$0xff]
        %v1415 = vld [vmem:[#allocation10 + $0x698] sm:$0xff]
        %v1416 = vld [vmem:[#allocation10 + $0x6a0] sm:$0xff]
        %v1417 = vld [vmem:[#allocation10 + $0x6a8] sm:$0xff]
        %v1418 = vld [vmem:[#allocation10 + $0x6b0] sm:$0xff]
        %v1419 = vld [vmem:[#allocation10 + $0x6b8] sm:$0xff]
        %v1420 = vld [vmem:[#allocation10 + $0x6c0] sm:$0xff]
        %v1421 = vld [vmem:[#allocation10 + $0x6c8] sm:$0xff]
        %v1422 = vld [vmem:[#allocation10 + $0x6d0] sm:$0xff]
        %v1423 = vld [vmem:[#allocation10 + $0x6d8] sm:$0xff]
        %v1424 = vld [vmem:[#allocation12] sm:$0x1f]
        %v1426 = vlaneseq
        %v1427 = vshrl.u32 %v1426, 7
        %v1428 = vsub.s32 0, %v1427
        %v1429 = vrot.slane %v1424, %v1428
        %v1430 = vlaneseq
        %v1431 = vshrl.u32 %v1430, 7
        %v1432 = vsub.s32 1, %v1431
        %v1433 = vrot.slane %v1424, %v1432
        %v1434 = vlaneseq
        %v1435 = vshrl.u32 %v1434, 7
        %v1436 = vsub.s32 2, %v1435
        %v1437 = vrot.slane %v1424, %v1436
        %v1438 = vlaneseq
        %v1439 = vshrl.u32 %v1438, 7
        %v1440 = vsub.s32 3, %v1439
        %v1441 = vrot.slane %v1424, %v1440
        %v1442 = vlaneseq
        %v1443 = vshrl.u32 %v1442, 7
        %v1444 = vsub.s32 4, %v1443
        %v1445 = vrot.slane %v1424, %v1444
        %vm1451 = vcmask 785408
        %v1453 = vsel %vm1451, %v1203, 0
        %1455 = vmatprep.subr.mxu0 %v1280
        %1456 = vmatpush1.msra.mxu0 %v1279
        %1457 = vmatprep.subr.mxu0 %v1275
        %1458 = vmatpush1.msra.mxu0 %v1274
        %1459 = vmatprep.subr.mxu0 %v1270
        %1460 = vmatpush1.msra.mxu0 %v1269
        %1461 = vmatprep.subr.mxu0 %v1265
        %1462 = vmatpush1.msra.mxu0 %v1264
        %1463 = vmatprep.subr.mxu0 %v1260
        %1464 = vmatpush1.msra.mxu0 %v1259
        %1465 = vmatprep.subr.mxu0 %v1255
        %1466 = vmatpush1.msra.mxu0 %v1254
        %1467 = vmatprep.subr.mxu0 %v1250
        %1468 = vmatpush1.msra.mxu0 %v1249
        %1469 = vmatprep.subr.mxu0 %v1245
        %1470 = vmatpush1.msra.mxu0 %v1244
        %1471 = vmatprep.subr.mxu0 %v1240
        %1472 = vmatpush1.msra.mxu0 %v1239
        %1473 = vmatprep.subr.mxu0 %v1235
        %1474 = vmatpush1.msra.mxu0 %v1234
        %1475 = vmatprep.subr.mxu0 %v1230
        %1476 = vmatpush1.msra.mxu0 %v1229
        %1477 = vmatprep.subr.mxu0 %v1225
        %1478 = vmatpush1.msra.mxu0 %v1224
        %1479 = vmatprep.subr.mxu0 %v1220
        %1480 = vmatpush1.msra.mxu0 %v1219
        %1481 = vmatprep.subr.mxu0 %v1215
        %1482 = vmatpush1.msra.mxu0 %v1214
        %1483 = vmatprep.subr.mxu0 %v1210
        %1484 = vmatpush1.msra.mxu0 %v1209
        %1485 = vmatprep.subr.mxu0 %v1205
        %1486 = vmatpush1.msra.mxu0 %v1204
        %1487 = vmatprep.subr.mxu0 %v1360
        %1488 = vmatpush2.msra.mxu0 %v1359
        %1489 = vmatprep.subr.mxu0 %v1355
        %1490 = vmatpush2.msra.mxu0 %v1354
        %1491 = vmatprep.subr.mxu0 %v1350
        %1492 = vmatpush2.msra.mxu0 %v1349
        %1493 = vmatprep.subr.mxu0 %v1345
        %1494 = vmatpush2.msra.mxu0 %v1344
        %1495 = vmatprep.subr.mxu0 %v1340
        %1496 = vmatpush2.msra.mxu0 %v1339
        %1497 = vmatprep.subr.mxu0 %v1335
        %1498 = vmatpush2.msra.mxu0 %v1334
        %1499 = vmatprep.subr.mxu0 %v1330
        %1500 = vmatpush2.msra.mxu0 %v1329
        %1501 = vmatprep.subr.mxu0 %v1325
        %1502 = vmatpush2.msra.mxu0 %v1324
        %1503 = vmatprep.subr.mxu0 %v1320
        %1504 = vmatpush2.msra.mxu0 %v1319
        %1505 = vmatprep.subr.mxu0 %v1315
        %1506 = vmatpush2.msra.mxu0 %v1314
        %1507 = vmatprep.subr.mxu0 %v1310
        %1508 = vmatpush2.msra.mxu0 %v1309
        %1509 = vmatprep.subr.mxu0 %v1305
        %1510 = vmatpush2.msra.mxu0 %v1304
        %1511 = vmatprep.subr.mxu0 %v1300
        %1512 = vmatpush2.msra.mxu0 %v1299
        %1513 = vmatprep.subr.mxu0 %v1295
        %1514 = vmatpush2.msra.mxu0 %v1294
        %1515 = vmatprep.subr.mxu0 %v1290
        %1516 = vmatpush2.msra.mxu0 %v1289
        %1517 = vmatprep.subr.mxu0 %v1285
        %1518 = vmatpush2.msra.mxu0 %v1284
        %1519 = vmatprep.mubr.f32.mxu0 %v1202
        %1520 = vmatmul.mubr.f32.gmra.mxu0 %v1201
        %v1521 = vpop.f32.mrf.mxu0
        %v1522 = vadd.f32 %v1429, %v1521
        %v1523 = vpop.f32.mrf.mxu0
        %v1524 = vadd.f32 %v1433, %v1523
        %1525 = vdwg.mxu0
        %1526 = vmatprep.subr.mxu0 0.0
        %1527 = vmatpush1.msra.mxu0 0.0
        %1528 = vmatprep.subr.mxu0 0.0
        %1529 = vmatpush1.msra.mxu0 0.0
        %1530 = vmatprep.subr.mxu0 0.0
        %1531 = vmatpush1.msra.mxu0 0.0
        %1532 = vmatprep.subr.mxu0 0.0
        %1533 = vmatpush1.msra.mxu0 0.0
        %1534 = vmatprep.subr.mxu0 %v1420
        %1535 = vmatpush1.msra.mxu0 %v1419
        %1536 = vmatprep.subr.mxu0 %v1415
        %1537 = vmatpush1.msra.mxu0 %v1414
        %1538 = vmatprep.subr.mxu0 %v1410
        %1539 = vmatpush1.msra.mxu0 %v1409
        %1540 = vmatprep.subr.mxu0 %v1405
        %1541 = vmatpush1.msra.mxu0 %v1404
        %1542 = vmatprep.subr.mxu0 %v1400
        %1543 = vmatpush1.msra.mxu0 %v1399
        %1544 = vmatprep.subr.mxu0 %v1395
        %1545 = vmatpush1.msra.mxu0 %v1394
        %1546 = vmatprep.subr.mxu0 %v1390
        %1547 = vmatpush1.msra.mxu0 %v1389
        %1548 = vmatprep.subr.mxu0 %v1385
        %1549 = vmatpush1.msra.mxu0 %v1384
        %1550 = vmatprep.subr.mxu0 %v1380
        %1551 = vmatpush1.msra.mxu0 %v1379
        %1552 = vmatprep.subr.mxu0 %v1375
        %1553 = vmatpush1.msra.mxu0 %v1374
        %1554 = vmatprep.subr.mxu0 %v1370
        %1555 = vmatpush1.msra.mxu0 %v1369
        %1556 = vmatprep.subr.mxu0 %v1365
        %1557 = vmatpush1.msra.mxu0 %v1364
        %1558 = vmatprep.subr.mxu0 0.0
        %1559 = vmatpush2.msra.mxu0 0.0
        %1560 = vmatprep.subr.mxu0 0.0
        %1561 = vmatpush2.msra.mxu0 0.0
        %1562 = vmatprep.subr.mxu0 0.0
        %1563 = vmatpush2.msra.mxu0 0.0
        %1564 = vmatprep.subr.mxu0 0.0
        %1565 = vmatpush2.msra.mxu0 0.0
        %1566 = vmatprep.subr.mxu0 0.0
        %1567 = vmatpush2.msra.mxu0 0.0
        %1568 = vmatprep.subr.mxu0 0.0
        %1569 = vmatpush2.msra.mxu0 0.0
        %1570 = vmatprep.subr.mxu0 0.0
        %1571 = vmatpush2.msra.mxu0 0.0
        %1572 = vmatprep.subr.mxu0 0.0
        %1573 = vmatpush2.msra.mxu0 0.0
        %1574 = vmatprep.subr.mxu0 0.0
        %1575 = vmatpush2.msra.mxu0 0.0
        %1576 = vmatprep.subr.mxu0 0.0
        %1577 = vmatpush2.msra.mxu0 0.0
        %1578 = vmatprep.subr.mxu0 0.0
        %1579 = vmatpush2.msra.mxu0 0.0
        %1580 = vmatprep.subr.mxu0 0.0
        %1581 = vmatpush2.msra.mxu0 0.0
        %1582 = vmatprep.subr.mxu0 0.0
        %1583 = vmatpush2.msra.mxu0 0.0
        %1584 = vmatprep.subr.mxu0 0.0
        %1585 = vmatpush2.msra.mxu0 0.0
        %1586 = vmatprep.subr.mxu0 0.0
        %1587 = vmatpush2.msra.mxu0 0.0
        %1588 = vmatprep.subr.mxu0 0.0
        %1589 = vmatpush2.msra.mxu0 0.0
        %1590 = vmatprep.mubr.f32.mxu0 0.0
        %1591 = vmatmul.mubr.f32.gmra.mxu0 %v1453
        %v1592 = vpop.f32.mrf.mxu0
        %v1593 = vadd.f32 %v1522, %v1592
        %v1594 = vpop.f32.mrf.mxu0
        %v1595 = vadd.f32 %v1524, %v1594
        %1596 = vdwg.mxu0
        %1597 = vmatprep.subr.mxu0 %v1282
        %1598 = vmatpush1.msra.mxu0 %v1281
        %1599 = vmatprep.subr.mxu0 %v1277
        %1600 = vmatpush1.msra.mxu0 %v1276
        %1601 = vmatprep.subr.mxu0 %v1272
        %1602 = vmatpush1.msra.mxu0 %v1271
        %1603 = vmatprep.subr.mxu0 %v1267
        %1604 = vmatpush1.msra.mxu0 %v1266
        %1605 = vmatprep.subr.mxu0 %v1262
        %1606 = vmatpush1.msra.mxu0 %v1261
        %1607 = vmatprep.subr.mxu0 %v1257
        %1608 = vmatpush1.msra.mxu0 %v1256
        %1609 = vmatprep.subr.mxu0 %v1252
        %1610 = vmatpush1.msra.mxu0 %v1251
        %1611 = vmatprep.subr.mxu0 %v1247
        %1612 = vmatpush1.msra.mxu0 %v1246
        %1613 = vmatprep.subr.mxu0 %v1242
        %1614 = vmatpush1.msra.mxu0 %v1241
        %1615 = vmatprep.subr.mxu0 %v1237
        %1616 = vmatpush1.msra.mxu0 %v1236
        %1617 = vmatprep.subr.mxu0 %v1232
        %1618 = vmatpush1.msra.mxu0 %v1231
        %1619 = vmatprep.subr.mxu0 %v1227
        %1620 = vmatpush1.msra.mxu0 %v1226
        %1621 = vmatprep.subr.mxu0 %v1222
        %1622 = vmatpush1.msra.mxu0 %v1221
        %1623 = vmatprep.subr.mxu0 %v1217
        %1624 = vmatpush1.msra.mxu0 %v1216
        %1625 = vmatprep.subr.mxu0 %v1212
        %1626 = vmatpush1.msra.mxu0 %v1211
        %1627 = vmatprep.subr.mxu0 %v1207
        %1628 = vmatpush1.msra.mxu0 %v1206
        %1629 = vmatprep.subr.mxu0 %v1362
        %1630 = vmatpush2.msra.mxu0 %v1361
        %1631 = vmatprep.subr.mxu0 %v1357
        %1632 = vmatpush2.msra.mxu0 %v1356
        %1633 = vmatprep.subr.mxu0 %v1352
        %1634 = vmatpush2.msra.mxu0 %v1351
        %1635 = vmatprep.subr.mxu0 %v1347
        %1636 = vmatpush2.msra.mxu0 %v1346
        %1637 = vmatprep.subr.mxu0 %v1342
        %1638 = vmatpush2.msra.mxu0 %v1341
        %1639 = vmatprep.subr.mxu0 %v1337
        %1640 = vmatpush2.msra.mxu0 %v1336
        %1641 = vmatprep.subr.mxu0 %v1332
        %1642 = vmatpush2.msra.mxu0 %v1331
        %1643 = vmatprep.subr.mxu0 %v1327
        %1644 = vmatpush2.msra.mxu0 %v1326
        %1645 = vmatprep.subr.mxu0 %v1322
        %1646 = vmatpush2.msra.mxu0 %v1321
        %1647 = vmatprep.subr.mxu0 %v1317
        %1648 = vmatpush2.msra.mxu0 %v1316
        %1649 = vmatprep.subr.mxu0 %v1312
        %1650 = vmatpush2.msra.mxu0 %v1311
        %1651 = vmatprep.subr.mxu0 %v1307
        %1652 = vmatpush2.msra.mxu0 %v1306
        %1653 = vmatprep.subr.mxu0 %v1302
        %1654 = vmatpush2.msra.mxu0 %v1301
        %1655 = vmatprep.subr.mxu0 %v1297
        %1656 = vmatpush2.msra.mxu0 %v1296
        %1657 = vmatprep.subr.mxu0 %v1292
        %1658 = vmatpush2.msra.mxu0 %v1291
        %1659 = vmatprep.subr.mxu0 %v1287
        %1660 = vmatpush2.msra.mxu0 %v1286
        %1661 = vmatprep.mubr.f32.mxu0 %v1202
        %1662 = vmatmul.mubr.f32.gmra.mxu0 %v1201
        %v1663 = vpop.f32.mrf.mxu0
        %v1664 = vadd.f32 %v1437, %v1663
        %v1665 = vpop.f32.mrf.mxu0
        %v1666 = vadd.f32 %v1441, %v1665
        %1667 = vdwg.mxu0
        %1668 = vmatprep.subr.mxu0 0.0
        %1669 = vmatpush1.msra.mxu0 0.0
        %1670 = vmatprep.subr.mxu0 0.0
        %1671 = vmatpush1.msra.mxu0 0.0
        %1672 = vmatprep.subr.mxu0 0.0
        %1673 = vmatpush1.msra.mxu0 0.0
        %1674 = vmatprep.subr.mxu0 0.0
        %1675 = vmatpush1.msra.mxu0 0.0
        %1676 = vmatprep.subr.mxu0 %v1422
        %1677 = vmatpush1.msra.mxu0 %v1421
        %1678 = vmatprep.subr.mxu0 %v1417
        %1679 = vmatpush1.msra.mxu0 %v1416
        %1680 = vmatprep.subr.mxu0 %v1412
        %1681 = vmatpush1.msra.mxu0 %v1411
        %1682 = vmatprep.subr.mxu0 %v1407
        %1683 = vmatpush1.msra.mxu0 %v1406
        %1684 = vmatprep.subr.mxu0 %v1402
        %1685 = vmatpush1.msra.mxu0 %v1401
        %1686 = vmatprep.subr.mxu0 %v1397
        %1687 = vmatpush1.msra.mxu0 %v1396
        %1688 = vmatprep.subr.mxu0 %v1392
        %1689 = vmatpush1.msra.mxu0 %v1391
        %1690 = vmatprep.subr.mxu0 %v1387
        %1691 = vmatpush1.msra.mxu0 %v1386
        %1692 = vmatprep.subr.mxu0 %v1382
        %1693 = vmatpush1.msra.mxu0 %v1381
        %1694 = vmatprep.subr.mxu0 %v1377
        %1695 = vmatpush1.msra.mxu0 %v1376
        %1696 = vmatprep.subr.mxu0 %v1372
        %1697 = vmatpush1.msra.mxu0 %v1371
        %1698 = vmatprep.subr.mxu0 %v1367
        %1699 = vmatpush1.msra.mxu0 %v1366
        %1700 = vmatprep.subr.mxu0 0.0
        %1701 = vmatpush2.msra.mxu0 0.0
        %1702 = vmatprep.subr.mxu0 0.0
        %1703 = vmatpush2.msra.mxu0 0.0
        %1704 = vmatprep.subr.mxu0 0.0
        %1705 = vmatpush2.msra.mxu0 0.0
        %1706 = vmatprep.subr.mxu0 0.0
        %1707 = vmatpush2.msra.mxu0 0.0
        %1708 = vmatprep.subr.mxu0 0.0
        %1709 = vmatpush2.msra.mxu0 0.0
        %1710 = vmatprep.subr.mxu0 0.0
        %1711 = vmatpush2.msra.mxu0 0.0
        %1712 = vmatprep.subr.mxu0 0.0
        %1713 = vmatpush2.msra.mxu0 0.0
        %1714 = vmatprep.subr.mxu0 0.0
        %1715 = vmatpush2.msra.mxu0 0.0
        %1716 = vmatprep.subr.mxu0 0.0
        %1717 = vmatpush2.msra.mxu0 0.0
        %1718 = vmatprep.subr.mxu0 0.0
        %1719 = vmatpush2.msra.mxu0 0.0
        %1720 = vmatprep.subr.mxu0 0.0
        %1721 = vmatpush2.msra.mxu0 0.0
        %1722 = vmatprep.subr.mxu0 0.0
        %1723 = vmatpush2.msra.mxu0 0.0
        %1724 = vmatprep.subr.mxu0 0.0
        %1725 = vmatpush2.msra.mxu0 0.0
        %1726 = vmatprep.subr.mxu0 0.0
        %1727 = vmatpush2.msra.mxu0 0.0
        %1728 = vmatprep.subr.mxu0 0.0
        %1729 = vmatpush2.msra.mxu0 0.0
        %1730 = vmatprep.subr.mxu0 0.0
        %1731 = vmatpush2.msra.mxu0 0.0
        %1732 = vmatprep.mubr.f32.mxu0 0.0
        %1733 = vmatmul.mubr.f32.gmra.mxu0 %v1453
        %v1734 = vpop.f32.mrf.mxu0
        %v1735 = vadd.f32 %v1664, %v1734
        %v1736 = vpop.f32.mrf.mxu0
        %v1737 = vadd.f32 %v1666, %v1736
        %1738 = vdwg.mxu0
        %1739 = vmatprep.subr.mxu0 0.0
        %1740 = vmatpush1.msra.mxu0 %v1283
        %1741 = vmatprep.subr.mxu0 0.0
        %1742 = vmatpush1.msra.mxu0 %v1278
        %1743 = vmatprep.subr.mxu0 0.0
        %1744 = vmatpush1.msra.mxu0 %v1273
        %1745 = vmatprep.subr.mxu0 0.0
        %1746 = vmatpush1.msra.mxu0 %v1268
        %1747 = vmatprep.subr.mxu0 0.0
        %1748 = vmatpush1.msra.mxu0 %v1263
        %1749 = vmatprep.subr.mxu0 0.0
        %1750 = vmatpush1.msra.mxu0 %v1258
        %1751 = vmatprep.subr.mxu0 0.0
        %1752 = vmatpush1.msra.mxu0 %v1253
        %1753 = vmatprep.subr.mxu0 0.0
        %1754 = vmatpush1.msra.mxu0 %v1248
        %1755 = vmatprep.subr.mxu0 0.0
        %1756 = vmatpush1.msra.mxu0 %v1243
        %1757 = vmatprep.subr.mxu0 0.0
        %1758 = vmatpush1.msra.mxu0 %v1238
        %1759 = vmatprep.subr.mxu0 0.0
        %1760 = vmatpush1.msra.mxu0 %v1233
        %1761 = vmatprep.subr.mxu0 0.0
        %1762 = vmatpush1.msra.mxu0 %v1228
        %1763 = vmatprep.subr.mxu0 0.0
        %1764 = vmatpush1.msra.mxu0 %v1223
        %1765 = vmatprep.subr.mxu0 0.0
        %1766 = vmatpush1.msra.mxu0 %v1218
        %1767 = vmatprep.subr.mxu0 0.0
        %1768 = vmatpush1.msra.mxu0 %v1213
        %1769 = vmatprep.subr.mxu0 0.0
        %1770 = vmatpush1.msra.mxu0 %v1208
        %1771 = vmatprep.subr.mxu0 0.0
        %1772 = vmatpush2.msra.mxu0 %v1363
        %1773 = vmatprep.subr.mxu0 0.0
        %1774 = vmatpush2.msra.mxu0 %v1358
        %1775 = vmatprep.subr.mxu0 0.0
        %1776 = vmatpush2.msra.mxu0 %v1353
        %1777 = vmatprep.subr.mxu0 0.0
        %1778 = vmatpush2.msra.mxu0 %v1348
        %1779 = vmatprep.subr.mxu0 0.0
        %1780 = vmatpush2.msra.mxu0 %v1343
        %1781 = vmatprep.subr.mxu0 0.0
        %1782 = vmatpush2.msra.mxu0 %v1338
        %1783 = vmatprep.subr.mxu0 0.0
        %1784 = vmatpush2.msra.mxu0 %v1333
        %1785 = vmatprep.subr.mxu0 0.0
        %1786 = vmatpush2.msra.mxu0 %v1328
        %1787 = vmatprep.subr.mxu0 0.0
        %1788 = vmatpush2.msra.mxu0 %v1323
        %1789 = vmatprep.subr.mxu0 0.0
        %1790 = vmatpush2.msra.mxu0 %v1318
        %1791 = vmatprep.subr.mxu0 0.0
        %1792 = vmatpush2.msra.mxu0 %v1313
        %1793 = vmatprep.subr.mxu0 0.0
        %1794 = vmatpush2.msra.mxu0 %v1308
        %1795 = vmatprep.subr.mxu0 0.0
        %1796 = vmatpush2.msra.mxu0 %v1303
        %1797 = vmatprep.subr.mxu0 0.0
        %1798 = vmatpush2.msra.mxu0 %v1298
        %1799 = vmatprep.subr.mxu0 0.0
        %1800 = vmatpush2.msra.mxu0 %v1293
        %1801 = vmatprep.subr.mxu0 0.0
        %1802 = vmatpush2.msra.mxu0 %v1288
        %1803 = vmatprep.mubr.f32.mxu0 %v1202
        %1804 = vmatmul.mubr.f32.gmra.mxu0 %v1201
        %v1805 = vpop.f32.mrf.mxu0
        %v1806 = vadd.f32 %v1445, %v1805
        %v1807 = vpop.f32.mrf.mxu0
        %1808 = vdwg.mxu0
        %1809 = vmatprep.subr.mxu0 0.0
        %1810 = vmatpush1.msra.mxu0 0.0
        %1811 = vmatprep.subr.mxu0 0.0
        %1812 = vmatpush1.msra.mxu0 0.0
        %1813 = vmatprep.subr.mxu0 0.0
        %1814 = vmatpush1.msra.mxu0 0.0
        %1815 = vmatprep.subr.mxu0 0.0
        %1816 = vmatpush1.msra.mxu0 0.0
        %1817 = vmatprep.subr.mxu0 0.0
        %1818 = vmatpush1.msra.mxu0 %v1423
        %1819 = vmatprep.subr.mxu0 0.0
        %1820 = vmatpush1.msra.mxu0 %v1418
        %1821 = vmatprep.subr.mxu0 0.0
        %1822 = vmatpush1.msra.mxu0 %v1413
        %1823 = vmatprep.subr.mxu0 0.0
        %1824 = vmatpush1.msra.mxu0 %v1408
        %1825 = vmatprep.subr.mxu0 0.0
        %1826 = vmatpush1.msra.mxu0 %v1403
        %1827 = vmatprep.subr.mxu0 0.0
        %1828 = vmatpush1.msra.mxu0 %v1398
        %1829 = vmatprep.subr.mxu0 0.0
        %1830 = vmatpush1.msra.mxu0 %v1393
        %1831 = vmatprep.subr.mxu0 0.0
        %1832 = vmatpush1.msra.mxu0 %v1388
        %1833 = vmatprep.subr.mxu0 0.0
        %1834 = vmatpush1.msra.mxu0 %v1383
        %1835 = vmatprep.subr.mxu0 0.0
        %1836 = vmatpush1.msra.mxu0 %v1378
        %1837 = vmatprep.subr.mxu0 0.0
        %1838 = vmatpush1.msra.mxu0 %v1373
        %1839 = vmatprep.subr.mxu0 0.0
        %1840 = vmatpush1.msra.mxu0 %v1368
        %1841 = vmatprep.subr.mxu0 0.0
        %1842 = vmatpush2.msra.mxu0 0.0
        %1843 = vmatprep.subr.mxu0 0.0
        %1844 = vmatpush2.msra.mxu0 0.0
        %1845 = vmatprep.subr.mxu0 0.0
        %1846 = vmatpush2.msra.mxu0 0.0
        %1847 = vmatprep.subr.mxu0 0.0
        %1848 = vmatpush2.msra.mxu0 0.0
        %1849 = vmatprep.subr.mxu0 0.0
        %1850 = vmatpush2.msra.mxu0 0.0
        %1851 = vmatprep.subr.mxu0 0.0
        %1852 = vmatpush2.msra.mxu0 0.0
        %1853 = vmatprep.subr.mxu0 0.0
        %1854 = vmatpush2.msra.mxu0 0.0
        %1855 = vmatprep.subr.mxu0 0.0
        %1856 = vmatpush2.msra.mxu0 0.0
        %1857 = vmatprep.subr.mxu0 0.0
        %1858 = vmatpush2.msra.mxu0 0.0
        %1859 = vmatprep.subr.mxu0 0.0
        %1860 = vmatpush2.msra.mxu0 0.0
        %1861 = vmatprep.subr.mxu0 0.0
        %1862 = vmatpush2.msra.mxu0 0.0
        %1863 = vmatprep.subr.mxu0 0.0
        %1864 = vmatpush2.msra.mxu0 0.0
        %1865 = vmatprep.subr.mxu0 0.0
        %1866 = vmatpush2.msra.mxu0 0.0
        %1867 = vmatprep.subr.mxu0 0.0
        %1868 = vmatpush2.msra.mxu0 0.0
        %1869 = vmatprep.subr.mxu0 0.0
        %1870 = vmatpush2.msra.mxu0 0.0
        %1871 = vmatprep.subr.mxu0 0.0
        %1872 = vmatpush2.msra.mxu0 0.0
        %1873 = vmatprep.mubr.f32.mxu0 0.0
        %1874 = vmatmul.mubr.f32.gmra.mxu0 %v1453
        %v1875 = vpop.f32.mrf.mxu0
        %v1876 = vadd.f32 %v1806, %v1875
        %v1877 = vpop.f32.mrf.mxu0
        %1878 = vdwg.mxu0
        %v1879 = vmul.f32 %v1593, %v716
        %v1880 = vmul.f32 %v1595, %v716
        %v1881 = vmul.f32 %v1735, %v716
        %v1882 = vmul.f32 %v1737, %v716
        %v1883 = vmul.f32 %v1876, %v716
        %v1884 = vmul.f32 %v1879, %v618
        %v1886 = vsel %vm720, %v1879, 0
        %1888 = vmatprep.subr.mxu0 0.0
        %1889 = vmatpush1.msra.mxu0 0.0
        %1890 = vmatprep.subr.mxu0 0.0
        %1891 = vmatpush1.msra.mxu0 0.0
        %1892 = vmatprep.subr.mxu0 0.0
        %1893 = vmatpush1.msra.mxu0 0.0
        %1894 = vmatprep.subr.mxu0 0.0
        %1895 = vmatpush1.msra.mxu0 0.0
        %1896 = vmatprep.subr.mxu0 0.0
        %1897 = vmatpush1.msra.mxu0 0.0
        %1898 = vmatprep.subr.mxu0 0.0
        %1899 = vmatpush1.msra.mxu0 0.0
        %1900 = vmatprep.subr.mxu0 0.0
        %1901 = vmatpush1.msra.mxu0 0.0
        %1902 = vmatprep.subr.mxu0 0.0
        %1903 = vmatpush1.msra.mxu0 0.0
        %1904 = vmatprep.subr.mxu0 0.0
        %1905 = vmatpush1.msra.mxu0 %v627
        %1906 = vmatprep.subr.mxu0 0.0
        %1907 = vmatpush1.msra.mxu0 %v626
        %1908 = vmatprep.subr.mxu0 0.0
        %1909 = vmatpush1.msra.mxu0 %v625
        %1910 = vmatprep.subr.mxu0 0.0
        %1911 = vmatpush1.msra.mxu0 %v624
        %1912 = vmatprep.subr.mxu0 0.0
        %1913 = vmatpush1.msra.mxu0 %v623
        %1914 = vmatprep.subr.mxu0 0.0
        %1915 = vmatpush1.msra.mxu0 %v622
        %1916 = vmatprep.subr.mxu0 0.0
        %1917 = vmatpush1.msra.mxu0 %v621
        %1918 = vmatprep.subr.mxu0 0.0
        %1919 = vmatpush1.msra.mxu0 %v620
        %1920 = vmatprep.subr.mxu0 0.0
        %1921 = vmatpush2.msra.mxu0 0.0
        %1922 = vmatprep.subr.mxu0 0.0
        %1923 = vmatpush2.msra.mxu0 0.0
        %1924 = vmatprep.subr.mxu0 0.0
        %1925 = vmatpush2.msra.mxu0 0.0
        %1926 = vmatprep.subr.mxu0 0.0
        %1927 = vmatpush2.msra.mxu0 0.0
        %1928 = vmatprep.subr.mxu0 0.0
        %1929 = vmatpush2.msra.mxu0 0.0
        %1930 = vmatprep.subr.mxu0 0.0
        %1931 = vmatpush2.msra.mxu0 0.0
        %1932 = vmatprep.subr.mxu0 0.0
        %1933 = vmatpush2.msra.mxu0 0.0
        %1934 = vmatprep.subr.mxu0 0.0
        %1935 = vmatpush2.msra.mxu0 0.0
        %1936 = vmatprep.subr.mxu0 0.0
        %1937 = vmatpush2.msra.mxu0 0.0
        %1938 = vmatprep.subr.mxu0 0.0
        %1939 = vmatpush2.msra.mxu0 0.0
        %1940 = vmatprep.subr.mxu0 0.0
        %1941 = vmatpush2.msra.mxu0 0.0
        %1942 = vmatprep.subr.mxu0 0.0
        %1943 = vmatpush2.msra.mxu0 0.0
        %1944 = vmatprep.subr.mxu0 0.0
        %1945 = vmatpush2.msra.mxu0 0.0
        %1946 = vmatprep.subr.mxu0 0.0
        %1947 = vmatpush2.msra.mxu0 0.0
        %1948 = vmatprep.subr.mxu0 0.0
        %1949 = vmatpush2.msra.mxu0 0.0
        %1950 = vmatprep.subr.mxu0 0.0
        %1951 = vmatpush2.msra.mxu0 0.0
        %1952 = vmatprep.mubr.f32.mxu0 0.0
        %1953 = vmatmul.mubr.f32.gmra.mxu0 %v1886
        %v1954 = vpop.f32.mrf.mxu0
        %v1955 = vadd.f32 0.0, %v1954
        %v1956 = vpop.f32.mrf.mxu0
        %1957 = vdwg.mxu0
        %v1958 = vmul.f32 %v1955, %v619
        %v1959 = vadd.f32 %v1884, %v1958
        %v1960 = vmul.f32 %v1881, %v798
        %1962 = vrot.lane.b32.xlu0 %v1881, 64
        %v1963 = vpop.permute.xlu0 %1962
        %v1964 = vsel %vm720, %v1963, 0
        %1966 = vmatprep.subr.mxu0 0.0
        %1967 = vmatpush1.msra.mxu0 0.0
        %1968 = vmatprep.subr.mxu0 0.0
        %1969 = vmatpush1.msra.mxu0 0.0
        %1970 = vmatprep.subr.mxu0 0.0
        %1971 = vmatpush1.msra.mxu0 0.0
        %1972 = vmatprep.subr.mxu0 0.0
        %1973 = vmatpush1.msra.mxu0 0.0
        %1974 = vmatprep.subr.mxu0 0.0
        %1975 = vmatpush1.msra.mxu0 0.0
        %1976 = vmatprep.subr.mxu0 0.0
        %1977 = vmatpush1.msra.mxu0 0.0
        %1978 = vmatprep.subr.mxu0 0.0
        %1979 = vmatpush1.msra.mxu0 0.0
        %1980 = vmatprep.subr.mxu0 0.0
        %1981 = vmatpush1.msra.mxu0 0.0
        %1982 = vmatprep.subr.mxu0 0.0
        %1983 = vmatpush1.msra.mxu0 %v627
        %1984 = vmatprep.subr.mxu0 0.0
        %1985 = vmatpush1.msra.mxu0 %v626
        %1986 = vmatprep.subr.mxu0 0.0
        %1987 = vmatpush1.msra.mxu0 %v625
        %1988 = vmatprep.subr.mxu0 0.0
        %1989 = vmatpush1.msra.mxu0 %v624
        %1990 = vmatprep.subr.mxu0 0.0
        %1991 = vmatpush1.msra.mxu0 %v623
        %1992 = vmatprep.subr.mxu0 0.0
        %1993 = vmatpush1.msra.mxu0 %v622
        %1994 = vmatprep.subr.mxu0 0.0
        %1995 = vmatpush1.msra.mxu0 %v621
        %1996 = vmatprep.subr.mxu0 0.0
        %1997 = vmatpush1.msra.mxu0 %v620
        %1998 = vmatprep.subr.mxu0 0.0
        %1999 = vmatpush2.msra.mxu0 0.0
        %2000 = vmatprep.subr.mxu0 0.0
        %2001 = vmatpush2.msra.mxu0 0.0
        %2002 = vmatprep.subr.mxu0 0.0
        %2003 = vmatpush2.msra.mxu0 0.0
        %2004 = vmatprep.subr.mxu0 0.0
        %2005 = vmatpush2.msra.mxu0 0.0
        %2006 = vmatprep.subr.mxu0 0.0
        %2007 = vmatpush2.msra.mxu0 0.0
        %2008 = vmatprep.subr.mxu0 0.0
        %2009 = vmatpush2.msra.mxu0 0.0
        %2010 = vmatprep.subr.mxu0 0.0
        %2011 = vmatpush2.msra.mxu0 0.0
        %2012 = vmatprep.subr.mxu0 0.0
        %2013 = vmatpush2.msra.mxu0 0.0
        %2014 = vmatprep.subr.mxu0 0.0
        %2015 = vmatpush2.msra.mxu0 0.0
        %2016 = vmatprep.subr.mxu0 0.0
        %2017 = vmatpush2.msra.mxu0 0.0
        %2018 = vmatprep.subr.mxu0 0.0
        %2019 = vmatpush2.msra.mxu0 0.0
        %2020 = vmatprep.subr.mxu0 0.0
        %2021 = vmatpush2.msra.mxu0 0.0
        %2022 = vmatprep.subr.mxu0 0.0
        %2023 = vmatpush2.msra.mxu0 0.0
        %2024 = vmatprep.subr.mxu0 0.0
        %2025 = vmatpush2.msra.mxu0 0.0
        %2026 = vmatprep.subr.mxu0 0.0
        %2027 = vmatpush2.msra.mxu0 0.0
        %2028 = vmatprep.subr.mxu0 0.0
        %2029 = vmatpush2.msra.mxu0 0.0
        %2030 = vmatprep.mubr.f32.mxu0 0.0
        %2031 = vmatmul.mubr.f32.gmra.mxu0 %v1964
        %v2032 = vpop.f32.mrf.mxu0
        %v2033 = vadd.f32 0.0, %v2032
        %v2034 = vpop.f32.mrf.mxu0
        %2035 = vdwg.mxu0
        %v2036 = vmul.f32 %v2033, %v619
        %2038 = vrot.lane.b32.xlu0 %v2036, 64
        %v2039 = vpop.permute.xlu0 %2038
        %v2041 = vadd.f32 %v1960, %v2039
        %2043 = vrot.lane.b32.xlu0 %v2041, 64
        %v2044 = vpop.permute.xlu0 %2043
        %v2046 = vsel %vm720, %v1959, 0
        %v2048 = vsel %vm720, %v2044, 0
        %2050 = vmatprep.subr.mxu0 0.0
        %2051 = vmatpush1.xpose.msra.mxu0 0.0
        %2052 = vmatprep.subr.mxu0 0.0
        %2053 = vmatpush1.xpose.msra.mxu0 0.0
        %2054 = vmatprep.subr.mxu0 0.0
        %2055 = vmatpush1.xpose.msra.mxu0 0.0
        %2056 = vmatprep.subr.mxu0 0.0
        %2057 = vmatpush1.xpose.msra.mxu0 0.0
        %2058 = vmatprep.subr.mxu0 0.0
        %2059 = vmatpush1.xpose.msra.mxu0 0.0
        %2060 = vmatprep.subr.mxu0 0.0
        %2061 = vmatpush1.xpose.msra.mxu0 0.0
        %2062 = vmatprep.subr.mxu0 0.0
        %2063 = vmatpush1.xpose.msra.mxu0 0.0
        %2064 = vmatprep.subr.mxu0 0.0
        %2065 = vmatpush1.xpose.msra.mxu0 0.0
        %2066 = vmatprep.subr.mxu0 0.0
        %2067 = vmatpush1.xpose.msra.mxu0 0.0
        %2068 = vmatprep.subr.mxu0 0.0
        %2069 = vmatpush1.xpose.msra.mxu0 0.0
        %2070 = vmatprep.subr.mxu0 0.0
        %2071 = vmatpush1.xpose.msra.mxu0 0.0
        %2072 = vmatprep.subr.mxu0 0.0
        %2073 = vmatpush1.xpose.msra.mxu0 0.0
        %2074 = vmatprep.subr.mxu0 0.0
        %2075 = vmatpush1.xpose.msra.mxu0 0.0
        %2076 = vmatprep.subr.mxu0 0.0
        %2077 = vmatpush1.xpose.msra.mxu0 0.0
        %2078 = vmatprep.subr.mxu0 0.0
        %2079 = vmatpush1.xpose.msra.mxu0 0.0
        %2080 = vmatprep.subr.mxu0 0.0
        %2081 = vmatpush1.xpose.msra.mxu0 %v2048
        %2082 = vmatprep.subr.mxu0 0.0
        %2083 = vmatpush2.xpose.msra.mxu0 0.0
        %2084 = vmatprep.subr.mxu0 0.0
        %2085 = vmatpush2.xpose.msra.mxu0 0.0
        %2086 = vmatprep.subr.mxu0 0.0
        %2087 = vmatpush2.xpose.msra.mxu0 0.0
        %2088 = vmatprep.subr.mxu0 0.0
        %2089 = vmatpush2.xpose.msra.mxu0 0.0
        %2090 = vmatprep.subr.mxu0 0.0
        %2091 = vmatpush2.xpose.msra.mxu0 0.0
        %2092 = vmatprep.subr.mxu0 0.0
        %2093 = vmatpush2.xpose.msra.mxu0 0.0
        %2094 = vmatprep.subr.mxu0 0.0
        %2095 = vmatpush2.xpose.msra.mxu0 0.0
        %2096 = vmatprep.subr.mxu0 0.0
        %2097 = vmatpush2.xpose.msra.mxu0 0.0
        %2098 = vmatprep.subr.mxu0 0.0
        %2099 = vmatpush2.xpose.msra.mxu0 0.0
        %2100 = vmatprep.subr.mxu0 0.0
        %2101 = vmatpush2.xpose.msra.mxu0 0.0
        %2102 = vmatprep.subr.mxu0 0.0
        %2103 = vmatpush2.xpose.msra.mxu0 0.0
        %2104 = vmatprep.subr.mxu0 0.0
        %2105 = vmatpush2.xpose.msra.mxu0 0.0
        %2106 = vmatprep.subr.mxu0 0.0
        %2107 = vmatpush2.xpose.msra.mxu0 0.0
        %2108 = vmatprep.subr.mxu0 0.0
        %2109 = vmatpush2.xpose.msra.mxu0 0.0
        %2110 = vmatprep.subr.mxu0 0.0
        %2111 = vmatpush2.xpose.msra.mxu0 0.0
        %2112 = vmatprep.subr.mxu0 0.0
        %2113 = vmatpush2.xpose.msra.mxu0 0.0
        %2114 = vmatprep.mubr.f32.mxu0 0.0
        %2115 = vmatmul.mubr.f32.gmra.mxu0 %v2046
        %v2116 = vpop.f32.mrf.mxu0
        %v2117 = vadd.f32 0.0, %v2116
        %v2118 = vpop.f32.mrf.mxu0
        %2119 = vdwg.mxu0
        %v2120 = vmul.f32 %v2117, 0.125
        %v2121 = vmul.f32 %v1879, %v798
        %2122 = vrot.lane.b32.xlu0 %v1879, 64
        %v2123 = vpop.permute.xlu0 %2122
        %v2124 = vsel %vm720, %v2123, 0
        %2126 = vmatprep.subr.mxu0 0.0
        %2127 = vmatpush1.msra.mxu0 0.0
        %2128 = vmatprep.subr.mxu0 0.0
        %2129 = vmatpush1.msra.mxu0 0.0
        %2130 = vmatprep.subr.mxu0 0.0
        %2131 = vmatpush1.msra.mxu0 0.0
        %2132 = vmatprep.subr.mxu0 0.0
        %2133 = vmatpush1.msra.mxu0 0.0
        %2134 = vmatprep.subr.mxu0 0.0
        %2135 = vmatpush1.msra.mxu0 0.0
        %2136 = vmatprep.subr.mxu0 0.0
        %2137 = vmatpush1.msra.mxu0 0.0
        %2138 = vmatprep.subr.mxu0 0.0
        %2139 = vmatpush1.msra.mxu0 0.0
        %2140 = vmatprep.subr.mxu0 0.0
        %2141 = vmatpush1.msra.mxu0 0.0
        %2142 = vmatprep.subr.mxu0 0.0
        %2143 = vmatpush1.msra.mxu0 %v627
        %2144 = vmatprep.subr.mxu0 0.0
        %2145 = vmatpush1.msra.mxu0 %v626
        %2146 = vmatprep.subr.mxu0 0.0
        %2147 = vmatpush1.msra.mxu0 %v625
        %2148 = vmatprep.subr.mxu0 0.0
        %2149 = vmatpush1.msra.mxu0 %v624
        %2150 = vmatprep.subr.mxu0 0.0
        %2151 = vmatpush1.msra.mxu0 %v623
        %2152 = vmatprep.subr.mxu0 0.0
        %2153 = vmatpush1.msra.mxu0 %v622
        %2154 = vmatprep.subr.mxu0 0.0
        %2155 = vmatpush1.msra.mxu0 %v621
        %2156 = vmatprep.subr.mxu0 0.0
        %2157 = vmatpush1.msra.mxu0 %v620
        %2158 = vmatprep.subr.mxu0 0.0
        %2159 = vmatpush2.msra.mxu0 0.0
        %2160 = vmatprep.subr.mxu0 0.0
        %2161 = vmatpush2.msra.mxu0 0.0
        %2162 = vmatprep.subr.mxu0 0.0
        %2163 = vmatpush2.msra.mxu0 0.0
        %2164 = vmatprep.subr.mxu0 0.0
        %2165 = vmatpush2.msra.mxu0 0.0
        %2166 = vmatprep.subr.mxu0 0.0
        %2167 = vmatpush2.msra.mxu0 0.0
        %2168 = vmatprep.subr.mxu0 0.0
        %2169 = vmatpush2.msra.mxu0 0.0
        %2170 = vmatprep.subr.mxu0 0.0
        %2171 = vmatpush2.msra.mxu0 0.0
        %2172 = vmatprep.subr.mxu0 0.0
        %2173 = vmatpush2.msra.mxu0 0.0
        %2174 = vmatprep.subr.mxu0 0.0
        %2175 = vmatpush2.msra.mxu0 0.0
        %2176 = vmatprep.subr.mxu0 0.0
        %2177 = vmatpush2.msra.mxu0 0.0
        %2178 = vmatprep.subr.mxu0 0.0
        %2179 = vmatpush2.msra.mxu0 0.0
        %2180 = vmatprep.subr.mxu0 0.0
        %2181 = vmatpush2.msra.mxu0 0.0
        %2182 = vmatprep.subr.mxu0 0.0
        %2183 = vmatpush2.msra.mxu0 0.0
        %2184 = vmatprep.subr.mxu0 0.0
        %2185 = vmatpush2.msra.mxu0 0.0
        %2186 = vmatprep.subr.mxu0 0.0
        %2187 = vmatpush2.msra.mxu0 0.0
        %2188 = vmatprep.subr.mxu0 0.0
        %2189 = vmatpush2.msra.mxu0 0.0
        %2190 = vmatprep.mubr.f32.mxu0 0.0
        %2191 = vmatmul.mubr.f32.gmra.mxu0 %v2124
        %v2192 = vpop.f32.mrf.mxu0
        %v2193 = vadd.f32 0.0, %v2192
        %v2194 = vpop.f32.mrf.mxu0
        %2195 = vdwg.mxu0
        %v2196 = vmul.f32 %v2193, %v619
        %2198 = vrot.lane.b32.xlu0 %v2196, 64
        %v2199 = vpop.permute.xlu0 %2198
        %v2201 = vadd.f32 %v2121, %v2199
        %v2202 = vmul.f32 %v1882, %v618
        %v2204 = vsel %vm720, %v1882, 0
        %2206 = vmatprep.subr.mxu0 0.0
        %2207 = vmatpush1.msra.mxu0 0.0
        %2208 = vmatprep.subr.mxu0 0.0
        %2209 = vmatpush1.msra.mxu0 0.0
        %2210 = vmatprep.subr.mxu0 0.0
        %2211 = vmatpush1.msra.mxu0 0.0
        %2212 = vmatprep.subr.mxu0 0.0
        %2213 = vmatpush1.msra.mxu0 0.0
        %2214 = vmatprep.subr.mxu0 0.0
        %2215 = vmatpush1.msra.mxu0 0.0
        %2216 = vmatprep.subr.mxu0 0.0
        %2217 = vmatpush1.msra.mxu0 0.0
        %2218 = vmatprep.subr.mxu0 0.0
        %2219 = vmatpush1.msra.mxu0 0.0
        %2220 = vmatprep.subr.mxu0 0.0
        %2221 = vmatpush1.msra.mxu0 0.0
        %2222 = vmatprep.subr.mxu0 0.0
        %2223 = vmatpush1.msra.mxu0 %v627
        %2224 = vmatprep.subr.mxu0 0.0
        %2225 = vmatpush1.msra.mxu0 %v626
        %2226 = vmatprep.subr.mxu0 0.0
        %2227 = vmatpush1.msra.mxu0 %v625
        %2228 = vmatprep.subr.mxu0 0.0
        %2229 = vmatpush1.msra.mxu0 %v624
        %2230 = vmatprep.subr.mxu0 0.0
        %2231 = vmatpush1.msra.mxu0 %v623
        %2232 = vmatprep.subr.mxu0 0.0
        %2233 = vmatpush1.msra.mxu0 %v622
        %2234 = vmatprep.subr.mxu0 0.0
        %2235 = vmatpush1.msra.mxu0 %v621
        %2236 = vmatprep.subr.mxu0 0.0
        %2237 = vmatpush1.msra.mxu0 %v620
        %2238 = vmatprep.subr.mxu0 0.0
        %2239 = vmatpush2.msra.mxu0 0.0
        %2240 = vmatprep.subr.mxu0 0.0
        %2241 = vmatpush2.msra.mxu0 0.0
        %2242 = vmatprep.subr.mxu0 0.0
        %2243 = vmatpush2.msra.mxu0 0.0
        %2244 = vmatprep.subr.mxu0 0.0
        %2245 = vmatpush2.msra.mxu0 0.0
        %2246 = vmatprep.subr.mxu0 0.0
        %2247 = vmatpush2.msra.mxu0 0.0
        %2248 = vmatprep.subr.mxu0 0.0
        %2249 = vmatpush2.msra.mxu0 0.0
        %2250 = vmatprep.subr.mxu0 0.0
        %2251 = vmatpush2.msra.mxu0 0.0
        %2252 = vmatprep.subr.mxu0 0.0
        %2253 = vmatpush2.msra.mxu0 0.0
        %2254 = vmatprep.subr.mxu0 0.0
        %2255 = vmatpush2.msra.mxu0 0.0
        %2256 = vmatprep.subr.mxu0 0.0
        %2257 = vmatpush2.msra.mxu0 0.0
        %2258 = vmatprep.subr.mxu0 0.0
        %2259 = vmatpush2.msra.mxu0 0.0
        %2260 = vmatprep.subr.mxu0 0.0
        %2261 = vmatpush2.msra.mxu0 0.0
        %2262 = vmatprep.subr.mxu0 0.0
        %2263 = vmatpush2.msra.mxu0 0.0
        %2264 = vmatprep.subr.mxu0 0.0
        %2265 = vmatpush2.msra.mxu0 0.0
        %2266 = vmatprep.subr.mxu0 0.0
        %2267 = vmatpush2.msra.mxu0 0.0
        %2268 = vmatprep.subr.mxu0 0.0
        %2269 = vmatpush2.msra.mxu0 0.0
        %2270 = vmatprep.mubr.f32.mxu0 0.0
        %2271 = vmatmul.mubr.f32.gmra.mxu0 %v2204
        %v2272 = vpop.f32.mrf.mxu0
        %v2273 = vadd.f32 0.0, %v2272
        %v2274 = vpop.f32.mrf.mxu0
        %2275 = vdwg.mxu0
        %v2276 = vmul.f32 %v2273, %v619
        %v2277 = vadd.f32 %v2202, %v2276
        %2279 = vrot.lane.b32.xlu0 %v2201, 64
        %v2280 = vpop.permute.xlu0 %2279
        %v2281 = vsel %vm720, %v2280, 0
        %v2284 = vsel %vm720, %v2277, 0
        %2286 = vmatprep.subr.mxu0 0.0
        %2287 = vmatpush1.xpose.msra.mxu0 0.0
        %2288 = vmatprep.subr.mxu0 0.0
        %2289 = vmatpush1.xpose.msra.mxu0 0.0
        %2290 = vmatprep.subr.mxu0 0.0
        %2291 = vmatpush1.xpose.msra.mxu0 0.0
        %2292 = vmatprep.subr.mxu0 0.0
        %2293 = vmatpush1.xpose.msra.mxu0 0.0
        %2294 = vmatprep.subr.mxu0 0.0
        %2295 = vmatpush1.xpose.msra.mxu0 0.0
        %2296 = vmatprep.subr.mxu0 0.0
        %2297 = vmatpush1.xpose.msra.mxu0 0.0
        %2298 = vmatprep.subr.mxu0 0.0
        %2299 = vmatpush1.xpose.msra.mxu0 0.0
        %2300 = vmatprep.subr.mxu0 0.0
        %2301 = vmatpush1.xpose.msra.mxu0 0.0
        %2302 = vmatprep.subr.mxu0 0.0
        %2303 = vmatpush1.xpose.msra.mxu0 0.0
        %2304 = vmatprep.subr.mxu0 0.0
        %2305 = vmatpush1.xpose.msra.mxu0 0.0
        %2306 = vmatprep.subr.mxu0 0.0
        %2307 = vmatpush1.xpose.msra.mxu0 0.0
        %2308 = vmatprep.subr.mxu0 0.0
        %2309 = vmatpush1.xpose.msra.mxu0 0.0
        %2310 = vmatprep.subr.mxu0 0.0
        %2311 = vmatpush1.xpose.msra.mxu0 0.0
        %2312 = vmatprep.subr.mxu0 0.0
        %2313 = vmatpush1.xpose.msra.mxu0 0.0
        %2314 = vmatprep.subr.mxu0 0.0
        %2315 = vmatpush1.xpose.msra.mxu0 0.0
        %2316 = vmatprep.subr.mxu0 0.0
        %2317 = vmatpush1.xpose.msra.mxu0 %v2284
        %2318 = vmatprep.subr.mxu0 0.0
        %2319 = vmatpush2.xpose.msra.mxu0 0.0
        %2320 = vmatprep.subr.mxu0 0.0
        %2321 = vmatpush2.xpose.msra.mxu0 0.0
        %2322 = vmatprep.subr.mxu0 0.0
        %2323 = vmatpush2.xpose.msra.mxu0 0.0
        %2324 = vmatprep.subr.mxu0 0.0
        %2325 = vmatpush2.xpose.msra.mxu0 0.0
        %2326 = vmatprep.subr.mxu0 0.0
        %2327 = vmatpush2.xpose.msra.mxu0 0.0
        %2328 = vmatprep.subr.mxu0 0.0
        %2329 = vmatpush2.xpose.msra.mxu0 0.0
        %2330 = vmatprep.subr.mxu0 0.0
        %2331 = vmatpush2.xpose.msra.mxu0 0.0
        %2332 = vmatprep.subr.mxu0 0.0
        %2333 = vmatpush2.xpose.msra.mxu0 0.0
        %2334 = vmatprep.subr.mxu0 0.0
        %2335 = vmatpush2.xpose.msra.mxu0 0.0
        %2336 = vmatprep.subr.mxu0 0.0
        %2337 = vmatpush2.xpose.msra.mxu0 0.0
        %2338 = vmatprep.subr.mxu0 0.0
        %2339 = vmatpush2.xpose.msra.mxu0 0.0
        %2340 = vmatprep.subr.mxu0 0.0
        %2341 = vmatpush2.xpose.msra.mxu0 0.0
        %2342 = vmatprep.subr.mxu0 0.0
        %2343 = vmatpush2.xpose.msra.mxu0 0.0
        %2344 = vmatprep.subr.mxu0 0.0
        %2345 = vmatpush2.xpose.msra.mxu0 0.0
        %2346 = vmatprep.subr.mxu0 0.0
        %2347 = vmatpush2.xpose.msra.mxu0 0.0
        %2348 = vmatprep.subr.mxu0 0.0
        %2349 = vmatpush2.xpose.msra.mxu0 0.0
        %2350 = vmatprep.mubr.f32.mxu0 0.0
        %2351 = vmatmul.mubr.f32.gmra.mxu0 %v2281
        %v2352 = vpop.f32.mrf.mxu0
        %v2353 = vadd.f32 0.0, %v2352
        %v2354 = vpop.f32.mrf.mxu0
        %2355 = vdwg.mxu0
        %v2356 = vmul.f32 %v2353, 0.125
        %v2357 = vmul.f32 %v1880, %v618
        %v2359 = vsel %vm720, %v1880, 0
        %2361 = vmatprep.subr.mxu0 0.0
        %2362 = vmatpush1.msra.mxu0 0.0
        %2363 = vmatprep.subr.mxu0 0.0
        %2364 = vmatpush1.msra.mxu0 0.0
        %2365 = vmatprep.subr.mxu0 0.0
        %2366 = vmatpush1.msra.mxu0 0.0
        %2367 = vmatprep.subr.mxu0 0.0
        %2368 = vmatpush1.msra.mxu0 0.0
        %2369 = vmatprep.subr.mxu0 0.0
        %2370 = vmatpush1.msra.mxu0 0.0
        %2371 = vmatprep.subr.mxu0 0.0
        %2372 = vmatpush1.msra.mxu0 0.0
        %2373 = vmatprep.subr.mxu0 0.0
        %2374 = vmatpush1.msra.mxu0 0.0
        %2375 = vmatprep.subr.mxu0 0.0
        %2376 = vmatpush1.msra.mxu0 0.0
        %2377 = vmatprep.subr.mxu0 0.0
        %2378 = vmatpush1.msra.mxu0 %v627
        %2379 = vmatprep.subr.mxu0 0.0
        %2380 = vmatpush1.msra.mxu0 %v626
        %2381 = vmatprep.subr.mxu0 0.0
        %2382 = vmatpush1.msra.mxu0 %v625
        %2383 = vmatprep.subr.mxu0 0.0
        %2384 = vmatpush1.msra.mxu0 %v624
        %2385 = vmatprep.subr.mxu0 0.0
        %2386 = vmatpush1.msra.mxu0 %v623
        %2387 = vmatprep.subr.mxu0 0.0
        %2388 = vmatpush1.msra.mxu0 %v622
        %2389 = vmatprep.subr.mxu0 0.0
        %2390 = vmatpush1.msra.mxu0 %v621
        %2391 = vmatprep.subr.mxu0 0.0
        %2392 = vmatpush1.msra.mxu0 %v620
        %2393 = vmatprep.subr.mxu0 0.0
        %2394 = vmatpush2.msra.mxu0 0.0
        %2395 = vmatprep.subr.mxu0 0.0
        %2396 = vmatpush2.msra.mxu0 0.0
        %2397 = vmatprep.subr.mxu0 0.0
        %2398 = vmatpush2.msra.mxu0 0.0
        %2399 = vmatprep.subr.mxu0 0.0
        %2400 = vmatpush2.msra.mxu0 0.0
        %2401 = vmatprep.subr.mxu0 0.0
        %2402 = vmatpush2.msra.mxu0 0.0
        %2403 = vmatprep.subr.mxu0 0.0
        %2404 = vmatpush2.msra.mxu0 0.0
        %2405 = vmatprep.subr.mxu0 0.0
        %2406 = vmatpush2.msra.mxu0 0.0
        %2407 = vmatprep.subr.mxu0 0.0
        %2408 = vmatpush2.msra.mxu0 0.0
        %2409 = vmatprep.subr.mxu0 0.0
        %2410 = vmatpush2.msra.mxu0 0.0
        %2411 = vmatprep.subr.mxu0 0.0
        %2412 = vmatpush2.msra.mxu0 0.0
        %2413 = vmatprep.subr.mxu0 0.0
        %2414 = vmatpush2.msra.mxu0 0.0
        %2415 = vmatprep.subr.mxu0 0.0
        %2416 = vmatpush2.msra.mxu0 0.0
        %2417 = vmatprep.subr.mxu0 0.0
        %2418 = vmatpush2.msra.mxu0 0.0
        %2419 = vmatprep.subr.mxu0 0.0
        %2420 = vmatpush2.msra.mxu0 0.0
        %2421 = vmatprep.subr.mxu0 0.0
        %2422 = vmatpush2.msra.mxu0 0.0
        %2423 = vmatprep.subr.mxu0 0.0
        %2424 = vmatpush2.msra.mxu0 0.0
        %2425 = vmatprep.mubr.f32.mxu0 0.0
        %2426 = vmatmul.mubr.f32.gmra.mxu0 %v2359
        %v2427 = vpop.f32.mrf.mxu0
        %v2428 = vadd.f32 0.0, %v2427
        %v2429 = vpop.f32.mrf.mxu0
        %2430 = vdwg.mxu0
        %v2431 = vmul.f32 %v2428, %v619
        %v2432 = vadd.f32 %v2357, %v2431
        %v2433 = vmul.f32 %v1882, %v798
        %2434 = vrot.lane.b32.xlu0 %v1882, 64
        %v2435 = vpop.permute.xlu0 %2434
        %v2436 = vsel %vm720, %v2435, 0
        %2438 = vmatprep.subr.mxu0 0.0
        %2439 = vmatpush1.msra.mxu0 0.0
        %2440 = vmatprep.subr.mxu0 0.0
        %2441 = vmatpush1.msra.mxu0 0.0
        %2442 = vmatprep.subr.mxu0 0.0
        %2443 = vmatpush1.msra.mxu0 0.0
        %2444 = vmatprep.subr.mxu0 0.0
        %2445 = vmatpush1.msra.mxu0 0.0
        %2446 = vmatprep.subr.mxu0 0.0
        %2447 = vmatpush1.msra.mxu0 0.0
        %2448 = vmatprep.subr.mxu0 0.0
        %2449 = vmatpush1.msra.mxu0 0.0
        %2450 = vmatprep.subr.mxu0 0.0
        %2451 = vmatpush1.msra.mxu0 0.0
        %2452 = vmatprep.subr.mxu0 0.0
        %2453 = vmatpush1.msra.mxu0 0.0
        %2454 = vmatprep.subr.mxu0 0.0
        %2455 = vmatpush1.msra.mxu0 %v627
        %2456 = vmatprep.subr.mxu0 0.0
        %2457 = vmatpush1.msra.mxu0 %v626
        %2458 = vmatprep.subr.mxu0 0.0
        %2459 = vmatpush1.msra.mxu0 %v625
        %2460 = vmatprep.subr.mxu0 0.0
        %2461 = vmatpush1.msra.mxu0 %v624
        %2462 = vmatprep.subr.mxu0 0.0
        %2463 = vmatpush1.msra.mxu0 %v623
        %2464 = vmatprep.subr.mxu0 0.0
        %2465 = vmatpush1.msra.mxu0 %v622
        %2466 = vmatprep.subr.mxu0 0.0
        %2467 = vmatpush1.msra.mxu0 %v621
        %2468 = vmatprep.subr.mxu0 0.0
        %2469 = vmatpush1.msra.mxu0 %v620
        %2470 = vmatprep.subr.mxu0 0.0
        %2471 = vmatpush2.msra.mxu0 0.0
        %2472 = vmatprep.subr.mxu0 0.0
        %2473 = vmatpush2.msra.mxu0 0.0
        %2474 = vmatprep.subr.mxu0 0.0
        %2475 = vmatpush2.msra.mxu0 0.0
        %2476 = vmatprep.subr.mxu0 0.0
        %2477 = vmatpush2.msra.mxu0 0.0
        %2478 = vmatprep.subr.mxu0 0.0
        %2479 = vmatpush2.msra.mxu0 0.0
        %2480 = vmatprep.subr.mxu0 0.0
        %2481 = vmatpush2.msra.mxu0 0.0
        %2482 = vmatprep.subr.mxu0 0.0
        %2483 = vmatpush2.msra.mxu0 0.0
        %2484 = vmatprep.subr.mxu0 0.0
        %2485 = vmatpush2.msra.mxu0 0.0
        %2486 = vmatprep.subr.mxu0 0.0
        %2487 = vmatpush2.msra.mxu0 0.0
        %2488 = vmatprep.subr.mxu0 0.0
        %2489 = vmatpush2.msra.mxu0 0.0
        %2490 = vmatprep.subr.mxu0 0.0
        %2491 = vmatpush2.msra.mxu0 0.0
        %2492 = vmatprep.subr.mxu0 0.0
        %2493 = vmatpush2.msra.mxu0 0.0
        %2494 = vmatprep.subr.mxu0 0.0
        %2495 = vmatpush2.msra.mxu0 0.0
        %2496 = vmatprep.subr.mxu0 0.0
        %2497 = vmatpush2.msra.mxu0 0.0
        %2498 = vmatprep.subr.mxu0 0.0
        %2499 = vmatpush2.msra.mxu0 0.0
        %2500 = vmatprep.subr.mxu0 0.0
        %2501 = vmatpush2.msra.mxu0 0.0
        %2502 = vmatprep.mubr.f32.mxu0 0.0
        %2503 = vmatmul.mubr.f32.gmra.mxu0 %v2436
        %v2504 = vpop.f32.mrf.mxu0
        %v2505 = vadd.f32 0.0, %v2504
        %v2506 = vpop.f32.mrf.mxu0
        %2507 = vdwg.mxu0
        %v2508 = vmul.f32 %v2505, %v619
        %2510 = vrot.lane.b32.xlu0 %v2508, 64
        %v2511 = vpop.permute.xlu0 %2510
        %v2513 = vadd.f32 %v2433, %v2511
        %2515 = vrot.lane.b32.xlu0 %v2513, 64
        %v2516 = vpop.permute.xlu0 %2515
        %v2518 = vsel %vm720, %v2432, 0
        %v2520 = vsel %vm720, %v2516, 0
        %2522 = vmatprep.subr.mxu0 0.0
        %2523 = vmatpush1.xpose.msra.mxu0 0.0
        %2524 = vmatprep.subr.mxu0 0.0
        %2525 = vmatpush1.xpose.msra.mxu0 0.0
        %2526 = vmatprep.subr.mxu0 0.0
        %2527 = vmatpush1.xpose.msra.mxu0 0.0
        %2528 = vmatprep.subr.mxu0 0.0
        %2529 = vmatpush1.xpose.msra.mxu0 0.0
        %2530 = vmatprep.subr.mxu0 0.0
        %2531 = vmatpush1.xpose.msra.mxu0 0.0
        %2532 = vmatprep.subr.mxu0 0.0
        %2533 = vmatpush1.xpose.msra.mxu0 0.0
        %2534 = vmatprep.subr.mxu0 0.0
        %2535 = vmatpush1.xpose.msra.mxu0 0.0
        %2536 = vmatprep.subr.mxu0 0.0
        %2537 = vmatpush1.xpose.msra.mxu0 0.0
        %2538 = vmatprep.subr.mxu0 0.0
        %2539 = vmatpush1.xpose.msra.mxu0 0.0
        %2540 = vmatprep.subr.mxu0 0.0
        %2541 = vmatpush1.xpose.msra.mxu0 0.0
        %2542 = vmatprep.subr.mxu0 0.0
        %2543 = vmatpush1.xpose.msra.mxu0 0.0
        %2544 = vmatprep.subr.mxu0 0.0
        %2545 = vmatpush1.xpose.msra.mxu0 0.0
        %2546 = vmatprep.subr.mxu0 0.0
        %2547 = vmatpush1.xpose.msra.mxu0 0.0
        %2548 = vmatprep.subr.mxu0 0.0
        %2549 = vmatpush1.xpose.msra.mxu0 0.0
        %2550 = vmatprep.subr.mxu0 0.0
        %2551 = vmatpush1.xpose.msra.mxu0 0.0
        %2552 = vmatprep.subr.mxu0 0.0
        %2553 = vmatpush1.xpose.msra.mxu0 %v2520
        %2554 = vmatprep.subr.mxu0 0.0
        %2555 = vmatpush2.xpose.msra.mxu0 0.0
        %2556 = vmatprep.subr.mxu0 0.0
        %2557 = vmatpush2.xpose.msra.mxu0 0.0
        %2558 = vmatprep.subr.mxu0 0.0
        %2559 = vmatpush2.xpose.msra.mxu0 0.0
        %2560 = vmatprep.subr.mxu0 0.0
        %2561 = vmatpush2.xpose.msra.mxu0 0.0
        %2562 = vmatprep.subr.mxu0 0.0
        %2563 = vmatpush2.xpose.msra.mxu0 0.0
        %2564 = vmatprep.subr.mxu0 0.0
        %2565 = vmatpush2.xpose.msra.mxu0 0.0
        %2566 = vmatprep.subr.mxu0 0.0
        %2567 = vmatpush2.xpose.msra.mxu0 0.0
        %2568 = vmatprep.subr.mxu0 0.0
        %2569 = vmatpush2.xpose.msra.mxu0 0.0
        %2570 = vmatprep.subr.mxu0 0.0
        %2571 = vmatpush2.xpose.msra.mxu0 0.0
        %2572 = vmatprep.subr.mxu0 0.0
        %2573 = vmatpush2.xpose.msra.mxu0 0.0
        %2574 = vmatprep.subr.mxu0 0.0
        %2575 = vmatpush2.xpose.msra.mxu0 0.0
        %2576 = vmatprep.subr.mxu0 0.0
        %2577 = vmatpush2.xpose.msra.mxu0 0.0
        %2578 = vmatprep.subr.mxu0 0.0
        %2579 = vmatpush2.xpose.msra.mxu0 0.0
        %2580 = vmatprep.subr.mxu0 0.0
        %2581 = vmatpush2.xpose.msra.mxu0 0.0
        %2582 = vmatprep.subr.mxu0 0.0
        %2583 = vmatpush2.xpose.msra.mxu0 0.0
        %2584 = vmatprep.subr.mxu0 0.0
        %2585 = vmatpush2.xpose.msra.mxu0 0.0
        %2586 = vmatprep.mubr.f32.mxu0 0.0
        %2587 = vmatmul.mubr.f32.gmra.mxu0 %v2518
        %v2588 = vpop.f32.mrf.mxu0
        %v2589 = vadd.f32 0.0, %v2588
        %v2590 = vpop.f32.mrf.mxu0
        %2591 = vdwg.mxu0
        %v2592 = vmul.f32 %v2589, 0.125
        %v2593 = vmul.f32 %v1880, %v798
        %2594 = vrot.lane.b32.xlu0 %v1880, 64
        %v2595 = vpop.permute.xlu0 %2594
        %v2596 = vsel %vm720, %v2595, 0
        %2598 = vmatprep.subr.mxu0 0.0
        %2599 = vmatpush1.msra.mxu0 0.0
        %2600 = vmatprep.subr.mxu0 0.0
        %2601 = vmatpush1.msra.mxu0 0.0
        %2602 = vmatprep.subr.mxu0 0.0
        %2603 = vmatpush1.msra.mxu0 0.0
        %2604 = vmatprep.subr.mxu0 0.0
        %2605 = vmatpush1.msra.mxu0 0.0
        %2606 = vmatprep.subr.mxu0 0.0
        %2607 = vmatpush1.msra.mxu0 0.0
        %2608 = vmatprep.subr.mxu0 0.0
        %2609 = vmatpush1.msra.mxu0 0.0
        %2610 = vmatprep.subr.mxu0 0.0
        %2611 = vmatpush1.msra.mxu0 0.0
        %2612 = vmatprep.subr.mxu0 0.0
        %2613 = vmatpush1.msra.mxu0 0.0
        %2614 = vmatprep.subr.mxu0 0.0
        %2615 = vmatpush1.msra.mxu0 %v627
        %2616 = vmatprep.subr.mxu0 0.0
        %2617 = vmatpush1.msra.mxu0 %v626
        %2618 = vmatprep.subr.mxu0 0.0
        %2619 = vmatpush1.msra.mxu0 %v625
        %2620 = vmatprep.subr.mxu0 0.0
        %2621 = vmatpush1.msra.mxu0 %v624
        %2622 = vmatprep.subr.mxu0 0.0
        %2623 = vmatpush1.msra.mxu0 %v623
        %2624 = vmatprep.subr.mxu0 0.0
        %2625 = vmatpush1.msra.mxu0 %v622
        %2626 = vmatprep.subr.mxu0 0.0
        %2627 = vmatpush1.msra.mxu0 %v621
        %2628 = vmatprep.subr.mxu0 0.0
        %2629 = vmatpush1.msra.mxu0 %v620
        %2630 = vmatprep.subr.mxu0 0.0
        %2631 = vmatpush2.msra.mxu0 0.0
        %2632 = vmatprep.subr.mxu0 0.0
        %2633 = vmatpush2.msra.mxu0 0.0
        %2634 = vmatprep.subr.mxu0 0.0
        %2635 = vmatpush2.msra.mxu0 0.0
        %2636 = vmatprep.subr.mxu0 0.0
        %2637 = vmatpush2.msra.mxu0 0.0
        %2638 = vmatprep.subr.mxu0 0.0
        %2639 = vmatpush2.msra.mxu0 0.0
        %2640 = vmatprep.subr.mxu0 0.0
        %2641 = vmatpush2.msra.mxu0 0.0
        %2642 = vmatprep.subr.mxu0 0.0
        %2643 = vmatpush2.msra.mxu0 0.0
        %2644 = vmatprep.subr.mxu0 0.0
        %2645 = vmatpush2.msra.mxu0 0.0
        %2646 = vmatprep.subr.mxu0 0.0
        %2647 = vmatpush2.msra.mxu0 0.0
        %2648 = vmatprep.subr.mxu0 0.0
        %2649 = vmatpush2.msra.mxu0 0.0
        %2650 = vmatprep.subr.mxu0 0.0
        %2651 = vmatpush2.msra.mxu0 0.0
        %2652 = vmatprep.subr.mxu0 0.0
        %2653 = vmatpush2.msra.mxu0 0.0
        %2654 = vmatprep.subr.mxu0 0.0
        %2655 = vmatpush2.msra.mxu0 0.0
        %2656 = vmatprep.subr.mxu0 0.0
        %2657 = vmatpush2.msra.mxu0 0.0
        %2658 = vmatprep.subr.mxu0 0.0
        %2659 = vmatpush2.msra.mxu0 0.0
        %2660 = vmatprep.subr.mxu0 0.0
        %2661 = vmatpush2.msra.mxu0 0.0
        %2662 = vmatprep.mubr.f32.mxu0 0.0
        %2663 = vmatmul.mubr.f32.gmra.mxu0 %v2596
        %v2664 = vpop.f32.mrf.mxu0
        %v2665 = vadd.f32 0.0, %v2664
        %v2666 = vpop.f32.mrf.mxu0
        %2667 = vdwg.mxu0
        %v2668 = vmul.f32 %v2665, %v619
        %2670 = vrot.lane.b32.xlu0 %v2668, 64
        %v2671 = vpop.permute.xlu0 %2670
        %v2673 = vadd.f32 %v2593, %v2671
        %v2674 = vmul.f32 %v1883, %v618
        %v2676 = vsel %vm720, %v1883, 0
        %2678 = vmatprep.subr.mxu0 0.0
        %2679 = vmatpush1.msra.mxu0 0.0
        %2680 = vmatprep.subr.mxu0 0.0
        %2681 = vmatpush1.msra.mxu0 0.0
        %2682 = vmatprep.subr.mxu0 0.0
        %2683 = vmatpush1.msra.mxu0 0.0
        %2684 = vmatprep.subr.mxu0 0.0
        %2685 = vmatpush1.msra.mxu0 0.0
        %2686 = vmatprep.subr.mxu0 0.0
        %2687 = vmatpush1.msra.mxu0 0.0
        %2688 = vmatprep.subr.mxu0 0.0
        %2689 = vmatpush1.msra.mxu0 0.0
        %2690 = vmatprep.subr.mxu0 0.0
        %2691 = vmatpush1.msra.mxu0 0.0
        %2692 = vmatprep.subr.mxu0 0.0
        %2693 = vmatpush1.msra.mxu0 0.0
        %2694 = vmatprep.subr.mxu0 0.0
        %2695 = vmatpush1.msra.mxu0 %v627
        %2696 = vmatprep.subr.mxu0 0.0
        %2697 = vmatpush1.msra.mxu0 %v626
        %2698 = vmatprep.subr.mxu0 0.0
        %2699 = vmatpush1.msra.mxu0 %v625
        %2700 = vmatprep.subr.mxu0 0.0
        %2701 = vmatpush1.msra.mxu0 %v624
        %2702 = vmatprep.subr.mxu0 0.0
        %2703 = vmatpush1.msra.mxu0 %v623
        %2704 = vmatprep.subr.mxu0 0.0
        %2705 = vmatpush1.msra.mxu0 %v622
        %2706 = vmatprep.subr.mxu0 0.0
        %2707 = vmatpush1.msra.mxu0 %v621
        %2708 = vmatprep.subr.mxu0 0.0
        %2709 = vmatpush1.msra.mxu0 %v620
        %2710 = vmatprep.subr.mxu0 0.0
        %2711 = vmatpush2.msra.mxu0 0.0
        %2712 = vmatprep.subr.mxu0 0.0
        %2713 = vmatpush2.msra.mxu0 0.0
        %2714 = vmatprep.subr.mxu0 0.0
        %2715 = vmatpush2.msra.mxu0 0.0
        %2716 = vmatprep.subr.mxu0 0.0
        %2717 = vmatpush2.msra.mxu0 0.0
        %2718 = vmatprep.subr.mxu0 0.0
        %2719 = vmatpush2.msra.mxu0 0.0
        %2720 = vmatprep.subr.mxu0 0.0
        %2721 = vmatpush2.msra.mxu0 0.0
        %2722 = vmatprep.subr.mxu0 0.0
        %2723 = vmatpush2.msra.mxu0 0.0
        %2724 = vmatprep.subr.mxu0 0.0
        %2725 = vmatpush2.msra.mxu0 0.0
        %2726 = vmatprep.subr.mxu0 0.0
        %2727 = vmatpush2.msra.mxu0 0.0
        %2728 = vmatprep.subr.mxu0 0.0
        %2729 = vmatpush2.msra.mxu0 0.0
        %2730 = vmatprep.subr.mxu0 0.0
        %2731 = vmatpush2.msra.mxu0 0.0
        %2732 = vmatprep.subr.mxu0 0.0
        %2733 = vmatpush2.msra.mxu0 0.0
        %2734 = vmatprep.subr.mxu0 0.0
        %2735 = vmatpush2.msra.mxu0 0.0
        %2736 = vmatprep.subr.mxu0 0.0
        %2737 = vmatpush2.msra.mxu0 0.0
        %2738 = vmatprep.subr.mxu0 0.0
        %2739 = vmatpush2.msra.mxu0 0.0
        %2740 = vmatprep.subr.mxu0 0.0
        %2741 = vmatpush2.msra.mxu0 0.0
        %2742 = vmatprep.mubr.f32.mxu0 0.0
        %2743 = vmatmul.mubr.f32.gmra.mxu0 %v2676
        %v2744 = vpop.f32.mrf.mxu0
        %v2745 = vadd.f32 0.0, %v2744
        %v2746 = vpop.f32.mrf.mxu0
        %2747 = vdwg.mxu0
        %v2748 = vmul.f32 %v2745, %v619
        %v2749 = vadd.f32 %v2674, %v2748
        %2751 = vrot.lane.b32.xlu0 %v2673, 64
        %v2752 = vpop.permute.xlu0 %2751
        %v2753 = vsel %vm720, %v2752, 0
        %v2756 = vsel %vm720, %v2749, 0
        %2758 = vmatprep.subr.mxu0 0.0
        %2759 = vmatpush1.xpose.msra.mxu0 0.0
        %2760 = vmatprep.subr.mxu0 0.0
        %2761 = vmatpush1.xpose.msra.mxu0 0.0
        %2762 = vmatprep.subr.mxu0 0.0
        %2763 = vmatpush1.xpose.msra.mxu0 0.0
        %2764 = vmatprep.subr.mxu0 0.0
        %2765 = vmatpush1.xpose.msra.mxu0 0.0
        %2766 = vmatprep.subr.mxu0 0.0
        %2767 = vmatpush1.xpose.msra.mxu0 0.0
        %2768 = vmatprep.subr.mxu0 0.0
        %2769 = vmatpush1.xpose.msra.mxu0 0.0
        %2770 = vmatprep.subr.mxu0 0.0
        %2771 = vmatpush1.xpose.msra.mxu0 0.0
        %2772 = vmatprep.subr.mxu0 0.0
        %2773 = vmatpush1.xpose.msra.mxu0 0.0
        %2774 = vmatprep.subr.mxu0 0.0
        %2775 = vmatpush1.xpose.msra.mxu0 0.0
        %2776 = vmatprep.subr.mxu0 0.0
        %2777 = vmatpush1.xpose.msra.mxu0 0.0
        %2778 = vmatprep.subr.mxu0 0.0
        %2779 = vmatpush1.xpose.msra.mxu0 0.0
        %2780 = vmatprep.subr.mxu0 0.0
        %2781 = vmatpush1.xpose.msra.mxu0 0.0
        %2782 = vmatprep.subr.mxu0 0.0
        %2783 = vmatpush1.xpose.msra.mxu0 0.0
        %2784 = vmatprep.subr.mxu0 0.0
        %2785 = vmatpush1.xpose.msra.mxu0 0.0
        %2786 = vmatprep.subr.mxu0 0.0
        %2787 = vmatpush1.xpose.msra.mxu0 0.0
        %2788 = vmatprep.subr.mxu0 0.0
        %2789 = vmatpush1.xpose.msra.mxu0 %v2756
        %2790 = vmatprep.subr.mxu0 0.0
        %2791 = vmatpush2.xpose.msra.mxu0 0.0
        %2792 = vmatprep.subr.mxu0 0.0
        %2793 = vmatpush2.xpose.msra.mxu0 0.0
        %2794 = vmatprep.subr.mxu0 0.0
        %2795 = vmatpush2.xpose.msra.mxu0 0.0
        %2796 = vmatprep.subr.mxu0 0.0
        %2797 = vmatpush2.xpose.msra.mxu0 0.0
        %2798 = vmatprep.subr.mxu0 0.0
        %2799 = vmatpush2.xpose.msra.mxu0 0.0
        %2800 = vmatprep.subr.mxu0 0.0
        %2801 = vmatpush2.xpose.msra.mxu0 0.0
        %2802 = vmatprep.subr.mxu0 0.0
        %2803 = vmatpush2.xpose.msra.mxu0 0.0
        %2804 = vmatprep.subr.mxu0 0.0
        %2805 = vmatpush2.xpose.msra.mxu0 0.0
        %2806 = vmatprep.subr.mxu0 0.0
        %2807 = vmatpush2.xpose.msra.mxu0 0.0
        %2808 = vmatprep.subr.mxu0 0.0
        %2809 = vmatpush2.xpose.msra.mxu0 0.0
        %2810 = vmatprep.subr.mxu0 0.0
        %2811 = vmatpush2.xpose.msra.mxu0 0.0
        %2812 = vmatprep.subr.mxu0 0.0
        %2813 = vmatpush2.xpose.msra.mxu0 0.0
        %2814 = vmatprep.subr.mxu0 0.0
        %2815 = vmatpush2.xpose.msra.mxu0 0.0
        %2816 = vmatprep.subr.mxu0 0.0
        %2817 = vmatpush2.xpose.msra.mxu0 0.0
        %2818 = vmatprep.subr.mxu0 0.0
        %2819 = vmatpush2.xpose.msra.mxu0 0.0
        %2820 = vmatprep.subr.mxu0 0.0
        %2821 = vmatpush2.xpose.msra.mxu0 0.0
        %2822 = vmatprep.mubr.f32.mxu0 0.0
        %2823 = vmatmul.mubr.f32.gmra.mxu0 %v2753
        %v2824 = vpop.f32.mrf.mxu0
        %v2825 = vadd.f32 0.0, %v2824
        %v2826 = vpop.f32.mrf.mxu0
        %2827 = vdwg.mxu0
        %v2828 = vmul.f32 %v2825, 0.125
        %v2829 = vmul.f32 %v1881, %v618
        %v2830 = vsel %vm720, %v1881, 0
        %2832 = vmatprep.subr.mxu0 0.0
        %2833 = vmatpush1.msra.mxu0 0.0
        %2834 = vmatprep.subr.mxu0 0.0
        %2835 = vmatpush1.msra.mxu0 0.0
        %2836 = vmatprep.subr.mxu0 0.0
        %2837 = vmatpush1.msra.mxu0 0.0
        %2838 = vmatprep.subr.mxu0 0.0
        %2839 = vmatpush1.msra.mxu0 0.0
        %2840 = vmatprep.subr.mxu0 0.0
        %2841 = vmatpush1.msra.mxu0 0.0
        %2842 = vmatprep.subr.mxu0 0.0
        %2843 = vmatpush1.msra.mxu0 0.0
        %2844 = vmatprep.subr.mxu0 0.0
        %2845 = vmatpush1.msra.mxu0 0.0
        %2846 = vmatprep.subr.mxu0 0.0
        %2847 = vmatpush1.msra.mxu0 0.0
        %2848 = vmatprep.subr.mxu0 0.0
        %2849 = vmatpush1.msra.mxu0 %v627
        %2850 = vmatprep.subr.mxu0 0.0
        %2851 = vmatpush1.msra.mxu0 %v626
        %2852 = vmatprep.subr.mxu0 0.0
        %2853 = vmatpush1.msra.mxu0 %v625
        %2854 = vmatprep.subr.mxu0 0.0
        %2855 = vmatpush1.msra.mxu0 %v624
        %2856 = vmatprep.subr.mxu0 0.0
        %2857 = vmatpush1.msra.mxu0 %v623
        %2858 = vmatprep.subr.mxu0 0.0
        %2859 = vmatpush1.msra.mxu0 %v622
        %2860 = vmatprep.subr.mxu0 0.0
        %2861 = vmatpush1.msra.mxu0 %v621
        %2862 = vmatprep.subr.mxu0 0.0
        %2863 = vmatpush1.msra.mxu0 %v620
        %2864 = vmatprep.subr.mxu0 0.0
        %2865 = vmatpush2.msra.mxu0 0.0
        %2866 = vmatprep.subr.mxu0 0.0
        %2867 = vmatpush2.msra.mxu0 0.0
        %2868 = vmatprep.subr.mxu0 0.0
        %2869 = vmatpush2.msra.mxu0 0.0
        %2870 = vmatprep.subr.mxu0 0.0
        %2871 = vmatpush2.msra.mxu0 0.0
        %2872 = vmatprep.subr.mxu0 0.0
        %2873 = vmatpush2.msra.mxu0 0.0
        %2874 = vmatprep.subr.mxu0 0.0
        %2875 = vmatpush2.msra.mxu0 0.0
        %2876 = vmatprep.subr.mxu0 0.0
        %2877 = vmatpush2.msra.mxu0 0.0
        %2878 = vmatprep.subr.mxu0 0.0
        %2879 = vmatpush2.msra.mxu0 0.0
        %2880 = vmatprep.subr.mxu0 0.0
        %2881 = vmatpush2.msra.mxu0 0.0
        %2882 = vmatprep.subr.mxu0 0.0
        %2883 = vmatpush2.msra.mxu0 0.0
        %2884 = vmatprep.subr.mxu0 0.0
        %2885 = vmatpush2.msra.mxu0 0.0
        %2886 = vmatprep.subr.mxu0 0.0
        %2887 = vmatpush2.msra.mxu0 0.0
        %2888 = vmatprep.subr.mxu0 0.0
        %2889 = vmatpush2.msra.mxu0 0.0
        %2890 = vmatprep.subr.mxu0 0.0
        %2891 = vmatpush2.msra.mxu0 0.0
        %2892 = vmatprep.subr.mxu0 0.0
        %2893 = vmatpush2.msra.mxu0 0.0
        %2894 = vmatprep.subr.mxu0 0.0
        %2895 = vmatpush2.msra.mxu0 0.0
        %2896 = vmatprep.mubr.f32.mxu0 0.0
        %2897 = vmatmul.mubr.f32.gmra.mxu0 %v2830
        %v2898 = vpop.f32.mrf.mxu0
        %v2899 = vadd.f32 0.0, %v2898
        %v2900 = vpop.f32.mrf.mxu0
        %2901 = vdwg.mxu0
        %v2902 = vmul.f32 %v2899, %v619
        %v2903 = vadd.f32 %v2829, %v2902
        %v2904 = vmul.f32 %v1883, %v798
        %2905 = vrot.lane.b32.xlu0 %v1883, 64
        %v2906 = vpop.permute.xlu0 %2905
        %v2907 = vsel %vm720, %v2906, 0
        %2909 = vmatprep.subr.mxu0 0.0
        %2910 = vmatpush1.msra.mxu0 0.0
        %2911 = vmatprep.subr.mxu0 0.0
        %2912 = vmatpush1.msra.mxu0 0.0
        %2913 = vmatprep.subr.mxu0 0.0
        %2914 = vmatpush1.msra.mxu0 0.0
        %2915 = vmatprep.subr.mxu0 0.0
        %2916 = vmatpush1.msra.mxu0 0.0
        %2917 = vmatprep.subr.mxu0 0.0
        %2918 = vmatpush1.msra.mxu0 0.0
        %2919 = vmatprep.subr.mxu0 0.0
        %2920 = vmatpush1.msra.mxu0 0.0
        %2921 = vmatprep.subr.mxu0 0.0
        %2922 = vmatpush1.msra.mxu0 0.0
        %2923 = vmatprep.subr.mxu0 0.0
        %2924 = vmatpush1.msra.mxu0 0.0
        %2925 = vmatprep.subr.mxu0 0.0
        %2926 = vmatpush1.msra.mxu0 %v627
        %2927 = vmatprep.subr.mxu0 0.0
        %2928 = vmatpush1.msra.mxu0 %v626
        %2929 = vmatprep.subr.mxu0 0.0
        %2930 = vmatpush1.msra.mxu0 %v625
        %2931 = vmatprep.subr.mxu0 0.0
        %2932 = vmatpush1.msra.mxu0 %v624
        %2933 = vmatprep.subr.mxu0 0.0
        %2934 = vmatpush1.msra.mxu0 %v623
        %2935 = vmatprep.subr.mxu0 0.0
        %2936 = vmatpush1.msra.mxu0 %v622
        %2937 = vmatprep.subr.mxu0 0.0
        %2938 = vmatpush1.msra.mxu0 %v621
        %2939 = vmatprep.subr.mxu0 0.0
        %2940 = vmatpush1.msra.mxu0 %v620
        %2941 = vmatprep.subr.mxu0 0.0
        %2942 = vmatpush2.msra.mxu0 0.0
        %2943 = vmatprep.subr.mxu0 0.0
        %2944 = vmatpush2.msra.mxu0 0.0
        %2945 = vmatprep.subr.mxu0 0.0
        %2946 = vmatpush2.msra.mxu0 0.0
        %2947 = vmatprep.subr.mxu0 0.0
        %2948 = vmatpush2.msra.mxu0 0.0
        %2949 = vmatprep.subr.mxu0 0.0
        %2950 = vmatpush2.msra.mxu0 0.0
        %2951 = vmatprep.subr.mxu0 0.0
        %2952 = vmatpush2.msra.mxu0 0.0
        %2953 = vmatprep.subr.mxu0 0.0
        %2954 = vmatpush2.msra.mxu0 0.0
        %2955 = vmatprep.subr.mxu0 0.0
        %2956 = vmatpush2.msra.mxu0 0.0
        %2957 = vmatprep.subr.mxu0 0.0
        %2958 = vmatpush2.msra.mxu0 0.0
        %2959 = vmatprep.subr.mxu0 0.0
        %2960 = vmatpush2.msra.mxu0 0.0
        %2961 = vmatprep.subr.mxu0 0.0
        %2962 = vmatpush2.msra.mxu0 0.0
        %2963 = vmatprep.subr.mxu0 0.0
        %2964 = vmatpush2.msra.mxu0 0.0
        %2965 = vmatprep.subr.mxu0 0.0
        %2966 = vmatpush2.msra.mxu0 0.0
        %2967 = vmatprep.subr.mxu0 0.0
        %2968 = vmatpush2.msra.mxu0 0.0
        %2969 = vmatprep.subr.mxu0 0.0
        %2970 = vmatpush2.msra.mxu0 0.0
        %2971 = vmatprep.subr.mxu0 0.0
        %2972 = vmatpush2.msra.mxu0 0.0
        %2973 = vmatprep.mubr.f32.mxu0 0.0
        %2974 = vmatmul.mubr.f32.gmra.mxu0 %v2907
        %v2975 = vpop.f32.mrf.mxu0
        %v2976 = vadd.f32 0.0, %v2975
        %v2977 = vpop.f32.mrf.mxu0
        %2978 = vdwg.mxu0
        %v2979 = vmul.f32 %v2976, %v619
        %2981 = vrot.lane.b32.xlu0 %v2979, 64
        %v2982 = vpop.permute.xlu0 %2981
        %v2984 = vadd.f32 %v2904, %v2982
        %2986 = vrot.lane.b32.xlu0 %v2984, 64
        %v2987 = vpop.permute.xlu0 %2986
        %v2989 = vsel %vm720, %v2903, 0
        %v2991 = vsel %vm720, %v2987, 0
        %2993 = vmatprep.subr.mxu0 0.0
        %2994 = vmatpush1.xpose.msra.mxu0 0.0
        %2995 = vmatprep.subr.mxu0 0.0
        %2996 = vmatpush1.xpose.msra.mxu0 0.0
        %2997 = vmatprep.subr.mxu0 0.0
        %2998 = vmatpush1.xpose.msra.mxu0 0.0
        %2999 = vmatprep.subr.mxu0 0.0
        %3000 = vmatpush1.xpose.msra.mxu0 0.0
        %3001 = vmatprep.subr.mxu0 0.0
        %3002 = vmatpush1.xpose.msra.mxu0 0.0
        %3003 = vmatprep.subr.mxu0 0.0
        %3004 = vmatpush1.xpose.msra.mxu0 0.0
        %3005 = vmatprep.subr.mxu0 0.0
        %3006 = vmatpush1.xpose.msra.mxu0 0.0
        %3007 = vmatprep.subr.mxu0 0.0
        %3008 = vmatpush1.xpose.msra.mxu0 0.0
        %3009 = vmatprep.subr.mxu0 0.0
        %3010 = vmatpush1.xpose.msra.mxu0 0.0
        %3011 = vmatprep.subr.mxu0 0.0
        %3012 = vmatpush1.xpose.msra.mxu0 0.0
        %3013 = vmatprep.subr.mxu0 0.0
        %3014 = vmatpush1.xpose.msra.mxu0 0.0
        %3015 = vmatprep.subr.mxu0 0.0
        %3016 = vmatpush1.xpose.msra.mxu0 0.0
        %3017 = vmatprep.subr.mxu0 0.0
        %3018 = vmatpush1.xpose.msra.mxu0 0.0
        %3019 = vmatprep.subr.mxu0 0.0
        %3020 = vmatpush1.xpose.msra.mxu0 0.0
        %3021 = vmatprep.subr.mxu0 0.0
        %3022 = vmatpush1.xpose.msra.mxu0 0.0
        %3023 = vmatprep.subr.mxu0 0.0
        %3024 = vmatpush1.xpose.msra.mxu0 %v2991
        %3025 = vmatprep.subr.mxu0 0.0
        %3026 = vmatpush2.xpose.msra.mxu0 0.0
        %3027 = vmatprep.subr.mxu0 0.0
        %3028 = vmatpush2.xpose.msra.mxu0 0.0
        %3029 = vmatprep.subr.mxu0 0.0
        %3030 = vmatpush2.xpose.msra.mxu0 0.0
        %3031 = vmatprep.subr.mxu0 0.0
        %3032 = vmatpush2.xpose.msra.mxu0 0.0
        %3033 = vmatprep.subr.mxu0 0.0
        %3034 = vmatpush2.xpose.msra.mxu0 0.0
        %3035 = vmatprep.subr.mxu0 0.0
        %3036 = vmatpush2.xpose.msra.mxu0 0.0
        %3037 = vmatprep.subr.mxu0 0.0
        %3038 = vmatpush2.xpose.msra.mxu0 0.0
        %3039 = vmatprep.subr.mxu0 0.0
        %3040 = vmatpush2.xpose.msra.mxu0 0.0
        %3041 = vmatprep.subr.mxu0 0.0
        %3042 = vmatpush2.xpose.msra.mxu0 0.0
        %3043 = vmatprep.subr.mxu0 0.0
        %3044 = vmatpush2.xpose.msra.mxu0 0.0
        %3045 = vmatprep.subr.mxu0 0.0
        %3046 = vmatpush2.xpose.msra.mxu0 0.0
        %3047 = vmatprep.subr.mxu0 0.0
        %3048 = vmatpush2.xpose.msra.mxu0 0.0
        %3049 = vmatprep.subr.mxu0 0.0
        %3050 = vmatpush2.xpose.msra.mxu0 0.0
        %3051 = vmatprep.subr.mxu0 0.0
        %3052 = vmatpush2.xpose.msra.mxu0 0.0
        %3053 = vmatprep.subr.mxu0 0.0
        %3054 = vmatpush2.xpose.msra.mxu0 0.0
        %3055 = vmatprep.subr.mxu0 0.0
        %3056 = vmatpush2.xpose.msra.mxu0 0.0
        %3057 = vmatprep.mubr.f32.mxu0 0.0
        %3058 = vmatmul.mubr.f32.gmra.mxu0 %v2989
        %v3059 = vpop.f32.mrf.mxu0
        %v3060 = vadd.f32 0.0, %v3059
        %v3061 = vpop.f32.mrf.mxu0
        %3062 = vdwg.mxu0
        %v3063 = vmul.f32 %v3060, 0.125
        %3064 = vxpose.xlu0.b32.start [1/16] %v2120, 128
        %3065 = vxpose.xlu0.b32.cont [2/16] 0.0, 128
        %3066 = vxpose.xlu0.b32.cont [3/16] 0.0, 128
        %3067 = vxpose.xlu0.b32.cont [4/16] 0.0, 128
        %3068 = vxpose.xlu0.b32.cont [5/16] 0.0, 128
        %3069 = vxpose.xlu0.b32.cont [6/16] 0.0, 128
        %3070 = vxpose.xlu0.b32.cont [7/16] 0.0, 128
        %3071 = vxpose.xlu0.b32.cont [8/16] 0.0, 128
        %3072 = vxpose.xlu0.b32.cont [9/16] 0.0, 128
        %3073 = vxpose.xlu0.b32.cont [10/16] 0.0, 128
        %3074 = vxpose.xlu0.b32.cont [11/16] 0.0, 128
        %3075 = vxpose.xlu0.b32.cont [12/16] 0.0, 128
        %3076 = vxpose.xlu0.b32.cont [13/16] 0.0, 128
        %3077 = vxpose.xlu0.b32.cont [14/16] 0.0, 128
        %3078 = vxpose.xlu0.b32.cont [15/16] 0.0, 128
        %3079 = vxpose.xlu0.b32.end [16/16] 0.0, 128
        %v3080 = vpop.trf.xlu0
        %v3081 = vpop.trf.xlu0
        %v3082 = vpop.trf.xlu0
        %v3083 = vpop.trf.xlu0
        %v3084 = vpop.trf.xlu0
        %v3085 = vpop.trf.xlu0
        %v3086 = vpop.trf.xlu0
        %v3087 = vpop.trf.xlu0
        %v3088 = vpop.trf.xlu0
        %v3089 = vpop.trf.xlu0
        %v3090 = vpop.trf.xlu0
        %v3091 = vpop.trf.xlu0
        %v3092 = vpop.trf.xlu0
        %v3093 = vpop.trf.xlu0
        %v3094 = vpop.trf.xlu0
        %v3095 = vpop.trf.xlu0
        %3096 = vst.msk [vmem:[%s610] sm:$0xff] %vm993, %v3080
        %3098 = vrot.lane.b32.xlu0 %v3080, 127
        %v3099 = vpop.permute.xlu0 %3098
        %3101 = vst.msk [vmem:[%s610 + $0x7] sm:$0xfe] %vm999, %v3099
        %3102 = vrot.lane.b32.xlu0 %v3080, 126
        %v3103 = vpop.permute.xlu0 %3102
        %3105 = vst.msk [vmem:[%s610 + $0xd] sm:$0xfc] %vm1004, %v3103
        %3106 = vrot.lane.b32.xlu0 %v3080, 125
        %v3107 = vpop.permute.xlu0 %3106
        %3109 = vst.msk [vmem:[%s610 + $0x12] sm:$0xf8] %vm1009, %v3107
        %3110 = vrot.lane.b32.xlu0 %v3080, 124
        %v3111 = vpop.permute.xlu0 %3110
        %3113 = vst.msk [vmem:[%s610 + $0x16] sm:$0xf0] %vm1014, %v3111
        %3114 = vrot.lane.b32.xlu0 %v3080, 123
        %v3115 = vpop.permute.xlu0 %3114
        %3117 = vst.msk [vmem:[%s610 + $0x19] sm:$0xe0] %vm1019, %v3115
        %3118 = vrot.lane.b32.xlu0 %v3080, 122
        %v3119 = vpop.permute.xlu0 %3118
        %3121 = vst.msk [vmem:[%s610 + $0x1b] sm:$0xc0] %vm1024, %v3119
        %3122 = vrot.lane.b32.xlu0 %v3080, 121
        %v3123 = vpop.permute.xlu0 %3122
        %3125 = vst.msk [vmem:[%s610 + $0x1c] sm:$0x80] %vm1029, %v3123
        %3126 = vxpose.xlu0.b32.start [1/16] %v2356, 128
        %3127 = vxpose.xlu0.b32.cont [2/16] 0.0, 128
        %3128 = vxpose.xlu0.b32.cont [3/16] 0.0, 128
        %3129 = vxpose.xlu0.b32.cont [4/16] 0.0, 128
        %3130 = vxpose.xlu0.b32.cont [5/16] 0.0, 128
        %3131 = vxpose.xlu0.b32.cont [6/16] 0.0, 128
        %3132 = vxpose.xlu0.b32.cont [7/16] 0.0, 128
        %3133 = vxpose.xlu0.b32.cont [8/16] 0.0, 128
        %3134 = vxpose.xlu0.b32.cont [9/16] 0.0, 128
        %3135 = vxpose.xlu0.b32.cont [10/16] 0.0, 128
        %3136 = vxpose.xlu0.b32.cont [11/16] 0.0, 128
        %3137 = vxpose.xlu0.b32.cont [12/16] 0.0, 128
        %3138 = vxpose.xlu0.b32.cont [13/16] 0.0, 128
        %3139 = vxpose.xlu0.b32.cont [14/16] 0.0, 128
        %3140 = vxpose.xlu0.b32.cont [15/16] 0.0, 128
        %3141 = vxpose.xlu0.b32.end [16/16] 0.0, 128
        %v3142 = vpop.trf.xlu0
        %v3143 = vpop.trf.xlu0
        %v3144 = vpop.trf.xlu0
        %v3145 = vpop.trf.xlu0
        %v3146 = vpop.trf.xlu0
        %v3147 = vpop.trf.xlu0
        %v3148 = vpop.trf.xlu0
        %v3149 = vpop.trf.xlu0
        %v3150 = vpop.trf.xlu0
        %v3151 = vpop.trf.xlu0
        %v3152 = vpop.trf.xlu0
        %v3153 = vpop.trf.xlu0
        %v3154 = vpop.trf.xlu0
        %v3155 = vpop.trf.xlu0
        %v3156 = vpop.trf.xlu0
        %v3157 = vpop.trf.xlu0
        %3159 = vrot.lane.b32.xlu0 %v3142, 1
        %v3160 = vpop.permute.xlu0 %3159
        %vm3162 = vcmask 15368
        %3163 = vst.msk [vmem:[%s610] sm:$0xff] %vm3162, %v3160
        %vm3164 = vcmask 15369
        %3165 = vst.msk [vmem:[%s610 + $0x7] sm:$0xfe] %vm3164, %v3142
        %3166 = vrot.lane.b32.xlu0 %v3142, 127
        %v3167 = vpop.permute.xlu0 %3166
        %vm3169 = vcmask 15370
        %3170 = vst.msk [vmem:[%s610 + $0xd] sm:$0xfc] %vm3169, %v3167
        %3171 = vrot.lane.b32.xlu0 %v3142, 126
        %v3172 = vpop.permute.xlu0 %3171
        %vm3174 = vcmask 15371
        %3175 = vst.msk [vmem:[%s610 + $0x12] sm:$0xf8] %vm3174, %v3172
        %3176 = vrot.lane.b32.xlu0 %v3142, 125
        %v3177 = vpop.permute.xlu0 %3176
        %vm3179 = vcmask 15372
        %3180 = vst.msk [vmem:[%s610 + $0x16] sm:$0xf0] %vm3179, %v3177
        %3181 = vrot.lane.b32.xlu0 %v3142, 124
        %v3182 = vpop.permute.xlu0 %3181
        %vm3184 = vcmask 15373
        %3185 = vst.msk [vmem:[%s610 + $0x19] sm:$0xe0] %vm3184, %v3182
        %3186 = vrot.lane.b32.xlu0 %v3142, 123
        %v3187 = vpop.permute.xlu0 %3186
        %vm3189 = vcmask 15374
        %3190 = vst.msk [vmem:[%s610 + $0x1b] sm:$0xc0] %vm3189, %v3187
        %3191 = vrot.lane.b32.xlu0 %v3142, 122
        %v3192 = vpop.permute.xlu0 %3191
        %vm3194 = vcmask 15375
        %3195 = vst.msk [vmem:[%s610 + $0x1c] sm:$0x80] %vm3194, %v3192
        %3196 = vxpose.xlu0.b32.start [1/16] %v2592, 128
        %3197 = vxpose.xlu0.b32.cont [2/16] 0.0, 128
        %3198 = vxpose.xlu0.b32.cont [3/16] 0.0, 128
        %3199 = vxpose.xlu0.b32.cont [4/16] 0.0, 128
        %3200 = vxpose.xlu0.b32.cont [5/16] 0.0, 128
        %3201 = vxpose.xlu0.b32.cont [6/16] 0.0, 128
        %3202 = vxpose.xlu0.b32.cont [7/16] 0.0, 128
        %3203 = vxpose.xlu0.b32.cont [8/16] 0.0, 128
        %3204 = vxpose.xlu0.b32.cont [9/16] 0.0, 128
        %3205 = vxpose.xlu0.b32.cont [10/16] 0.0, 128
        %3206 = vxpose.xlu0.b32.cont [11/16] 0.0, 128
        %3207 = vxpose.xlu0.b32.cont [12/16] 0.0, 128
        %3208 = vxpose.xlu0.b32.cont [13/16] 0.0, 128
        %3209 = vxpose.xlu0.b32.cont [14/16] 0.0, 128
        %3210 = vxpose.xlu0.b32.cont [15/16] 0.0, 128
        %3211 = vxpose.xlu0.b32.end [16/16] 0.0, 128
        %v3212 = vpop.trf.xlu0
        %v3213 = vpop.trf.xlu0
        %v3214 = vpop.trf.xlu0
        %v3215 = vpop.trf.xlu0
        %v3216 = vpop.trf.xlu0
        %v3217 = vpop.trf.xlu0
        %v3218 = vpop.trf.xlu0
        %v3219 = vpop.trf.xlu0
        %v3220 = vpop.trf.xlu0
        %v3221 = vpop.trf.xlu0
        %v3222 = vpop.trf.xlu0
        %v3223 = vpop.trf.xlu0
        %v3224 = vpop.trf.xlu0
        %v3225 = vpop.trf.xlu0
        %v3226 = vpop.trf.xlu0
        %v3227 = vpop.trf.xlu0
        %3229 = vrot.lane.b32.xlu0 %v3212, 2
        %v3230 = vpop.permute.xlu0 %3229
        %vm3232 = vcmask 23568
        %3233 = vst.msk [vmem:[%s610] sm:$0xff] %vm3232, %v3230
        %3234 = vrot.lane.b32.xlu0 %v3212, 1
        %v3235 = vpop.permute.xlu0 %3234
        %vm3237 = vcmask 23569
        %3238 = vst.msk [vmem:[%s610 + $0x7] sm:$0xfe] %vm3237, %v3235
        %vm3239 = vcmask 23570
        %3240 = vst.msk [vmem:[%s610 + $0xd] sm:$0xfc] %vm3239, %v3212
        %3241 = vrot.lane.b32.xlu0 %v3212, 127
        %v3242 = vpop.permute.xlu0 %3241
        %vm3244 = vcmask 23571
        %3245 = vst.msk [vmem:[%s610 + $0x12] sm:$0xf8] %vm3244, %v3242
        %3246 = vrot.lane.b32.xlu0 %v3212, 126
        %v3247 = vpop.permute.xlu0 %3246
        %vm3249 = vcmask 23572
        %3250 = vst.msk [vmem:[%s610 + $0x16] sm:$0xf0] %vm3249, %v3247
        %3251 = vrot.lane.b32.xlu0 %v3212, 125
        %v3252 = vpop.permute.xlu0 %3251
        %vm3254 = vcmask 23573
        %3255 = vst.msk [vmem:[%s610 + $0x19] sm:$0xe0] %vm3254, %v3252
        %3256 = vrot.lane.b32.xlu0 %v3212, 124
        %v3257 = vpop.permute.xlu0 %3256
        %vm3259 = vcmask 23574
        %3260 = vst.msk [vmem:[%s610 + $0x1b] sm:$0xc0] %vm3259, %v3257
        %3261 = vrot.lane.b32.xlu0 %v3212, 123
        %v3262 = vpop.permute.xlu0 %3261
        %vm3264 = vcmask 23575
        %3265 = vst.msk [vmem:[%s610 + $0x1c] sm:$0x80] %vm3264, %v3262
        %3266 = vxpose.xlu0.b32.start [1/16] %v2828, 128
        %3267 = vxpose.xlu0.b32.cont [2/16] 0.0, 128
        %3268 = vxpose.xlu0.b32.cont [3/16] 0.0, 128
        %3269 = vxpose.xlu0.b32.cont [4/16] 0.0, 128
        %3270 = vxpose.xlu0.b32.cont [5/16] 0.0, 128
        %3271 = vxpose.xlu0.b32.cont [6/16] 0.0, 128
        %3272 = vxpose.xlu0.b32.cont [7/16] 0.0, 128
        %3273 = vxpose.xlu0.b32.cont [8/16] 0.0, 128
        %3274 = vxpose.xlu0.b32.cont [9/16] 0.0, 128
        %3275 = vxpose.xlu0.b32.cont [10/16] 0.0, 128
        %3276 = vxpose.xlu0.b32.cont [11/16] 0.0, 128
        %3277 = vxpose.xlu0.b32.cont [12/16] 0.0, 128
        %3278 = vxpose.xlu0.b32.cont [13/16] 0.0, 128
        %3279 = vxpose.xlu0.b32.cont [14/16] 0.0, 128
        %3280 = vxpose.xlu0.b32.cont [15/16] 0.0, 128
        %3281 = vxpose.xlu0.b32.end [16/16] 0.0, 128
        %v3282 = vpop.trf.xlu0
        %v3283 = vpop.trf.xlu0
        %v3284 = vpop.trf.xlu0
        %v3285 = vpop.trf.xlu0
        %v3286 = vpop.trf.xlu0
        %v3287 = vpop.trf.xlu0
        %v3288 = vpop.trf.xlu0
        %v3289 = vpop.trf.xlu0
        %v3290 = vpop.trf.xlu0
        %v3291 = vpop.trf.xlu0
        %v3292 = vpop.trf.xlu0
        %v3293 = vpop.trf.xlu0
        %v3294 = vpop.trf.xlu0
        %v3295 = vpop.trf.xlu0
        %v3296 = vpop.trf.xlu0
        %v3297 = vpop.trf.xlu0
        %3299 = vrot.lane.b32.xlu0 %v3282, 3
        %v3300 = vpop.permute.xlu0 %3299
        %vm3302 = vcmask 31768
        %3303 = vst.msk [vmem:[%s610] sm:$0xff] %vm3302, %v3300
        %3304 = vrot.lane.b32.xlu0 %v3282, 2
        %v3305 = vpop.permute.xlu0 %3304
        %vm3307 = vcmask 31769
        %3308 = vst.msk [vmem:[%s610 + $0x7] sm:$0xfe] %vm3307, %v3305
        %3309 = vrot.lane.b32.xlu0 %v3282, 1
        %v3310 = vpop.permute.xlu0 %3309
        %vm3312 = vcmask 31770
        %3313 = vst.msk [vmem:[%s610 + $0xd] sm:$0xfc] %vm3312, %v3310
        %vm3314 = vcmask 31771
        %3315 = vst.msk [vmem:[%s610 + $0x12] sm:$0xf8] %vm3314, %v3282
        %3316 = vrot.lane.b32.xlu0 %v3282, 127
        %v3317 = vpop.permute.xlu0 %3316
        %vm3319 = vcmask 31772
        %3320 = vst.msk [vmem:[%s610 + $0x16] sm:$0xf0] %vm3319, %v3317
        %3321 = vrot.lane.b32.xlu0 %v3282, 126
        %v3322 = vpop.permute.xlu0 %3321
        %vm3324 = vcmask 31773
        %3325 = vst.msk [vmem:[%s610 + $0x19] sm:$0xe0] %vm3324, %v3322
        %3326 = vrot.lane.b32.xlu0 %v3282, 125
        %v3327 = vpop.permute.xlu0 %3326
        %vm3329 = vcmask 31774
        %3330 = vst.msk [vmem:[%s610 + $0x1b] sm:$0xc0] %vm3329, %v3327
        %3331 = vrot.lane.b32.xlu0 %v3282, 124
        %v3332 = vpop.permute.xlu0 %3331
        %vm3334 = vcmask 31775
        %3335 = vst.msk [vmem:[%s610 + $0x1c] sm:$0x80] %vm3334, %v3332
        %v3336 = vlaneseq
        %v3337 = vshrl.u32 %v3336, 7
        %v3338 = vlaneseq
        %v3339 = vand.u32 %v3338, 127
        %vm3340 = vcmp.gt.s32.totalorder %v3339, %v3337
        %v3341 = vsel %vm3340, %v2120, 0.0
        %vm3342 = vcmp.eq.s32.totalorder %v3339, %v3337
        %v3343 = vsel %vm3342, %v2120, 0.0
        %3344 = vxpose.xlu0.b32.start [1/16] %v3341, 128
        %3345 = vxpose.xlu0.b32.cont [2/16] 0.0, 128
        %3346 = vxpose.xlu0.b32.cont [3/16] 0.0, 128
        %3347 = vxpose.xlu0.b32.cont [4/16] 0.0, 128
        %3348 = vxpose.xlu0.b32.cont [5/16] 0.0, 128
        %3349 = vxpose.xlu0.b32.cont [6/16] 0.0, 128
        %3350 = vxpose.xlu0.b32.cont [7/16] 0.0, 128
        %3351 = vxpose.xlu0.b32.cont [8/16] 0.0, 128
        %3352 = vxpose.xlu0.b32.cont [9/16] 0.0, 128
        %3353 = vxpose.xlu0.b32.cont [10/16] 0.0, 128
        %3354 = vxpose.xlu0.b32.cont [11/16] 0.0, 128
        %3355 = vxpose.xlu0.b32.cont [12/16] 0.0, 128
        %3356 = vxpose.xlu0.b32.cont [13/16] 0.0, 128
        %3357 = vxpose.xlu0.b32.cont [14/16] 0.0, 128
        %3358 = vxpose.xlu0.b32.cont [15/16] 0.0, 128
        %3359 = vxpose.xlu0.b32.end [16/16] 0.0, 128
        %v3360 = vpop.trf.xlu0
        %v3361 = vpop.trf.xlu0
        %v3362 = vpop.trf.xlu0
        %v3363 = vpop.trf.xlu0
        %v3364 = vpop.trf.xlu0
        %v3365 = vpop.trf.xlu0
        %v3366 = vpop.trf.xlu0
        %v3367 = vpop.trf.xlu0
        %v3368 = vpop.trf.xlu0
        %v3369 = vpop.trf.xlu0
        %v3370 = vpop.trf.xlu0
        %v3371 = vpop.trf.xlu0
        %v3372 = vpop.trf.xlu0
        %v3373 = vpop.trf.xlu0
        %v3374 = vpop.trf.xlu0
        %v3375 = vpop.trf.xlu0
        %v3376 = vadd.f32 %v3341, %v3360
        %v3377 = vadd.f32 %v3376, %v3343
        %vm3378 = vcmp.ne.f32.partialorder %v3377, 0.0
        %v3379 = vsel %vm3378, 1, 0
        %v3380 = vcvt.s32.f32 %v3379
        %vm3381 = vcmask 64512
        %v3382 = vsel %vm3381, %v3377, -inf
        %3383 = vmax.xlane.f32.xlu0 %v3382
        %v3384 = vpop.xlane.xlu0 %3383
        %v3385 = vsub.f32 %v3377, %v3384
        %v3386 = vmul.f32 %v3385, 1.442695
        %v3387 = vpow.pop %v3386
        %v3388 = vsel %vm3381, %v3387, 0.0
        %3389 = vadd.xlane.f32.xlu0 %v3388
        %v3390 = vpop.xlane.xlu0 %3389
        %v3391 = vrcp.pop %v3390
        %v3392 = vmul.f32 %v3387, %v3391
        %v3393 = vmul.f32 %v3392, %v3380
        %v3394 = vsel %vm3340, %v2356, 0.0
        %v3395 = vsel %vm3342, %v2356, 0.0
        %3396 = vxpose.xlu0.b32.start [1/16] %v3394, 128
        %3397 = vxpose.xlu0.b32.cont [2/16] 0.0, 128
        %3398 = vxpose.xlu0.b32.cont [3/16] 0.0, 128
        %3399 = vxpose.xlu0.b32.cont [4/16] 0.0, 128
        %3400 = vxpose.xlu0.b32.cont [5/16] 0.0, 128
        %3401 = vxpose.xlu0.b32.cont [6/16] 0.0, 128
        %3402 = vxpose.xlu0.b32.cont [7/16] 0.0, 128
        %3403 = vxpose.xlu0.b32.cont [8/16] 0.0, 128
        %3404 = vxpose.xlu0.b32.cont [9/16] 0.0, 128
        %3405 = vxpose.xlu0.b32.cont [10/16] 0.0, 128
        %3406 = vxpose.xlu0.b32.cont [11/16] 0.0, 128
        %3407 = vxpose.xlu0.b32.cont [12/16] 0.0, 128
        %3408 = vxpose.xlu0.b32.cont [13/16] 0.0, 128
        %3409 = vxpose.xlu0.b32.cont [14/16] 0.0, 128
        %3410 = vxpose.xlu0.b32.cont [15/16] 0.0, 128
        %3411 = vxpose.xlu0.b32.end [16/16] 0.0, 128
        %v3412 = vpop.trf.xlu0
        %v3413 = vpop.trf.xlu0
        %v3414 = vpop.trf.xlu0
        %v3415 = vpop.trf.xlu0
        %v3416 = vpop.trf.xlu0
        %v3417 = vpop.trf.xlu0
        %v3418 = vpop.trf.xlu0
        %v3419 = vpop.trf.xlu0
        %v3420 = vpop.trf.xlu0
        %v3421 = vpop.trf.xlu0
        %v3422 = vpop.trf.xlu0
        %v3423 = vpop.trf.xlu0
        %v3424 = vpop.trf.xlu0
        %v3425 = vpop.trf.xlu0
        %v3426 = vpop.trf.xlu0
        %v3427 = vpop.trf.xlu0
        %v3428 = vadd.f32 %v3394, %v3412
        %v3429 = vadd.f32 %v3428, %v3395
        %vm3430 = vcmp.ne.f32.partialorder %v3429, 0.0
        %v3431 = vsel %vm3430, 1, 0
        %v3432 = vcvt.s32.f32 %v3431
        %v3433 = vsel %vm3381, %v3429, -inf
        %3434 = vmax.xlane.f32.xlu0 %v3433
        %v3435 = vpop.xlane.xlu0 %3434
        %v3436 = vsub.f32 %v3429, %v3435
        %v3437 = vmul.f32 %v3436, 1.442695
        %v3438 = vpow.pop %v3437
        %v3439 = vsel %vm3381, %v3438, 0.0
        %3440 = vadd.xlane.f32.xlu0 %v3439
        %v3441 = vpop.xlane.xlu0 %3440
        %v3442 = vrcp.pop %v3441
        %v3443 = vmul.f32 %v3438, %v3442
        %v3444 = vmul.f32 %v3443, %v3432
        %v3445 = vsel %vm3340, %v2592, 0.0
        %v3446 = vsel %vm3342, %v2592, 0.0
        %3447 = vxpose.xlu0.b32.start [1/16] %v3445, 128
        %3448 = vxpose.xlu0.b32.cont [2/16] 0.0, 128
        %3449 = vxpose.xlu0.b32.cont [3/16] 0.0, 128
        %3450 = vxpose.xlu0.b32.cont [4/16] 0.0, 128
        %3451 = vxpose.xlu0.b32.cont [5/16] 0.0, 128
        %3452 = vxpose.xlu0.b32.cont [6/16] 0.0, 128
        %3453 = vxpose.xlu0.b32.cont [7/16] 0.0, 128
        %3454 = vxpose.xlu0.b32.cont [8/16] 0.0, 128
        %3455 = vxpose.xlu0.b32.cont [9/16] 0.0, 128
        %3456 = vxpose.xlu0.b32.cont [10/16] 0.0, 128
        %3457 = vxpose.xlu0.b32.cont [11/16] 0.0, 128
        %3458 = vxpose.xlu0.b32.cont [12/16] 0.0, 128
        %3459 = vxpose.xlu0.b32.cont [13/16] 0.0, 128
        %3460 = vxpose.xlu0.b32.cont [14/16] 0.0, 128
        %3461 = vxpose.xlu0.b32.cont [15/16] 0.0, 128
        %3462 = vxpose.xlu0.b32.end [16/16] 0.0, 128
        %v3463 = vpop.trf.xlu0
        %v3464 = vpop.trf.xlu0
        %v3465 = vpop.trf.xlu0
        %v3466 = vpop.trf.xlu0
        %v3467 = vpop.trf.xlu0
        %v3468 = vpop.trf.xlu0
        %v3469 = vpop.trf.xlu0
        %v3470 = vpop.trf.xlu0
        %v3471 = vpop.trf.xlu0
        %v3472 = vpop.trf.xlu0
        %v3473 = vpop.trf.xlu0
        %v3474 = vpop.trf.xlu0
        %v3475 = vpop.trf.xlu0
        %v3476 = vpop.trf.xlu0
        %v3477 = vpop.trf.xlu0
        %v3478 = vpop.trf.xlu0
        %v3479 = vadd.f32 %v3445, %v3463
        %v3480 = vadd.f32 %v3479, %v3446
        %vm3481 = vcmp.ne.f32.partialorder %v3480, 0.0
        %v3482 = vsel %vm3481, 1, 0
        %v3483 = vcvt.s32.f32 %v3482
        %v3484 = vsel %vm3381, %v3480, -inf
        %3485 = vmax.xlane.f32.xlu0 %v3484
        %v3486 = vpop.xlane.xlu0 %3485
        %v3487 = vsub.f32 %v3480, %v3486
        %v3488 = vmul.f32 %v3487, 1.442695
        %v3489 = vpow.pop %v3488
        %v3490 = vsel %vm3381, %v3489, 0.0
        %3491 = vadd.xlane.f32.xlu0 %v3490
        %v3492 = vpop.xlane.xlu0 %3491
        %v3493 = vrcp.pop %v3492
        %v3494 = vmul.f32 %v3489, %v3493
        %v3495 = vmul.f32 %v3494, %v3483
        %v3496 = vsel %vm3340, %v2828, 0.0
        %v3497 = vsel %vm3342, %v2828, 0.0
        %3498 = vxpose.xlu0.b32.start [1/16] %v3496, 128
        %3499 = vxpose.xlu0.b32.cont [2/16] 0.0, 128
        %3500 = vxpose.xlu0.b32.cont [3/16] 0.0, 128
        %3501 = vxpose.xlu0.b32.cont [4/16] 0.0, 128
        %3502 = vxpose.xlu0.b32.cont [5/16] 0.0, 128
        %3503 = vxpose.xlu0.b32.cont [6/16] 0.0, 128
        %3504 = vxpose.xlu0.b32.cont [7/16] 0.0, 128
        %3505 = vxpose.xlu0.b32.cont [8/16] 0.0, 128
        %3506 = vxpose.xlu0.b32.cont [9/16] 0.0, 128
        %3507 = vxpose.xlu0.b32.cont [10/16] 0.0, 128
        %3508 = vxpose.xlu0.b32.cont [11/16] 0.0, 128
        %3509 = vxpose.xlu0.b32.cont [12/16] 0.0, 128
        %3510 = vxpose.xlu0.b32.cont [13/16] 0.0, 128
        %3511 = vxpose.xlu0.b32.cont [14/16] 0.0, 128
        %3512 = vxpose.xlu0.b32.cont [15/16] 0.0, 128
        %3513 = vxpose.xlu0.b32.end [16/16] 0.0, 128
        %v3514 = vpop.trf.xlu0
        %v3515 = vpop.trf.xlu0
        %v3516 = vpop.trf.xlu0
        %v3517 = vpop.trf.xlu0
        %v3518 = vpop.trf.xlu0
        %v3519 = vpop.trf.xlu0
        %v3520 = vpop.trf.xlu0
        %v3521 = vpop.trf.xlu0
        %v3522 = vpop.trf.xlu0
        %v3523 = vpop.trf.xlu0
        %v3524 = vpop.trf.xlu0
        %v3525 = vpop.trf.xlu0
        %v3526 = vpop.trf.xlu0
        %v3527 = vpop.trf.xlu0
        %v3528 = vpop.trf.xlu0
        %v3529 = vpop.trf.xlu0
        %v3530 = vadd.f32 %v3496, %v3514
        %v3531 = vadd.f32 %v3530, %v3497
        %vm3532 = vcmp.ne.f32.partialorder %v3531, 0.0
        %v3533 = vsel %vm3532, 1, 0
        %v3534 = vcvt.s32.f32 %v3533
        %v3535 = vsel %vm3381, %v3531, -inf
        %3536 = vmax.xlane.f32.xlu0 %v3535
        %v3537 = vpop.xlane.xlu0 %3536
        %v3538 = vsub.f32 %v3531, %v3537
        %v3539 = vmul.f32 %v3538, 1.442695
        %v3540 = vpow.pop %v3539
        %v3541 = vsel %vm3381, %v3540, 0.0
        %3542 = vadd.xlane.f32.xlu0 %v3541
        %v3543 = vpop.xlane.xlu0 %3542
        %v3544 = vrcp.pop %v3543
        %v3545 = vmul.f32 %v3540, %v3544
        %v3546 = vmul.f32 %v3545, %v3534
        %v3547 = vsel %vm3340, %v3063, 0.0
        %v3548 = vsel %vm3342, %v3063, 0.0
        %3549 = vxpose.xlu0.b32.start [1/16] %v3547, 128
        %3550 = vxpose.xlu0.b32.cont [2/16] 0.0, 128
        %3551 = vxpose.xlu0.b32.cont [3/16] 0.0, 128
        %3552 = vxpose.xlu0.b32.cont [4/16] 0.0, 128
        %3553 = vxpose.xlu0.b32.cont [5/16] 0.0, 128
        %3554 = vxpose.xlu0.b32.cont [6/16] 0.0, 128
        %3555 = vxpose.xlu0.b32.cont [7/16] 0.0, 128
        %3556 = vxpose.xlu0.b32.cont [8/16] 0.0, 128
        %3557 = vxpose.xlu0.b32.cont [9/16] 0.0, 128
        %3558 = vxpose.xlu0.b32.cont [10/16] 0.0, 128
        %3559 = vxpose.xlu0.b32.cont [11/16] 0.0, 128
        %3560 = vxpose.xlu0.b32.cont [12/16] 0.0, 128
        %3561 = vxpose.xlu0.b32.cont [13/16] 0.0, 128
        %3562 = vxpose.xlu0.b32.cont [14/16] 0.0, 128
        %3563 = vxpose.xlu0.b32.cont [15/16] 0.0, 128
        %3564 = vxpose.xlu0.b32.end [16/16] 0.0, 128
        %v3565 = vpop.trf.xlu0
        %v3566 = vpop.trf.xlu0
        %v3567 = vpop.trf.xlu0
        %v3568 = vpop.trf.xlu0
        %v3569 = vpop.trf.xlu0
        %v3570 = vpop.trf.xlu0
        %v3571 = vpop.trf.xlu0
        %v3572 = vpop.trf.xlu0
        %v3573 = vpop.trf.xlu0
        %v3574 = vpop.trf.xlu0
        %v3575 = vpop.trf.xlu0
        %v3576 = vpop.trf.xlu0
        %v3577 = vpop.trf.xlu0
        %v3578 = vpop.trf.xlu0
        %v3579 = vpop.trf.xlu0
        %v3580 = vpop.trf.xlu0
        %v3581 = vadd.f32 %v3547, %v3565
        %v3582 = vadd.f32 %v3581, %v3548
        %vm3583 = vcmp.ne.f32.partialorder %v3582, 0.0
        %v3584 = vsel %vm3583, 1, 0
        %v3585 = vcvt.s32.f32 %v3584
        %v3586 = vsel %vm3381, %v3582, -inf
        %3587 = vmax.xlane.f32.xlu0 %v3586
        %v3588 = vpop.xlane.xlu0 %3587
        %v3589 = vsub.f32 %v3582, %v3588
        %v3590 = vmul.f32 %v3589, 1.442695
        %v3591 = vpow.pop %v3590
        %v3592 = vsel %vm3381, %v3591, 0.0
        %3593 = vadd.xlane.f32.xlu0 %v3592
        %v3594 = vpop.xlane.xlu0 %3593
        %v3595 = vrcp.pop %v3594
        %v3596 = vmul.f32 %v3591, %v3595
        %v3597 = vmul.f32 %v3596, %v3585
        %v3598 = vld [vmem:[#allocation13] sm:$0xff]
        %v3599 = vld [vmem:[#allocation13 + $0x8] sm:$0xff]
        %v3600 = vld [vmem:[#allocation13 + $0x10] sm:$0xff]
        %v3601 = vld [vmem:[#allocation13 + $0x18] sm:$0xff]
        %v3602 = vld [vmem:[#allocation13 + $0x20] sm:$0xff]
        %v3603 = vld [vmem:[#allocation13 + $0x28] sm:$0xff]
        %v3604 = vld [vmem:[#allocation13 + $0x30] sm:$0xff]
        %v3605 = vld [vmem:[#allocation13 + $0x38] sm:$0xff]
        %3606 = vmatprep.subr.mxu0 0.0
        %3607 = vmatpush1.msra.mxu0 0.0
        %3608 = vmatprep.subr.mxu0 0.0
        %3609 = vmatpush1.msra.mxu0 0.0
        %3610 = vmatprep.subr.mxu0 0.0
        %3611 = vmatpush1.msra.mxu0 0.0
        %3612 = vmatprep.subr.mxu0 0.0
        %3613 = vmatpush1.msra.mxu0 0.0
        %3614 = vmatprep.subr.mxu0 0.0
        %3615 = vmatpush1.msra.mxu0 0.0
        %3616 = vmatprep.subr.mxu0 0.0
        %3617 = vmatpush1.msra.mxu0 0.0
        %3618 = vmatprep.subr.mxu0 0.0
        %3619 = vmatpush1.msra.mxu0 0.0
        %3620 = vmatprep.subr.mxu0 0.0
        %3621 = vmatpush1.msra.mxu0 0.0
        %3622 = vmatprep.subr.mxu0 0.0
        %3623 = vmatpush1.msra.mxu0 0.0
        %3624 = vmatprep.subr.mxu0 0.0
        %3625 = vmatpush1.msra.mxu0 0.0
        %3626 = vmatprep.subr.mxu0 0.0
        %3627 = vmatpush1.msra.mxu0 0.0
        %3628 = vmatprep.subr.mxu0 0.0
        %3629 = vmatpush1.msra.mxu0 0.0
        %3630 = vmatprep.subr.mxu0 %v3605
        %3631 = vmatpush1.msra.mxu0 %v3604
        %3632 = vmatprep.subr.mxu0 %v3603
        %3633 = vmatpush1.msra.mxu0 %v3602
        %3634 = vmatprep.subr.mxu0 %v3601
        %3635 = vmatpush1.msra.mxu0 %v3600
        %3636 = vmatprep.subr.mxu0 %v3599
        %3637 = vmatpush1.msra.mxu0 %v3598
        %3638 = vmatprep.subr.mxu0 0.0
        %3639 = vmatpush2.msra.mxu0 0.0
        %3640 = vmatprep.subr.mxu0 0.0
        %3641 = vmatpush2.msra.mxu0 0.0
        %3642 = vmatprep.subr.mxu0 0.0
        %3643 = vmatpush2.msra.mxu0 0.0
        %3644 = vmatprep.subr.mxu0 0.0
        %3645 = vmatpush2.msra.mxu0 0.0
        %3646 = vmatprep.subr.mxu0 0.0
        %3647 = vmatpush2.msra.mxu0 0.0
        %3648 = vmatprep.subr.mxu0 0.0
        %3649 = vmatpush2.msra.mxu0 0.0
        %3650 = vmatprep.subr.mxu0 0.0
        %3651 = vmatpush2.msra.mxu0 0.0
        %3652 = vmatprep.subr.mxu0 0.0
        %3653 = vmatpush2.msra.mxu0 0.0
        %3654 = vmatprep.subr.mxu0 0.0
        %3655 = vmatpush2.msra.mxu0 0.0
        %3656 = vmatprep.subr.mxu0 0.0
        %3657 = vmatpush2.msra.mxu0 0.0
        %3658 = vmatprep.subr.mxu0 0.0
        %3659 = vmatpush2.msra.mxu0 0.0
        %3660 = vmatprep.subr.mxu0 0.0
        %3661 = vmatpush2.msra.mxu0 0.0
        %3662 = vmatprep.subr.mxu0 0.0
        %3663 = vmatpush2.msra.mxu0 0.0
        %3664 = vmatprep.subr.mxu0 0.0
        %3665 = vmatpush2.msra.mxu0 0.0
        %3666 = vmatprep.subr.mxu0 0.0
        %3667 = vmatpush2.msra.mxu0 0.0
        %3668 = vmatprep.subr.mxu0 0.0
        %3669 = vmatpush2.msra.mxu0 0.0
        %3670 = vmatprep.mubr.f32.mxu0 0.0
        %3671 = vmatmul.mubr.f32.gmra.mxu0 %v641
        %v3672 = vpop.f32.mrf.mxu0
        %v3673 = vadd.f32 0.0, %v3672
        %v3674 = vpop.f32.mrf.mxu0
        %v3675 = vadd.f32 0.0, %v3674
        %3676 = vdwg.mxu0
        %v3678 = vsel %vm3381, %v3393, 0
        %3680 = vmatprep.subr.mxu0 0.0
        %3681 = vmatpush1.msra.mxu0 0.0
        %3682 = vmatprep.subr.mxu0 0.0
        %3683 = vmatpush1.msra.mxu0 0.0
        %3684 = vmatprep.subr.mxu0 0.0
        %3685 = vmatpush1.msra.mxu0 0.0
        %3686 = vmatprep.subr.mxu0 0.0
        %3687 = vmatpush1.msra.mxu0 0.0
        %3688 = vmatprep.subr.mxu0 0.0
        %3689 = vmatpush1.msra.mxu0 0.0
        %3690 = vmatprep.subr.mxu0 0.0
        %3691 = vmatpush1.msra.mxu0 0.0
        %3692 = vmatprep.subr.mxu0 0.0
        %3693 = vmatpush1.msra.mxu0 0.0
        %3694 = vmatprep.subr.mxu0 0.0
        %3695 = vmatpush1.msra.mxu0 0.0
        %3696 = vmatprep.subr.mxu0 0.0
        %3697 = vmatpush1.msra.mxu0 0.0
        %3698 = vmatprep.subr.mxu0 0.0
        %3699 = vmatpush1.msra.mxu0 0.0
        %3700 = vmatprep.subr.mxu0 0.0
        %3701 = vmatpush1.msra.mxu0 0.0
        %3702 = vmatprep.subr.mxu0 0.0
        %3703 = vmatpush1.msra.mxu0 0.0
        %3704 = vmatprep.subr.mxu0 0.0
        %3705 = vmatpush1.msra.mxu0 0.0
        %3706 = vmatprep.subr.mxu0 0.0
        %3707 = vmatpush1.msra.mxu0 0.0
        %3708 = vmatprep.subr.mxu0 0.0
        %3709 = vmatpush1.msra.mxu0 0.0
        %3710 = vmatprep.subr.mxu0 0.0
        %3711 = vmatpush1.msra.mxu0 %v3673
        %3712 = vmatprep.subr.mxu0 0.0
        %3713 = vmatpush2.msra.mxu0 0.0
        %3714 = vmatprep.subr.mxu0 0.0
        %3715 = vmatpush2.msra.mxu0 0.0
        %3716 = vmatprep.subr.mxu0 0.0
        %3717 = vmatpush2.msra.mxu0 0.0
        %3718 = vmatprep.subr.mxu0 0.0
        %3719 = vmatpush2.msra.mxu0 0.0
        %3720 = vmatprep.subr.mxu0 0.0
        %3721 = vmatpush2.msra.mxu0 0.0
        %3722 = vmatprep.subr.mxu0 0.0
        %3723 = vmatpush2.msra.mxu0 0.0
        %3724 = vmatprep.subr.mxu0 0.0
        %3725 = vmatpush2.msra.mxu0 0.0
        %3726 = vmatprep.subr.mxu0 0.0
        %3727 = vmatpush2.msra.mxu0 0.0
        %3728 = vmatprep.subr.mxu0 0.0
        %3729 = vmatpush2.msra.mxu0 0.0
        %3730 = vmatprep.subr.mxu0 0.0
        %3731 = vmatpush2.msra.mxu0 0.0
        %3732 = vmatprep.subr.mxu0 0.0
        %3733 = vmatpush2.msra.mxu0 0.0
        %3734 = vmatprep.subr.mxu0 0.0
        %3735 = vmatpush2.msra.mxu0 0.0
        %3736 = vmatprep.subr.mxu0 0.0
        %3737 = vmatpush2.msra.mxu0 0.0
        %3738 = vmatprep.subr.mxu0 0.0
        %3739 = vmatpush2.msra.mxu0 0.0
        %3740 = vmatprep.subr.mxu0 0.0
        %3741 = vmatpush2.msra.mxu0 0.0
        %3742 = vmatprep.subr.mxu0 0.0
        %3743 = vmatpush2.msra.mxu0 0.0
        %3744 = vmatprep.mubr.f32.mxu0 0.0
        %3745 = vmatmul.mubr.f32.gmra.mxu0 %v3678
        %v3746 = vpop.f32.mrf.mxu0
        %v3747 = vadd.f32 0.0, %v3746
        %v3748 = vpop.f32.mrf.mxu0
        %3749 = vdwg.mxu0
        %v3750 = vmax.f32 %v3747, 0.0
        %v3751 = vadd.f32 %v3750, 0.0
        %3753 = vrot.lane.b32.xlu0 %v3673, 96
        %v3754 = vpop.permute.xlu0 %3753
        %v3757 = vsel %vm3381, %v3444, 0
        %3759 = vmatprep.subr.mxu0 0.0
        %3760 = vmatpush1.msra.mxu0 0.0
        %3761 = vmatprep.subr.mxu0 0.0
        %3762 = vmatpush1.msra.mxu0 0.0
        %3763 = vmatprep.subr.mxu0 0.0
        %3764 = vmatpush1.msra.mxu0 0.0
        %3765 = vmatprep.subr.mxu0 0.0
        %3766 = vmatpush1.msra.mxu0 0.0
        %3767 = vmatprep.subr.mxu0 0.0
        %3768 = vmatpush1.msra.mxu0 0.0
        %3769 = vmatprep.subr.mxu0 0.0
        %3770 = vmatpush1.msra.mxu0 0.0
        %3771 = vmatprep.subr.mxu0 0.0
        %3772 = vmatpush1.msra.mxu0 0.0
        %3773 = vmatprep.subr.mxu0 0.0
        %3774 = vmatpush1.msra.mxu0 0.0
        %3775 = vmatprep.subr.mxu0 0.0
        %3776 = vmatpush1.msra.mxu0 0.0
        %3777 = vmatprep.subr.mxu0 0.0
        %3778 = vmatpush1.msra.mxu0 0.0
        %3779 = vmatprep.subr.mxu0 0.0
        %3780 = vmatpush1.msra.mxu0 0.0
        %3781 = vmatprep.subr.mxu0 0.0
        %3782 = vmatpush1.msra.mxu0 0.0
        %3783 = vmatprep.subr.mxu0 0.0
        %3784 = vmatpush1.msra.mxu0 0.0
        %3785 = vmatprep.subr.mxu0 0.0
        %3786 = vmatpush1.msra.mxu0 0.0
        %3787 = vmatprep.subr.mxu0 0.0
        %3788 = vmatpush1.msra.mxu0 0.0
        %3789 = vmatprep.subr.mxu0 0.0
        %3790 = vmatpush1.msra.mxu0 %v3754
        %3791 = vmatprep.subr.mxu0 0.0
        %3792 = vmatpush2.msra.mxu0 0.0
        %3793 = vmatprep.subr.mxu0 0.0
        %3794 = vmatpush2.msra.mxu0 0.0
        %3795 = vmatprep.subr.mxu0 0.0
        %3796 = vmatpush2.msra.mxu0 0.0
        %3797 = vmatprep.subr.mxu0 0.0
        %3798 = vmatpush2.msra.mxu0 0.0
        %3799 = vmatprep.subr.mxu0 0.0
        %3800 = vmatpush2.msra.mxu0 0.0
        %3801 = vmatprep.subr.mxu0 0.0
        %3802 = vmatpush2.msra.mxu0 0.0
        %3803 = vmatprep.subr.mxu0 0.0
        %3804 = vmatpush2.msra.mxu0 0.0
        %3805 = vmatprep.subr.mxu0 0.0
        %3806 = vmatpush2.msra.mxu0 0.0
        %3807 = vmatprep.subr.mxu0 0.0
        %3808 = vmatpush2.msra.mxu0 0.0
        %3809 = vmatprep.subr.mxu0 0.0
        %3810 = vmatpush2.msra.mxu0 0.0
        %3811 = vmatprep.subr.mxu0 0.0
        %3812 = vmatpush2.msra.mxu0 0.0
        %3813 = vmatprep.subr.mxu0 0.0
        %3814 = vmatpush2.msra.mxu0 0.0
        %3815 = vmatprep.subr.mxu0 0.0
        %3816 = vmatpush2.msra.mxu0 0.0
        %3817 = vmatprep.subr.mxu0 0.0
        %3818 = vmatpush2.msra.mxu0 0.0
        %3819 = vmatprep.subr.mxu0 0.0
        %3820 = vmatpush2.msra.mxu0 0.0
        %3821 = vmatprep.subr.mxu0 0.0
        %3822 = vmatpush2.msra.mxu0 0.0
        %3823 = vmatprep.mubr.f32.mxu0 0.0
        %3824 = vmatmul.mubr.f32.gmra.mxu0 %v3757
        %v3825 = vpop.f32.mrf.mxu0
        %v3826 = vadd.f32 0.0, %v3825
        %v3827 = vpop.f32.mrf.mxu0
        %3828 = vdwg.mxu0
        %v3829 = vmax.f32 %v3826, 0.0
        %v3830 = vadd.f32 %v3751, %v3829
        %3831 = vrot.lane.b32.xlu0 %v3673, 64
        %v3832 = vpop.permute.xlu0 %3831
        %v3835 = vsel %vm3381, %v3495, 0
        %3837 = vmatprep.subr.mxu0 0.0
        %3838 = vmatpush1.msra.mxu0 0.0
        %3839 = vmatprep.subr.mxu0 0.0
        %3840 = vmatpush1.msra.mxu0 0.0
        %3841 = vmatprep.subr.mxu0 0.0
        %3842 = vmatpush1.msra.mxu0 0.0
        %3843 = vmatprep.subr.mxu0 0.0
        %3844 = vmatpush1.msra.mxu0 0.0
        %3845 = vmatprep.subr.mxu0 0.0
        %3846 = vmatpush1.msra.mxu0 0.0
        %3847 = vmatprep.subr.mxu0 0.0
        %3848 = vmatpush1.msra.mxu0 0.0
        %3849 = vmatprep.subr.mxu0 0.0
        %3850 = vmatpush1.msra.mxu0 0.0
        %3851 = vmatprep.subr.mxu0 0.0
        %3852 = vmatpush1.msra.mxu0 0.0
        %3853 = vmatprep.subr.mxu0 0.0
        %3854 = vmatpush1.msra.mxu0 0.0
        %3855 = vmatprep.subr.mxu0 0.0
        %3856 = vmatpush1.msra.mxu0 0.0
        %3857 = vmatprep.subr.mxu0 0.0
        %3858 = vmatpush1.msra.mxu0 0.0
        %3859 = vmatprep.subr.mxu0 0.0
        %3860 = vmatpush1.msra.mxu0 0.0
        %3861 = vmatprep.subr.mxu0 0.0
        %3862 = vmatpush1.msra.mxu0 0.0
        %3863 = vmatprep.subr.mxu0 0.0
        %3864 = vmatpush1.msra.mxu0 0.0
        %3865 = vmatprep.subr.mxu0 0.0
        %3866 = vmatpush1.msra.mxu0 0.0
        %3867 = vmatprep.subr.mxu0 0.0
        %3868 = vmatpush1.msra.mxu0 %v3832
        %3869 = vmatprep.subr.mxu0 0.0
        %3870 = vmatpush2.msra.mxu0 0.0
        %3871 = vmatprep.subr.mxu0 0.0
        %3872 = vmatpush2.msra.mxu0 0.0
        %3873 = vmatprep.subr.mxu0 0.0
        %3874 = vmatpush2.msra.mxu0 0.0
        %3875 = vmatprep.subr.mxu0 0.0
        %3876 = vmatpush2.msra.mxu0 0.0
        %3877 = vmatprep.subr.mxu0 0.0
        %3878 = vmatpush2.msra.mxu0 0.0
        %3879 = vmatprep.subr.mxu0 0.0
        %3880 = vmatpush2.msra.mxu0 0.0
        %3881 = vmatprep.subr.mxu0 0.0
        %3882 = vmatpush2.msra.mxu0 0.0
        %3883 = vmatprep.subr.mxu0 0.0
        %3884 = vmatpush2.msra.mxu0 0.0
        %3885 = vmatprep.subr.mxu0 0.0
        %3886 = vmatpush2.msra.mxu0 0.0
        %3887 = vmatprep.subr.mxu0 0.0
        %3888 = vmatpush2.msra.mxu0 0.0
        %3889 = vmatprep.subr.mxu0 0.0
        %3890 = vmatpush2.msra.mxu0 0.0
        %3891 = vmatprep.subr.mxu0 0.0
        %3892 = vmatpush2.msra.mxu0 0.0
        %3893 = vmatprep.subr.mxu0 0.0
        %3894 = vmatpush2.msra.mxu0 0.0
        %3895 = vmatprep.subr.mxu0 0.0
        %3896 = vmatpush2.msra.mxu0 0.0
        %3897 = vmatprep.subr.mxu0 0.0
        %3898 = vmatpush2.msra.mxu0 0.0
        %3899 = vmatprep.subr.mxu0 0.0
        %3900 = vmatpush2.msra.mxu0 0.0
        %3901 = vmatprep.mubr.f32.mxu0 0.0
        %3902 = vmatmul.mubr.f32.gmra.mxu0 %v3835
        %v3903 = vpop.f32.mrf.mxu0
        %v3904 = vadd.f32 0.0, %v3903
        %v3905 = vpop.f32.mrf.mxu0
        %3906 = vdwg.mxu0
        %v3907 = vmax.f32 %v3904, 0.0
        %v3908 = vadd.f32 %v3830, %v3907
        %3909 = vrot.lane.b32.xlu0 %v3673, 32
        %v3910 = vpop.permute.xlu0 %3909
        %v3913 = vsel %vm3381, %v3546, 0
        %3915 = vmatprep.subr.mxu0 0.0
        %3916 = vmatpush1.msra.mxu0 0.0
        %3917 = vmatprep.subr.mxu0 0.0
        %3918 = vmatpush1.msra.mxu0 0.0
        %3919 = vmatprep.subr.mxu0 0.0
        %3920 = vmatpush1.msra.mxu0 0.0
        %3921 = vmatprep.subr.mxu0 0.0
        %3922 = vmatpush1.msra.mxu0 0.0
        %3923 = vmatprep.subr.mxu0 0.0
        %3924 = vmatpush1.msra.mxu0 0.0
        %3925 = vmatprep.subr.mxu0 0.0
        %3926 = vmatpush1.msra.mxu0 0.0
        %3927 = vmatprep.subr.mxu0 0.0
        %3928 = vmatpush1.msra.mxu0 0.0
        %3929 = vmatprep.subr.mxu0 0.0
        %3930 = vmatpush1.msra.mxu0 0.0
        %3931 = vmatprep.subr.mxu0 0.0
        %3932 = vmatpush1.msra.mxu0 0.0
        %3933 = vmatprep.subr.mxu0 0.0
        %3934 = vmatpush1.msra.mxu0 0.0
        %3935 = vmatprep.subr.mxu0 0.0
        %3936 = vmatpush1.msra.mxu0 0.0
        %3937 = vmatprep.subr.mxu0 0.0
        %3938 = vmatpush1.msra.mxu0 0.0
        %3939 = vmatprep.subr.mxu0 0.0
        %3940 = vmatpush1.msra.mxu0 0.0
        %3941 = vmatprep.subr.mxu0 0.0
        %3942 = vmatpush1.msra.mxu0 0.0
        %3943 = vmatprep.subr.mxu0 0.0
        %3944 = vmatpush1.msra.mxu0 0.0
        %3945 = vmatprep.subr.mxu0 0.0
        %3946 = vmatpush1.msra.mxu0 %v3910
        %3947 = vmatprep.subr.mxu0 0.0
        %3948 = vmatpush2.msra.mxu0 0.0
        %3949 = vmatprep.subr.mxu0 0.0
        %3950 = vmatpush2.msra.mxu0 0.0
        %3951 = vmatprep.subr.mxu0 0.0
        %3952 = vmatpush2.msra.mxu0 0.0
        %3953 = vmatprep.subr.mxu0 0.0
        %3954 = vmatpush2.msra.mxu0 0.0
        %3955 = vmatprep.subr.mxu0 0.0
        %3956 = vmatpush2.msra.mxu0 0.0
        %3957 = vmatprep.subr.mxu0 0.0
        %3958 = vmatpush2.msra.mxu0 0.0
        %3959 = vmatprep.subr.mxu0 0.0
        %3960 = vmatpush2.msra.mxu0 0.0
        %3961 = vmatprep.subr.mxu0 0.0
        %3962 = vmatpush2.msra.mxu0 0.0
        %3963 = vmatprep.subr.mxu0 0.0
        %3964 = vmatpush2.msra.mxu0 0.0
        %3965 = vmatprep.subr.mxu0 0.0
        %3966 = vmatpush2.msra.mxu0 0.0
        %3967 = vmatprep.subr.mxu0 0.0
        %3968 = vmatpush2.msra.mxu0 0.0
        %3969 = vmatprep.subr.mxu0 0.0
        %3970 = vmatpush2.msra.mxu0 0.0
        %3971 = vmatprep.subr.mxu0 0.0
        %3972 = vmatpush2.msra.mxu0 0.0
        %3973 = vmatprep.subr.mxu0 0.0
        %3974 = vmatpush2.msra.mxu0 0.0
        %3975 = vmatprep.subr.mxu0 0.0
        %3976 = vmatpush2.msra.mxu0 0.0
        %3977 = vmatprep.subr.mxu0 0.0
        %3978 = vmatpush2.msra.mxu0 0.0
        %3979 = vmatprep.mubr.f32.mxu0 0.0
        %3980 = vmatmul.mubr.f32.gmra.mxu0 %v3913
        %v3981 = vpop.f32.mrf.mxu0
        %v3982 = vadd.f32 0.0, %v3981
        %v3983 = vpop.f32.mrf.mxu0
        %3984 = vdwg.mxu0
        %v3985 = vmax.f32 %v3982, 0.0
        %v3986 = vadd.f32 %v3908, %v3985
        %v3988 = vsel %vm3381, %v3597, 0
        %3990 = vmatprep.subr.mxu0 0.0
        %3991 = vmatpush1.msra.mxu0 0.0
        %3992 = vmatprep.subr.mxu0 0.0
        %3993 = vmatpush1.msra.mxu0 0.0
        %3994 = vmatprep.subr.mxu0 0.0
        %3995 = vmatpush1.msra.mxu0 0.0
        %3996 = vmatprep.subr.mxu0 0.0
        %3997 = vmatpush1.msra.mxu0 0.0
        %3998 = vmatprep.subr.mxu0 0.0
        %3999 = vmatpush1.msra.mxu0 0.0
        %4000 = vmatprep.subr.mxu0 0.0
        %4001 = vmatpush1.msra.mxu0 0.0
        %4002 = vmatprep.subr.mxu0 0.0
        %4003 = vmatpush1.msra.mxu0 0.0
        %4004 = vmatprep.subr.mxu0 0.0
        %4005 = vmatpush1.msra.mxu0 0.0
        %4006 = vmatprep.subr.mxu0 0.0
        %4007 = vmatpush1.msra.mxu0 0.0
        %4008 = vmatprep.subr.mxu0 0.0
        %4009 = vmatpush1.msra.mxu0 0.0
        %4010 = vmatprep.subr.mxu0 0.0
        %4011 = vmatpush1.msra.mxu0 0.0
        %4012 = vmatprep.subr.mxu0 0.0
        %4013 = vmatpush1.msra.mxu0 0.0
        %4014 = vmatprep.subr.mxu0 0.0
        %4015 = vmatpush1.msra.mxu0 0.0
        %4016 = vmatprep.subr.mxu0 0.0
        %4017 = vmatpush1.msra.mxu0 0.0
        %4018 = vmatprep.subr.mxu0 0.0
        %4019 = vmatpush1.msra.mxu0 0.0
        %4020 = vmatprep.subr.mxu0 0.0
        %4021 = vmatpush1.msra.mxu0 %v3675
        %4022 = vmatprep.subr.mxu0 0.0
        %4023 = vmatpush2.msra.mxu0 0.0
        %4024 = vmatprep.subr.mxu0 0.0
        %4025 = vmatpush2.msra.mxu0 0.0
        %4026 = vmatprep.subr.mxu0 0.0
        %4027 = vmatpush2.msra.mxu0 0.0
        %4028 = vmatprep.subr.mxu0 0.0
        %4029 = vmatpush2.msra.mxu0 0.0
        %4030 = vmatprep.subr.mxu0 0.0
        %4031 = vmatpush2.msra.mxu0 0.0
        %4032 = vmatprep.subr.mxu0 0.0
        %4033 = vmatpush2.msra.mxu0 0.0
        %4034 = vmatprep.subr.mxu0 0.0
        %4035 = vmatpush2.msra.mxu0 0.0
        %4036 = vmatprep.subr.mxu0 0.0
        %4037 = vmatpush2.msra.mxu0 0.0
        %4038 = vmatprep.subr.mxu0 0.0
        %4039 = vmatpush2.msra.mxu0 0.0
        %4040 = vmatprep.subr.mxu0 0.0
        %4041 = vmatpush2.msra.mxu0 0.0
        %4042 = vmatprep.subr.mxu0 0.0
        %4043 = vmatpush2.msra.mxu0 0.0
        %4044 = vmatprep.subr.mxu0 0.0
        %4045 = vmatpush2.msra.mxu0 0.0
        %4046 = vmatprep.subr.mxu0 0.0
        %4047 = vmatpush2.msra.mxu0 0.0
        %4048 = vmatprep.subr.mxu0 0.0
        %4049 = vmatpush2.msra.mxu0 0.0
        %4050 = vmatprep.subr.mxu0 0.0
        %4051 = vmatpush2.msra.mxu0 0.0
        %4052 = vmatprep.subr.mxu0 0.0
        %4053 = vmatpush2.msra.mxu0 0.0
        %4054 = vmatprep.mubr.f32.mxu0 0.0
        %4055 = vmatmul.mubr.f32.gmra.mxu0 %v3988
        %v4056 = vpop.f32.mrf.mxu0
        %v4057 = vadd.f32 0.0, %v4056
        %v4058 = vpop.f32.mrf.mxu0
        %4059 = vdwg.mxu0
        %v4060 = vmax.f32 %v4057, 0.0
        %v4061 = vadd.f32 %v3986, %v4060
        %v4062 = vmax.f32 %v4061, 0.0
        %v4063 = vrcp.pop 5.0
        %v4064 = vmul.f32 %v4062, %v4063
        %v4065 = vsel %vm639, %v4064, 0.0
        %4066 = vadd.xlane.f32.xlu0 %v4065
        %v4067 = vpop.xlane.xlu0 %4066
        %v4068 = vrcp.pop 32.0
        %v4069 = vmul.f32 %v4067, %v4068
        %v4070 = vsub.f32 %v4064, %v4069
        %v4071 = vmul.f32 %v4070, %v4070
        %v4072 = vsel %vm639, %v4071, 0.0
        %4073 = vadd.xlane.f32.xlu0 %v4072
        %v4074 = vpop.xlane.xlu0 %4073
        %v4075 = vmul.f32 %v4074, %v4068
        %v4076 = vadd.f32 %v4075, 1e-05
        %v4077 = vrsqrt.pop %v4076
        %v4078 = vmul.f32 %v4070, %v4077
        %s4079 = scalar_lea.vmem [#allocation13], 64
        %v4080 = vld [vmem:[%s4079] sm:$0xff]
        %v4081 = vld [vmem:[%s4079 + $0x8] sm:$0xff]
        %v4082 = vld [vmem:[%s4079 + $0x10] sm:$0xff]
        %v4083 = vld [vmem:[%s4079 + $0x18] sm:$0xff]
        %v4084 = vld [vmem:[%s4079 + $0x20] sm:$0xff]
        %v4085 = vld [vmem:[%s4079 + $0x28] sm:$0xff]
        %v4086 = vld [vmem:[%s4079 + $0x30] sm:$0xff]
        %v4087 = vld [vmem:[%s4079 + $0x38] sm:$0xff]
        %v4089 = vsel %vm639, %v4078, 0
        %4091 = vmatprep.subr.mxu0 0.0
        %4092 = vmatpush1.msra.mxu0 0.0
        %4093 = vmatprep.subr.mxu0 0.0
        %4094 = vmatpush1.msra.mxu0 0.0
        %4095 = vmatprep.subr.mxu0 0.0
        %4096 = vmatpush1.msra.mxu0 0.0
        %4097 = vmatprep.subr.mxu0 0.0
        %4098 = vmatpush1.msra.mxu0 0.0
        %4099 = vmatprep.subr.mxu0 0.0
        %4100 = vmatpush1.msra.mxu0 0.0
        %4101 = vmatprep.subr.mxu0 0.0
        %4102 = vmatpush1.msra.mxu0 0.0
        %4103 = vmatprep.subr.mxu0 0.0
        %4104 = vmatpush1.msra.mxu0 0.0
        %4105 = vmatprep.subr.mxu0 0.0
        %4106 = vmatpush1.msra.mxu0 0.0
        %4107 = vmatprep.subr.mxu0 0.0
        %4108 = vmatpush1.msra.mxu0 0.0
        %4109 = vmatprep.subr.mxu0 0.0
        %4110 = vmatpush1.msra.mxu0 0.0
        %4111 = vmatprep.subr.mxu0 0.0
        %4112 = vmatpush1.msra.mxu0 0.0
        %4113 = vmatprep.subr.mxu0 0.0
        %4114 = vmatpush1.msra.mxu0 0.0
        %4115 = vmatprep.subr.mxu0 %v4087
        %4116 = vmatpush1.msra.mxu0 %v4086
        %4117 = vmatprep.subr.mxu0 %v4085
        %4118 = vmatpush1.msra.mxu0 %v4084
        %4119 = vmatprep.subr.mxu0 %v4083
        %4120 = vmatpush1.msra.mxu0 %v4082
        %4121 = vmatprep.subr.mxu0 %v4081
        %4122 = vmatpush1.msra.mxu0 %v4080
        %4123 = vmatprep.subr.mxu0 0.0
        %4124 = vmatpush2.msra.mxu0 0.0
        %4125 = vmatprep.subr.mxu0 0.0
        %4126 = vmatpush2.msra.mxu0 0.0
        %4127 = vmatprep.subr.mxu0 0.0
        %4128 = vmatpush2.msra.mxu0 0.0
        %4129 = vmatprep.subr.mxu0 0.0
        %4130 = vmatpush2.msra.mxu0 0.0
        %4131 = vmatprep.subr.mxu0 0.0
        %4132 = vmatpush2.msra.mxu0 0.0
        %4133 = vmatprep.subr.mxu0 0.0
        %4134 = vmatpush2.msra.mxu0 0.0
        %4135 = vmatprep.subr.mxu0 0.0
        %4136 = vmatpush2.msra.mxu0 0.0
        %4137 = vmatprep.subr.mxu0 0.0
        %4138 = vmatpush2.msra.mxu0 0.0
        %4139 = vmatprep.subr.mxu0 0.0
        %4140 = vmatpush2.msra.mxu0 0.0
        %4141 = vmatprep.subr.mxu0 0.0
        %4142 = vmatpush2.msra.mxu0 0.0
        %4143 = vmatprep.subr.mxu0 0.0
        %4144 = vmatpush2.msra.mxu0 0.0
        %4145 = vmatprep.subr.mxu0 0.0
        %4146 = vmatpush2.msra.mxu0 0.0
        %4147 = vmatprep.subr.mxu0 0.0
        %4148 = vmatpush2.msra.mxu0 0.0
        %4149 = vmatprep.subr.mxu0 0.0
        %4150 = vmatpush2.msra.mxu0 0.0
        %4151 = vmatprep.subr.mxu0 0.0
        %4152 = vmatpush2.msra.mxu0 0.0
        %4153 = vmatprep.subr.mxu0 0.0
        %4154 = vmatpush2.msra.mxu0 0.0
        %4155 = vmatprep.mubr.f32.mxu0 0.0
        %4156 = vmatmul.mubr.f32.gmra.mxu0 %v4089
        %v4157 = vpop.f32.mrf.mxu0
        %v4158 = vadd.f32 0.0, %v4157
        %v4159 = vpop.f32.mrf.mxu0
        %v4160 = vadd.f32 0.0, %v4159
        %4161 = vdwg.mxu0
        %4162 = vmatprep.subr.mxu0 0.0
        %4163 = vmatpush1.msra.mxu0 0.0
        %4164 = vmatprep.subr.mxu0 0.0
        %4165 = vmatpush1.msra.mxu0 0.0
        %4166 = vmatprep.subr.mxu0 0.0
        %4167 = vmatpush1.msra.mxu0 0.0
        %4168 = vmatprep.subr.mxu0 0.0
        %4169 = vmatpush1.msra.mxu0 0.0
        %4170 = vmatprep.subr.mxu0 0.0
        %4171 = vmatpush1.msra.mxu0 0.0
        %4172 = vmatprep.subr.mxu0 0.0
        %4173 = vmatpush1.msra.mxu0 0.0
        %4174 = vmatprep.subr.mxu0 0.0
        %4175 = vmatpush1.msra.mxu0 0.0
        %4176 = vmatprep.subr.mxu0 0.0
        %4177 = vmatpush1.msra.mxu0 0.0
        %4178 = vmatprep.subr.mxu0 0.0
        %4179 = vmatpush1.msra.mxu0 0.0
        %4180 = vmatprep.subr.mxu0 0.0
        %4181 = vmatpush1.msra.mxu0 0.0
        %4182 = vmatprep.subr.mxu0 0.0
        %4183 = vmatpush1.msra.mxu0 0.0
        %4184 = vmatprep.subr.mxu0 0.0
        %4185 = vmatpush1.msra.mxu0 0.0
        %4186 = vmatprep.subr.mxu0 0.0
        %4187 = vmatpush1.msra.mxu0 0.0
        %4188 = vmatprep.subr.mxu0 0.0
        %4189 = vmatpush1.msra.mxu0 0.0
        %4190 = vmatprep.subr.mxu0 0.0
        %4191 = vmatpush1.msra.mxu0 0.0
        %4192 = vmatprep.subr.mxu0 0.0
        %4193 = vmatpush1.msra.mxu0 %v4158
        %4194 = vmatprep.subr.mxu0 0.0
        %4195 = vmatpush2.msra.mxu0 0.0
        %4196 = vmatprep.subr.mxu0 0.0
        %4197 = vmatpush2.msra.mxu0 0.0
        %4198 = vmatprep.subr.mxu0 0.0
        %4199 = vmatpush2.msra.mxu0 0.0
        %4200 = vmatprep.subr.mxu0 0.0
        %4201 = vmatpush2.msra.mxu0 0.0
        %4202 = vmatprep.subr.mxu0 0.0
        %4203 = vmatpush2.msra.mxu0 0.0
        %4204 = vmatprep.subr.mxu0 0.0
        %4205 = vmatpush2.msra.mxu0 0.0
        %4206 = vmatprep.subr.mxu0 0.0
        %4207 = vmatpush2.msra.mxu0 0.0
        %4208 = vmatprep.subr.mxu0 0.0
        %4209 = vmatpush2.msra.mxu0 0.0
        %4210 = vmatprep.subr.mxu0 0.0
        %4211 = vmatpush2.msra.mxu0 0.0
        %4212 = vmatprep.subr.mxu0 0.0
        %4213 = vmatpush2.msra.mxu0 0.0
        %4214 = vmatprep.subr.mxu0 0.0
        %4215 = vmatpush2.msra.mxu0 0.0
        %4216 = vmatprep.subr.mxu0 0.0
        %4217 = vmatpush2.msra.mxu0 0.0
        %4218 = vmatprep.subr.mxu0 0.0
        %4219 = vmatpush2.msra.mxu0 0.0
        %4220 = vmatprep.subr.mxu0 0.0
        %4221 = vmatpush2.msra.mxu0 0.0
        %4222 = vmatprep.subr.mxu0 0.0
        %4223 = vmatpush2.msra.mxu0 0.0
        %4224 = vmatprep.subr.mxu0 0.0
        %4225 = vmatpush2.msra.mxu0 0.0
        %4226 = vmatprep.mubr.f32.mxu0 0.0
        %4227 = vmatmul.mubr.f32.gmra.mxu0 %v3678
        %v4228 = vpop.f32.mrf.mxu0
        %v4229 = vadd.f32 0.0, %v4228
        %v4230 = vpop.f32.mrf.mxu0
        %4231 = vdwg.mxu0
        %v4232 = vmax.f32 %v4229, 0.0
        %v4233 = vadd.f32 %v4232, 0.0
        %4235 = vrot.lane.b32.xlu0 %v4158, 96
        %v4236 = vpop.permute.xlu0 %4235
        %4238 = vmatprep.subr.mxu0 0.0
        %4239 = vmatpush1.msra.mxu0 0.0
        %4240 = vmatprep.subr.mxu0 0.0
        %4241 = vmatpush1.msra.mxu0 0.0
        %4242 = vmatprep.subr.mxu0 0.0
        %4243 = vmatpush1.msra.mxu0 0.0
        %4244 = vmatprep.subr.mxu0 0.0
        %4245 = vmatpush1.msra.mxu0 0.0
        %4246 = vmatprep.subr.mxu0 0.0
        %4247 = vmatpush1.msra.mxu0 0.0
        %4248 = vmatprep.subr.mxu0 0.0
        %4249 = vmatpush1.msra.mxu0 0.0
        %4250 = vmatprep.subr.mxu0 0.0
        %4251 = vmatpush1.msra.mxu0 0.0
        %4252 = vmatprep.subr.mxu0 0.0
        %4253 = vmatpush1.msra.mxu0 0.0
        %4254 = vmatprep.subr.mxu0 0.0
        %4255 = vmatpush1.msra.mxu0 0.0
        %4256 = vmatprep.subr.mxu0 0.0
        %4257 = vmatpush1.msra.mxu0 0.0
        %4258 = vmatprep.subr.mxu0 0.0
        %4259 = vmatpush1.msra.mxu0 0.0
        %4260 = vmatprep.subr.mxu0 0.0
        %4261 = vmatpush1.msra.mxu0 0.0
        %4262 = vmatprep.subr.mxu0 0.0
        %4263 = vmatpush1.msra.mxu0 0.0
        %4264 = vmatprep.subr.mxu0 0.0
        %4265 = vmatpush1.msra.mxu0 0.0
        %4266 = vmatprep.subr.mxu0 0.0
        %4267 = vmatpush1.msra.mxu0 0.0
        %4268 = vmatprep.subr.mxu0 0.0
        %4269 = vmatpush1.msra.mxu0 %v4236
        %4270 = vmatprep.subr.mxu0 0.0
        %4271 = vmatpush2.msra.mxu0 0.0
        %4272 = vmatprep.subr.mxu0 0.0
        %4273 = vmatpush2.msra.mxu0 0.0
        %4274 = vmatprep.subr.mxu0 0.0
        %4275 = vmatpush2.msra.mxu0 0.0
        %4276 = vmatprep.subr.mxu0 0.0
        %4277 = vmatpush2.msra.mxu0 0.0
        %4278 = vmatprep.subr.mxu0 0.0
        %4279 = vmatpush2.msra.mxu0 0.0
        %4280 = vmatprep.subr.mxu0 0.0
        %4281 = vmatpush2.msra.mxu0 0.0
        %4282 = vmatprep.subr.mxu0 0.0
        %4283 = vmatpush2.msra.mxu0 0.0
        %4284 = vmatprep.subr.mxu0 0.0
        %4285 = vmatpush2.msra.mxu0 0.0
        %4286 = vmatprep.subr.mxu0 0.0
        %4287 = vmatpush2.msra.mxu0 0.0
        %4288 = vmatprep.subr.mxu0 0.0
        %4289 = vmatpush2.msra.mxu0 0.0
        %4290 = vmatprep.subr.mxu0 0.0
        %4291 = vmatpush2.msra.mxu0 0.0
        %4292 = vmatprep.subr.mxu0 0.0
        %4293 = vmatpush2.msra.mxu0 0.0
        %4294 = vmatprep.subr.mxu0 0.0
        %4295 = vmatpush2.msra.mxu0 0.0
        %4296 = vmatprep.subr.mxu0 0.0
        %4297 = vmatpush2.msra.mxu0 0.0
        %4298 = vmatprep.subr.mxu0 0.0
        %4299 = vmatpush2.msra.mxu0 0.0
        %4300 = vmatprep.subr.mxu0 0.0
        %4301 = vmatpush2.msra.mxu0 0.0
        %4302 = vmatprep.mubr.f32.mxu0 0.0
        %4303 = vmatmul.mubr.f32.gmra.mxu0 %v3757
        %v4304 = vpop.f32.mrf.mxu0
        %v4305 = vadd.f32 0.0, %v4304
        %v4306 = vpop.f32.mrf.mxu0
        %4307 = vdwg.mxu0
        %v4308 = vmax.f32 %v4305, 0.0
        %v4309 = vadd.f32 %v4233, %v4308
        %4310 = vrot.lane.b32.xlu0 %v4158, 64
        %v4311 = vpop.permute.xlu0 %4310
        %4313 = vmatprep.subr.mxu0 0.0
        %4314 = vmatpush1.msra.mxu0 0.0
        %4315 = vmatprep.subr.mxu0 0.0
        %4316 = vmatpush1.msra.mxu0 0.0
        %4317 = vmatprep.subr.mxu0 0.0
        %4318 = vmatpush1.msra.mxu0 0.0
        %4319 = vmatprep.subr.mxu0 0.0
        %4320 = vmatpush1.msra.mxu0 0.0
        %4321 = vmatprep.subr.mxu0 0.0
        %4322 = vmatpush1.msra.mxu0 0.0
        %4323 = vmatprep.subr.mxu0 0.0
        %4324 = vmatpush1.msra.mxu0 0.0
        %4325 = vmatprep.subr.mxu0 0.0
        %4326 = vmatpush1.msra.mxu0 0.0
        %4327 = vmatprep.subr.mxu0 0.0
        %4328 = vmatpush1.msra.mxu0 0.0
        %4329 = vmatprep.subr.mxu0 0.0
        %4330 = vmatpush1.msra.mxu0 0.0
        %4331 = vmatprep.subr.mxu0 0.0
        %4332 = vmatpush1.msra.mxu0 0.0
        %4333 = vmatprep.subr.mxu0 0.0
        %4334 = vmatpush1.msra.mxu0 0.0
        %4335 = vmatprep.subr.mxu0 0.0
        %4336 = vmatpush1.msra.mxu0 0.0
        %4337 = vmatprep.subr.mxu0 0.0
        %4338 = vmatpush1.msra.mxu0 0.0
        %4339 = vmatprep.subr.mxu0 0.0
        %4340 = vmatpush1.msra.mxu0 0.0
        %4341 = vmatprep.subr.mxu0 0.0
        %4342 = vmatpush1.msra.mxu0 0.0
        %4343 = vmatprep.subr.mxu0 0.0
        %4344 = vmatpush1.msra.mxu0 %v4311
        %4345 = vmatprep.subr.mxu0 0.0
        %4346 = vmatpush2.msra.mxu0 0.0
        %4347 = vmatprep.subr.mxu0 0.0
        %4348 = vmatpush2.msra.mxu0 0.0
        %4349 = vmatprep.subr.mxu0 0.0
        %4350 = vmatpush2.msra.mxu0 0.0
        %4351 = vmatprep.subr.mxu0 0.0
        %4352 = vmatpush2.msra.mxu0 0.0
        %4353 = vmatprep.subr.mxu0 0.0
        %4354 = vmatpush2.msra.mxu0 0.0
        %4355 = vmatprep.subr.mxu0 0.0
        %4356 = vmatpush2.msra.mxu0 0.0
        %4357 = vmatprep.subr.mxu0 0.0
        %4358 = vmatpush2.msra.mxu0 0.0
        %4359 = vmatprep.subr.mxu0 0.0
        %4360 = vmatpush2.msra.mxu0 0.0
        %4361 = vmatprep.subr.mxu0 0.0
        %4362 = vmatpush2.msra.mxu0 0.0
        %4363 = vmatprep.subr.mxu0 0.0
        %4364 = vmatpush2.msra.mxu0 0.0
        %4365 = vmatprep.subr.mxu0 0.0
        %4366 = vmatpush2.msra.mxu0 0.0
        %4367 = vmatprep.subr.mxu0 0.0
        %4368 = vmatpush2.msra.mxu0 0.0
        %4369 = vmatprep.subr.mxu0 0.0
        %4370 = vmatpush2.msra.mxu0 0.0
        %4371 = vmatprep.subr.mxu0 0.0
        %4372 = vmatpush2.msra.mxu0 0.0
        %4373 = vmatprep.subr.mxu0 0.0
        %4374 = vmatpush2.msra.mxu0 0.0
        %4375 = vmatprep.subr.mxu0 0.0
        %4376 = vmatpush2.msra.mxu0 0.0
        %4377 = vmatprep.mubr.f32.mxu0 0.0
        %4378 = vmatmul.mubr.f32.gmra.mxu0 %v3835
        %v4379 = vpop.f32.mrf.mxu0
        %v4380 = vadd.f32 0.0, %v4379
        %v4381 = vpop.f32.mrf.mxu0
        %4382 = vdwg.mxu0
        %v4383 = vmax.f32 %v4380, 0.0
        %v4384 = vadd.f32 %v4309, %v4383
        %4385 = vrot.lane.b32.xlu0 %v4158, 32
        %v4386 = vpop.permute.xlu0 %4385
        %4388 = vmatprep.subr.mxu0 0.0
        %4389 = vmatpush1.msra.mxu0 0.0
        %4390 = vmatprep.subr.mxu0 0.0
        %4391 = vmatpush1.msra.mxu0 0.0
        %4392 = vmatprep.subr.mxu0 0.0
        %4393 = vmatpush1.msra.mxu0 0.0
        %4394 = vmatprep.subr.mxu0 0.0
        %4395 = vmatpush1.msra.mxu0 0.0
        %4396 = vmatprep.subr.mxu0 0.0
        %4397 = vmatpush1.msra.mxu0 0.0
        %4398 = vmatprep.subr.mxu0 0.0
        %4399 = vmatpush1.msra.mxu0 0.0
        %4400 = vmatprep.subr.mxu0 0.0
        %4401 = vmatpush1.msra.mxu0 0.0
        %4402 = vmatprep.subr.mxu0 0.0
        %4403 = vmatpush1.msra.mxu0 0.0
        %4404 = vmatprep.subr.mxu0 0.0
        %4405 = vmatpush1.msra.mxu0 0.0
        %4406 = vmatprep.subr.mxu0 0.0
        %4407 = vmatpush1.msra.mxu0 0.0
        %4408 = vmatprep.subr.mxu0 0.0
        %4409 = vmatpush1.msra.mxu0 0.0
        %4410 = vmatprep.subr.mxu0 0.0
        %4411 = vmatpush1.msra.mxu0 0.0
        %4412 = vmatprep.subr.mxu0 0.0
        %4413 = vmatpush1.msra.mxu0 0.0
        %4414 = vmatprep.subr.mxu0 0.0
        %4415 = vmatpush1.msra.mxu0 0.0
        %4416 = vmatprep.subr.mxu0 0.0
        %4417 = vmatpush1.msra.mxu0 0.0
        %4418 = vmatprep.subr.mxu0 0.0
        %4419 = vmatpush1.msra.mxu0 %v4386
        %4420 = vmatprep.subr.mxu0 0.0
        %4421 = vmatpush2.msra.mxu0 0.0
        %4422 = vmatprep.subr.mxu0 0.0
        %4423 = vmatpush2.msra.mxu0 0.0
        %4424 = vmatprep.subr.mxu0 0.0
        %4425 = vmatpush2.msra.mxu0 0.0
        %4426 = vmatprep.subr.mxu0 0.0
        %4427 = vmatpush2.msra.mxu0 0.0
        %4428 = vmatprep.subr.mxu0 0.0
        %4429 = vmatpush2.msra.mxu0 0.0
        %4430 = vmatprep.subr.mxu0 0.0
        %4431 = vmatpush2.msra.mxu0 0.0
        %4432 = vmatprep.subr.mxu0 0.0
        %4433 = vmatpush2.msra.mxu0 0.0
        %4434 = vmatprep.subr.mxu0 0.0
        %4435 = vmatpush2.msra.mxu0 0.0
        %4436 = vmatprep.subr.mxu0 0.0
        %4437 = vmatpush2.msra.mxu0 0.0
        %4438 = vmatprep.subr.mxu0 0.0
        %4439 = vmatpush2.msra.mxu0 0.0
        %4440 = vmatprep.subr.mxu0 0.0
        %4441 = vmatpush2.msra.mxu0 0.0
        %4442 = vmatprep.subr.mxu0 0.0
        %4443 = vmatpush2.msra.mxu0 0.0
        %4444 = vmatprep.subr.mxu0 0.0
        %4445 = vmatpush2.msra.mxu0 0.0
        %4446 = vmatprep.subr.mxu0 0.0
        %4447 = vmatpush2.msra.mxu0 0.0
        %4448 = vmatprep.subr.mxu0 0.0
        %4449 = vmatpush2.msra.mxu0 0.0
        %4450 = vmatprep.subr.mxu0 0.0
        %4451 = vmatpush2.msra.mxu0 0.0
        %4452 = vmatprep.mubr.f32.mxu0 0.0
        %4453 = vmatmul.mubr.f32.gmra.mxu0 %v3913
        %v4454 = vpop.f32.mrf.mxu0
        %v4455 = vadd.f32 0.0, %v4454
        %v4456 = vpop.f32.mrf.mxu0
        %4457 = vdwg.mxu0
        %v4458 = vmax.f32 %v4455, 0.0
        %v4459 = vadd.f32 %v4384, %v4458
        %4460 = vmatprep.subr.mxu0 0.0
        %4461 = vmatpush1.msra.mxu0 0.0
        %4462 = vmatprep.subr.mxu0 0.0
        %4463 = vmatpush1.msra.mxu0 0.0
        %4464 = vmatprep.subr.mxu0 0.0
        %4465 = vmatpush1.msra.mxu0 0.0
        %4466 = vmatprep.subr.mxu0 0.0
        %4467 = vmatpush1.msra.mxu0 0.0
        %4468 = vmatprep.subr.mxu0 0.0
        %4469 = vmatpush1.msra.mxu0 0.0
        %4470 = vmatprep.subr.mxu0 0.0
        %4471 = vmatpush1.msra.mxu0 0.0
        %4472 = vmatprep.subr.mxu0 0.0
        %4473 = vmatpush1.msra.mxu0 0.0
        %4474 = vmatprep.subr.mxu0 0.0
        %4475 = vmatpush1.msra.mxu0 0.0
        %4476 = vmatprep.subr.mxu0 0.0
        %4477 = vmatpush1.msra.mxu0 0.0
        %4478 = vmatprep.subr.mxu0 0.0
        %4479 = vmatpush1.msra.mxu0 0.0
        %4480 = vmatprep.subr.mxu0 0.0
        %4481 = vmatpush1.msra.mxu0 0.0
        %4482 = vmatprep.subr.mxu0 0.0
        %4483 = vmatpush1.msra.mxu0 0.0
        %4484 = vmatprep.subr.mxu0 0.0
        %4485 = vmatpush1.msra.mxu0 0.0
        %4486 = vmatprep.subr.mxu0 0.0
        %4487 = vmatpush1.msra.mxu0 0.0
        %4488 = vmatprep.subr.mxu0 0.0
        %4489 = vmatpush1.msra.mxu0 0.0
        %4490 = vmatprep.subr.mxu0 0.0
        %4491 = vmatpush1.msra.mxu0 %v4160
        %4492 = vmatprep.subr.mxu0 0.0
        %4493 = vmatpush2.msra.mxu0 0.0
        %4494 = vmatprep.subr.mxu0 0.0
        %4495 = vmatpush2.msra.mxu0 0.0
        %4496 = vmatprep.subr.mxu0 0.0
        %4497 = vmatpush2.msra.mxu0 0.0
        %4498 = vmatprep.subr.mxu0 0.0
        %4499 = vmatpush2.msra.mxu0 0.0
        %4500 = vmatprep.subr.mxu0 0.0
        %4501 = vmatpush2.msra.mxu0 0.0
        %4502 = vmatprep.subr.mxu0 0.0
        %4503 = vmatpush2.msra.mxu0 0.0
        %4504 = vmatprep.subr.mxu0 0.0
        %4505 = vmatpush2.msra.mxu0 0.0
        %4506 = vmatprep.subr.mxu0 0.0
        %4507 = vmatpush2.msra.mxu0 0.0
        %4508 = vmatprep.subr.mxu0 0.0
        %4509 = vmatpush2.msra.mxu0 0.0
        %4510 = vmatprep.subr.mxu0 0.0
        %4511 = vmatpush2.msra.mxu0 0.0
        %4512 = vmatprep.subr.mxu0 0.0
        %4513 = vmatpush2.msra.mxu0 0.0
        %4514 = vmatprep.subr.mxu0 0.0
        %4515 = vmatpush2.msra.mxu0 0.0
        %4516 = vmatprep.subr.mxu0 0.0
        %4517 = vmatpush2.msra.mxu0 0.0
        %4518 = vmatprep.subr.mxu0 0.0
        %4519 = vmatpush2.msra.mxu0 0.0
        %4520 = vmatprep.subr.mxu0 0.0
        %4521 = vmatpush2.msra.mxu0 0.0
        %4522 = vmatprep.subr.mxu0 0.0
        %4523 = vmatpush2.msra.mxu0 0.0
        %4524 = vmatprep.mubr.f32.mxu0 0.0
        %4525 = vmatmul.mubr.f32.gmra.mxu0 %v3988
        %v4526 = vpop.f32.mrf.mxu0
        %v4527 = vadd.f32 0.0, %v4526
        %v4528 = vpop.f32.mrf.mxu0
        %4529 = vdwg.mxu0
        %v4530 = vmax.f32 %v4527, 0.0
        %v4531 = vadd.f32 %v4459, %v4530
        %v4532 = vmax.f32 %v4531, 0.0
        %v4533 = vmul.f32 %v4532, %v4063
        %v4534 = vsel %vm639, %v4533, 0.0
        %4535 = vadd.xlane.f32.xlu0 %v4534
        %v4536 = vpop.xlane.xlu0 %4535
        %v4537 = vmul.f32 %v4536, %v4068
        %v4538 = vsub.f32 %v4533, %v4537
        %v4539 = vmul.f32 %v4538, %v4538
        %v4540 = vsel %vm639, %v4539, 0.0
        %4541 = vadd.xlane.f32.xlu0 %v4540
        %v4542 = vpop.xlane.xlu0 %4541
        %v4543 = vmul.f32 %v4542, %v4068
        %v4544 = vadd.f32 %v4543, 1e-05
        %v4545 = vrsqrt.pop %v4544
        %v4546 = vmul.f32 %v4538, %v4545
        %4547 = vst.msk [vmem:[%s605] sm:$0xff] %vm639, %v4546
        %p4548 = scmp.lt.s32.totalorder %s31, 1
        %s4549 = scalar_select %p4548, %s31, 1
        %s4550 = smul.addr %s4549, 8
        %s4551 = scalar_lea.vmem %s12, %s4550
        %p4552 = scmp.lt.s32.totalorder %s31, 1
        %s4553 = scalar_select %p4552, %s31, 1
        %s4554 = smul.addr %s4553, 5
        %s4555 = smul.addr %s4554, 8
        %s4556 = scalar_lea.vmem %s13, %s4555
        %p4557 = scmp.lt.s32.totalorder %s31, 1
        %s4558 = scalar_select %p4557, %s31, 1
        %s4559 = smul.addr %s4558, 5
        %s4560 = smul.addr %s4559, 8
        %s4561 = scalar_lea.vmem %s14, %s4560
        // Predicated region
        $region101: #{token_pair_modeling_forward.2} parent=67 // pred_check
          %p4562 = pneg %p311
        $region102: #{token_pair_modeling_forward.2} parent=67 // pred_check_branch
          %4564 = sbr.rel (%p4562) target = $region104
        $region103: #{token_pair_modeling_forward.2} parent=67 // pred_region
          _
        $region104: #{token_pair_modeling_forward.2} parent=67 // pred_fallthru
          _
        // Predicated region
        $region105: #{token_pair_modeling_forward.2} parent=67 // pred_check
          %p4565 = pneg %p337
        $region106: #{token_pair_modeling_forward.2} parent=67 // pred_check_branch
          %4567 = sbr.rel (%p4565) target = $region108
        $region107: #{token_pair_modeling_forward.2} parent=67 // pred_region
          _
        $region108: #{token_pair_modeling_forward.2} parent=67 // pred_fallthru
          _
        // Predicated region
        $region109: #{token_pair_modeling_forward.2} parent=67 // pred_check
          %p4568 = pneg %p363
        $region110: #{token_pair_modeling_forward.2} parent=67 // pred_check_branch
          %4570 = sbr.rel (%p4568) target = $region112
        $region111: #{token_pair_modeling_forward.2} parent=67 // pred_region
          _
        $region112: #{token_pair_modeling_forward.2} parent=67 // pred_fallthru
          _
      $region68: #{token_pair_modeling_forward.2} parent=5 // pred_fallthru
        _
      %p4571 = scmp.le.s32.totalorder 2, %s26
      // Predicated region
      $region113: #{token_pair_modeling_forward.2} parent=5 // pred_check
        %p4572 = pneg %p4571
      $region114: #{token_pair_modeling_forward.2} parent=5 // pred_check_branch
        %4574 = sbr.rel (%p4572) target = $region116
      $region115: #{token_pair_modeling_forward.2} parent=5 // pred_region
        %s4575 = ssub.s32 %s26, 2
        // Predicated region
        $region117: #{token_pair_modeling_forward.2} parent=115 // pred_check
          %p4576 = pneg %p317
        $region118: #{token_pair_modeling_forward.2} parent=115 // pred_check_branch
          %4578 = sbr.rel (%p4576) target = $region120
        $region119: #{token_pair_modeling_forward.2} parent=115 // pred_region
          %p4579 = scmp.lt.s32.totalorder %s32, 1
          %s4580 = scalar_select %p4579, %s32, 1
          %s4581 = smul.addr %s4580, 8
          %s4582 = scalar_lea.vmem %s12, %s4581
        $region120: #{token_pair_modeling_forward.2} parent=115 // pred_fallthru
          _
        // Predicated region
        $region121: #{token_pair_modeling_forward.2} parent=115 // pred_check
          %p4583 = pneg %p343
        $region122: #{token_pair_modeling_forward.2} parent=115 // pred_check_branch
          %4585 = sbr.rel (%p4583) target = $region124
        $region123: #{token_pair_modeling_forward.2} parent=115 // pred_region
          %p4586 = scmp.lt.s32.totalorder %s32, 1
          %s4587 = scalar_select %p4586, %s32, 1
          %s4588 = smul.addr %s4587, 5
          %s4589 = smul.addr %s4588, 8
          %s4590 = scalar_lea.vmem %s13, %s4589
        $region124: #{token_pair_modeling_forward.2} parent=115 // pred_fallthru
          _
        // Predicated region
        $region125: #{token_pair_modeling_forward.2} parent=115 // pred_check
          %p4591 = pneg %p369
        $region126: #{token_pair_modeling_forward.2} parent=115 // pred_check_branch
          %4593 = sbr.rel (%p4591) target = $region128
        $region127: #{token_pair_modeling_forward.2} parent=115 // pred_region
          %p4594 = scmp.lt.s32.totalorder %s32, 1
          %s4595 = scalar_select %p4594, %s32, 1
          %s4596 = smul.addr %s4595, 5
          %s4597 = smul.addr %s4596, 8
          %s4598 = scalar_lea.vmem %s14, %s4597
        $region128: #{token_pair_modeling_forward.2} parent=115 // pred_fallthru
          _
      $region116: #{token_pair_modeling_forward.2} parent=5 // pred_fallthru
        _
    $region6: #{token_pair_modeling_forward.2} parent=1 // loop_footer
      %s30 = sadd.s32 1, %s26
    $region7: #{token_pair_modeling_forward.2} parent=1 // loop_footer_branch
      %25 = sbr.rel target = $region3
    $region8: #{token_pair_modeling_forward.2} parent=1 // loop_exit
      _
    %4599 = vsyncpa [#allocation3], 1
    %s4600 = scalar_lea.sflag [#allocation3], 1
    %4601 = vsyncpa %s4600, 1
    %4602 = vsyncpa [#allocation5], 1
    %4603 = vsyncpa [#allocation8], 1
    %4604 = vsyncpa [#allocation11], 1
    %4605 = vsyncpa [#allocation14], 1

</llo_original>
